<compile_context>
chip_gen: v5e
topology: v5e:2x2
jax: 0.10.0
libtpu: 0.0.40
codegen_flags: <defaults>
</compile_context>

<pallas_src>
import numpy as np

import jax
import jax.numpy as jnp
from jax.experimental import pallas as pl
from jax.experimental.pallas import tpu as pltpu


# ------------------------------ static sizes ------------------------------ #
_N = 2          # batch
_H0 = 80        # input spatial
_OH1, _OH2, _OH3, _OH4 = 38, 17, 7, 3   # conv output spatial sizes

_CONV_CFG = [  # (in_ch, out_ch, kernel, stride)
    (3, 24, 5, 2),
    (24, 32, 5, 2),
    (32, 64, 5, 2),
    (64, 64, 3, 2),
    (64, 64, 3, 1),
]
_STRIDES = tuple(c[3] for c in _CONV_CFG)

# conv1 matmul geometry (call 1)
_M1 = _N * _OH1 * _OH1          # 2888 output rows
_M1_PAD = 2912                  # 2 tiles of 1456 (multiple of 16 for bf16)
_TM1 = _M1_PAD // 2
_K1 = 75                        # 5*5*3, NOT padded to 128 (full-dim block)
_C1 = 24

# fused tail geometry (call 2)
_QH = 9                         # ceil(17 / 2): parity-padded conv2 half-extent
_BLK = _QH * _N * _QH           # 162 rows per (oh2%2, ow2%2) parity block
_R2 = 4 * _BLK                  # 648 parity-packed conv2 output rows
_K2 = 600                       # 5*5*24 conv2 contraction (unpadded)
_C2 = 32
_R3 = _OH3 * _N * _QH           # 126 conv3 acc rows: oh3*18 + n*9 + ow3
_R4 = 9 * _N                    # 18 conv4 rows: (oh4*3+ow4)*2 + n

assert _R3 == 126 and _BLK == 162 and _R2 == 648


# --------------------------- selection constant ---------------------------- #
def _build_sel4():
    """0/1 matrix gathering conv3 rows into conv4 accumulation order.

    g4 row (t4*18 + (oh4*3+ow4)*2 + n) = conv3 output at (n, 2*oh4+i4, 2*ow4+j4)
    stored at y3 row h3*18 + n*9 + w3.  Junk y3 rows (col%9 in {7,8}) are never
    selected because w3 = 2*ow4 + j4 <= 6."""
    sel = np.zeros((9 * _R4, _R3), np.float32)
    for t4 in range(9):
        i4, j4 = divmod(t4, 3)
        for s4 in range(9):
            oh4, ow4 = divmod(s4, 3)
            h3 = 2 * oh4 + i4
            w3 = 2 * ow4 + j4
            for n in range(_N):
                sel[t4 * _R4 + s4 * _N + n, h3 * (_N * _QH) + n * _QH + w3] = 1.0
    return sel


# ------------------------------- parameters -------------------------------- #
def init_params(key):
    """PyTorch-default-style uniform(-1/sqrt(fan_in), +) init, torch layouts."""
    n_keys = 2 * len(_CONV_CFG) + 4
    keys = list(jax.random.split(key, n_keys))
    params = {"convs": []}
    k = 0
    for (cin, cout, ksz, _s) in _CONV_CFG:
        bound = 1.0 / float(np.sqrt(cin * ksz * ksz))
        w = jax.random.uniform(keys[k], (cout, cin, ksz, ksz), jnp.float32,
                               -bound, bound)
        b = jax.random.uniform(keys[k + 1], (cout,), jnp.float32, -bound, bound)
        params["convs"].append((w, b))
        k += 2
    for name, (kin, kout) in (("fc1", (1, 64)), ("fc2", (64, 64))):
        bound = 1.0 / float(np.sqrt(kin))
        params[f"{name}_w"] = jax.random.uniform(
            keys[k], (kin, kout), jnp.float32, -bound, bound)
        params[f"{name}_b"] = jax.random.uniform(
            keys[k + 1], (kout,), jnp.float32, -bound, bound)
        k += 2
    return params


def prepare_params(params):
    """One-time transform of torch-layout params into kernel-ready arrays."""
    (w1, b1), (w2, b2), (w3, b3), (w4, b4), (w5, b5) = params["convs"]

    def conv_mat(w):  # (Cout,Cin,kh,kw) -> (kh*kw*Cin, Cout)
        co, ci, kh, kw = w.shape
        return jnp.transpose(w, (2, 3, 1, 0)).reshape(kh * kw * ci, co)

    def conv_stack(w):  # (Cout,Cin,kh,kw) -> (kh*kw, Cin, Cout)
        co, ci, kh, kw = w.shape
        return jnp.transpose(w, (2, 3, 1, 0)).reshape(kh * kw, ci, co).astype(
            jnp.float32)

    return dict(
        w1=conv_mat(w1).astype(jnp.bfloat16),                     # (75, 24)
        b1=b1.reshape(1, _C1).astype(jnp.float32),
        w2=conv_mat(w2).astype(jnp.bfloat16),                     # (600, 32)
        b2=b2.reshape(1, _C2).astype(jnp.float32),
        w3=conv_stack(w3), b3=b3.reshape(1, 64).astype(jnp.float32),
        w4=conv_stack(w4), b4=b4.reshape(1, 64).astype(jnp.float32),
        w5=conv_stack(w5), b5=b5.reshape(1, 64).astype(jnp.float32),
        sel4=jnp.asarray(_build_sel4()),                          # (162, 126)
        fc1_w=params["fc1_w"].reshape(1, 64).astype(jnp.float32),
        fc1_b=params["fc1_b"].reshape(1, 64).astype(jnp.float32),
        fc2_w=params["fc2_w"].astype(jnp.float32),
        fc2_b=params["fc2_b"].reshape(1, 64).astype(jnp.float32),
    )


# --------------------------------- im2col ---------------------------------- #
def _im2col(x_nhwc, kh, kw, stride):
    """Patch extraction (plain-JAX wrapper glue). ((N*oh*ow, kh*kw*C), oh, ow)."""
    N, H, W, C = x_nhwc.shape
    oh = (H - kh) // stride + 1
    ow = (W - kw) // stride + 1
    cols = []
    for i in range(kh):
        for j in range(kw):
            cols.append(
                jax.lax.slice(
                    x_nhwc,
                    (0, i, j, 0),
                    (N, i + (oh - 1) * stride + 1, j + (ow - 1) * stride + 1, C),
                    (1, stride, stride, 1)))
    p = jnp.stack(cols, axis=3)  # (N, oh, ow, kh*kw, C)
    return p.reshape(N * oh * ow, kh * kw * C), oh, ow


# ----------------------------- call 1: conv1 ------------------------------- #
def _conv1_kernel(x_ref, w_ref, b_ref, o_ref):
    acc = jnp.dot(x_ref[...], w_ref[...], preferred_element_type=jnp.float32)
    o_ref[...] = jnp.maximum(acc + b_ref[...], 0.0).astype(o_ref.dtype)


def _conv1_call(patches, w, b):
    return pl.pallas_call(
        _conv1_kernel,
        out_shape=jax.ShapeDtypeStruct((_M1_PAD, _C1), jnp.bfloat16),
        grid=(_M1_PAD // _TM1,),
        in_specs=[
            pl.BlockSpec((_TM1, _K1), lambda i: (i, 0)),
            pl.BlockSpec((_K1, _C1), lambda i: (0, 0)),
            pl.BlockSpec((1, _C1), lambda i: (0, 0)),
        ],
        out_specs=pl.BlockSpec((_TM1, _C1), lambda i: (i, 0)),
        compiler_params=pltpu.CompilerParams(dimension_semantics=("parallel",)),
    )(patches, w, b)


# -------------- call 2: conv2..conv5 + speed extractor + concat ------------ #
def _tail_kernel(p_ref, w2_ref, b2_ref, w3_ref, b3_ref, sel4_ref, w4_ref,
                 b4_ref, w5_ref, b5_ref, f1w_ref, f1b_ref, f2w_ref, f2b_ref,
                 spd_ref, o_ref):
    # Speed extractor first (independent of the image path; Dropout == identity
    # in eval mode).  fc1 has K=1 so it is a VPU broadcast multiply-add.
    h = jnp.maximum(spd_ref[...] * f1w_ref[...] + f1b_ref[...], 0.0)
    h = jnp.dot(h, f2w_ref[...], preferred_element_type=jnp.float32)
    h = jnp.maximum(h + f2b_ref[...], 0.0)                         # (2, 64)
    o_ref[:, 64:128] = h

    # conv2 ONCE over the 648 de-duplicated, parity-packed patch rows.
    # Padded rows become relu(b2) garbage but only land in junk acc rows below.
    y2 = jnp.dot(p_ref[...], w2_ref[...], preferred_element_type=jnp.float32)
    y2 = jnp.maximum(y2 + b2_ref[...], 0.0)                        # (648, 32)

    # conv3: thanks to the parity row layout, each of the 25 kernel positions
    # is ONE contiguous 126-row slice of y2.  acc3 row q = oh3*18 + n*9 + ow3;
    # rows with q % 9 in {7, 8} are junk and never selected by sel4.
    acc3 = jnp.zeros((_R3, 64), jnp.float32)
    for t3 in range(25):
        i3, j3 = divmod(t3, 5)
        start = (((i3 % 2) * 2 + (j3 % 2)) * _BLK
                 + (i3 // 2) * (_N * _QH) + (j3 // 2))
        acc3 = acc3 + jnp.dot(y2[start:start + _R3, :], w3_ref[t3],
                              preferred_element_type=jnp.float32)
    y3 = jnp.maximum(acc3 + b3_ref[...], 0.0)                      # (126, 64)

    # conv4: ONE 0/1 selection matmul gathers all 9 kernel positions at once,
    # then 9 small contractions against the stacked weights.
    g4 = jnp.dot(sel4_ref[...], y3, preferred_element_type=jnp.float32)  # (162,64)
    acc4 = jnp.zeros((_R4, 64), jnp.float32)
    for t4 in range(9):
        acc4 = acc4 + jnp.dot(g4[t4 * _R4:(t4 + 1) * _R4, :], w4_ref[t4],
                              preferred_element_type=jnp.float32)
    y4 = jnp.maximum(acc4 + b4_ref[...], 0.0)                      # (18, 64)

    # conv5: output is 1x1 spatially -> full 3x3 contraction; y4 rows are
    # (spatial, n) so each position is a contiguous 2-row slice.
    acc5 = jnp.zeros((_N, 64), jnp.float32)
    for t5 in range(9):
        acc5 = acc5 + jnp.dot(y4[t5 * _N:(t5 + 1) * _N, :], w5_ref[t5],
                              preferred_element_type=jnp.float32)
    img_feat = jnp.maximum(acc5 + b5_ref[...], 0.0)                # (2, 64)

    # torch.cat([img_perception, spd_perception], dim=-1)
    o_ref[:, 0:64] = img_feat


def _tail_call(p2, prep, speed):
    def fa(shape):  # full-array block, single grid step
        return pl.BlockSpec(shape, lambda i, _s=shape: (0,) * len(_s))

    return pl.pallas_call(
        _tail_kernel,
        out_shape=jax.ShapeDtypeStruct((_N, 128), jnp.float32),
        grid=(1,),
        in_specs=[
            fa((_R2, _K2)),        # conv2 patches (parity layout)
            fa((_K2, _C2)),        # w2
            fa((1, _C2)),          # b2
            fa((25, _C2, 64)),     # w3 stack
            fa((1, 64)),           # b3
            fa((9 * _R4, _R3)),    # sel4
            fa((9, 64, 64)),       # w4 stack
            fa((1, 64)),           # b4
            fa((9, 64, 64)),       # w5 stack
            fa((1, 64)),           # b5
            fa((1, 64)),           # fc1_w
            fa((1, 64)),           # fc1_b
            fa((64, 64)),          # fc2_w
            fa((1, 64)),           # fc2_b
            fa((_N, 1)),           # speed
        ],
        out_specs=fa((_N, 128)),
        compiler_params=pltpu.CompilerParams(dimension_semantics=("arbitrary",)),
    )(p2, prep["w2"], prep["b2"], prep["w3"], prep["b3"], prep["sel4"],
      prep["w4"], prep["b4"], prep["w5"], prep["b5"], prep["fc1_w"],
      prep["fc1_b"], prep["fc2_w"], prep["fc2_b"], speed)


# --------------------------------- forward --------------------------------- #
def perception_forward(prep, img_nchw, speed):
    # conv1: im2col of the raw image in the wrapper, fused matmul kernel.
    x = jnp.transpose(img_nchw, (0, 2, 3, 1)).astype(jnp.float32)   # NHWC
    p1, _, _ = _im2col(x, 5, 5, 2)                                  # (2888, 75)
    p1 = jnp.pad(p1, ((0, _M1_PAD - _M1), (0, 0))).astype(jnp.bfloat16)
    y1 = _conv1_call(p1, prep["w1"], prep["b1"])                    # (2912, 24)
    y1 = y1[:_M1].reshape(_N, _OH1, _OH1, _C1)                      # conv1 NHWC

    # De-duplicated conv2 patches (one row per conv2 output position), packed
    # into the parity layout the kernel's conv3 slices expect:
    #   row = (oh2%2*2 + ow2%2)*162 + (oh2//2)*18 + n*9 + (ow2//2)
    p2, _, _ = _im2col(y1, 5, 5, 2)                                 # (578, 600)
    p2 = p2.reshape(_N, _OH2, _OH2, _K2)
    p2 = jnp.pad(p2, ((0, 0), (0, 1), (0, 1), (0, 0)))              # (2,18,18,600)
    p2 = p2.reshape(_N, _QH, 2, _QH, 2, _K2)                        # n,hq,hp,wq,wp,k
    p2 = jnp.transpose(p2, (2, 4, 1, 0, 3, 5)).reshape(_R2, _K2)    # (648, 600)

    # conv2..conv5 + speed extractor + concat, fully fused in one kernel.
    return _tail_call(p2, prep, speed.astype(jnp.float32))          # (2, 128)


# --------------------------- pure-JAX reference ---------------------------- #
def _reference_forward(params, img, speed):
    dn = ("NHWC", "OIHW", "NHWC")
    x = jnp.transpose(img, (0, 2, 3, 1))
    for idx, (w, b) in enumerate(params["convs"]):
        if idx < 2:   # mirror the kernels' bf16 operands for the big layers
            lhs, rhs = x.astype(jnp.bfloat16), w.astype(jnp.bfloat16)
        else:
            lhs, rhs = x.astype(jnp.float32), w.astype(jnp.float32)
        s = _STRIDES[idx]
        x = jax.lax.conv_general_dilated(
            lhs, rhs, (s, s), "VALID", dimension_numbers=dn,
            preferred_element_type=jnp.float32)
        x = jnp.maximum(x + b.reshape(1, 1, 1, -1), 0.0)
        if idx == 0:
            x = x.astype(jnp.bfloat16)   # conv1 activations stored as bf16
    img_feat = x.reshape(x.shape[0], -1).astype(jnp.float32)        # (N, 64)
    h = jnp.maximum(speed @ params["fc1_w"] + params["fc1_b"], 0.0)
    h = jnp.maximum(h @ params["fc2_w"] + params["fc2_b"], 0.0)
    return jnp.concatenate([img_feat, h], axis=-1)


# ----------------------------------- main ----------------------------------- #
if __name__ == "__main__":
    key = jax.random.PRNGKey(0)
    k_param, k_img, k_spd = jax.random.split(key, 3)

    params = init_params(k_param)
    prep = prepare_params(params)

    img = jax.random.normal(k_img, (_N, 3, _H0, _H0), jnp.float32)
    speed = jax.random.normal(k_spd, (_N, 1), jnp.float32)

    fwd = jax.jit(perception_forward)
    out = jax.block_until_ready(fwd(prep, img, speed))
    assert out.shape == (_N, 64 + 64), out.shape

    ref = jax.block_until_ready(jax.jit(_reference_forward)(params, img, speed))
    np.testing.assert_allclose(np.asarray(out), np.asarray(ref),
                               rtol=2e-2, atol=2e-2)

    print("KERNEL_OK")
</pallas_src>

<mosaic_0001>
module attributes {stable_mosaic.version = 11 : i64} {
  func.func @_conv1_kernel(%arg0: i32, %arg1: memref<1456x75xbf16, #tpu.memory_space<vmem>>, %arg2: memref<75x24xbf16, #tpu.memory_space<vmem>>, %arg3: memref<1x24xf32, #tpu.memory_space<vmem>>, %arg4: memref<1456x24xbf16, #tpu.memory_space<vmem>>) attributes {dimension_semantics = [#tpu.dimension_semantics<parallel>], iteration_bounds = array<i64: 2>, scalar_prefetch = 0 : i64, scratch_operands = 0 : i64, tpu.core_type = #tpu.core_type<tc>, window_params = [{transform_indices = @transform_0, window_bounds = array<i64: 1456, 75>}, {pipeline_mode = #tpu.pipeline_mode<synchronous>, transform_indices = @transform_1, window_bounds = array<i64: 75, 24>}, {pipeline_mode = #tpu.pipeline_mode<synchronous>, transform_indices = @transform_2, window_bounds = array<i64: 1, 24>}, {transform_indices = @transform_3, window_bounds = array<i64: 1456, 24>}]} {
    %c0 = arith.constant 0 : index
    %c0_0 = arith.constant 0 : index
    %0 = vector.load %arg1[%c0, %c0_0] : memref<1456x75xbf16, #tpu.memory_space<vmem>>, vector<1456x75xbf16>
    %c0_1 = arith.constant 0 : index
    %c0_2 = arith.constant 0 : index
    %1 = vector.load %arg2[%c0_1, %c0_2] : memref<75x24xbf16, #tpu.memory_space<vmem>>, vector<75x24xbf16>
    %cst = arith.constant dense<0.000000e+00> : vector<1456x24xf32>
    %2 = tpu.matmul %0, %1, %cst {dimension_numbers = #tpu.dot_dimension_numbers<[1], [0], [0], [1], [0, 0, 1, 1], [], []>} : vector<1456x75xbf16>, vector<75x24xbf16>, vector<1456x24xf32> -> vector<1456x24xf32>
    %c0_3 = arith.constant 0 : index
    %c0_4 = arith.constant 0 : index
    %3 = vector.load %arg3[%c0_3, %c0_4] : memref<1x24xf32, #tpu.memory_space<vmem>>, vector<1x24xf32>
    %4 = vector.broadcast %3 : vector<1x24xf32> to vector<1456x24xf32>
    %5 = arith.addf %2, %4 : vector<1456x24xf32>
    %cst_5 = arith.constant 0.000000e+00 : f32
    %6 = vector.broadcast %cst_5 : f32 to vector<1456x24xf32>
    %7 = arith.maximumf %5, %6 : vector<1456x24xf32>
    %8 = arith.truncf %7 : vector<1456x24xf32> to vector<1456x24xbf16>
    %c0_6 = arith.constant 0 : index
    %c0_7 = arith.constant 0 : index
    %9 = vector.load %arg4[%c0_6, %c0_7] : memref<1456x24xbf16, #tpu.memory_space<vmem>>, vector<1456x24xbf16>
    tpu.vector_store %arg4[%c0_6, %c0_7], %8 {strides = array<i32>} : memref<1456x24xbf16, #tpu.memory_space<vmem>>, vector<1456x24xbf16>,
    return
  }
  func.func @transform_0(%arg0: i32) -> (i32, i32) {
    %c0_i32 = arith.constant 0 : i32
    %c0_i32_0 = arith.constant 0 : i32
    return %arg0, %c0_i32 : i32, i32
  }
  func.func @transform_1(%arg0: i32) -> (i32, i32) {
    %c0_i32 = arith.constant 0 : i32
    %c0_i32_0 = arith.constant 0 : i32
    %c0_i32_1 = arith.constant 0 : i32
    return %c0_i32, %c0_i32_0 : i32, i32
  }
  func.func @transform_2(%arg0: i32) -> (i32, i32) {
    %c0_i32 = arith.constant 0 : i32
    %c0_i32_0 = arith.constant 0 : i32
    %c0_i32_1 = arith.constant 0 : i32
    return %c0_i32, %c0_i32_0 : i32, i32
  }
  func.func @transform_3(%arg0: i32) -> (i32, i32) {
    %c0_i32 = arith.constant 0 : i32
    %c0_i32_0 = arith.constant 0 : i32
    return %arg0, %c0_i32 : i32, i32
  }
}

module attributes {stable_mosaic.version = 11 : i64} {
  func.func @_tail_kernel(%arg0: i32, %arg1: memref<648x600xbf16, #tpu.memory_space<vmem>>, %arg2: memref<600x32xbf16, #tpu.memory_space<vmem>>, %arg3: memref<1x32xf32, #tpu.memory_space<vmem>>, %arg4: memref<25x32x64xf32, #tpu.memory_space<vmem>>, %arg5: memref<1x64xf32, #tpu.memory_space<vmem>>, %arg6: memref<162x126xf32, #tpu.memory_space<vmem>>, %arg7: memref<9x64x64xf32, #tpu.memory_space<vmem>>, %arg8: memref<1x64xf32, #tpu.memory_space<vmem>>, %arg9: memref<9x64x64xf32, #tpu.memory_space<vmem>>, %arg10: memref<1x64xf32, #tpu.memory_space<vmem>>, %arg11: memref<1x64xf32, #tpu.memory_space<vmem>>, %arg12: memref<1x64xf32, #tpu.memory_space<vmem>>, %arg13: memref<64x64xf32, #tpu.memory_space<vmem>>, %arg14: memref<1x64xf32, #tpu.memory_space<vmem>>, %arg15: memref<2x1xf32, #tpu.memory_space<vmem>>, %arg16: memref<2x128xf32, #tpu.memory_space<vmem>>) attributes {dimension_semantics = [#tpu.dimension_semantics<arbitrary>], iteration_bounds = array<i64: 1>, scalar_prefetch = 0 : i64, scratch_operands = 0 : i64, tpu.core_type = #tpu.core_type<tc>, window_params = [{pipeline_mode = #tpu.pipeline_mode<synchronous>, transform_indices = @transform_0, window_bounds = array<i64: 648, 600>}, {pipeline_mode = #tpu.pipeline_mode<synchronous>, transform_indices = @transform_1, window_bounds = array<i64: 600, 32>}, {pipeline_mode = #tpu.pipeline_mode<synchronous>, transform_indices = @transform_2, window_bounds = array<i64: 1, 32>}, {pipeline_mode = #tpu.pipeline_mode<synchronous>, transform_indices = @transform_3, window_bounds = array<i64: 25, 32, 64>}, {pipeline_mode = #tpu.pipeline_mode<synchronous>, transform_indices = @transform_4, window_bounds = array<i64: 1, 64>}, {pipeline_mode = #tpu.pipeline_mode<synchronous>, transform_indices = @transform_5, window_bounds = array<i64: 162, 126>}, {pipeline_mode = #tpu.pipeline_mode<synchronous>, transform_indices = @transform_6, window_bounds = array<i64: 9, 64, 64>}, {pipeline_mode = #tpu.pipeline_mode<synchronous>, transform_indices = @transform_7, window_bounds = array<i64: 1, 64>}, {pipeline_mode = #tpu.pipeline_mode<synchronous>, transform_indices = @transform_8, window_bounds = array<i64: 9, 64, 64>}, {pipeline_mode = #tpu.pipeline_mode<synchronous>, transform_indices = @transform_9, window_bounds = array<i64: 1, 64>}, {pipeline_mode = #tpu.pipeline_mode<synchronous>, transform_indices = @transform_10, window_bounds = array<i64: 1, 64>}, {pipeline_mode = #tpu.pipeline_mode<synchronous>, transform_indices = @transform_11, window_bounds = array<i64: 1, 64>}, {pipeline_mode = #tpu.pipeline_mode<synchronous>, transform_indices = @transform_12, window_bounds = array<i64: 64, 64>}, {pipeline_mode = #tpu.pipeline_mode<synchronous>, transform_indices = @transform_13, window_bounds = array<i64: 1, 64>}, {pipeline_mode = #tpu.pipeline_mode<synchronous>, transform_indices = @transform_14, window_bounds = array<i64: 2, 1>}, {pipeline_mode = #tpu.pipeline_mode<synchronous>, transform_indices = @transform_15, window_bounds = array<i64: 2, 128>}]} {
    %c0 = arith.constant 0 : index
    %c0_0 = arith.constant 0 : index
    %0 = vector.load %arg15[%c0, %c0_0] : memref<2x1xf32, #tpu.memory_space<vmem>>, vector<2x1xf32>
    %c0_1 = arith.constant 0 : index
    %c0_2 = arith.constant 0 : index
    %1 = vector.load %arg11[%c0_1, %c0_2] : memref<1x64xf32, #tpu.memory_space<vmem>>, vector<1x64xf32>
    %2 = vector.broadcast %0 : vector<2x1xf32> to vector<2x64xf32>
    %3 = vector.broadcast %1 : vector<1x64xf32> to vector<2x64xf32>
    %4 = arith.mulf %2, %3 : vector<2x64xf32>
    %c0_3 = arith.constant 0 : index
    %c0_4 = arith.constant 0 : index
    %5 = vector.load %arg12[%c0_3, %c0_4] : memref<1x64xf32, #tpu.memory_space<vmem>>, vector<1x64xf32>
    %6 = vector.broadcast %5 : vector<1x64xf32> to vector<2x64xf32>
    %7 = arith.addf %4, %6 : vector<2x64xf32>
    %cst = arith.constant 0.000000e+00 : f32
    %8 = vector.broadcast %cst : f32 to vector<2x64xf32>
    %9 = arith.maximumf %7, %8 : vector<2x64xf32>
    %c0_5 = arith.constant 0 : index
    %c0_6 = arith.constant 0 : index
    %10 = vector.load %arg13[%c0_5, %c0_6] : memref<64x64xf32, #tpu.memory_space<vmem>>, vector<64x64xf32>
    %cst_7 = arith.constant dense<0.000000e+00> : vector<2x64xf32>
    %11 = tpu.matmul %9, %10, %cst_7 {dimension_numbers = #tpu.dot_dimension_numbers<[1], [0], [0], [1], [0, 0, 1, 1], [], []>} : vector<2x64xf32>, vector<64x64xf32>, vector<2x64xf32> -> vector<2x64xf32>
    %c0_8 = arith.constant 0 : index
    %c0_9 = arith.constant 0 : index
    %12 = vector.load %arg14[%c0_8, %c0_9] : memref<1x64xf32, #tpu.memory_space<vmem>>, vector<1x64xf32>
    %13 = vector.broadcast %12 : vector<1x64xf32> to vector<2x64xf32>
    %14 = arith.addf %11, %13 : vector<2x64xf32>
    %cst_10 = arith.constant 0.000000e+00 : f32
    %15 = vector.broadcast %cst_10 : f32 to vector<2x64xf32>
    %16 = arith.maximumf %14, %15 : vector<2x64xf32>
    %c0_11 = arith.constant 0 : index
    %c64 = arith.constant 64 : index
    %17 = vector.load %arg16[%c0_11, %c64] : memref<2x128xf32, #tpu.memory_space<vmem>>, vector<2x64xf32>
    tpu.vector_store %arg16[%c0_11, %c64], %16 {strides = array<i32>} : memref<2x128xf32, #tpu.memory_space<vmem>>, vector<2x64xf32>,
    %c0_12 = arith.constant 0 : index
    %c0_13 = arith.constant 0 : index
    %18 = vector.load %arg1[%c0_12, %c0_13] : memref<648x600xbf16, #tpu.memory_space<vmem>>, vector<648x600xbf16>
    %c0_14 = arith.constant 0 : index
    %c0_15 = arith.constant 0 : index
    %19 = vector.load %arg2[%c0_14, %c0_15] : memref<600x32xbf16, #tpu.memory_space<vmem>>, vector<600x32xbf16>
    %cst_16 = arith.constant dense<0.000000e+00> : vector<648x32xf32>
    %20 = tpu.matmul %18, %19, %cst_16 {dimension_numbers = #tpu.dot_dimension_numbers<[1], [0], [0], [1], [0, 0, 1, 1], [], []>} : vector<648x600xbf16>, vector<600x32xbf16>, vector<648x32xf32> -> vector<648x32xf32>
    %c0_17 = arith.constant 0 : index
    %c0_18 = arith.constant 0 : index
    %21 = vector.load %arg3[%c0_17, %c0_18] : memref<1x32xf32, #tpu.memory_space<vmem>>, vector<1x32xf32>
    %22 = vector.broadcast %21 : vector<1x32xf32> to vector<648x32xf32>
    %23 = arith.addf %20, %22 : vector<648x32xf32>
    %cst_19 = arith.constant 0.000000e+00 : f32
    %24 = vector.broadcast %cst_19 : f32 to vector<648x32xf32>
    %25 = arith.maximumf %23, %24 : vector<648x32xf32>
    %cst_20 = arith.constant 0.000000e+00 : f32
    %26 = vector.broadcast %cst_20 : f32 to vector<126x64xf32>
    %27 = vector.extract_strided_slice %25 {offsets = [0, 0], sizes = [126, 32], strides = [1, 1]} : vector<648x32xf32> to vector<126x32xf32>
    %c0_21 = arith.constant 0 : index
    %c0_22 = arith.constant 0 : index
    %c0_23 = arith.constant 0 : index
    %28 = vector.load %arg4[%c0_21, %c0_22, %c0_23] : memref<25x32x64xf32, #tpu.memory_space<vmem>>, vector<1x32x64xf32>
    %29 = vector.shape_cast %28 : vector<1x32x64xf32> to vector<32x64xf32>
    %cst_24 = arith.constant dense<0.000000e+00> : vector<126x64xf32>
    %30 = tpu.matmul %27, %29, %cst_24 {dimension_numbers = #tpu.dot_dimension_numbers<[1], [0], [0], [1], [0, 0, 1, 1], [], []>} : vector<126x32xf32>, vector<32x64xf32>, vector<126x64xf32> -> vector<126x64xf32>
    %31 = arith.addf %26, %30 : vector<126x64xf32>
    %32 = vector.extract_strided_slice %25 {offsets = [162, 0], sizes = [126, 32], strides = [1, 1]} : vector<648x32xf32> to vector<126x32xf32>
    %c1 = arith.constant 1 : index
    %c0_25 = arith.constant 0 : index
    %c0_26 = arith.constant 0 : index
    %33 = vector.load %arg4[%c1, %c0_25, %c0_26] : memref<25x32x64xf32, #tpu.memory_space<vmem>>, vector<1x32x64xf32>
    %34 = vector.shape_cast %33 : vector<1x32x64xf32> to vector<32x64xf32>
    %cst_27 = arith.constant dense<0.000000e+00> : vector<126x64xf32>
    %35 = tpu.matmul %32, %34, %cst_27 {dimension_numbers = #tpu.dot_dimension_numbers<[1], [0], [0], [1], [0, 0, 1, 1], [], []>} : vector<126x32xf32>, vector<32x64xf32>, vector<126x64xf32> -> vector<126x64xf32>
    %36 = arith.addf %31, %35 : vector<126x64xf32>
    %37 = vector.extract_strided_slice %25 {offsets = [1, 0], sizes = [126, 32], strides = [1, 1]} : vector<648x32xf32> to vector<126x32xf32>
    %c2 = arith.constant 2 : index
    %c0_28 = arith.constant 0 : index
    %c0_29 = arith.constant 0 : index
    %38 = vector.load %arg4[%c2, %c0_28, %c0_29] : memref<25x32x64xf32, #tpu.memory_space<vmem>>, vector<1x32x64xf32>
    %39 = vector.shape_cast %38 : vector<1x32x64xf32> to vector<32x64xf32>
    %cst_30 = arith.constant dense<0.000000e+00> : vector<126x64xf32>
    %40 = tpu.matmul %37, %39, %cst_30 {dimension_numbers = #tpu.dot_dimension_numbers<[1], [0], [0], [1], [0, 0, 1, 1], [], []>} : vector<126x32xf32>, vector<32x64xf32>, vector<126x64xf32> -> vector<126x64xf32>
    %41 = arith.addf %36, %40 : vector<126x64xf32>
    %42 = vector.extract_strided_slice %25 {offsets = [163, 0], sizes = [126, 32], strides = [1, 1]} : vector<648x32xf32> to vector<126x32xf32>
    %c3 = arith.constant 3 : index
    %c0_31 = arith.constant 0 : index
    %c0_32 = arith.constant 0 : index
    %43 = vector.load %arg4[%c3, %c0_31, %c0_32] : memref<25x32x64xf32, #tpu.memory_space<vmem>>, vector<1x32x64xf32>
    %44 = vector.shape_cast %43 : vector<1x32x64xf32> to vector<32x64xf32>
    %cst_33 = arith.constant dense<0.000000e+00> : vector<126x64xf32>
    %45 = tpu.matmul %42, %44, %cst_33 {dimension_numbers = #tpu.dot_dimension_numbers<[1], [0], [0], [1], [0, 0, 1, 1], [], []>} : vector<126x32xf32>, vector<32x64xf32>, vector<126x64xf32> -> vector<126x64xf32>
    %46 = arith.addf %41, %45 : vector<126x64xf32>
    %47 = vector.extract_strided_slice %25 {offsets = [2, 0], sizes = [126, 32], strides = [1, 1]} : vector<648x32xf32> to vector<126x32xf32>
    %c4 = arith.constant 4 : index
    %c0_34 = arith.constant 0 : index
    %c0_35 = arith.constant 0 : index
    %48 = vector.load %arg4[%c4, %c0_34, %c0_35] : memref<25x32x64xf32, #tpu.memory_space<vmem>>, vector<1x32x64xf32>
    %49 = vector.shape_cast %48 : vector<1x32x64xf32> to vector<32x64xf32>
    %cst_36 = arith.constant dense<0.000000e+00> : vector<126x64xf32>
    %50 = tpu.matmul %47, %49, %cst_36 {dimension_numbers = #tpu.dot_dimension_numbers<[1], [0], [0], [1], [0, 0, 1, 1], [], []>} : vector<126x32xf32>, vector<32x64xf32>, vector<126x64xf32> -> vector<126x64xf32>
    %51 = arith.addf %46, %50 : vector<126x64xf32>
    %52 = vector.extract_strided_slice %25 {offsets = [324, 0], sizes = [126, 32], strides = [1, 1]} : vector<648x32xf32> to vector<126x32xf32>
    %c5 = arith.constant 5 : index
    %c0_37 = arith.constant 0 : index
    %c0_38 = arith.constant 0 : index
    %53 = vector.load %arg4[%c5, %c0_37, %c0_38] : memref<25x32x64xf32, #tpu.memory_space<vmem>>, vector<1x32x64xf32>
    %54 = vector.shape_cast %53 : vector<1x32x64xf32> to vector<32x64xf32>
    %cst_39 = arith.constant dense<0.000000e+00> : vector<126x64xf32>
    %55 = tpu.matmul %52, %54, %cst_39 {dimension_numbers = #tpu.dot_dimension_numbers<[1], [0], [0], [1], [0, 0, 1, 1], [], []>} : vector<126x32xf32>, vector<32x64xf32>, vector<126x64xf32> -> vector<126x64xf32>
    %56 = arith.addf %51, %55 : vector<126x64xf32>
    %57 = vector.extract_strided_slice %25 {offsets = [486, 0], sizes = [126, 32], strides = [1, 1]} : vector<648x32xf32> to vector<126x32xf32>
    %c6 = arith.constant 6 : index
    %c0_40 = arith.constant 0 : index
    %c0_41 = arith.constant 0 : index
    %58 = vector.load %arg4[%c6, %c0_40, %c0_41] : memref<25x32x64xf32, #tpu.memory_space<vmem>>, vector<1x32x64xf32>
    %59 = vector.shape_cast %58 : vector<1x32x64xf32> to vector<32x64xf32>
    %cst_42 = arith.constant dense<0.000000e+00> : vector<126x64xf32>
    %60 = tpu.matmul %57, %59, %cst_42 {dimension_numbers = #tpu.dot_dimension_numbers<[1], [0], [0], [1], [0, 0, 1, 1], [], []>} : vector<126x32xf32>, vector<32x64xf32>, vector<126x64xf32> -> vector<126x64xf32>
    %61 = arith.addf %56, %60 : vector<126x64xf32>
    %62 = vector.extract_strided_slice %25 {offsets = [325, 0], sizes = [126, 32], strides = [1, 1]} : vector<648x32xf32> to vector<126x32xf32>
    %c7 = arith.constant 7 : index
    %c0_43 = arith.constant 0 : index
    %c0_44 = arith.constant 0 : index
    %63 = vector.load %arg4[%c7, %c0_43, %c0_44] : memref<25x32x64xf32, #tpu.memory_space<vmem>>, vector<1x32x64xf32>
    %64 = vector.shape_cast %63 : vector<1x32x64xf32> to vector<32x64xf32>
    %cst_45 = arith.constant dense<0.000000e+00> : vector<126x64xf32>
    %65 = tpu.matmul %62, %64, %cst_45 {dimension_numbers = #tpu.dot_dimension_numbers<[1], [0], [0], [1], [0, 0, 1, 1], [], []>} : vector<126x32xf32>, vector<32x64xf32>, vector<126x64xf32> -> vector<126x64xf32>
    %66 = arith.addf %61, %65 : vector<126x64xf32>
    %67 = vector.extract_strided_slice %25 {offsets = [487, 0], sizes = [126, 32], strides = [1, 1]} : vector<648x32xf32> to vector<126x32xf32>
    %c8 = arith.constant 8 : index
    %c0_46 = arith.constant 0 : index
    %c0_47 = arith.constant 0 : index
    %68 = vector.load %arg4[%c8, %c0_46, %c0_47] : memref<25x32x64xf32, #tpu.memory_space<vmem>>, vector<1x32x64xf32>
    %69 = vector.shape_cast %68 : vector<1x32x64xf32> to vector<32x64xf32>
    %cst_48 = arith.constant dense<0.000000e+00> : vector<126x64xf32>
    %70 = tpu.matmul %67, %69, %cst_48 {dimension_numbers = #tpu.dot_dimension_numbers<[1], [0], [0], [1], [0, 0, 1, 1], [], []>} : vector<126x32xf32>, vector<32x64xf32>, vector<126x64xf32> -> vector<126x64xf32>
    %71 = arith.addf %66, %70 : vector<126x64xf32>
    %72 = vector.extract_strided_slice %25 {offsets = [326, 0], sizes = [126, 32], strides = [1, 1]} : vector<648x32xf32> to vector<126x32xf32>
    %c9 = arith.constant 9 : index
    %c0_49 = arith.constant 0 : index
    %c0_50 = arith.constant 0 : index
    %73 = vector.load %arg4[%c9, %c0_49, %c0_50] : memref<25x32x64xf32, #tpu.memory_space<vmem>>, vector<1x32x64xf32>
    %74 = vector.shape_cast %73 : vector<1x32x64xf32> to vector<32x64xf32>
    %cst_51 = arith.constant dense<0.000000e+00> : vector<126x64xf32>
    %75 = tpu.matmul %72, %74, %cst_51 {dimension_numbers = #tpu.dot_dimension_numbers<[1], [0], [0], [1], [0, 0, 1, 1], [], []>} : vector<126x32xf32>, vector<32x64xf32>, vector<126x64xf32> -> vector<126x64xf32>
    %76 = arith.addf %71, %75 : vector<126x64xf32>
    %77 = vector.extract_strided_slice %25 {offsets = [18, 0], sizes = [126, 32], strides = [1, 1]} : vector<648x32xf32> to vector<126x32xf32>
    %c10 = arith.constant 10 : index
    %c0_52 = arith.constant 0 : index
    %c0_53 = arith.constant 0 : index
    %78 = vector.load %arg4[%c10, %c0_52, %c0_53] : memref<25x32x64xf32, #tpu.memory_space<vmem>>, vector<1x32x64xf32>
    %79 = vector.shape_cast %78 : vector<1x32x64xf32> to vector<32x64xf32>
    %cst_54 = arith.constant dense<0.000000e+00> : vector<126x64xf32>
    %80 = tpu.matmul %77, %79, %cst_54 {dimension_numbers = #tpu.dot_dimension_numbers<[1], [0], [0], [1], [0, 0, 1, 1], [], []>} : vector<126x32xf32>, vector<32x64xf32>, vector<126x64xf32> -> vector<126x64xf32>
    %81 = arith.addf %76, %80 : vector<126x64xf32>
    %82 = vector.extract_strided_slice %25 {offsets = [180, 0], sizes = [126, 32], strides = [1, 1]} : vector<648x32xf32> to vector<126x32xf32>
    %c11 = arith.constant 11 : index
    %c0_55 = arith.constant 0 : index
    %c0_56 = arith.constant 0 : index
    %83 = vector.load %arg4[%c11, %c0_55, %c0_56] : memref<25x32x64xf32, #tpu.memory_space<vmem>>, vector<1x32x64xf32>
    %84 = vector.shape_cast %83 : vector<1x32x64xf32> to vector<32x64xf32>
    %cst_57 = arith.constant dense<0.000000e+00> : vector<126x64xf32>
    %85 = tpu.matmul %82, %84, %cst_57 {dimension_numbers = #tpu.dot_dimension_numbers<[1], [0], [0], [1], [0, 0, 1, 1], [], []>} : vector<126x32xf32>, vector<32x64xf32>, vector<126x64xf32> -> vector<126x64xf32>
    %86 = arith.addf %81, %85 : vector<126x64xf32>
    %87 = vector.extract_strided_slice %25 {offsets = [19, 0], sizes = [126, 32], strides = [1, 1]} : vector<648x32xf32> to vector<126x32xf32>
    %c12 = arith.constant 12 : index
    %c0_58 = arith.constant 0 : index
    %c0_59 = arith.constant 0 : index
    %88 = vector.load %arg4[%c12, %c0_58, %c0_59] : memref<25x32x64xf32, #tpu.memory_space<vmem>>, vector<1x32x64xf32>
    %89 = vector.shape_cast %88 : vector<1x32x64xf32> to vector<32x64xf32>
    %cst_60 = arith.constant dense<0.000000e+00> : vector<126x64xf32>
    %90 = tpu.matmul %87, %89, %cst_60 {dimension_numbers = #tpu.dot_dimension_numbers<[1], [0], [0], [1], [0, 0, 1, 1], [], []>} : vector<126x32xf32>, vector<32x64xf32>, vector<126x64xf32> -> vector<126x64xf32>
    %91 = arith.addf %86, %90 : vector<126x64xf32>
    %92 = vector.extract_strided_slice %25 {offsets = [181, 0], sizes = [126, 32], strides = [1, 1]} : vector<648x32xf32> to vector<126x32xf32>
    %c13 = arith.constant 13 : index
    %c0_61 = arith.constant 0 : index
    %c0_62 = arith.constant 0 : index
    %93 = vector.load %arg4[%c13, %c0_61, %c0_62] : memref<25x32x64xf32, #tpu.memory_space<vmem>>, vector<1x32x64xf32>
    %94 = vector.shape_cast %93 : vector<1x32x64xf32> to vector<32x64xf32>
    %cst_63 = arith.constant dense<0.000000e+00> : vector<126x64xf32>
    %95 = tpu.matmul %92, %94, %cst_63 {dimension_numbers = #tpu.dot_dimension_numbers<[1], [0], [0], [1], [0, 0, 1, 1], [], []>} : vector<126x32xf32>, vector<32x64xf32>, vector<126x64xf32> -> vector<126x64xf32>
    %96 = arith.addf %91, %95 : vector<126x64xf32>
    %97 = vector.extract_strided_slice %25 {offsets = [20, 0], sizes = [126, 32], strides = [1, 1]} : vector<648x32xf32> to vector<126x32xf32>
    %c14 = arith.constant 14 : index
    %c0_64 = arith.constant 0 : index
    %c0_65 = arith.constant 0 : index
    %98 = vector.load %arg4[%c14, %c0_64, %c0_65] : memref<25x32x64xf32, #tpu.memory_space<vmem>>, vector<1x32x64xf32>
    %99 = vector.shape_cast %98 : vector<1x32x64xf32> to vector<32x64xf32>
    %cst_66 = arith.constant dense<0.000000e+00> : vector<126x64xf32>
    %100 = tpu.matmul %97, %99, %cst_66 {dimension_numbers = #tpu.dot_dimension_numbers<[1], [0], [0], [1], [0, 0, 1, 1], [], []>} : vector<126x32xf32>, vector<32x64xf32>, vector<126x64xf32> -> vector<126x64xf32>
    %101 = arith.addf %96, %100 : vector<126x64xf32>
    %102 = vector.extract_strided_slice %25 {offsets = [342, 0], sizes = [126, 32], strides = [1, 1]} : vector<648x32xf32> to vector<126x32xf32>
    %c15 = arith.constant 15 : index
    %c0_67 = arith.constant 0 : index
    %c0_68 = arith.constant 0 : index
    %103 = vector.load %arg4[%c15, %c0_67, %c0_68] : memref<25x32x64xf32, #tpu.memory_space<vmem>>, vector<1x32x64xf32>
    %104 = vector.shape_cast %103 : vector<1x32x64xf32> to vector<32x64xf32>
    %cst_69 = arith.constant dense<0.000000e+00> : vector<126x64xf32>
    %105 = tpu.matmul %102, %104, %cst_69 {dimension_numbers = #tpu.dot_dimension_numbers<[1], [0], [0], [1], [0, 0, 1, 1], [], []>} : vector<126x32xf32>, vector<32x64xf32>, vector<126x64xf32> -> vector<126x64xf32>
    %106 = arith.addf %101, %105 : vector<126x64xf32>
    %107 = vector.extract_strided_slice %25 {offsets = [504, 0], sizes = [126, 32], strides = [1, 1]} : vector<648x32xf32> to vector<126x32xf32>
    %c16 = arith.constant 16 : index
    %c0_70 = arith.constant 0 : index
    %c0_71 = arith.constant 0 : index
    %108 = vector.load %arg4[%c16, %c0_70, %c0_71] : memref<25x32x64xf32, #tpu.memory_space<vmem>>, vector<1x32x64xf32>
    %109 = vector.shape_cast %108 : vector<1x32x64xf32> to vector<32x64xf32>
    %cst_72 = arith.constant dense<0.000000e+00> : vector<126x64xf32>
    %110 = tpu.matmul %107, %109, %cst_72 {dimension_numbers = #tpu.dot_dimension_numbers<[1], [0], [0], [1], [0, 0, 1, 1], [], []>} : vector<126x32xf32>, vector<32x64xf32>, vector<126x64xf32> -> vector<126x64xf32>
    %111 = arith.addf %106, %110 : vector<126x64xf32>
    %112 = vector.extract_strided_slice %25 {offsets = [343, 0], sizes = [126, 32], strides = [1, 1]} : vector<648x32xf32> to vector<126x32xf32>
    %c17 = arith.constant 17 : index
    %c0_73 = arith.constant 0 : index
    %c0_74 = arith.constant 0 : index
    %113 = vector.load %arg4[%c17, %c0_73, %c0_74] : memref<25x32x64xf32, #tpu.memory_space<vmem>>, vector<1x32x64xf32>
    %114 = vector.shape_cast %113 : vector<1x32x64xf32> to vector<32x64xf32>
    %cst_75 = arith.constant dense<0.000000e+00> : vector<126x64xf32>
    %115 = tpu.matmul %112, %114, %cst_75 {dimension_numbers = #tpu.dot_dimension_numbers<[1], [0], [0], [1], [0, 0, 1, 1], [], []>} : vector<126x32xf32>, vector<32x64xf32>, vector<126x64xf32> -> vector<126x64xf32>
    %116 = arith.addf %111, %115 : vector<126x64xf32>
    %117 = vector.extract_strided_slice %25 {offsets = [505, 0], sizes = [126, 32], strides = [1, 1]} : vector<648x32xf32> to vector<126x32xf32>
    %c18 = arith.constant 18 : index
    %c0_76 = arith.constant 0 : index
    %c0_77 = arith.constant 0 : index
    %118 = vector.load %arg4[%c18, %c0_76, %c0_77] : memref<25x32x64xf32, #tpu.memory_space<vmem>>, vector<1x32x64xf32>
    %119 = vector.shape_cast %118 : vector<1x32x64xf32> to vector<32x64xf32>
    %cst_78 = arith.constant dense<0.000000e+00> : vector<126x64xf32>
    %120 = tpu.matmul %117, %119, %cst_78 {dimension_numbers = #tpu.dot_dimension_numbers<[1], [0], [0], [1], [0, 0, 1, 1], [], []>} : vector<126x32xf32>, vector<32x64xf32>, vector<126x64xf32> -> vector<126x64xf32>
    %121 = arith.addf %116, %120 : vector<126x64xf32>
    %122 = vector.extract_strided_slice %25 {offsets = [344, 0], sizes = [126, 32], strides = [1, 1]} : vector<648x32xf32> to vector<126x32xf32>
    %c19 = arith.constant 19 : index
    %c0_79 = arith.constant 0 : index
    %c0_80 = arith.constant 0 : index
    %123 = vector.load %arg4[%c19, %c0_79, %c0_80] : memref<25x32x64xf32, #tpu.memory_space<vmem>>, vector<1x32x64xf32>
    %124 = vector.shape_cast %123 : vector<1x32x64xf32> to vector<32x64xf32>
    %cst_81 = arith.constant dense<0.000000e+00> : vector<126x64xf32>
    %125 = tpu.matmul %122, %124, %cst_81 {dimension_numbers = #tpu.dot_dimension_numbers<[1], [0], [0], [1], [0, 0, 1, 1], [], []>} : vector<126x32xf32>, vector<32x64xf32>, vector<126x64xf32> -> vector<126x64xf32>
    %126 = arith.addf %121, %125 : vector<126x64xf32>
    %127 = vector.extract_strided_slice %25 {offsets = [36, 0], sizes = [126, 32], strides = [1, 1]} : vector<648x32xf32> to vector<126x32xf32>
    %c20 = arith.constant 20 : index
    %c0_82 = arith.constant 0 : index
    %c0_83 = arith.constant 0 : index
    %128 = vector.load %arg4[%c20, %c0_82, %c0_83] : memref<25x32x64xf32, #tpu.memory_space<vmem>>, vector<1x32x64xf32>
    %129 = vector.shape_cast %128 : vector<1x32x64xf32> to vector<32x64xf32>
    %cst_84 = arith.constant dense<0.000000e+00> : vector<126x64xf32>
    %130 = tpu.matmul %127, %129, %cst_84 {dimension_numbers = #tpu.dot_dimension_numbers<[1], [0], [0], [1], [0, 0, 1, 1], [], []>} : vector<126x32xf32>, vector<32x64xf32>, vector<126x64xf32> -> vector<126x64xf32>
    %131 = arith.addf %126, %130 : vector<126x64xf32>
    %132 = vector.extract_strided_slice %25 {offsets = [198, 0], sizes = [126, 32], strides = [1, 1]} : vector<648x32xf32> to vector<126x32xf32>
    %c21 = arith.constant 21 : index
    %c0_85 = arith.constant 0 : index
    %c0_86 = arith.constant 0 : index
    %133 = vector.load %arg4[%c21, %c0_85, %c0_86] : memref<25x32x64xf32, #tpu.memory_space<vmem>>, vector<1x32x64xf32>
    %134 = vector.shape_cast %133 : vector<1x32x64xf32> to vector<32x64xf32>
    %cst_87 = arith.constant dense<0.000000e+00> : vector<126x64xf32>
    %135 = tpu.matmul %132, %134, %cst_87 {dimension_numbers = #tpu.dot_dimension_numbers<[1], [0], [0], [1], [0, 0, 1, 1], [], []>} : vector<126x32xf32>, vector<32x64xf32>, vector<126x64xf32> -> vector<126x64xf32>
    %136 = arith.addf %131, %135 : vector<126x64xf32>
    %137 = vector.extract_strided_slice %25 {offsets = [37, 0], sizes = [126, 32], strides = [1, 1]} : vector<648x32xf32> to vector<126x32xf32>
    %c22 = arith.constant 22 : index
    %c0_88 = arith.constant 0 : index
    %c0_89 = arith.constant 0 : index
    %138 = vector.load %arg4[%c22, %c0_88, %c0_89] : memref<25x32x64xf32, #tpu.memory_space<vmem>>, vector<1x32x64xf32>
    %139 = vector.shape_cast %138 : vector<1x32x64xf32> to vector<32x64xf32>
    %cst_90 = arith.constant dense<0.000000e+00> : vector<126x64xf32>
    %140 = tpu.matmul %137, %139, %cst_90 {dimension_numbers = #tpu.dot_dimension_numbers<[1], [0], [0], [1], [0, 0, 1, 1], [], []>} : vector<126x32xf32>, vector<32x64xf32>, vector<126x64xf32> -> vector<126x64xf32>
    %141 = arith.addf %136, %140 : vector<126x64xf32>
    %142 = vector.extract_strided_slice %25 {offsets = [199, 0], sizes = [126, 32], strides = [1, 1]} : vector<648x32xf32> to vector<126x32xf32>
    %c23 = arith.constant 23 : index
    %c0_91 = arith.constant 0 : index
    %c0_92 = arith.constant 0 : index
    %143 = vector.load %arg4[%c23, %c0_91, %c0_92] : memref<25x32x64xf32, #tpu.memory_space<vmem>>, vector<1x32x64xf32>
    %144 = vector.shape_cast %143 : vector<1x32x64xf32> to vector<32x64xf32>
    %cst_93 = arith.constant dense<0.000000e+00> : vector<126x64xf32>
    %145 = tpu.matmul %142, %144, %cst_93 {dimension_numbers = #tpu.dot_dimension_numbers<[1], [0], [0], [1], [0, 0, 1, 1], [], []>} : vector<126x32xf32>, vector<32x64xf32>, vector<126x64xf32> -> vector<126x64xf32>
    %146 = arith.addf %141, %145 : vector<126x64xf32>
    %147 = vector.extract_strided_slice %25 {offsets = [38, 0], sizes = [126, 32], strides = [1, 1]} : vector<648x32xf32> to vector<126x32xf32>
    %c24 = arith.constant 24 : index
    %c0_94 = arith.constant 0 : index
    %c0_95 = arith.constant 0 : index
    %148 = vector.load %arg4[%c24, %c0_94, %c0_95] : memref<25x32x64xf32, #tpu.memory_space<vmem>>, vector<1x32x64xf32>
    %149 = vector.shape_cast %148 : vector<1x32x64xf32> to vector<32x64xf32>
    %cst_96 = arith.constant dense<0.000000e+00> : vector<126x64xf32>
    %150 = tpu.matmul %147, %149, %cst_96 {dimension_numbers = #tpu.dot_dimension_numbers<[1], [0], [0], [1], [0, 0, 1, 1], [], []>} : vector<126x32xf32>, vector<32x64xf32>, vector<126x64xf32> -> vector<126x64xf32>
    %151 = arith.addf %146, %150 : vector<126x64xf32>
    %c0_97 = arith.constant 0 : index
    %c0_98 = arith.constant 0 : index
    %152 = vector.load %arg5[%c0_97, %c0_98] : memref<1x64xf32, #tpu.memory_space<vmem>>, vector<1x64xf32>
    %153 = vector.broadcast %152 : vector<1x64xf32> to vector<126x64xf32>
    %154 = arith.addf %151, %153 : vector<126x64xf32>
    %cst_99 = arith.constant 0.000000e+00 : f32
    %155 = vector.broadcast %cst_99 : f32 to vector<126x64xf32>
    %156 = arith.maximumf %154, %155 : vector<126x64xf32>
    %c0_100 = arith.constant 0 : index
    %c0_101 = arith.constant 0 : index
    %157 = vector.load %arg6[%c0_100, %c0_101] : memref<162x126xf32, #tpu.memory_space<vmem>>, vector<162x126xf32>
    %cst_102 = arith.constant dense<0.000000e+00> : vector<162x64xf32>
    %158 = tpu.matmul %157, %156, %cst_102 {dimension_numbers = #tpu.dot_dimension_numbers<[1], [0], [0], [1], [0, 0, 1, 1], [], []>} : vector<162x126xf32>, vector<126x64xf32>, vector<162x64xf32> -> vector<162x64xf32>
    %cst_103 = arith.constant 0.000000e+00 : f32
    %159 = vector.broadcast %cst_103 : f32 to vector<18x64xf32>
    %160 = vector.extract_strided_slice %158 {offsets = [0, 0], sizes = [18, 64], strides = [1, 1]} : vector<162x64xf32> to vector<18x64xf32>
    %c0_104 = arith.constant 0 : index
    %c0_105 = arith.constant 0 : index
    %c0_106 = arith.constant 0 : index
    %161 = vector.load %arg7[%c0_104, %c0_105, %c0_106] : memref<9x64x64xf32, #tpu.memory_space<vmem>>, vector<1x64x64xf32>
    %162 = vector.shape_cast %161 : vector<1x64x64xf32> to vector<64x64xf32>
    %cst_107 = arith.constant dense<0.000000e+00> : vector<18x64xf32>
    %163 = tpu.matmul %160, %162, %cst_107 {dimension_numbers = #tpu.dot_dimension_numbers<[1], [0], [0], [1], [0, 0, 1, 1], [], []>} : vector<18x64xf32>, vector<64x64xf32>, vector<18x64xf32> -> vector<18x64xf32>
    %164 = arith.addf %159, %163 : vector<18x64xf32>
    %165 = vector.extract_strided_slice %158 {offsets = [18, 0], sizes = [18, 64], strides = [1, 1]} : vector<162x64xf32> to vector<18x64xf32>
    %c1_108 = arith.constant 1 : index
    %c0_109 = arith.constant 0 : index
    %c0_110 = arith.constant 0 : index
    %166 = vector.load %arg7[%c1_108, %c0_109, %c0_110] : memref<9x64x64xf32, #tpu.memory_space<vmem>>, vector<1x64x64xf32>
    %167 = vector.shape_cast %166 : vector<1x64x64xf32> to vector<64x64xf32>
    %cst_111 = arith.constant dense<0.000000e+00> : vector<18x64xf32>
    %168 = tpu.matmul %165, %167, %cst_111 {dimension_numbers = #tpu.dot_dimension_numbers<[1], [0], [0], [1], [0, 0, 1, 1], [], []>} : vector<18x64xf32>, vector<64x64xf32>, vector<18x64xf32> -> vector<18x64xf32>
    %169 = arith.addf %164, %168 : vector<18x64xf32>
    %170 = vector.extract_strided_slice %158 {offsets = [36, 0], sizes = [18, 64], strides = [1, 1]} : vector<162x64xf32> to vector<18x64xf32>
    %c2_112 = arith.constant 2 : index
    %c0_113 = arith.constant 0 : index
    %c0_114 = arith.constant 0 : index
    %171 = vector.load %arg7[%c2_112, %c0_113, %c0_114] : memref<9x64x64xf32, #tpu.memory_space<vmem>>, vector<1x64x64xf32>
    %172 = vector.shape_cast %171 : vector<1x64x64xf32> to vector<64x64xf32>
    %cst_115 = arith.constant dense<0.000000e+00> : vector<18x64xf32>
    %173 = tpu.matmul %170, %172, %cst_115 {dimension_numbers = #tpu.dot_dimension_numbers<[1], [0], [0], [1], [0, 0, 1, 1], [], []>} : vector<18x64xf32>, vector<64x64xf32>, vector<18x64xf32> -> vector<18x64xf32>
    %174 = arith.addf %169, %173 : vector<18x64xf32>
    %175 = vector.extract_strided_slice %158 {offsets = [54, 0], sizes = [18, 64], strides = [1, 1]} : vector<162x64xf32> to vector<18x64xf32>
    %c3_116 = arith.constant 3 : index
    %c0_117 = arith.constant 0 : index
    %c0_118 = arith.constant 0 : index
    %176 = vector.load %arg7[%c3_116, %c0_117, %c0_118] : memref<9x64x64xf32, #tpu.memory_space<vmem>>, vector<1x64x64xf32>
    %177 = vector.shape_cast %176 : vector<1x64x64xf32> to vector<64x64xf32>
    %cst_119 = arith.constant dense<0.000000e+00> : vector<18x64xf32>
    %178 = tpu.matmul %175, %177, %cst_119 {dimension_numbers = #tpu.dot_dimension_numbers<[1], [0], [0], [1], [0, 0, 1, 1], [], []>} : vector<18x64xf32>, vector<64x64xf32>, vector<18x64xf32> -> vector<18x64xf32>
    %179 = arith.addf %174, %178 : vector<18x64xf32>
    %180 = vector.extract_strided_slice %158 {offsets = [72, 0], sizes = [18, 64], strides = [1, 1]} : vector<162x64xf32> to vector<18x64xf32>
    %c4_120 = arith.constant 4 : index
    %c0_121 = arith.constant 0 : index
    %c0_122 = arith.constant 0 : index
    %181 = vector.load %arg7[%c4_120, %c0_121, %c0_122] : memref<9x64x64xf32, #tpu.memory_space<vmem>>, vector<1x64x64xf32>
    %182 = vector.shape_cast %181 : vector<1x64x64xf32> to vector<64x64xf32>
    %cst_123 = arith.constant dense<0.000000e+00> : vector<18x64xf32>
    %183 = tpu.matmul %180, %182, %cst_123 {dimension_numbers = #tpu.dot_dimension_numbers<[1], [0], [0], [1], [0, 0, 1, 1], [], []>} : vector<18x64xf32>, vector<64x64xf32>, vector<18x64xf32> -> vector<18x64xf32>
    %184 = arith.addf %179, %183 : vector<18x64xf32>
    %185 = vector.extract_strided_slice %158 {offsets = [90, 0], sizes = [18, 64], strides = [1, 1]} : vector<162x64xf32> to vector<18x64xf32>
    %c5_124 = arith.constant 5 : index
    %c0_125 = arith.constant 0 : index
    %c0_126 = arith.constant 0 : index
    %186 = vector.load %arg7[%c5_124, %c0_125, %c0_126] : memref<9x64x64xf32, #tpu.memory_space<vmem>>, vector<1x64x64xf32>
    %187 = vector.shape_cast %186 : vector<1x64x64xf32> to vector<64x64xf32>
    %cst_127 = arith.constant dense<0.000000e+00> : vector<18x64xf32>
    %188 = tpu.matmul %185, %187, %cst_127 {dimension_numbers = #tpu.dot_dimension_numbers<[1], [0], [0], [1], [0, 0, 1, 1], [], []>} : vector<18x64xf32>, vector<64x64xf32>, vector<18x64xf32> -> vector<18x64xf32>
    %189 = arith.addf %184, %188 : vector<18x64xf32>
    %190 = vector.extract_strided_slice %158 {offsets = [108, 0], sizes = [18, 64], strides = [1, 1]} : vector<162x64xf32> to vector<18x64xf32>
    %c6_128 = arith.constant 6 : index
    %c0_129 = arith.constant 0 : index
    %c0_130 = arith.constant 0 : index
    %191 = vector.load %arg7[%c6_128, %c0_129, %c0_130] : memref<9x64x64xf32, #tpu.memory_space<vmem>>, vector<1x64x64xf32>
    %192 = vector.shape_cast %191 : vector<1x64x64xf32> to vector<64x64xf32>
    %cst_131 = arith.constant dense<0.000000e+00> : vector<18x64xf32>
    %193 = tpu.matmul %190, %192, %cst_131 {dimension_numbers = #tpu.dot_dimension_numbers<[1], [0], [0], [1], [0, 0, 1, 1], [], []>} : vector<18x64xf32>, vector<64x64xf32>, vector<18x64xf32> -> vector<18x64xf32>
    %194 = arith.addf %189, %193 : vector<18x64xf32>
    %195 = vector.extract_strided_slice %158 {offsets = [126, 0], sizes = [18, 64], strides = [1, 1]} : vector<162x64xf32> to vector<18x64xf32>
    %c7_132 = arith.constant 7 : index
    %c0_133 = arith.constant 0 : index
    %c0_134 = arith.constant 0 : index
    %196 = vector.load %arg7[%c7_132, %c0_133, %c0_134] : memref<9x64x64xf32, #tpu.memory_space<vmem>>, vector<1x64x64xf32>
    %197 = vector.shape_cast %196 : vector<1x64x64xf32> to vector<64x64xf32>
    %cst_135 = arith.constant dense<0.000000e+00> : vector<18x64xf32>
    %198 = tpu.matmul %195, %197, %cst_135 {dimension_numbers = #tpu.dot_dimension_numbers<[1], [0], [0], [1], [0, 0, 1, 1], [], []>} : vector<18x64xf32>, vector<64x64xf32>, vector<18x64xf32> -> vector<18x64xf32>
    %199 = arith.addf %194, %198 : vector<18x64xf32>
    %200 = vector.extract_strided_slice %158 {offsets = [144, 0], sizes = [18, 64], strides = [1, 1]} : vector<162x64xf32> to vector<18x64xf32>
    %c8_136 = arith.constant 8 : index
    %c0_137 = arith.constant 0 : index
    %c0_138 = arith.constant 0 : index
    %201 = vector.load %arg7[%c8_136, %c0_137, %c0_138] : memref<9x64x64xf32, #tpu.memory_space<vmem>>, vector<1x64x64xf32>
    %202 = vector.shape_cast %201 : vector<1x64x64xf32> to vector<64x64xf32>
    %cst_139 = arith.constant dense<0.000000e+00> : vector<18x64xf32>
    %203 = tpu.matmul %200, %202, %cst_139 {dimension_numbers = #tpu.dot_dimension_numbers<[1], [0], [0], [1], [0, 0, 1, 1], [], []>} : vector<18x64xf32>, vector<64x64xf32>, vector<18x64xf32> -> vector<18x64xf32>
    %204 = arith.addf %199, %203 : vector<18x64xf32>
    %c0_140 = arith.constant 0 : index
    %c0_141 = arith.constant 0 : index
    %205 = vector.load %arg8[%c0_140, %c0_141] : memref<1x64xf32, #tpu.memory_space<vmem>>, vector<1x64xf32>
    %206 = vector.broadcast %205 : vector<1x64xf32> to vector<18x64xf32>
    %207 = arith.addf %204, %206 : vector<18x64xf32>
    %cst_142 = arith.constant 0.000000e+00 : f32
    %208 = vector.broadcast %cst_142 : f32 to vector<18x64xf32>
    %209 = arith.maximumf %207, %208 : vector<18x64xf32>
    %cst_143 = arith.constant 0.000000e+00 : f32
    %210 = vector.broadcast %cst_143 : f32 to vector<2x64xf32>
    %211 = vector.extract_strided_slice %209 {offsets = [0, 0], sizes = [2, 64], strides = [1, 1]} : vector<18x64xf32> to vector<2x64xf32>
    %c0_144 = arith.constant 0 : index
    %c0_145 = arith.constant 0 : index
    %c0_146 = arith.constant 0 : index
    %212 = vector.load %arg9[%c0_144, %c0_145, %c0_146] : memref<9x64x64xf32, #tpu.memory_space<vmem>>, vector<1x64x64xf32>
    %213 = vector.shape_cast %212 : vector<1x64x64xf32> to vector<64x64xf32>
    %cst_147 = arith.constant dense<0.000000e+00> : vector<2x64xf32>
    %214 = tpu.matmul %211, %213, %cst_147 {dimension_numbers = #tpu.dot_dimension_numbers<[1], [0], [0], [1], [0, 0, 1, 1], [], []>} : vector<2x64xf32>, vector<64x64xf32>, vector<2x64xf32> -> vector<2x64xf32>
    %215 = arith.addf %210, %214 : vector<2x64xf32>
    %216 = vector.extract_strided_slice %209 {offsets = [2, 0], sizes = [2, 64], strides = [1, 1]} : vector<18x64xf32> to vector<2x64xf32>
    %c1_148 = arith.constant 1 : index
    %c0_149 = arith.constant 0 : index
    %c0_150 = arith.constant 0 : index
    %217 = vector.load %arg9[%c1_148, %c0_149, %c0_150] : memref<9x64x64xf32, #tpu.memory_space<vmem>>, vector<1x64x64xf32>
    %218 = vector.shape_cast %217 : vector<1x64x64xf32> to vector<64x64xf32>
    %cst_151 = arith.constant dense<0.000000e+00> : vector<2x64xf32>
    %219 = tpu.matmul %216, %218, %cst_151 {dimension_numbers = #tpu.dot_dimension_numbers<[1], [0], [0], [1], [0, 0, 1, 1], [], []>} : vector<2x64xf32>, vector<64x64xf32>, vector<2x64xf32> -> vector<2x64xf32>
    %220 = arith.addf %215, %219 : vector<2x64xf32>
    %221 = vector.extract_strided_slice %209 {offsets = [4, 0], sizes = [2, 64], strides = [1, 1]} : vector<18x64xf32> to vector<2x64xf32>
    %c2_152 = arith.constant 2 : index
    %c0_153 = arith.constant 0 : index
    %c0_154 = arith.constant 0 : index
    %222 = vector.load %arg9[%c2_152, %c0_153, %c0_154] : memref<9x64x64xf32, #tpu.memory_space<vmem>>, vector<1x64x64xf32>
    %223 = vector.shape_cast %222 : vector<1x64x64xf32> to vector<64x64xf32>
    %cst_155 = arith.constant dense<0.000000e+00> : vector<2x64xf32>
    %224 = tpu.matmul %221, %223, %cst_155 {dimension_numbers = #tpu.dot_dimension_numbers<[1], [0], [0], [1], [0, 0, 1, 1], [], []>} : vector<2x64xf32>, vector<64x64xf32>, vector<2x64xf32> -> vector<2x64xf32>
    %225 = arith.addf %220, %224 : vector<2x64xf32>
    %226 = vector.extract_strided_slice %209 {offsets = [6, 0], sizes = [2, 64], strides = [1, 1]} : vector<18x64xf32> to vector<2x64xf32>
    %c3_156 = arith.constant 3 : index
    %c0_157 = arith.constant 0 : index
    %c0_158 = arith.constant 0 : index
    %227 = vector.load %arg9[%c3_156, %c0_157, %c0_158] : memref<9x64x64xf32, #tpu.memory_space<vmem>>, vector<1x64x64xf32>
    %228 = vector.shape_cast %227 : vector<1x64x64xf32> to vector<64x64xf32>
    %cst_159 = arith.constant dense<0.000000e+00> : vector<2x64xf32>
    %229 = tpu.matmul %226, %228, %cst_159 {dimension_numbers = #tpu.dot_dimension_numbers<[1], [0], [0], [1], [0, 0, 1, 1], [], []>} : vector<2x64xf32>, vector<64x64xf32>, vector<2x64xf32> -> vector<2x64xf32>
    %230 = arith.addf %225, %229 : vector<2x64xf32>
    %231 = vector.extract_strided_slice %209 {offsets = [8, 0], sizes = [2, 64], strides = [1, 1]} : vector<18x64xf32> to vector<2x64xf32>
    %c4_160 = arith.constant 4 : index
    %c0_161 = arith.constant 0 : index
    %c0_162 = arith.constant 0 : index
    %232 = vector.load %arg9[%c4_160, %c0_161, %c0_162] : memref<9x64x64xf32, #tpu.memory_space<vmem>>, vector<1x64x64xf32>
    %233 = vector.shape_cast %232 : vector<1x64x64xf32> to vector<64x64xf32>
    %cst_163 = arith.constant dense<0.000000e+00> : vector<2x64xf32>
    %234 = tpu.matmul %231, %233, %cst_163 {dimension_numbers = #tpu.dot_dimension_numbers<[1], [0], [0], [1], [0, 0, 1, 1], [], []>} : vector<2x64xf32>, vector<64x64xf32>, vector<2x64xf32> -> vector<2x64xf32>
    %235 = arith.addf %230, %234 : vector<2x64xf32>
    %236 = vector.extract_strided_slice %209 {offsets = [10, 0], sizes = [2, 64], strides = [1, 1]} : vector<18x64xf32> to vector<2x64xf32>
    %c5_164 = arith.constant 5 : index
    %c0_165 = arith.constant 0 : index
    %c0_166 = arith.constant 0 : index
    %237 = vector.load %arg9[%c5_164, %c0_165, %c0_166] : memref<9x64x64xf32, #tpu.memory_space<vmem>>, vector<1x64x64xf32>
    %238 = vector.shape_cast %237 : vector<1x64x64xf32> to vector<64x64xf32>
    %cst_167 = arith.constant dense<0.000000e+00> : vector<2x64xf32>
    %239 = tpu.matmul %236, %238, %cst_167 {dimension_numbers = #tpu.dot_dimension_numbers<[1], [0], [0], [1], [0, 0, 1, 1], [], []>} : vector<2x64xf32>, vector<64x64xf32>, vector<2x64xf32> -> vector<2x64xf32>
    %240 = arith.addf %235, %239 : vector<2x64xf32>
    %241 = vector.extract_strided_slice %209 {offsets = [12, 0], sizes = [2, 64], strides = [1, 1]} : vector<18x64xf32> to vector<2x64xf32>
    %c6_168 = arith.constant 6 : index
    %c0_169 = arith.constant 0 : index
    %c0_170 = arith.constant 0 : index
    %242 = vector.load %arg9[%c6_168, %c0_169, %c0_170] : memref<9x64x64xf32, #tpu.memory_space<vmem>>, vector<1x64x64xf32>
    %243 = vector.shape_cast %242 : vector<1x64x64xf32> to vector<64x64xf32>
    %cst_171 = arith.constant dense<0.000000e+00> : vector<2x64xf32>
    %244 = tpu.matmul %241, %243, %cst_171 {dimension_numbers = #tpu.dot_dimension_numbers<[1], [0], [0], [1], [0, 0, 1, 1], [], []>} : vector<2x64xf32>, vector<64x64xf32>, vector<2x64xf32> -> vector<2x64xf32>
    %245 = arith.addf %240, %244 : vector<2x64xf32>
    %246 = vector.extract_strided_slice %209 {offsets = [14, 0], sizes = [2, 64], strides = [1, 1]} : vector<18x64xf32> to vector<2x64xf32>
    %c7_172 = arith.constant 7 : index
    %c0_173 = arith.constant 0 : index
    %c0_174 = arith.constant 0 : index
    %247 = vector.load %arg9[%c7_172, %c0_173, %c0_174] : memref<9x64x64xf32, #tpu.memory_space<vmem>>, vector<1x64x64xf32>
    %248 = vector.shape_cast %247 : vector<1x64x64xf32> to vector<64x64xf32>
    %cst_175 = arith.constant dense<0.000000e+00> : vector<2x64xf32>
    %249 = tpu.matmul %246, %248, %cst_175 {dimension_numbers = #tpu.dot_dimension_numbers<[1], [0], [0], [1], [0, 0, 1, 1], [], []>} : vector<2x64xf32>, vector<64x64xf32>, vector<2x64xf32> -> vector<2x64xf32>
    %250 = arith.addf %245, %249 : vector<2x64xf32>
    %251 = vector.extract_strided_slice %209 {offsets = [16, 0], sizes = [2, 64], strides = [1, 1]} : vector<18x64xf32> to vector<2x64xf32>
    %c8_176 = arith.constant 8 : index
    %c0_177 = arith.constant 0 : index
    %c0_178 = arith.constant 0 : index
    %252 = vector.load %arg9[%c8_176, %c0_177, %c0_178] : memref<9x64x64xf32, #tpu.memory_space<vmem>>, vector<1x64x64xf32>
    %253 = vector.shape_cast %252 : vector<1x64x64xf32> to vector<64x64xf32>
    %cst_179 = arith.constant dense<0.000000e+00> : vector<2x64xf32>
    %254 = tpu.matmul %251, %253, %cst_179 {dimension_numbers = #tpu.dot_dimension_numbers<[1], [0], [0], [1], [0, 0, 1, 1], [], []>} : vector<2x64xf32>, vector<64x64xf32>, vector<2x64xf32> -> vector<2x64xf32>
    %255 = arith.addf %250, %254 : vector<2x64xf32>
    %c0_180 = arith.constant 0 : index
    %c0_181 = arith.constant 0 : index
    %256 = vector.load %arg10[%c0_180, %c0_181] : memref<1x64xf32, #tpu.memory_space<vmem>>, vector<1x64xf32>
    %257 = vector.broadcast %256 : vector<1x64xf32> to vector<2x64xf32>
    %258 = arith.addf %255, %257 : vector<2x64xf32>
    %cst_182 = arith.constant 0.000000e+00 : f32
    %259 = vector.broadcast %cst_182 : f32 to vector<2x64xf32>
    %260 = arith.maximumf %258, %259 : vector<2x64xf32>
    %c0_183 = arith.constant 0 : index
    %c0_184 = arith.constant 0 : index
    %261 = vector.load %arg16[%c0_183, %c0_184] : memref<2x128xf32, #tpu.memory_space<vmem>>, vector<2x64xf32>
    tpu.vector_store %arg16[%c0_183, %c0_184], %260 {strides = array<i32>} : memref<2x128xf32, #tpu.memory_space<vmem>>, vector<2x64xf32>,
    return
  }
  func.func @transform_0(%arg0: i32) -> (i32, i32) {
    %c0_i32 = arith.constant 0 : i32
    %c0_i32_0 = arith.constant 0 : i32
    %c0_i32_1 = arith.constant 0 : i32
    return %c0_i32, %c0_i32_0 : i32, i32
  }
  func.func @transform_1(%arg0: i32) -> (i32, i32) {
    %c0_i32 = arith.constant 0 : i32
    %c0_i32_0 = arith.constant 0 : i32
    %c0_i32_1 = arith.constant 0 : i32
    return %c0_i32, %c0_i32_0 : i32, i32
  }
  func.func @transform_2(%arg0: i32) -> (i32, i32) {
    %c0_i32 = arith.constant 0 : i32
    %c0_i32_0 = arith.constant 0 : i32
    %c0_i32_1 = arith.constant 0 : i32
    return %c0_i32, %c0_i32_0 : i32, i32
  }
  func.func @transform_3(%arg0: i32) -> (i32, i32, i32) {
    %c0_i32 = arith.constant 0 : i32
    %c0_i32_0 = arith.constant 0 : i32
    %c0_i32_1 = arith.constant 0 : i32
    %c0_i32_2 = arith.constant 0 : i32
    return %c0_i32, %c0_i32_0, %c0_i32_1 : i32, i32, i32
  }
  func.func @transform_4(%arg0: i32) -> (i32, i32) {
    %c0_i32 = arith.constant 0 : i32
    %c0_i32_0 = arith.constant 0 : i32
    %c0_i32_1 = arith.constant 0 : i32
    return %c0_i32, %c0_i32_0 : i32, i32
  }
  func.func @transform_5(%arg0: i32) -> (i32, i32) {
    %c0_i32 = arith.constant 0 : i32
    %c0_i32_0 = arith.constant 0 : i32
    %c0_i32_1 = arith.constant 0 : i32
    return %c0_i32, %c0_i32_0 : i32, i32
  }
  func.func @transform_6(%arg0: i32) -> (i32, i32, i32) {
    %c0_i32 = arith.constant 0 : i32
    %c0_i32_0 = arith.constant 0 : i32
    %c0_i32_1 = arith.constant 0 : i32
    %c0_i32_2 = arith.constant 0 : i32
    return %c0_i32, %c0_i32_0, %c0_i32_1 : i32, i32, i32
  }
  func.func @transform_7(%arg0: i32) -> (i32, i32) {
    %c0_i32 = arith.constant 0 : i32
    %c0_i32_0 = arith.constant 0 : i32
    %c0_i32_1 = arith.constant 0 : i32
    return %c0_i32, %c0_i32_0 : i32, i32
  }
  func.func @transform_8(%arg0: i32) -> (i32, i32, i32) {
    %c0_i32 = arith.constant 0 : i32
    %c0_i32_0 = arith.constant 0 : i32
    %c0_i32_1 = arith.constant 0 : i32
    %c0_i32_2 = arith.constant 0 : i32
    return %c0_i32, %c0_i32_0, %c0_i32_1 : i32, i32, i32
  }
  func.func @transform_9(%arg0: i32) -> (i32, i32) {
    %c0_i32 = arith.constant 0 : i32
    %c0_i32_0 = arith.constant 0 : i32
    %c0_i32_1 = arith.constant 0 : i32
    return %c0_i32, %c0_i32_0 : i32, i32
  }
  func.func @transform_10(%arg0: i32) -> (i32, i32) {
    %c0_i32 = arith.constant 0 : i32
    %c0_i32_0 = arith.constant 0 : i32
    %c0_i32_1 = arith.constant 0 : i32
    return %c0_i32, %c0_i32_0 : i32, i32
  }
  func.func @transform_11(%arg0: i32) -> (i32, i32) {
    %c0_i32 = arith.constant 0 : i32
    %c0_i32_0 = arith.constant 0 : i32
    %c0_i32_1 = arith.constant 0 : i32
    return %c0_i32, %c0_i32_0 : i32, i32
  }
  func.func @transform_12(%arg0: i32) -> (i32, i32) {
    %c0_i32 = arith.constant 0 : i32
    %c0_i32_0 = arith.constant 0 : i32
    %c0_i32_1 = arith.constant 0 : i32
    return %c0_i32, %c0_i32_0 : i32, i32
  }
  func.func @transform_13(%arg0: i32) -> (i32, i32) {
    %c0_i32 = arith.constant 0 : i32
    %c0_i32_0 = arith.constant 0 : i32
    %c0_i32_1 = arith.constant 0 : i32
    return %c0_i32, %c0_i32_0 : i32, i32
  }
  func.func @transform_14(%arg0: i32) -> (i32, i32) {
    %c0_i32 = arith.constant 0 : i32
    %c0_i32_0 = arith.constant 0 : i32
    %c0_i32_1 = arith.constant 0 : i32
    return %c0_i32, %c0_i32_0 : i32, i32
  }
  func.func @transform_15(%arg0: i32) -> (i32, i32) {
    %c0_i32 = arith.constant 0 : i32
    %c0_i32_0 = arith.constant 0 : i32
    %c0_i32_1 = arith.constant 0 : i32
    return %c0_i32, %c0_i32_0 : i32, i32
  }
}

</mosaic_0001>

<llo_original>
// kernel: perception_forward.2
$region0: #{perception_forward.2}
  #allocation0 [shape = 'u32[]', space=smem, size = 0x4, offset = 0x4, fixed_abs, tag = 'smem constant byte address 0x4 - core index']
  #allocation1 [shape = 'u32[72,128]{1,0:T(1,128)}', space=vmem, size = 0x9000, scoped, tag = 'internal scratch']
  %s0 = inlined_call_operand.vmem [shape: bf16[2912,75], index: 0, kind: input, shape index: {}]
  %s1 = inlined_call_operand.vmem [shape: bf16[75,24], index: 1, kind: input, shape index: {}]
  %s2 = inlined_call_operand.vmem [shape: f32[1,24], index: 2, kind: input, shape index: {}]
  %s3 = inlined_call_operand.vmem [shape: bf16[2912,24], index: 3, kind: output, shape index: {}]
  %s4 = sld [smem:[#allocation0]]
  $region45: #{perception_forward.2} parent=0
    _
  %s6 = ssub.s32 1, %s4
  %s7 = scalar_select 0, %s6, %s4
  loop: start=0, step=1, limit=4
  $region2: #{perception_forward.2} parent=0 // loop_pre_header
    _
  $region3: #{perception_forward.2} parent=0 // loop_header
    %s9 = sphi 0, %s13
    %p10 = scmp.ge.s32.totalorder %s9, 4
    %s19 = sphi 0, %s21
    %s22 = sphi 0, %s19
    %s23 = sphi 0, %s22
    %s39 = sphi 0, %s23
    %s43 = sphi 0, %s43
    %s45 = sphi 0, %s43
    %s46 = sphi 0, %s45
    %s60 = sphi 0, %s46
    %s64 = sphi 0, %s64
    %s66 = sphi 0, %s64
    %s67 = sphi 0, %s66
    %s81 = sphi 0, %s67
    %s87 = sphi 0, %s89
    %s90 = sphi 0, %s87
    %s91 = sphi 0, %s90
    %s107 = sphi 0, %s91
  $region4: #{perception_forward.2} parent=0 // loop_header_branch
    %12 = sbr.rel (%p10) target = $region8
  $region5: #{perception_forward.2} parent=0 // loop_body
    %s14 = ssub.s32 %s9, 1
    %s15 = ssub.s32 %s9, 2
    %s16 = sadd.s32 %s9, 1
    %s17 = ssub.s32 %s9, %s16
    %p18 = scmp.eq.s32.totalorder %s17, 0
    %s20 = sadd.s32 %s19, 1
    %s21 = scalar_select %p18, %s19, %s20
    %p24 = pneg %p18
    %p25 = scmp.eq.s32.totalorder %s9, 1
    %p26 = por %p24, %p25
    %p27 = scmp.ne.s32.totalorder %s19, %s22
    %p28 = scmp.eq.s32.totalorder %s9, 0
    %p29 = por %p27, %p28
    %p30 = scmp.ne.s32.totalorder %s19, %s22
    %p31 = scmp.eq.s32.totalorder %s14, 1
    %p32 = por %p30, %p31
    %p33 = scmp.ne.s32.totalorder %s22, %s23
    %p34 = scmp.eq.s32.totalorder %s14, 0
    %p35 = por %p33, %p34
    %p36 = scmp.ne.s32.totalorder %s22, %s23
    %p37 = scmp.eq.s32.totalorder %s15, 1
    %p38 = por %p36, %p37
    %p40 = scmp.ne.s32.totalorder %s23, %s39
    %p41 = scmp.eq.s32.totalorder %s15, 0
    %p42 = por %p40, %p41
    %s44 = sadd.s32 %s43, 1
    %p47 = scmp.eq.s32.totalorder %s9, 1
    %p48 = scmp.ne.s32.totalorder %s43, %s45
    %p49 = scmp.eq.s32.totalorder %s9, 0
    %p50 = por %p48, %p49
    %p51 = scmp.ne.s32.totalorder %s43, %s45
    %p52 = scmp.eq.s32.totalorder %s14, 1
    %p53 = por %p51, %p52
    %p54 = scmp.ne.s32.totalorder %s45, %s46
    %p55 = scmp.eq.s32.totalorder %s14, 0
    %p56 = por %p54, %p55
    %p57 = scmp.ne.s32.totalorder %s45, %s46
    %p58 = scmp.eq.s32.totalorder %s15, 1
    %p59 = por %p57, %p58
    %p61 = scmp.ne.s32.totalorder %s46, %s60
    %p62 = scmp.eq.s32.totalorder %s15, 0
    %p63 = por %p61, %p62
    %s65 = sadd.s32 %s64, 1
    %p68 = scmp.eq.s32.totalorder %s9, 1
    %p69 = scmp.ne.s32.totalorder %s64, %s66
    %p70 = scmp.eq.s32.totalorder %s9, 0
    %p71 = por %p69, %p70
    %p72 = scmp.ne.s32.totalorder %s64, %s66
    %p73 = scmp.eq.s32.totalorder %s14, 1
    %p74 = por %p72, %p73
    %p75 = scmp.ne.s32.totalorder %s66, %s67
    %p76 = scmp.eq.s32.totalorder %s14, 0
    %p77 = por %p75, %p76
    %p78 = scmp.ne.s32.totalorder %s66, %s67
    %p79 = scmp.eq.s32.totalorder %s15, 1
    %p80 = por %p78, %p79
    %p82 = scmp.ne.s32.totalorder %s67, %s81
    %p83 = scmp.eq.s32.totalorder %s15, 0
    %p84 = por %p82, %p83
    %s85 = ssub.s32 %s9, %s16
    %p86 = scmp.eq.s32.totalorder %s85, 0
    %s88 = sadd.s32 %s87, 1
    %s89 = scalar_select %p86, %s87, %s88
    %p92 = pneg %p86
    %p93 = scmp.eq.s32.totalorder %s9, 1
    %p94 = por %p92, %p93
    %p95 = scmp.ne.s32.totalorder %s87, %s90
    %p96 = scmp.eq.s32.totalorder %s9, 0
    %p97 = por %p95, %p96
    %p98 = scmp.ne.s32.totalorder %s87, %s90
    %p99 = scmp.eq.s32.totalorder %s14, 1
    %p100 = por %p98, %p99
    %p101 = scmp.ne.s32.totalorder %s90, %s91
    %p102 = scmp.eq.s32.totalorder %s14, 0
    %p103 = por %p101, %p102
    %p104 = scmp.ne.s32.totalorder %s90, %s91
    %p105 = scmp.eq.s32.totalorder %s15, 1
    %p106 = por %p104, %p105
    %p108 = scmp.ne.s32.totalorder %s91, %s107
    %p109 = scmp.eq.s32.totalorder %s15, 0
    %p110 = por %p108, %p109
    %p111 = scmp.le.s32.totalorder 1, %s9
    %p112 = scmp.lt.s32.totalorder %s9, 3
    %p113 = pnand %p111, %p112
    %p114 = pneg %p113
    // Predicated region
    $region9: #{perception_forward.2} parent=5 // pred_check
      _
    $region10: #{perception_forward.2} parent=5 // pred_check_branch
      %116 = sbr.rel (%p113) target = $region12
    $region11: #{perception_forward.2} parent=5 // pred_region
      %s117 = ssub.s32 %s9, 1
      // Predicated region
      $region13: #{perception_forward.2} parent=11 // pred_check
        %p118 = pneg %p56
      $region14: #{perception_forward.2} parent=11 // pred_check_branch
        %120 = sbr.rel (%p118) target = $region16
      $region15: #{perception_forward.2} parent=11 // pred_region
        _
      $region16: #{perception_forward.2} parent=11 // pred_fallthru
        _
      // Predicated region
      $region17: #{perception_forward.2} parent=11 // pred_check
        %p121 = pneg %p77
      $region18: #{perception_forward.2} parent=11 // pred_check_branch
        %123 = sbr.rel (%p121) target = $region20
      $region19: #{perception_forward.2} parent=11 // pred_region
        _
      $region20: #{perception_forward.2} parent=11 // pred_fallthru
        _
    $region12: #{perception_forward.2} parent=5 // pred_fallthru
      _
    %p124 = scmp.lt.s32.totalorder %s9, 2
    // Predicated region
    $region21: #{perception_forward.2} parent=5 // pred_check
      %p125 = pneg %p124
    $region22: #{perception_forward.2} parent=5 // pred_check_branch
      %127 = sbr.rel (%p125) target = $region24
    $region23: #{perception_forward.2} parent=5 // pred_region
      // Predicated region
      $region25: #{perception_forward.2} parent=23 // pred_check
        %p128 = pneg %p29
      $region26: #{perception_forward.2} parent=23 // pred_check_branch
        %130 = sbr.rel (%p128) target = $region28
      $region27: #{perception_forward.2} parent=23 // pred_region
        %s131 = smul.u32 182, %s9
        %p132 = scmp.lt.s32.totalorder %s131, 363
        %s133 = scalar_select %p132, %s131, 363
        %s134 = smul.addr %s133, 4
        %s135 = scalar_lea.vmem %s0, %s134
        %s136 = smul.u32 182, %s9
      $region28: #{perception_forward.2} parent=23 // pred_fallthru
        _
    $region24: #{perception_forward.2} parent=5 // pred_fallthru
      _
    %p137 = scmp.le.s32.totalorder 1, %s9
    %p138 = scmp.lt.s32.totalorder %s9, 3
    %p139 = pnand %p137, %p138
    %p140 = pneg %p139
    // Predicated region
    $region29: #{perception_forward.2} parent=5 // pred_check
      _
    $region30: #{perception_forward.2} parent=5 // pred_check_branch
      %142 = sbr.rel (%p139) target = $region32
    $region31: #{perception_forward.2} parent=5 // pred_region
      %s143 = ssub.s32 %s9, 1
      %s144 = smul.u32 182, %s14
      %p145 = scmp.lt.s32.totalorder %s144, 363
      %s146 = scalar_select %p145, %s144, 363
      %s147 = smul.addr %s146, 4
      %s148 = scalar_lea.vmem %s0, %s147
      %p149 = pneg %p35
      %p150 = pneg %p32
      %p151 = pneg %p56
      %p152 = pneg %p53
      %p153 = pneg %p77
      %p154 = pneg %p74
      %p155 = pneg %p103
      %p156 = pneg %p100
      %s157 = smul.u32 182, %s14
      %p158 = scmp.lt.s32.totalorder %s157, 363
      %s159 = scalar_select %p158, %s157, 363
      %s160 = smul.addr %s159, 4
      %s161 = scalar_lea.vmem %s3, %s160
      %s162 = smul.u32 182, %s14
      %p163 = scmp.lt.s32.totalorder %s162, 363
      %s164 = scalar_select %p163, %s162, 363
      %s165 = smul.addr %s164, 4
      %s166 = scalar_lea.vmem %s0, %s165
      %s167 = smul.u32 182, %s14
      %s168 = smul.u32 182, %s14
      %p169 = scmp.lt.s32.totalorder %s168, 363
      %s170 = scalar_select %p169, %s168, 363
      %s171 = smul.addr %s170, 4
      %s172 = scalar_lea.vmem %s3, %s171
      %s173 = smul.u32 182, %s14
      %v175 = vld [vmem:[%s166] sm:$0xf]
      %v176 = vld [vmem:[%s166 + $0x4] sm:$0xf]
      %v177 = vld [vmem:[%s166 + $0x8] sm:$0xf]
      %v178 = vld [vmem:[%s166 + $0xc] sm:$0xf]
      %v179 = vld [vmem:[%s166 + $0x10] sm:$0xf]
      %v180 = vld [vmem:[%s166 + $0x14] sm:$0xf]
      %v181 = vld [vmem:[%s166 + $0x18] sm:$0xf]
      %v182 = vld [vmem:[%s166 + $0x1c] sm:$0xf]
      %v183 = vld [vmem:[%s166 + $0x20] sm:$0xf]
      %v184 = vld [vmem:[%s166 + $0x24] sm:$0xf]
      %v185 = vld [vmem:[%s166 + $0x28] sm:$0xf]
      %v186 = vld [vmem:[%s166 + $0x2c] sm:$0xf]
      %v187 = vld [vmem:[%s166 + $0x30] sm:$0xf]
      %v188 = vld [vmem:[%s166 + $0x34] sm:$0xf]
      %v189 = vld [vmem:[%s166 + $0x38] sm:$0xf]
      %v190 = vld [vmem:[%s166 + $0x3c] sm:$0xf]
      %v191 = vld [vmem:[%s166 + $0x40] sm:$0xf]
      %v192 = vld [vmem:[%s166 + $0x44] sm:$0xf]
      %v193 = vld [vmem:[%s166 + $0x48] sm:$0xf]
      %v194 = vld [vmem:[%s166 + $0x4c] sm:$0xf]
      %v195 = vld [vmem:[%s166 + $0x50] sm:$0xf]
      %v196 = vld [vmem:[%s166 + $0x54] sm:$0xf]
      %v197 = vld [vmem:[%s166 + $0x58] sm:$0xf]
      %v198 = vld [vmem:[%s166 + $0x5c] sm:$0xf]
      %v199 = vld [vmem:[%s166 + $0x60] sm:$0xf]
      %v200 = vld [vmem:[%s166 + $0x64] sm:$0xf]
      %v201 = vld [vmem:[%s166 + $0x68] sm:$0xf]
      %v202 = vld [vmem:[%s166 + $0x6c] sm:$0xf]
      %v203 = vld [vmem:[%s166 + $0x70] sm:$0xf]
      %v204 = vld [vmem:[%s166 + $0x74] sm:$0xf]
      %v205 = vld [vmem:[%s166 + $0x78] sm:$0xf]
      %v206 = vld [vmem:[%s166 + $0x7c] sm:$0xf]
      %v207 = vld [vmem:[%s166 + $0x80] sm:$0xf]
      %v208 = vld [vmem:[%s166 + $0x84] sm:$0xf]
      %v209 = vld [vmem:[%s166 + $0x88] sm:$0xf]
      %v210 = vld [vmem:[%s166 + $0x8c] sm:$0xf]
      %v211 = vld [vmem:[%s166 + $0x90] sm:$0xf]
      %v212 = vld [vmem:[%s166 + $0x94] sm:$0xf]
      %v213 = vld [vmem:[%s166 + $0x98] sm:$0xf]
      %v214 = vld [vmem:[%s166 + $0x9c] sm:$0xf]
      %v215 = vld [vmem:[%s166 + $0xa0] sm:$0xf]
      %v216 = vld [vmem:[%s166 + $0xa4] sm:$0xf]
      %v217 = vld [vmem:[%s166 + $0xa8] sm:$0xf]
      %v218 = vld [vmem:[%s166 + $0xac] sm:$0xf]
      %v219 = vld [vmem:[%s166 + $0xb0] sm:$0xf]
      %v220 = vld [vmem:[%s166 + $0xb4] sm:$0xf]
      %v221 = vld [vmem:[%s166 + $0xb8] sm:$0xf]
      %v222 = vld [vmem:[%s166 + $0xbc] sm:$0xf]
      %v223 = vld [vmem:[%s166 + $0xc0] sm:$0xf]
      %v224 = vld [vmem:[%s166 + $0xc4] sm:$0xf]
      %v225 = vld [vmem:[%s166 + $0xc8] sm:$0xf]
      %v226 = vld [vmem:[%s166 + $0xcc] sm:$0xf]
      %v227 = vld [vmem:[%s166 + $0xd0] sm:$0xf]
      %v228 = vld [vmem:[%s166 + $0xd4] sm:$0xf]
      %v229 = vld [vmem:[%s166 + $0xd8] sm:$0xf]
      %v230 = vld [vmem:[%s166 + $0xdc] sm:$0xf]
      %v231 = vld [vmem:[%s166 + $0xe0] sm:$0xf]
      %v232 = vld [vmem:[%s166 + $0xe4] sm:$0xf]
      %v233 = vld [vmem:[%s166 + $0xe8] sm:$0xf]
      %v234 = vld [vmem:[%s166 + $0xec] sm:$0xf]
      %v235 = vld [vmem:[%s166 + $0xf0] sm:$0xf]
      %v236 = vld [vmem:[%s166 + $0xf4] sm:$0xf]
      %v237 = vld [vmem:[%s166 + $0xf8] sm:$0xf]
      %v238 = vld [vmem:[%s166 + $0xfc] sm:$0xf]
      %v239 = vld [vmem:[%s166 + $0x100] sm:$0xf]
      %v240 = vld [vmem:[%s166 + $0x104] sm:$0xf]
      %v241 = vld [vmem:[%s166 + $0x108] sm:$0xf]
      %v242 = vld [vmem:[%s166 + $0x10c] sm:$0xf]
      %v243 = vld [vmem:[%s166 + $0x110] sm:$0xf]
      %v244 = vld [vmem:[%s166 + $0x114] sm:$0xf]
      %v245 = vld [vmem:[%s166 + $0x118] sm:$0xf]
      %v246 = vld [vmem:[%s166 + $0x11c] sm:$0xf]
      %v247 = vld [vmem:[%s166 + $0x120] sm:$0xf]
      %v248 = vld [vmem:[%s166 + $0x124] sm:$0xf]
      %v249 = vld [vmem:[%s166 + $0x128] sm:$0xf]
      %v250 = vld [vmem:[%s166 + $0x12c] sm:$0xf]
      %v251 = vld [vmem:[%s166 + $0x130] sm:$0xf]
      %v252 = vld [vmem:[%s166 + $0x134] sm:$0xf]
      %v253 = vld [vmem:[%s166 + $0x138] sm:$0xf]
      %v254 = vld [vmem:[%s166 + $0x13c] sm:$0xf]
      %v255 = vld [vmem:[%s166 + $0x140] sm:$0xf]
      %v256 = vld [vmem:[%s166 + $0x144] sm:$0xf]
      %v257 = vld [vmem:[%s166 + $0x148] sm:$0xf]
      %v258 = vld [vmem:[%s166 + $0x14c] sm:$0xf]
      %v259 = vld [vmem:[%s166 + $0x150] sm:$0xf]
      %v260 = vld [vmem:[%s166 + $0x154] sm:$0xf]
      %v261 = vld [vmem:[%s166 + $0x158] sm:$0xf]
      %v262 = vld [vmem:[%s166 + $0x15c] sm:$0xf]
      %v263 = vld [vmem:[%s166 + $0x160] sm:$0xf]
      %v264 = vld [vmem:[%s166 + $0x164] sm:$0xf]
      %v265 = vld [vmem:[%s166 + $0x168] sm:$0xf]
      %v266 = vld [vmem:[%s166 + $0x16c] sm:$0xf]
      %v267 = vld [vmem:[%s166 + $0x170] sm:$0xf]
      %v268 = vld [vmem:[%s166 + $0x174] sm:$0xf]
      %v269 = vld [vmem:[%s166 + $0x178] sm:$0xf]
      %v270 = vld [vmem:[%s166 + $0x17c] sm:$0xf]
      %v271 = vld [vmem:[%s166 + $0x180] sm:$0xf]
      %v272 = vld [vmem:[%s166 + $0x184] sm:$0xf]
      %v273 = vld [vmem:[%s166 + $0x188] sm:$0xf]
      %v274 = vld [vmem:[%s166 + $0x18c] sm:$0xf]
      %v275 = vld [vmem:[%s166 + $0x190] sm:$0xf]
      %v276 = vld [vmem:[%s166 + $0x194] sm:$0xf]
      %v277 = vld [vmem:[%s166 + $0x198] sm:$0xf]
      %v278 = vld [vmem:[%s166 + $0x19c] sm:$0xf]
      %v279 = vld [vmem:[%s166 + $0x1a0] sm:$0xf]
      %v280 = vld [vmem:[%s166 + $0x1a4] sm:$0xf]
      %v281 = vld [vmem:[%s166 + $0x1a8] sm:$0xf]
      %v282 = vld [vmem:[%s166 + $0x1ac] sm:$0xf]
      %v283 = vld [vmem:[%s166 + $0x1b0] sm:$0xf]
      %v284 = vld [vmem:[%s166 + $0x1b4] sm:$0xf]
      %v285 = vld [vmem:[%s166 + $0x1b8] sm:$0xf]
      %v286 = vld [vmem:[%s166 + $0x1bc] sm:$0xf]
      %v287 = vld [vmem:[%s166 + $0x1c0] sm:$0xf]
      %v288 = vld [vmem:[%s166 + $0x1c4] sm:$0xf]
      %v289 = vld [vmem:[%s166 + $0x1c8] sm:$0xf]
      %v290 = vld [vmem:[%s166 + $0x1cc] sm:$0xf]
      %v291 = vld [vmem:[%s166 + $0x1d0] sm:$0xf]
      %v292 = vld [vmem:[%s166 + $0x1d4] sm:$0xf]
      %v293 = vld [vmem:[%s166 + $0x1d8] sm:$0xf]
      %v294 = vld [vmem:[%s166 + $0x1dc] sm:$0xf]
      %v295 = vld [vmem:[%s166 + $0x1e0] sm:$0xf]
      %v296 = vld [vmem:[%s166 + $0x1e4] sm:$0xf]
      %v297 = vld [vmem:[%s166 + $0x1e8] sm:$0xf]
      %v298 = vld [vmem:[%s166 + $0x1ec] sm:$0xf]
      %v299 = vld [vmem:[%s166 + $0x1f0] sm:$0xf]
      %v300 = vld [vmem:[%s166 + $0x1f4] sm:$0xf]
      %v301 = vld [vmem:[%s166 + $0x1f8] sm:$0xf]
      %v302 = vld [vmem:[%s166 + $0x1fc] sm:$0xf]
      %v303 = vld [vmem:[%s166 + $0x200] sm:$0xf]
      %v304 = vld [vmem:[%s166 + $0x204] sm:$0xf]
      %v305 = vld [vmem:[%s166 + $0x208] sm:$0xf]
      %v306 = vld [vmem:[%s166 + $0x20c] sm:$0xf]
      %v307 = vld [vmem:[%s166 + $0x210] sm:$0xf]
      %v308 = vld [vmem:[%s166 + $0x214] sm:$0xf]
      %v309 = vld [vmem:[%s166 + $0x218] sm:$0xf]
      %v310 = vld [vmem:[%s166 + $0x21c] sm:$0xf]
      %v311 = vld [vmem:[%s166 + $0x220] sm:$0xf]
      %v312 = vld [vmem:[%s166 + $0x224] sm:$0xf]
      %v313 = vld [vmem:[%s166 + $0x228] sm:$0xf]
      %v314 = vld [vmem:[%s166 + $0x22c] sm:$0xf]
      %v315 = vld [vmem:[%s166 + $0x230] sm:$0xf]
      %v316 = vld [vmem:[%s166 + $0x234] sm:$0xf]
      %v317 = vld [vmem:[%s166 + $0x238] sm:$0xf]
      %v318 = vld [vmem:[%s166 + $0x23c] sm:$0xf]
      %v319 = vld [vmem:[%s166 + $0x240] sm:$0xf]
      %v320 = vld [vmem:[%s166 + $0x244] sm:$0xf]
      %v321 = vld [vmem:[%s166 + $0x248] sm:$0xf]
      %v322 = vld [vmem:[%s166 + $0x24c] sm:$0xf]
      %v323 = vld [vmem:[%s166 + $0x250] sm:$0xf]
      %v324 = vld [vmem:[%s166 + $0x254] sm:$0xf]
      %v325 = vld [vmem:[%s166 + $0x258] sm:$0xf]
      %v326 = vld [vmem:[%s166 + $0x25c] sm:$0xf]
      %v327 = vld [vmem:[%s166 + $0x260] sm:$0xf]
      %v328 = vld [vmem:[%s166 + $0x264] sm:$0xf]
      %v329 = vld [vmem:[%s166 + $0x268] sm:$0xf]
      %v330 = vld [vmem:[%s166 + $0x26c] sm:$0xf]
      %v331 = vld [vmem:[%s166 + $0x270] sm:$0xf]
      %v332 = vld [vmem:[%s166 + $0x274] sm:$0xf]
      %v333 = vld [vmem:[%s166 + $0x278] sm:$0xf]
      %v334 = vld [vmem:[%s166 + $0x27c] sm:$0xf]
      %v335 = vld [vmem:[%s166 + $0x280] sm:$0xf]
      %v336 = vld [vmem:[%s166 + $0x284] sm:$0xf]
      %v337 = vld [vmem:[%s166 + $0x288] sm:$0xf]
      %v338 = vld [vmem:[%s166 + $0x28c] sm:$0xf]
      %v339 = vld [vmem:[%s166 + $0x290] sm:$0xf]
      %v340 = vld [vmem:[%s166 + $0x294] sm:$0xf]
      %v341 = vld [vmem:[%s166 + $0x298] sm:$0xf]
      %v342 = vld [vmem:[%s166 + $0x29c] sm:$0xf]
      %v343 = vld [vmem:[%s166 + $0x2a0] sm:$0xf]
      %v344 = vld [vmem:[%s166 + $0x2a4] sm:$0xf]
      %v345 = vld [vmem:[%s166 + $0x2a8] sm:$0xf]
      %v346 = vld [vmem:[%s166 + $0x2ac] sm:$0xf]
      %v347 = vld [vmem:[%s166 + $0x2b0] sm:$0xf]
      %v348 = vld [vmem:[%s166 + $0x2b4] sm:$0xf]
      %v349 = vld [vmem:[%s166 + $0x2b8] sm:$0xf]
      %v350 = vld [vmem:[%s166 + $0x2bc] sm:$0xf]
      %v351 = vld [vmem:[%s166 + $0x2c0] sm:$0xf]
      %v352 = vld [vmem:[%s166 + $0x2c4] sm:$0xf]
      %v353 = vld [vmem:[%s166 + $0x2c8] sm:$0xf]
      %v354 = vld [vmem:[%s166 + $0x2cc] sm:$0xf]
      %v355 = vld [vmem:[%s166 + $0x2d0] sm:$0xf]
      %v356 = vld [vmem:[%s166 + $0x2d4] sm:$0xf]
      %v357 = vld [vmem:[%s1] sm:$0xf]
      %v358 = vld [vmem:[%s1 + $0x4] sm:$0xf]
      %v359 = vld [vmem:[%s1 + $0x8] sm:$0xf]
      %v360 = vld [vmem:[%s1 + $0xc] sm:$0xf]
      %v361 = vld [vmem:[%s1 + $0x10] sm:$0xf]
      %v362 = vld [vmem:[%s1 + $0x14] sm:$0xf]
      %v363 = vld [vmem:[%s1 + $0x18] sm:$0xf]
      %v364 = vld [vmem:[%s1 + $0x1c] sm:$0xf]
      %v365 = vld [vmem:[%s1 + $0x20] sm:$0xf]
      %v366 = vld [vmem:[%s1 + $0x24] sm:$0x3]
      %v367 = vld [vmem:[%s2] sm:$0x1]
      %v369 = vperm.slane %v367, 0
      %v553 = vunpack.c.l.b16 %v175
      %v554 = vunpack.c.l.b16 %v176
      %v555 = vunpack.c.l.b16 %v177
      %v556 = vunpack.c.l.b16 %v178
      %v557 = vunpack.c.l.b16 %v179
      %v558 = vunpack.c.l.b16 %v180
      %v559 = vunpack.c.l.b16 %v181
      %v560 = vunpack.c.l.b16 %v182
      %v561 = vunpack.c.l.b16 %v183
      %v562 = vunpack.c.l.b16 %v184
      %v563 = vunpack.c.l.b16 %v185
      %v564 = vunpack.c.l.b16 %v186
      %v565 = vunpack.c.l.b16 %v187
      %v566 = vunpack.c.l.b16 %v188
      %v567 = vunpack.c.l.b16 %v189
      %v568 = vunpack.c.l.b16 %v190
      %v569 = vunpack.c.l.b16 %v191
      %v570 = vunpack.c.l.b16 %v192
      %v571 = vunpack.c.l.b16 %v193
      %v572 = vunpack.c.l.b16 %v194
      %v573 = vunpack.c.l.b16 %v195
      %v574 = vunpack.c.l.b16 %v196
      %v575 = vunpack.c.l.b16 %v197
      %v576 = vunpack.c.l.b16 %v198
      %v577 = vunpack.c.l.b16 %v199
      %v578 = vunpack.c.l.b16 %v200
      %v579 = vunpack.c.l.b16 %v201
      %v580 = vunpack.c.l.b16 %v202
      %v581 = vunpack.c.l.b16 %v203
      %v582 = vunpack.c.l.b16 %v204
      %v583 = vunpack.c.l.b16 %v205
      %v584 = vunpack.c.l.b16 %v206
      %v585 = vunpack.c.l.b16 %v207
      %v586 = vunpack.c.l.b16 %v208
      %v587 = vunpack.c.l.b16 %v209
      %v588 = vunpack.c.l.b16 %v210
      %v589 = vunpack.c.l.b16 %v211
      %v590 = vunpack.c.l.b16 %v212
      %v591 = vunpack.c.l.b16 %v213
      %v592 = vunpack.c.l.b16 %v214
      %v593 = vunpack.c.l.b16 %v215
      %v594 = vunpack.c.l.b16 %v216
      %v595 = vunpack.c.l.b16 %v217
      %v596 = vunpack.c.l.b16 %v218
      %v597 = vunpack.c.l.b16 %v219
      %v598 = vunpack.c.l.b16 %v220
      %v599 = vunpack.c.l.b16 %v221
      %v600 = vunpack.c.l.b16 %v222
      %v601 = vunpack.c.l.b16 %v223
      %v602 = vunpack.c.l.b16 %v224
      %v603 = vunpack.c.l.b16 %v225
      %v604 = vunpack.c.l.b16 %v226
      %v605 = vunpack.c.l.b16 %v227
      %v606 = vunpack.c.l.b16 %v228
      %v607 = vunpack.c.l.b16 %v229
      %v608 = vunpack.c.l.b16 %v230
      %v609 = vunpack.c.l.b16 %v231
      %v610 = vunpack.c.l.b16 %v232
      %v611 = vunpack.c.l.b16 %v233
      %v612 = vunpack.c.l.b16 %v234
      %v613 = vunpack.c.l.b16 %v235
      %v614 = vunpack.c.l.b16 %v236
      %v615 = vunpack.c.l.b16 %v237
      %v616 = vunpack.c.l.b16 %v238
      %v617 = vunpack.c.l.b16 %v239
      %v618 = vunpack.c.l.b16 %v240
      %v619 = vunpack.c.l.b16 %v241
      %v620 = vunpack.c.l.b16 %v242
      %v621 = vunpack.c.l.b16 %v243
      %v622 = vunpack.c.l.b16 %v244
      %v623 = vunpack.c.l.b16 %v245
      %v624 = vunpack.c.l.b16 %v246
      %v625 = vunpack.c.l.b16 %v247
      %v626 = vunpack.c.l.b16 %v248
      %v627 = vunpack.c.l.b16 %v249
      %v628 = vunpack.c.l.b16 %v250
      %v629 = vunpack.c.l.b16 %v251
      %v630 = vunpack.c.l.b16 %v252
      %v631 = vunpack.c.l.b16 %v253
      %v632 = vunpack.c.l.b16 %v254
      %v633 = vunpack.c.l.b16 %v255
      %v634 = vunpack.c.l.b16 %v256
      %v635 = vunpack.c.l.b16 %v257
      %v636 = vunpack.c.l.b16 %v258
      %v637 = vunpack.c.l.b16 %v259
      %v638 = vunpack.c.l.b16 %v260
      %v639 = vunpack.c.l.b16 %v261
      %v640 = vunpack.c.l.b16 %v262
      %v641 = vunpack.c.l.b16 %v263
      %v642 = vunpack.c.l.b16 %v264
      %v643 = vunpack.c.l.b16 %v265
      %v644 = vunpack.c.l.b16 %v266
      %v645 = vunpack.c.l.b16 %v267
      %v646 = vunpack.c.l.b16 %v268
      %v647 = vunpack.c.l.b16 %v269
      %v648 = vunpack.c.l.b16 %v270
      %v649 = vunpack.c.l.b16 %v271
      %v650 = vunpack.c.l.b16 %v272
      %v651 = vunpack.c.l.b16 %v273
      %v652 = vunpack.c.l.b16 %v274
      %v653 = vunpack.c.l.b16 %v275
      %v654 = vunpack.c.l.b16 %v276
      %v655 = vunpack.c.l.b16 %v277
      %v656 = vunpack.c.l.b16 %v278
      %v657 = vunpack.c.l.b16 %v279
      %v658 = vunpack.c.l.b16 %v280
      %v659 = vunpack.c.l.b16 %v281
      %v660 = vunpack.c.l.b16 %v282
      %v661 = vunpack.c.l.b16 %v283
      %v662 = vunpack.c.l.b16 %v284
      %v663 = vunpack.c.l.b16 %v285
      %v664 = vunpack.c.l.b16 %v286
      %v665 = vunpack.c.l.b16 %v287
      %v666 = vunpack.c.l.b16 %v288
      %v667 = vunpack.c.l.b16 %v289
      %v668 = vunpack.c.l.b16 %v290
      %v669 = vunpack.c.l.b16 %v291
      %v670 = vunpack.c.l.b16 %v292
      %v671 = vunpack.c.l.b16 %v293
      %v672 = vunpack.c.l.b16 %v294
      %v673 = vunpack.c.l.b16 %v295
      %v674 = vunpack.c.l.b16 %v296
      %v675 = vunpack.c.l.b16 %v297
      %v676 = vunpack.c.l.b16 %v298
      %v677 = vunpack.c.l.b16 %v299
      %v678 = vunpack.c.l.b16 %v300
      %v679 = vunpack.c.l.b16 %v301
      %v680 = vunpack.c.l.b16 %v302
      %v681 = vunpack.c.l.b16 %v303
      %v682 = vunpack.c.l.b16 %v304
      %v683 = vunpack.c.l.b16 %v305
      %v684 = vunpack.c.l.b16 %v306
      %v685 = vunpack.c.l.b16 %v307
      %v686 = vunpack.c.l.b16 %v308
      %v687 = vunpack.c.l.b16 %v309
      %v688 = vunpack.c.l.b16 %v310
      %v689 = vunpack.c.l.b16 %v311
      %v690 = vunpack.c.l.b16 %v312
      %v691 = vunpack.c.l.b16 %v313
      %v692 = vunpack.c.l.b16 %v314
      %v693 = vunpack.c.l.b16 %v315
      %v694 = vunpack.c.l.b16 %v316
      %v695 = vunpack.c.l.b16 %v317
      %v696 = vunpack.c.l.b16 %v318
      %v697 = vunpack.c.l.b16 %v319
      %v698 = vunpack.c.l.b16 %v320
      %v699 = vunpack.c.l.b16 %v321
      %v700 = vunpack.c.l.b16 %v322
      %v701 = vunpack.c.l.b16 %v323
      %v702 = vunpack.c.l.b16 %v324
      %v703 = vunpack.c.l.b16 %v325
      %v704 = vunpack.c.l.b16 %v326
      %v705 = vunpack.c.l.b16 %v327
      %v706 = vunpack.c.l.b16 %v328
      %v707 = vunpack.c.l.b16 %v329
      %v708 = vunpack.c.l.b16 %v330
      %v709 = vunpack.c.l.b16 %v331
      %v710 = vunpack.c.l.b16 %v332
      %v711 = vunpack.c.l.b16 %v333
      %v712 = vunpack.c.l.b16 %v334
      %v713 = vunpack.c.l.b16 %v335
      %v714 = vunpack.c.l.b16 %v336
      %v715 = vunpack.c.l.b16 %v337
      %v716 = vunpack.c.l.b16 %v338
      %v717 = vunpack.c.l.b16 %v339
      %v718 = vunpack.c.l.b16 %v340
      %v719 = vunpack.c.l.b16 %v341
      %v720 = vunpack.c.l.b16 %v342
      %v721 = vunpack.c.l.b16 %v343
      %v722 = vunpack.c.l.b16 %v344
      %v723 = vunpack.c.l.b16 %v345
      %v724 = vunpack.c.l.b16 %v346
      %v725 = vunpack.c.l.b16 %v347
      %v726 = vunpack.c.l.b16 %v348
      %v727 = vunpack.c.l.b16 %v349
      %v728 = vunpack.c.l.b16 %v350
      %v729 = vunpack.c.l.b16 %v351
      %v730 = vunpack.c.l.b16 %v352
      %v731 = vunpack.c.l.b16 %v353
      %v732 = vunpack.c.l.b16 %v354
      %v733 = vunpack.c.l.b16 %v355
      %v734 = vunpack.c.l.b16 %v356
      %v735 = vpack.c.b16 %v554, %v553
      %v736 = vpack.c.b16 %v556, %v555
      %v737 = vpack.c.b16 %v558, %v557
      %v738 = vpack.c.b16 %v560, %v559
      %v739 = vpack.c.b16 %v562, %v561
      %v740 = vpack.c.b16 %v564, %v563
      %v741 = vpack.c.b16 %v566, %v565
      %v742 = vpack.c.b16 %v568, %v567
      %v743 = vpack.c.b16 %v570, %v569
      %v744 = vpack.c.b16 %v572, %v571
      %v745 = vpack.c.b16 %v574, %v573
      %v746 = vpack.c.b16 %v576, %v575
      %v747 = vpack.c.b16 %v578, %v577
      %v748 = vpack.c.b16 %v580, %v579
      %v749 = vpack.c.b16 %v582, %v581
      %v750 = vpack.c.b16 %v584, %v583
      %v751 = vpack.c.b16 %v586, %v585
      %v752 = vpack.c.b16 %v588, %v587
      %v753 = vpack.c.b16 %v590, %v589
      %v754 = vpack.c.b16 %v592, %v591
      %v755 = vpack.c.b16 %v594, %v593
      %v756 = vpack.c.b16 %v596, %v595
      %v757 = vpack.c.b16 %v598, %v597
      %v758 = vpack.c.b16 %v600, %v599
      %v759 = vpack.c.b16 %v602, %v601
      %v760 = vpack.c.b16 %v604, %v603
      %v761 = vpack.c.b16 %v606, %v605
      %v762 = vpack.c.b16 %v608, %v607
      %v763 = vpack.c.b16 %v610, %v609
      %v764 = vpack.c.b16 %v612, %v611
      %v765 = vpack.c.b16 %v614, %v613
      %v766 = vpack.c.b16 %v616, %v615
      %v767 = vpack.c.b16 %v618, %v617
      %v768 = vpack.c.b16 %v620, %v619
      %v769 = vpack.c.b16 %v622, %v621
      %v770 = vpack.c.b16 %v624, %v623
      %v771 = vpack.c.b16 %v626, %v625
      %v772 = vpack.c.b16 %v628, %v627
      %v773 = vpack.c.b16 %v630, %v629
      %v774 = vpack.c.b16 %v632, %v631
      %v775 = vpack.c.b16 %v634, %v633
      %v776 = vpack.c.b16 %v636, %v635
      %v777 = vpack.c.b16 %v638, %v637
      %v778 = vpack.c.b16 %v640, %v639
      %v779 = vpack.c.b16 %v642, %v641
      %v780 = vpack.c.b16 %v644, %v643
      %v781 = vpack.c.b16 %v646, %v645
      %v782 = vpack.c.b16 %v648, %v647
      %v783 = vpack.c.b16 %v650, %v649
      %v784 = vpack.c.b16 %v652, %v651
      %v785 = vpack.c.b16 %v654, %v653
      %v786 = vpack.c.b16 %v656, %v655
      %v787 = vpack.c.b16 %v658, %v657
      %v788 = vpack.c.b16 %v660, %v659
      %v789 = vpack.c.b16 %v662, %v661
      %v790 = vpack.c.b16 %v664, %v663
      %v791 = vpack.c.b16 %v666, %v665
      %v792 = vpack.c.b16 %v668, %v667
      %v793 = vpack.c.b16 %v670, %v669
      %v794 = vpack.c.b16 %v672, %v671
      %v795 = vpack.c.b16 %v674, %v673
      %v796 = vpack.c.b16 %v676, %v675
      %v797 = vpack.c.b16 %v678, %v677
      %v798 = vpack.c.b16 %v680, %v679
      %v799 = vpack.c.b16 %v682, %v681
      %v800 = vpack.c.b16 %v684, %v683
      %v801 = vpack.c.b16 %v686, %v685
      %v802 = vpack.c.b16 %v688, %v687
      %v803 = vpack.c.b16 %v690, %v689
      %v804 = vpack.c.b16 %v692, %v691
      %v805 = vpack.c.b16 %v694, %v693
      %v806 = vpack.c.b16 %v696, %v695
      %v807 = vpack.c.b16 %v698, %v697
      %v808 = vpack.c.b16 %v700, %v699
      %v809 = vpack.c.b16 %v702, %v701
      %v810 = vpack.c.b16 %v704, %v703
      %v811 = vpack.c.b16 %v706, %v705
      %v812 = vpack.c.b16 %v708, %v707
      %v813 = vpack.c.b16 %v710, %v709
      %v814 = vpack.c.b16 %v712, %v711
      %v815 = vpack.c.b16 %v714, %v713
      %v816 = vpack.c.b16 %v716, %v715
      %v817 = vpack.c.b16 %v718, %v717
      %v818 = vpack.c.b16 %v720, %v719
      %v819 = vpack.c.b16 %v722, %v721
      %v820 = vpack.c.b16 %v724, %v723
      %v821 = vpack.c.b16 %v726, %v725
      %v822 = vpack.c.b16 %v728, %v727
      %v823 = vpack.c.b16 %v730, %v729
      %v824 = vpack.c.b16 %v732, %v731
      %v825 = vpack.c.b16 %v734, %v733
      %v836 = vunpack.c.l.b16 %v357
      %v837 = vunpack.c.l.b16 %v358
      %v838 = vunpack.c.l.b16 %v359
      %v839 = vunpack.c.l.b16 %v360
      %v840 = vunpack.c.l.b16 %v361
      %v841 = vunpack.c.l.b16 %v362
      %v842 = vunpack.c.l.b16 %v363
      %v843 = vunpack.c.l.b16 %v364
      %v844 = vunpack.c.l.b16 %v365
      %v845 = vunpack.c.l.b16 %v366
      %v846 = vpack.c.b16 %v837, %v836
      %v847 = vpack.c.b16 %v839, %v838
      %v848 = vpack.c.b16 %v841, %v840
      %v849 = vpack.c.b16 %v843, %v842
      %v850 = vpack.c.b16 %v845, %v844
      %vm855 = vcmask 613376
      %v857 = vsel %vm855, %v735, 0
      %v860 = vsel %vm855, %v736, 0
      %v863 = vsel %vm855, %v737, 0
      %v866 = vsel %vm855, %v738, 0
      %v869 = vsel %vm855, %v739, 0
      %v872 = vsel %vm855, %v740, 0
      %v875 = vsel %vm855, %v741, 0
      %v878 = vsel %vm855, %v742, 0
      %v881 = vsel %vm855, %v743, 0
      %v884 = vsel %vm855, %v744, 0
      %v887 = vsel %vm855, %v745, 0
      %v890 = vsel %vm855, %v746, 0
      %v893 = vsel %vm855, %v747, 0
      %v896 = vsel %vm855, %v748, 0
      %v899 = vsel %vm855, %v749, 0
      %v902 = vsel %vm855, %v750, 0
      %v905 = vsel %vm855, %v751, 0
      %v908 = vsel %vm855, %v752, 0
      %v911 = vsel %vm855, %v753, 0
      %v914 = vsel %vm855, %v754, 0
      %v917 = vsel %vm855, %v755, 0
      %v920 = vsel %vm855, %v756, 0
      %v923 = vsel %vm855, %v757, 0
      %v926 = vsel %vm855, %v758, 0
      %v929 = vsel %vm855, %v759, 0
      %v932 = vsel %vm855, %v760, 0
      %v935 = vsel %vm855, %v761, 0
      %v938 = vsel %vm855, %v762, 0
      %v941 = vsel %vm855, %v763, 0
      %v944 = vsel %vm855, %v764, 0
      %v947 = vsel %vm855, %v765, 0
      %v950 = vsel %vm855, %v766, 0
      %v953 = vsel %vm855, %v767, 0
      %v956 = vsel %vm855, %v768, 0
      %v959 = vsel %vm855, %v769, 0
      %v962 = vsel %vm855, %v770, 0
      %v965 = vsel %vm855, %v771, 0
      %v968 = vsel %vm855, %v772, 0
      %v971 = vsel %vm855, %v773, 0
      %v974 = vsel %vm855, %v774, 0
      %v977 = vsel %vm855, %v775, 0
      %v980 = vsel %vm855, %v776, 0
      %v983 = vsel %vm855, %v777, 0
      %v986 = vsel %vm855, %v778, 0
      %v989 = vsel %vm855, %v779, 0
      %v992 = vsel %vm855, %v780, 0
      %v995 = vsel %vm855, %v781, 0
      %v998 = vsel %vm855, %v782, 0
      %v1001 = vsel %vm855, %v783, 0
      %v1004 = vsel %vm855, %v784, 0
      %v1007 = vsel %vm855, %v785, 0
      %v1010 = vsel %vm855, %v786, 0
      %v1013 = vsel %vm855, %v787, 0
      %v1016 = vsel %vm855, %v788, 0
      %v1019 = vsel %vm855, %v789, 0
      %v1022 = vsel %vm855, %v790, 0
      %v1025 = vsel %vm855, %v791, 0
      %v1028 = vsel %vm855, %v792, 0
      %v1031 = vsel %vm855, %v793, 0
      %v1034 = vsel %vm855, %v794, 0
      %v1037 = vsel %vm855, %v795, 0
      %v1040 = vsel %vm855, %v796, 0
      %v1043 = vsel %vm855, %v797, 0
      %v1046 = vsel %vm855, %v798, 0
      %v1049 = vsel %vm855, %v799, 0
      %v1052 = vsel %vm855, %v800, 0
      %v1055 = vsel %vm855, %v801, 0
      %v1058 = vsel %vm855, %v802, 0
      %v1061 = vsel %vm855, %v803, 0
      %v1064 = vsel %vm855, %v804, 0
      %v1067 = vsel %vm855, %v805, 0
      %v1070 = vsel %vm855, %v806, 0
      %v1073 = vsel %vm855, %v807, 0
      %v1076 = vsel %vm855, %v808, 0
      %v1079 = vsel %vm855, %v809, 0
      %v1082 = vsel %vm855, %v810, 0
      %v1085 = vsel %vm855, %v811, 0
      %v1088 = vsel %vm855, %v812, 0
      %v1091 = vsel %vm855, %v813, 0
      %v1094 = vsel %vm855, %v814, 0
      %v1097 = vsel %vm855, %v815, 0
      %v1100 = vsel %vm855, %v816, 0
      %v1103 = vsel %vm855, %v817, 0
      %v1106 = vsel %vm855, %v818, 0
      %v1109 = vsel %vm855, %v819, 0
      %v1112 = vsel %vm855, %v820, 0
      %v1115 = vsel %vm855, %v821, 0
      %v1118 = vsel %vm855, %v822, 0
      %v1121 = vsel %vm855, %v823, 0
      %v1124 = vsel %vm855, %v824, 0
      %v1127 = vsel %vm855, %v825, 0
      %vm1129 = vcmask 1044480
      %vm1130 = vcmask 1045504
      %v1131 = vsel %vm1129, 4294967295, 65535
      %v1132 = vsel %vm1130, %v1131, 0
      %v1134 = vand.u32 %v850, %v1132
      %1136 = vmatpush.bf16.msra.mxu0 0
      %1137 = vmatpush.bf16.msra.mxu0 0
      %1138 = vmatpush.bf16.msra.mxu0 0
      %1139 = vmatpush.bf16.msra.mxu0 %v1134
      %1140 = vmatpush.bf16.msra.mxu0 %v849
      %1141 = vmatpush.bf16.msra.mxu0 %v848
      %1142 = vmatpush.bf16.msra.mxu0 %v847
      %1143 = vmatpush.bf16.msra.mxu0 %v846
      %1144 = vmatmul.bf16.gmra.mxu0 %v857
      %v1145 = vpop.f32.mrf.mxu0
      %v1146 = vadd.f32 %v369, %v1145
      %v1147 = vpop.f32.mrf.mxu0
      %v1148 = vadd.f32 %v369, %v1147
      %1149 = vmatmul.bf16.gmra.mxu0 %v860
      %v1150 = vpop.f32.mrf.mxu0
      %v1151 = vadd.f32 %v369, %v1150
      %v1152 = vpop.f32.mrf.mxu0
      %v1153 = vadd.f32 %v369, %v1152
      %1154 = vmatmul.bf16.gmra.mxu0 %v863
      %v1155 = vpop.f32.mrf.mxu0
      %v1156 = vadd.f32 %v369, %v1155
      %v1157 = vpop.f32.mrf.mxu0
      %v1158 = vadd.f32 %v369, %v1157
      %1159 = vmatmul.bf16.gmra.mxu0 %v866
      %v1160 = vpop.f32.mrf.mxu0
      %v1161 = vadd.f32 %v369, %v1160
      %v1162 = vpop.f32.mrf.mxu0
      %v1163 = vadd.f32 %v369, %v1162
      %1164 = vmatmul.bf16.gmra.mxu0 %v869
      %v1165 = vpop.f32.mrf.mxu0
      %v1166 = vadd.f32 %v369, %v1165
      %v1167 = vpop.f32.mrf.mxu0
      %v1168 = vadd.f32 %v369, %v1167
      %1169 = vmatmul.bf16.gmra.mxu0 %v872
      %v1170 = vpop.f32.mrf.mxu0
      %v1171 = vadd.f32 %v369, %v1170
      %v1172 = vpop.f32.mrf.mxu0
      %v1173 = vadd.f32 %v369, %v1172
      %1174 = vmatmul.bf16.gmra.mxu0 %v875
      %v1175 = vpop.f32.mrf.mxu0
      %v1176 = vadd.f32 %v369, %v1175
      %v1177 = vpop.f32.mrf.mxu0
      %v1178 = vadd.f32 %v369, %v1177
      %1179 = vmatmul.bf16.gmra.mxu0 %v878
      %v1180 = vpop.f32.mrf.mxu0
      %v1181 = vadd.f32 %v369, %v1180
      %v1182 = vpop.f32.mrf.mxu0
      %v1183 = vadd.f32 %v369, %v1182
      %1184 = vmatmul.bf16.gmra.mxu0 %v881
      %v1185 = vpop.f32.mrf.mxu0
      %v1186 = vadd.f32 %v369, %v1185
      %v1187 = vpop.f32.mrf.mxu0
      %v1188 = vadd.f32 %v369, %v1187
      %1189 = vmatmul.bf16.gmra.mxu0 %v884
      %v1190 = vpop.f32.mrf.mxu0
      %v1191 = vadd.f32 %v369, %v1190
      %v1192 = vpop.f32.mrf.mxu0
      %v1193 = vadd.f32 %v369, %v1192
      %1194 = vmatmul.bf16.gmra.mxu0 %v887
      %v1195 = vpop.f32.mrf.mxu0
      %v1196 = vadd.f32 %v369, %v1195
      %v1197 = vpop.f32.mrf.mxu0
      %v1198 = vadd.f32 %v369, %v1197
      %1199 = vmatmul.bf16.gmra.mxu0 %v890
      %v1200 = vpop.f32.mrf.mxu0
      %v1201 = vadd.f32 %v369, %v1200
      %v1202 = vpop.f32.mrf.mxu0
      %v1203 = vadd.f32 %v369, %v1202
      %1204 = vmatmul.bf16.gmra.mxu0 %v893
      %v1205 = vpop.f32.mrf.mxu0
      %v1206 = vadd.f32 %v369, %v1205
      %v1207 = vpop.f32.mrf.mxu0
      %v1208 = vadd.f32 %v369, %v1207
      %1209 = vmatmul.bf16.gmra.mxu0 %v896
      %v1210 = vpop.f32.mrf.mxu0
      %v1211 = vadd.f32 %v369, %v1210
      %v1212 = vpop.f32.mrf.mxu0
      %v1213 = vadd.f32 %v369, %v1212
      %1214 = vmatmul.bf16.gmra.mxu0 %v899
      %v1215 = vpop.f32.mrf.mxu0
      %v1216 = vadd.f32 %v369, %v1215
      %v1217 = vpop.f32.mrf.mxu0
      %v1218 = vadd.f32 %v369, %v1217
      %1219 = vmatmul.bf16.gmra.mxu0 %v902
      %v1220 = vpop.f32.mrf.mxu0
      %v1221 = vadd.f32 %v369, %v1220
      %v1222 = vpop.f32.mrf.mxu0
      %v1223 = vadd.f32 %v369, %v1222
      %1224 = vmatmul.bf16.gmra.mxu0 %v905
      %v1225 = vpop.f32.mrf.mxu0
      %v1226 = vadd.f32 %v369, %v1225
      %v1227 = vpop.f32.mrf.mxu0
      %v1228 = vadd.f32 %v369, %v1227
      %1229 = vmatmul.bf16.gmra.mxu0 %v908
      %v1230 = vpop.f32.mrf.mxu0
      %v1231 = vadd.f32 %v369, %v1230
      %v1232 = vpop.f32.mrf.mxu0
      %v1233 = vadd.f32 %v369, %v1232
      %1234 = vmatmul.bf16.gmra.mxu0 %v911
      %v1235 = vpop.f32.mrf.mxu0
      %v1236 = vadd.f32 %v369, %v1235
      %v1237 = vpop.f32.mrf.mxu0
      %v1238 = vadd.f32 %v369, %v1237
      %1239 = vmatmul.bf16.gmra.mxu0 %v914
      %v1240 = vpop.f32.mrf.mxu0
      %v1241 = vadd.f32 %v369, %v1240
      %v1242 = vpop.f32.mrf.mxu0
      %v1243 = vadd.f32 %v369, %v1242
      %1244 = vmatmul.bf16.gmra.mxu0 %v917
      %v1245 = vpop.f32.mrf.mxu0
      %v1246 = vadd.f32 %v369, %v1245
      %v1247 = vpop.f32.mrf.mxu0
      %v1248 = vadd.f32 %v369, %v1247
      %1249 = vmatmul.bf16.gmra.mxu0 %v920
      %v1250 = vpop.f32.mrf.mxu0
      %v1251 = vadd.f32 %v369, %v1250
      %v1252 = vpop.f32.mrf.mxu0
      %v1253 = vadd.f32 %v369, %v1252
      %1254 = vmatmul.bf16.gmra.mxu0 %v923
      %v1255 = vpop.f32.mrf.mxu0
      %v1256 = vadd.f32 %v369, %v1255
      %v1257 = vpop.f32.mrf.mxu0
      %v1258 = vadd.f32 %v369, %v1257
      %1259 = vmatmul.bf16.gmra.mxu0 %v926
      %v1260 = vpop.f32.mrf.mxu0
      %v1261 = vadd.f32 %v369, %v1260
      %v1262 = vpop.f32.mrf.mxu0
      %v1263 = vadd.f32 %v369, %v1262
      %1264 = vmatmul.bf16.gmra.mxu0 %v929
      %v1265 = vpop.f32.mrf.mxu0
      %v1266 = vadd.f32 %v369, %v1265
      %v1267 = vpop.f32.mrf.mxu0
      %v1268 = vadd.f32 %v369, %v1267
      %1269 = vmatmul.bf16.gmra.mxu0 %v932
      %v1270 = vpop.f32.mrf.mxu0
      %v1271 = vadd.f32 %v369, %v1270
      %v1272 = vpop.f32.mrf.mxu0
      %v1273 = vadd.f32 %v369, %v1272
      %1274 = vmatmul.bf16.gmra.mxu0 %v935
      %v1275 = vpop.f32.mrf.mxu0
      %v1276 = vadd.f32 %v369, %v1275
      %v1277 = vpop.f32.mrf.mxu0
      %v1278 = vadd.f32 %v369, %v1277
      %1279 = vmatmul.bf16.gmra.mxu0 %v938
      %v1280 = vpop.f32.mrf.mxu0
      %v1281 = vadd.f32 %v369, %v1280
      %v1282 = vpop.f32.mrf.mxu0
      %v1283 = vadd.f32 %v369, %v1282
      %1284 = vmatmul.bf16.gmra.mxu0 %v941
      %v1285 = vpop.f32.mrf.mxu0
      %v1286 = vadd.f32 %v369, %v1285
      %v1287 = vpop.f32.mrf.mxu0
      %v1288 = vadd.f32 %v369, %v1287
      %1289 = vmatmul.bf16.gmra.mxu0 %v944
      %v1290 = vpop.f32.mrf.mxu0
      %v1291 = vadd.f32 %v369, %v1290
      %v1292 = vpop.f32.mrf.mxu0
      %v1293 = vadd.f32 %v369, %v1292
      %1294 = vmatmul.bf16.gmra.mxu0 %v947
      %v1295 = vpop.f32.mrf.mxu0
      %v1296 = vadd.f32 %v369, %v1295
      %v1297 = vpop.f32.mrf.mxu0
      %v1298 = vadd.f32 %v369, %v1297
      %1299 = vmatmul.bf16.gmra.mxu0 %v950
      %v1300 = vpop.f32.mrf.mxu0
      %v1301 = vadd.f32 %v369, %v1300
      %v1302 = vpop.f32.mrf.mxu0
      %v1303 = vadd.f32 %v369, %v1302
      %1304 = vmatmul.bf16.gmra.mxu0 %v953
      %v1305 = vpop.f32.mrf.mxu0
      %v1306 = vadd.f32 %v369, %v1305
      %v1307 = vpop.f32.mrf.mxu0
      %v1308 = vadd.f32 %v369, %v1307
      %1309 = vmatmul.bf16.gmra.mxu0 %v956
      %v1310 = vpop.f32.mrf.mxu0
      %v1311 = vadd.f32 %v369, %v1310
      %v1312 = vpop.f32.mrf.mxu0
      %v1313 = vadd.f32 %v369, %v1312
      %1314 = vmatmul.bf16.gmra.mxu0 %v959
      %v1315 = vpop.f32.mrf.mxu0
      %v1316 = vadd.f32 %v369, %v1315
      %v1317 = vpop.f32.mrf.mxu0
      %v1318 = vadd.f32 %v369, %v1317
      %1319 = vmatmul.bf16.gmra.mxu0 %v962
      %v1320 = vpop.f32.mrf.mxu0
      %v1321 = vadd.f32 %v369, %v1320
      %v1322 = vpop.f32.mrf.mxu0
      %v1323 = vadd.f32 %v369, %v1322
      %1324 = vmatmul.bf16.gmra.mxu0 %v965
      %v1325 = vpop.f32.mrf.mxu0
      %v1326 = vadd.f32 %v369, %v1325
      %v1327 = vpop.f32.mrf.mxu0
      %v1328 = vadd.f32 %v369, %v1327
      %1329 = vmatmul.bf16.gmra.mxu0 %v968
      %v1330 = vpop.f32.mrf.mxu0
      %v1331 = vadd.f32 %v369, %v1330
      %v1332 = vpop.f32.mrf.mxu0
      %v1333 = vadd.f32 %v369, %v1332
      %1334 = vmatmul.bf16.gmra.mxu0 %v971
      %v1335 = vpop.f32.mrf.mxu0
      %v1336 = vadd.f32 %v369, %v1335
      %v1337 = vpop.f32.mrf.mxu0
      %v1338 = vadd.f32 %v369, %v1337
      %1339 = vmatmul.bf16.gmra.mxu0 %v974
      %v1340 = vpop.f32.mrf.mxu0
      %v1341 = vadd.f32 %v369, %v1340
      %v1342 = vpop.f32.mrf.mxu0
      %v1343 = vadd.f32 %v369, %v1342
      %1344 = vmatmul.bf16.gmra.mxu0 %v977
      %v1345 = vpop.f32.mrf.mxu0
      %v1346 = vadd.f32 %v369, %v1345
      %v1347 = vpop.f32.mrf.mxu0
      %v1348 = vadd.f32 %v369, %v1347
      %1349 = vmatmul.bf16.gmra.mxu0 %v980
      %v1350 = vpop.f32.mrf.mxu0
      %v1351 = vadd.f32 %v369, %v1350
      %v1352 = vpop.f32.mrf.mxu0
      %v1353 = vadd.f32 %v369, %v1352
      %1354 = vmatmul.bf16.gmra.mxu0 %v983
      %v1355 = vpop.f32.mrf.mxu0
      %v1356 = vadd.f32 %v369, %v1355
      %v1357 = vpop.f32.mrf.mxu0
      %v1358 = vadd.f32 %v369, %v1357
      %1359 = vmatmul.bf16.gmra.mxu0 %v986
      %v1360 = vpop.f32.mrf.mxu0
      %v1361 = vadd.f32 %v369, %v1360
      %v1362 = vpop.f32.mrf.mxu0
      %v1363 = vadd.f32 %v369, %v1362
      %1364 = vmatmul.bf16.gmra.mxu0 %v989
      %v1365 = vpop.f32.mrf.mxu0
      %v1366 = vadd.f32 %v369, %v1365
      %v1367 = vpop.f32.mrf.mxu0
      %v1368 = vadd.f32 %v369, %v1367
      %1369 = vmatmul.bf16.gmra.mxu0 %v992
      %v1370 = vpop.f32.mrf.mxu0
      %v1371 = vadd.f32 %v369, %v1370
      %v1372 = vpop.f32.mrf.mxu0
      %v1373 = vadd.f32 %v369, %v1372
      %1374 = vmatmul.bf16.gmra.mxu0 %v995
      %v1375 = vpop.f32.mrf.mxu0
      %v1376 = vadd.f32 %v369, %v1375
      %v1377 = vpop.f32.mrf.mxu0
      %v1378 = vadd.f32 %v369, %v1377
      %1379 = vmatmul.bf16.gmra.mxu0 %v998
      %v1380 = vpop.f32.mrf.mxu0
      %v1381 = vadd.f32 %v369, %v1380
      %v1382 = vpop.f32.mrf.mxu0
      %v1383 = vadd.f32 %v369, %v1382
      %1384 = vmatmul.bf16.gmra.mxu0 %v1001
      %v1385 = vpop.f32.mrf.mxu0
      %v1386 = vadd.f32 %v369, %v1385
      %v1387 = vpop.f32.mrf.mxu0
      %v1388 = vadd.f32 %v369, %v1387
      %1389 = vmatmul.bf16.gmra.mxu0 %v1004
      %v1390 = vpop.f32.mrf.mxu0
      %v1391 = vadd.f32 %v369, %v1390
      %v1392 = vpop.f32.mrf.mxu0
      %v1393 = vadd.f32 %v369, %v1392
      %1394 = vmatmul.bf16.gmra.mxu0 %v1007
      %v1395 = vpop.f32.mrf.mxu0
      %v1396 = vadd.f32 %v369, %v1395
      %v1397 = vpop.f32.mrf.mxu0
      %v1398 = vadd.f32 %v369, %v1397
      %1399 = vmatmul.bf16.gmra.mxu0 %v1010
      %v1400 = vpop.f32.mrf.mxu0
      %v1401 = vadd.f32 %v369, %v1400
      %v1402 = vpop.f32.mrf.mxu0
      %v1403 = vadd.f32 %v369, %v1402
      %1404 = vmatmul.bf16.gmra.mxu0 %v1013
      %v1405 = vpop.f32.mrf.mxu0
      %v1406 = vadd.f32 %v369, %v1405
      %v1407 = vpop.f32.mrf.mxu0
      %v1408 = vadd.f32 %v369, %v1407
      %1409 = vmatmul.bf16.gmra.mxu0 %v1016
      %v1410 = vpop.f32.mrf.mxu0
      %v1411 = vadd.f32 %v369, %v1410
      %v1412 = vpop.f32.mrf.mxu0
      %v1413 = vadd.f32 %v369, %v1412
      %1414 = vmatmul.bf16.gmra.mxu0 %v1019
      %v1415 = vpop.f32.mrf.mxu0
      %v1416 = vadd.f32 %v369, %v1415
      %v1417 = vpop.f32.mrf.mxu0
      %v1418 = vadd.f32 %v369, %v1417
      %1419 = vmatmul.bf16.gmra.mxu0 %v1022
      %v1420 = vpop.f32.mrf.mxu0
      %v1421 = vadd.f32 %v369, %v1420
      %v1422 = vpop.f32.mrf.mxu0
      %v1423 = vadd.f32 %v369, %v1422
      %1424 = vmatmul.bf16.gmra.mxu0 %v1025
      %v1425 = vpop.f32.mrf.mxu0
      %v1426 = vadd.f32 %v369, %v1425
      %v1427 = vpop.f32.mrf.mxu0
      %v1428 = vadd.f32 %v369, %v1427
      %1429 = vmatmul.bf16.gmra.mxu0 %v1028
      %v1430 = vpop.f32.mrf.mxu0
      %v1431 = vadd.f32 %v369, %v1430
      %v1432 = vpop.f32.mrf.mxu0
      %v1433 = vadd.f32 %v369, %v1432
      %1434 = vmatmul.bf16.gmra.mxu0 %v1031
      %v1435 = vpop.f32.mrf.mxu0
      %v1436 = vadd.f32 %v369, %v1435
      %v1437 = vpop.f32.mrf.mxu0
      %v1438 = vadd.f32 %v369, %v1437
      %1439 = vmatmul.bf16.gmra.mxu0 %v1034
      %v1440 = vpop.f32.mrf.mxu0
      %v1441 = vadd.f32 %v369, %v1440
      %v1442 = vpop.f32.mrf.mxu0
      %v1443 = vadd.f32 %v369, %v1442
      %1444 = vmatmul.bf16.gmra.mxu0 %v1037
      %v1445 = vpop.f32.mrf.mxu0
      %v1446 = vadd.f32 %v369, %v1445
      %v1447 = vpop.f32.mrf.mxu0
      %v1448 = vadd.f32 %v369, %v1447
      %1449 = vmatmul.bf16.gmra.mxu0 %v1040
      %v1450 = vpop.f32.mrf.mxu0
      %v1451 = vadd.f32 %v369, %v1450
      %v1452 = vpop.f32.mrf.mxu0
      %v1453 = vadd.f32 %v369, %v1452
      %1454 = vmatmul.bf16.gmra.mxu0 %v1043
      %v1455 = vpop.f32.mrf.mxu0
      %v1456 = vadd.f32 %v369, %v1455
      %v1457 = vpop.f32.mrf.mxu0
      %v1458 = vadd.f32 %v369, %v1457
      %1459 = vmatmul.bf16.gmra.mxu0 %v1046
      %v1460 = vpop.f32.mrf.mxu0
      %v1461 = vadd.f32 %v369, %v1460
      %v1462 = vpop.f32.mrf.mxu0
      %v1463 = vadd.f32 %v369, %v1462
      %1464 = vmatmul.bf16.gmra.mxu0 %v1049
      %v1465 = vpop.f32.mrf.mxu0
      %v1466 = vadd.f32 %v369, %v1465
      %v1467 = vpop.f32.mrf.mxu0
      %v1468 = vadd.f32 %v369, %v1467
      %1469 = vmatmul.bf16.gmra.mxu0 %v1052
      %v1470 = vpop.f32.mrf.mxu0
      %v1471 = vadd.f32 %v369, %v1470
      %v1472 = vpop.f32.mrf.mxu0
      %v1473 = vadd.f32 %v369, %v1472
      %1474 = vmatmul.bf16.gmra.mxu0 %v1055
      %v1475 = vpop.f32.mrf.mxu0
      %v1476 = vadd.f32 %v369, %v1475
      %v1477 = vpop.f32.mrf.mxu0
      %v1478 = vadd.f32 %v369, %v1477
      %1479 = vmatmul.bf16.gmra.mxu0 %v1058
      %v1480 = vpop.f32.mrf.mxu0
      %v1481 = vadd.f32 %v369, %v1480
      %v1482 = vpop.f32.mrf.mxu0
      %v1483 = vadd.f32 %v369, %v1482
      %1484 = vmatmul.bf16.gmra.mxu0 %v1061
      %v1485 = vpop.f32.mrf.mxu0
      %v1486 = vadd.f32 %v369, %v1485
      %v1487 = vpop.f32.mrf.mxu0
      %v1488 = vadd.f32 %v369, %v1487
      %1489 = vmatmul.bf16.gmra.mxu0 %v1064
      %v1490 = vpop.f32.mrf.mxu0
      %v1491 = vadd.f32 %v369, %v1490
      %v1492 = vpop.f32.mrf.mxu0
      %v1493 = vadd.f32 %v369, %v1492
      %1494 = vmatmul.bf16.gmra.mxu0 %v1067
      %v1495 = vpop.f32.mrf.mxu0
      %v1496 = vadd.f32 %v369, %v1495
      %v1497 = vpop.f32.mrf.mxu0
      %v1498 = vadd.f32 %v369, %v1497
      %1499 = vmatmul.bf16.gmra.mxu0 %v1070
      %v1500 = vpop.f32.mrf.mxu0
      %v1501 = vadd.f32 %v369, %v1500
      %v1502 = vpop.f32.mrf.mxu0
      %v1503 = vadd.f32 %v369, %v1502
      %1504 = vmatmul.bf16.gmra.mxu0 %v1073
      %v1505 = vpop.f32.mrf.mxu0
      %v1506 = vadd.f32 %v369, %v1505
      %v1507 = vpop.f32.mrf.mxu0
      %v1508 = vadd.f32 %v369, %v1507
      %1509 = vmatmul.bf16.gmra.mxu0 %v1076
      %v1510 = vpop.f32.mrf.mxu0
      %v1511 = vadd.f32 %v369, %v1510
      %v1512 = vpop.f32.mrf.mxu0
      %v1513 = vadd.f32 %v369, %v1512
      %1514 = vmatmul.bf16.gmra.mxu0 %v1079
      %v1515 = vpop.f32.mrf.mxu0
      %v1516 = vadd.f32 %v369, %v1515
      %v1517 = vpop.f32.mrf.mxu0
      %v1518 = vadd.f32 %v369, %v1517
      %1519 = vmatmul.bf16.gmra.mxu0 %v1082
      %v1520 = vpop.f32.mrf.mxu0
      %v1521 = vadd.f32 %v369, %v1520
      %v1522 = vpop.f32.mrf.mxu0
      %v1523 = vadd.f32 %v369, %v1522
      %1524 = vmatmul.bf16.gmra.mxu0 %v1085
      %v1525 = vpop.f32.mrf.mxu0
      %v1526 = vadd.f32 %v369, %v1525
      %v1527 = vpop.f32.mrf.mxu0
      %v1528 = vadd.f32 %v369, %v1527
      %1529 = vmatmul.bf16.gmra.mxu0 %v1088
      %v1530 = vpop.f32.mrf.mxu0
      %v1531 = vadd.f32 %v369, %v1530
      %v1532 = vpop.f32.mrf.mxu0
      %v1533 = vadd.f32 %v369, %v1532
      %1534 = vmatmul.bf16.gmra.mxu0 %v1091
      %v1535 = vpop.f32.mrf.mxu0
      %v1536 = vadd.f32 %v369, %v1535
      %v1537 = vpop.f32.mrf.mxu0
      %v1538 = vadd.f32 %v369, %v1537
      %1539 = vmatmul.bf16.gmra.mxu0 %v1094
      %v1540 = vpop.f32.mrf.mxu0
      %v1541 = vadd.f32 %v369, %v1540
      %v1542 = vpop.f32.mrf.mxu0
      %v1543 = vadd.f32 %v369, %v1542
      %1544 = vmatmul.bf16.gmra.mxu0 %v1097
      %v1545 = vpop.f32.mrf.mxu0
      %v1546 = vadd.f32 %v369, %v1545
      %v1547 = vpop.f32.mrf.mxu0
      %v1548 = vadd.f32 %v369, %v1547
      %1549 = vmatmul.bf16.gmra.mxu0 %v1100
      %v1550 = vpop.f32.mrf.mxu0
      %v1551 = vadd.f32 %v369, %v1550
      %v1552 = vpop.f32.mrf.mxu0
      %v1553 = vadd.f32 %v369, %v1552
      %1554 = vmatmul.bf16.gmra.mxu0 %v1103
      %v1555 = vpop.f32.mrf.mxu0
      %v1556 = vadd.f32 %v369, %v1555
      %v1557 = vpop.f32.mrf.mxu0
      %v1558 = vadd.f32 %v369, %v1557
      %1559 = vmatmul.bf16.gmra.mxu0 %v1106
      %v1560 = vpop.f32.mrf.mxu0
      %v1561 = vadd.f32 %v369, %v1560
      %v1562 = vpop.f32.mrf.mxu0
      %v1563 = vadd.f32 %v369, %v1562
      %1564 = vmatmul.bf16.gmra.mxu0 %v1109
      %v1565 = vpop.f32.mrf.mxu0
      %v1566 = vadd.f32 %v369, %v1565
      %v1567 = vpop.f32.mrf.mxu0
      %v1568 = vadd.f32 %v369, %v1567
      %1569 = vmatmul.bf16.gmra.mxu0 %v1112
      %v1570 = vpop.f32.mrf.mxu0
      %v1571 = vadd.f32 %v369, %v1570
      %v1572 = vpop.f32.mrf.mxu0
      %v1573 = vadd.f32 %v369, %v1572
      %1574 = vmatmul.bf16.gmra.mxu0 %v1115
      %v1575 = vpop.f32.mrf.mxu0
      %v1576 = vadd.f32 %v369, %v1575
      %v1577 = vpop.f32.mrf.mxu0
      %v1578 = vadd.f32 %v369, %v1577
      %1579 = vmatmul.bf16.gmra.mxu0 %v1118
      %v1580 = vpop.f32.mrf.mxu0
      %v1581 = vadd.f32 %v369, %v1580
      %v1582 = vpop.f32.mrf.mxu0
      %v1583 = vadd.f32 %v369, %v1582
      %1584 = vmatmul.bf16.gmra.mxu0 %v1121
      %v1585 = vpop.f32.mrf.mxu0
      %v1586 = vadd.f32 %v369, %v1585
      %v1587 = vpop.f32.mrf.mxu0
      %v1588 = vadd.f32 %v369, %v1587
      %1589 = vmatmul.bf16.gmra.mxu0 %v1124
      %v1590 = vpop.f32.mrf.mxu0
      %v1591 = vadd.f32 %v369, %v1590
      %v1592 = vpop.f32.mrf.mxu0
      %v1593 = vadd.f32 %v369, %v1592
      %1594 = vmatmul.bf16.gmra.mxu0 %v1127
      %v1595 = vpop.f32.mrf.mxu0
      %v1596 = vadd.f32 %v369, %v1595
      %v1597 = vpop.f32.mrf.mxu0
      %v1598 = vadd.f32 %v369, %v1597
      %1599 = vdwg.mxu0
      %v1600 = vmax.f32 %v1146, 0.0
      %v1601 = vmax.f32 %v1148, 0.0
      %v1602 = vmax.f32 %v1151, 0.0
      %v1603 = vmax.f32 %v1153, 0.0
      %v1604 = vmax.f32 %v1156, 0.0
      %v1605 = vmax.f32 %v1158, 0.0
      %v1606 = vmax.f32 %v1161, 0.0
      %v1607 = vmax.f32 %v1163, 0.0
      %v1608 = vmax.f32 %v1166, 0.0
      %v1609 = vmax.f32 %v1168, 0.0
      %v1610 = vmax.f32 %v1171, 0.0
      %v1611 = vmax.f32 %v1173, 0.0
      %v1612 = vmax.f32 %v1176, 0.0
      %v1613 = vmax.f32 %v1178, 0.0
      %v1614 = vmax.f32 %v1181, 0.0
      %v1615 = vmax.f32 %v1183, 0.0
      %v1616 = vmax.f32 %v1186, 0.0
      %v1617 = vmax.f32 %v1188, 0.0
      %v1618 = vmax.f32 %v1191, 0.0
      %v1619 = vmax.f32 %v1193, 0.0
      %v1620 = vmax.f32 %v1196, 0.0
      %v1621 = vmax.f32 %v1198, 0.0
      %v1622 = vmax.f32 %v1201, 0.0
      %v1623 = vmax.f32 %v1203, 0.0
      %v1624 = vmax.f32 %v1206, 0.0
      %v1625 = vmax.f32 %v1208, 0.0
      %v1626 = vmax.f32 %v1211, 0.0
      %v1627 = vmax.f32 %v1213, 0.0
      %v1628 = vmax.f32 %v1216, 0.0
      %v1629 = vmax.f32 %v1218, 0.0
      %v1630 = vmax.f32 %v1221, 0.0
      %v1631 = vmax.f32 %v1223, 0.0
      %v1632 = vmax.f32 %v1226, 0.0
      %v1633 = vmax.f32 %v1228, 0.0
      %v1634 = vmax.f32 %v1231, 0.0
      %v1635 = vmax.f32 %v1233, 0.0
      %v1636 = vmax.f32 %v1236, 0.0
      %v1637 = vmax.f32 %v1238, 0.0
      %v1638 = vmax.f32 %v1241, 0.0
      %v1639 = vmax.f32 %v1243, 0.0
      %v1640 = vmax.f32 %v1246, 0.0
      %v1641 = vmax.f32 %v1248, 0.0
      %v1642 = vmax.f32 %v1251, 0.0
      %v1643 = vmax.f32 %v1253, 0.0
      %v1644 = vmax.f32 %v1256, 0.0
      %v1645 = vmax.f32 %v1258, 0.0
      %v1646 = vmax.f32 %v1261, 0.0
      %v1647 = vmax.f32 %v1263, 0.0
      %v1648 = vmax.f32 %v1266, 0.0
      %v1649 = vmax.f32 %v1268, 0.0
      %v1650 = vmax.f32 %v1271, 0.0
      %v1651 = vmax.f32 %v1273, 0.0
      %v1652 = vmax.f32 %v1276, 0.0
      %v1653 = vmax.f32 %v1278, 0.0
      %v1654 = vmax.f32 %v1281, 0.0
      %v1655 = vmax.f32 %v1283, 0.0
      %v1656 = vmax.f32 %v1286, 0.0
      %v1657 = vmax.f32 %v1288, 0.0
      %v1658 = vmax.f32 %v1291, 0.0
      %v1659 = vmax.f32 %v1293, 0.0
      %v1660 = vmax.f32 %v1296, 0.0
      %v1661 = vmax.f32 %v1298, 0.0
      %v1662 = vmax.f32 %v1301, 0.0
      %v1663 = vmax.f32 %v1303, 0.0
      %v1664 = vmax.f32 %v1306, 0.0
      %v1665 = vmax.f32 %v1308, 0.0
      %v1666 = vmax.f32 %v1311, 0.0
      %v1667 = vmax.f32 %v1313, 0.0
      %v1668 = vmax.f32 %v1316, 0.0
      %v1669 = vmax.f32 %v1318, 0.0
      %v1670 = vmax.f32 %v1321, 0.0
      %v1671 = vmax.f32 %v1323, 0.0
      %v1672 = vmax.f32 %v1326, 0.0
      %v1673 = vmax.f32 %v1328, 0.0
      %v1674 = vmax.f32 %v1331, 0.0
      %v1675 = vmax.f32 %v1333, 0.0
      %v1676 = vmax.f32 %v1336, 0.0
      %v1677 = vmax.f32 %v1338, 0.0
      %v1678 = vmax.f32 %v1341, 0.0
      %v1679 = vmax.f32 %v1343, 0.0
      %v1680 = vmax.f32 %v1346, 0.0
      %v1681 = vmax.f32 %v1348, 0.0
      %v1682 = vmax.f32 %v1351, 0.0
      %v1683 = vmax.f32 %v1353, 0.0
      %v1684 = vmax.f32 %v1356, 0.0
      %v1685 = vmax.f32 %v1358, 0.0
      %v1686 = vmax.f32 %v1361, 0.0
      %v1687 = vmax.f32 %v1363, 0.0
      %v1688 = vmax.f32 %v1366, 0.0
      %v1689 = vmax.f32 %v1368, 0.0
      %v1690 = vmax.f32 %v1371, 0.0
      %v1691 = vmax.f32 %v1373, 0.0
      %v1692 = vmax.f32 %v1376, 0.0
      %v1693 = vmax.f32 %v1378, 0.0
      %v1694 = vmax.f32 %v1381, 0.0
      %v1695 = vmax.f32 %v1383, 0.0
      %v1696 = vmax.f32 %v1386, 0.0
      %v1697 = vmax.f32 %v1388, 0.0
      %v1698 = vmax.f32 %v1391, 0.0
      %v1699 = vmax.f32 %v1393, 0.0
      %v1700 = vmax.f32 %v1396, 0.0
      %v1701 = vmax.f32 %v1398, 0.0
      %v1702 = vmax.f32 %v1401, 0.0
      %v1703 = vmax.f32 %v1403, 0.0
      %v1704 = vmax.f32 %v1406, 0.0
      %v1705 = vmax.f32 %v1408, 0.0
      %v1706 = vmax.f32 %v1411, 0.0
      %v1707 = vmax.f32 %v1413, 0.0
      %v1708 = vmax.f32 %v1416, 0.0
      %v1709 = vmax.f32 %v1418, 0.0
      %v1710 = vmax.f32 %v1421, 0.0
      %v1711 = vmax.f32 %v1423, 0.0
      %v1712 = vmax.f32 %v1426, 0.0
      %v1713 = vmax.f32 %v1428, 0.0
      %v1714 = vmax.f32 %v1431, 0.0
      %v1715 = vmax.f32 %v1433, 0.0
      %v1716 = vmax.f32 %v1436, 0.0
      %v1717 = vmax.f32 %v1438, 0.0
      %v1718 = vmax.f32 %v1441, 0.0
      %v1719 = vmax.f32 %v1443, 0.0
      %v1720 = vmax.f32 %v1446, 0.0
      %v1721 = vmax.f32 %v1448, 0.0
      %v1722 = vmax.f32 %v1451, 0.0
      %v1723 = vmax.f32 %v1453, 0.0
      %v1724 = vmax.f32 %v1456, 0.0
      %v1725 = vmax.f32 %v1458, 0.0
      %v1726 = vmax.f32 %v1461, 0.0
      %v1727 = vmax.f32 %v1463, 0.0
      %v1728 = vmax.f32 %v1466, 0.0
      %v1729 = vmax.f32 %v1468, 0.0
      %v1730 = vmax.f32 %v1471, 0.0
      %v1731 = vmax.f32 %v1473, 0.0
      %v1732 = vmax.f32 %v1476, 0.0
      %v1733 = vmax.f32 %v1478, 0.0
      %v1734 = vmax.f32 %v1481, 0.0
      %v1735 = vmax.f32 %v1483, 0.0
      %v1736 = vmax.f32 %v1486, 0.0
      %v1737 = vmax.f32 %v1488, 0.0
      %v1738 = vmax.f32 %v1491, 0.0
      %v1739 = vmax.f32 %v1493, 0.0
      %v1740 = vmax.f32 %v1496, 0.0
      %v1741 = vmax.f32 %v1498, 0.0
      %v1742 = vmax.f32 %v1501, 0.0
      %v1743 = vmax.f32 %v1503, 0.0
      %v1744 = vmax.f32 %v1506, 0.0
      %v1745 = vmax.f32 %v1508, 0.0
      %v1746 = vmax.f32 %v1511, 0.0
      %v1747 = vmax.f32 %v1513, 0.0
      %v1748 = vmax.f32 %v1516, 0.0
      %v1749 = vmax.f32 %v1518, 0.0
      %v1750 = vmax.f32 %v1521, 0.0
      %v1751 = vmax.f32 %v1523, 0.0
      %v1752 = vmax.f32 %v1526, 0.0
      %v1753 = vmax.f32 %v1528, 0.0
      %v1754 = vmax.f32 %v1531, 0.0
      %v1755 = vmax.f32 %v1533, 0.0
      %v1756 = vmax.f32 %v1536, 0.0
      %v1757 = vmax.f32 %v1538, 0.0
      %v1758 = vmax.f32 %v1541, 0.0
      %v1759 = vmax.f32 %v1543, 0.0
      %v1760 = vmax.f32 %v1546, 0.0
      %v1761 = vmax.f32 %v1548, 0.0
      %v1762 = vmax.f32 %v1551, 0.0
      %v1763 = vmax.f32 %v1553, 0.0
      %v1764 = vmax.f32 %v1556, 0.0
      %v1765 = vmax.f32 %v1558, 0.0
      %v1766 = vmax.f32 %v1561, 0.0
      %v1767 = vmax.f32 %v1563, 0.0
      %v1768 = vmax.f32 %v1566, 0.0
      %v1769 = vmax.f32 %v1568, 0.0
      %v1770 = vmax.f32 %v1571, 0.0
      %v1771 = vmax.f32 %v1573, 0.0
      %v1772 = vmax.f32 %v1576, 0.0
      %v1773 = vmax.f32 %v1578, 0.0
      %v1774 = vmax.f32 %v1581, 0.0
      %v1775 = vmax.f32 %v1583, 0.0
      %v1776 = vmax.f32 %v1586, 0.0
      %v1777 = vmax.f32 %v1588, 0.0
      %v1778 = vmax.f32 %v1591, 0.0
      %v1779 = vmax.f32 %v1593, 0.0
      %v1780 = vmax.f32 %v1596, 0.0
      %v1781 = vmax.f32 %v1598, 0.0
      %v1782 = vpack.c.bf16 %v1600, %v1600
      %v1783 = vpack.c.bf16 %v1601, %v1601
      %v1784 = vpack.c.bf16 %v1602, %v1602
      %v1785 = vpack.c.bf16 %v1603, %v1603
      %v1786 = vpack.c.bf16 %v1604, %v1604
      %v1787 = vpack.c.bf16 %v1605, %v1605
      %v1788 = vpack.c.bf16 %v1606, %v1606
      %v1789 = vpack.c.bf16 %v1607, %v1607
      %v1790 = vpack.c.bf16 %v1608, %v1608
      %v1791 = vpack.c.bf16 %v1609, %v1609
      %v1792 = vpack.c.bf16 %v1610, %v1610
      %v1793 = vpack.c.bf16 %v1611, %v1611
      %v1794 = vpack.c.bf16 %v1612, %v1612
      %v1795 = vpack.c.bf16 %v1613, %v1613
      %v1796 = vpack.c.bf16 %v1614, %v1614
      %v1797 = vpack.c.bf16 %v1615, %v1615
      %v1798 = vpack.c.bf16 %v1616, %v1616
      %v1799 = vpack.c.bf16 %v1617, %v1617
      %v1800 = vpack.c.bf16 %v1618, %v1618
      %v1801 = vpack.c.bf16 %v1619, %v1619
      %v1802 = vpack.c.bf16 %v1620, %v1620
      %v1803 = vpack.c.bf16 %v1621, %v1621
      %v1804 = vpack.c.bf16 %v1622, %v1622
      %v1805 = vpack.c.bf16 %v1623, %v1623
      %v1806 = vpack.c.bf16 %v1624, %v1624
      %v1807 = vpack.c.bf16 %v1625, %v1625
      %v1808 = vpack.c.bf16 %v1626, %v1626
      %v1809 = vpack.c.bf16 %v1627, %v1627
      %v1810 = vpack.c.bf16 %v1628, %v1628
      %v1811 = vpack.c.bf16 %v1629, %v1629
      %v1812 = vpack.c.bf16 %v1630, %v1630
      %v1813 = vpack.c.bf16 %v1631, %v1631
      %v1814 = vpack.c.bf16 %v1632, %v1632
      %v1815 = vpack.c.bf16 %v1633, %v1633
      %v1816 = vpack.c.bf16 %v1634, %v1634
      %v1817 = vpack.c.bf16 %v1635, %v1635
      %v1818 = vpack.c.bf16 %v1636, %v1636
      %v1819 = vpack.c.bf16 %v1637, %v1637
      %v1820 = vpack.c.bf16 %v1638, %v1638
      %v1821 = vpack.c.bf16 %v1639, %v1639
      %v1822 = vpack.c.bf16 %v1640, %v1640
      %v1823 = vpack.c.bf16 %v1641, %v1641
      %v1824 = vpack.c.bf16 %v1642, %v1642
      %v1825 = vpack.c.bf16 %v1643, %v1643
      %v1826 = vpack.c.bf16 %v1644, %v1644
      %v1827 = vpack.c.bf16 %v1645, %v1645
      %v1828 = vpack.c.bf16 %v1646, %v1646
      %v1829 = vpack.c.bf16 %v1647, %v1647
      %v1830 = vpack.c.bf16 %v1648, %v1648
      %v1831 = vpack.c.bf16 %v1649, %v1649
      %v1832 = vpack.c.bf16 %v1650, %v1650
      %v1833 = vpack.c.bf16 %v1651, %v1651
      %v1834 = vpack.c.bf16 %v1652, %v1652
      %v1835 = vpack.c.bf16 %v1653, %v1653
      %v1836 = vpack.c.bf16 %v1654, %v1654
      %v1837 = vpack.c.bf16 %v1655, %v1655
      %v1838 = vpack.c.bf16 %v1656, %v1656
      %v1839 = vpack.c.bf16 %v1657, %v1657
      %v1840 = vpack.c.bf16 %v1658, %v1658
      %v1841 = vpack.c.bf16 %v1659, %v1659
      %v1842 = vpack.c.bf16 %v1660, %v1660
      %v1843 = vpack.c.bf16 %v1661, %v1661
      %v1844 = vpack.c.bf16 %v1662, %v1662
      %v1845 = vpack.c.bf16 %v1663, %v1663
      %v1846 = vpack.c.bf16 %v1664, %v1664
      %v1847 = vpack.c.bf16 %v1665, %v1665
      %v1848 = vpack.c.bf16 %v1666, %v1666
      %v1849 = vpack.c.bf16 %v1667, %v1667
      %v1850 = vpack.c.bf16 %v1668, %v1668
      %v1851 = vpack.c.bf16 %v1669, %v1669
      %v1852 = vpack.c.bf16 %v1670, %v1670
      %v1853 = vpack.c.bf16 %v1671, %v1671
      %v1854 = vpack.c.bf16 %v1672, %v1672
      %v1855 = vpack.c.bf16 %v1673, %v1673
      %v1856 = vpack.c.bf16 %v1674, %v1674
      %v1857 = vpack.c.bf16 %v1675, %v1675
      %v1858 = vpack.c.bf16 %v1676, %v1676
      %v1859 = vpack.c.bf16 %v1677, %v1677
      %v1860 = vpack.c.bf16 %v1678, %v1678
      %v1861 = vpack.c.bf16 %v1679, %v1679
      %v1862 = vpack.c.bf16 %v1680, %v1680
      %v1863 = vpack.c.bf16 %v1681, %v1681
      %v1864 = vpack.c.bf16 %v1682, %v1682
      %v1865 = vpack.c.bf16 %v1683, %v1683
      %v1866 = vpack.c.bf16 %v1684, %v1684
      %v1867 = vpack.c.bf16 %v1685, %v1685
      %v1868 = vpack.c.bf16 %v1686, %v1686
      %v1869 = vpack.c.bf16 %v1687, %v1687
      %v1870 = vpack.c.bf16 %v1688, %v1688
      %v1871 = vpack.c.bf16 %v1689, %v1689
      %v1872 = vpack.c.bf16 %v1690, %v1690
      %v1873 = vpack.c.bf16 %v1691, %v1691
      %v1874 = vpack.c.bf16 %v1692, %v1692
      %v1875 = vpack.c.bf16 %v1693, %v1693
      %v1876 = vpack.c.bf16 %v1694, %v1694
      %v1877 = vpack.c.bf16 %v1695, %v1695
      %v1878 = vpack.c.bf16 %v1696, %v1696
      %v1879 = vpack.c.bf16 %v1697, %v1697
      %v1880 = vpack.c.bf16 %v1698, %v1698
      %v1881 = vpack.c.bf16 %v1699, %v1699
      %v1882 = vpack.c.bf16 %v1700, %v1700
      %v1883 = vpack.c.bf16 %v1701, %v1701
      %v1884 = vpack.c.bf16 %v1702, %v1702
      %v1885 = vpack.c.bf16 %v1703, %v1703
      %v1886 = vpack.c.bf16 %v1704, %v1704
      %v1887 = vpack.c.bf16 %v1705, %v1705
      %v1888 = vpack.c.bf16 %v1706, %v1706
      %v1889 = vpack.c.bf16 %v1707, %v1707
      %v1890 = vpack.c.bf16 %v1708, %v1708
      %v1891 = vpack.c.bf16 %v1709, %v1709
      %v1892 = vpack.c.bf16 %v1710, %v1710
      %v1893 = vpack.c.bf16 %v1711, %v1711
      %v1894 = vpack.c.bf16 %v1712, %v1712
      %v1895 = vpack.c.bf16 %v1713, %v1713
      %v1896 = vpack.c.bf16 %v1714, %v1714
      %v1897 = vpack.c.bf16 %v1715, %v1715
      %v1898 = vpack.c.bf16 %v1716, %v1716
      %v1899 = vpack.c.bf16 %v1717, %v1717
      %v1900 = vpack.c.bf16 %v1718, %v1718
      %v1901 = vpack.c.bf16 %v1719, %v1719
      %v1902 = vpack.c.bf16 %v1720, %v1720
      %v1903 = vpack.c.bf16 %v1721, %v1721
      %v1904 = vpack.c.bf16 %v1722, %v1722
      %v1905 = vpack.c.bf16 %v1723, %v1723
      %v1906 = vpack.c.bf16 %v1724, %v1724
      %v1907 = vpack.c.bf16 %v1725, %v1725
      %v1908 = vpack.c.bf16 %v1726, %v1726
      %v1909 = vpack.c.bf16 %v1727, %v1727
      %v1910 = vpack.c.bf16 %v1728, %v1728
      %v1911 = vpack.c.bf16 %v1729, %v1729
      %v1912 = vpack.c.bf16 %v1730, %v1730
      %v1913 = vpack.c.bf16 %v1731, %v1731
      %v1914 = vpack.c.bf16 %v1732, %v1732
      %v1915 = vpack.c.bf16 %v1733, %v1733
      %v1916 = vpack.c.bf16 %v1734, %v1734
      %v1917 = vpack.c.bf16 %v1735, %v1735
      %v1918 = vpack.c.bf16 %v1736, %v1736
      %v1919 = vpack.c.bf16 %v1737, %v1737
      %v1920 = vpack.c.bf16 %v1738, %v1738
      %v1921 = vpack.c.bf16 %v1739, %v1739
      %v1922 = vpack.c.bf16 %v1740, %v1740
      %v1923 = vpack.c.bf16 %v1741, %v1741
      %v1924 = vpack.c.bf16 %v1742, %v1742
      %v1925 = vpack.c.bf16 %v1743, %v1743
      %v1926 = vpack.c.bf16 %v1744, %v1744
      %v1927 = vpack.c.bf16 %v1745, %v1745
      %v1928 = vpack.c.bf16 %v1746, %v1746
      %v1929 = vpack.c.bf16 %v1747, %v1747
      %v1930 = vpack.c.bf16 %v1748, %v1748
      %v1931 = vpack.c.bf16 %v1749, %v1749
      %v1932 = vpack.c.bf16 %v1750, %v1750
      %v1933 = vpack.c.bf16 %v1751, %v1751
      %v1934 = vpack.c.bf16 %v1752, %v1752
      %v1935 = vpack.c.bf16 %v1753, %v1753
      %v1936 = vpack.c.bf16 %v1754, %v1754
      %v1937 = vpack.c.bf16 %v1755, %v1755
      %v1938 = vpack.c.bf16 %v1756, %v1756
      %v1939 = vpack.c.bf16 %v1757, %v1757
      %v1940 = vpack.c.bf16 %v1758, %v1758
      %v1941 = vpack.c.bf16 %v1759, %v1759
      %v1942 = vpack.c.bf16 %v1760, %v1760
      %v1943 = vpack.c.bf16 %v1761, %v1761
      %v1944 = vpack.c.bf16 %v1762, %v1762
      %v1945 = vpack.c.bf16 %v1763, %v1763
      %v1946 = vpack.c.bf16 %v1764, %v1764
      %v1947 = vpack.c.bf16 %v1765, %v1765
      %v1948 = vpack.c.bf16 %v1766, %v1766
      %v1949 = vpack.c.bf16 %v1767, %v1767
      %v1950 = vpack.c.bf16 %v1768, %v1768
      %v1951 = vpack.c.bf16 %v1769, %v1769
      %v1952 = vpack.c.bf16 %v1770, %v1770
      %v1953 = vpack.c.bf16 %v1771, %v1771
      %v1954 = vpack.c.bf16 %v1772, %v1772
      %v1955 = vpack.c.bf16 %v1773, %v1773
      %v1956 = vpack.c.bf16 %v1774, %v1774
      %v1957 = vpack.c.bf16 %v1775, %v1775
      %v1958 = vpack.c.bf16 %v1776, %v1776
      %v1959 = vpack.c.bf16 %v1777, %v1777
      %v1960 = vpack.c.bf16 %v1778, %v1778
      %v1961 = vpack.c.bf16 %v1779, %v1779
      %v1962 = vpack.c.bf16 %v1780, %v1780
      %v1963 = vpack.c.bf16 %v1781, %v1781
      %vm1964 = vcmask 191488
      %1965 = vst.msk [vmem:[%s172] sm:$0xf] %vm1964, %v1782
      %1966 = vst.msk [vmem:[%s172 + $0x4] sm:$0xf] %vm1964, %v1783
      %1967 = vst.msk [vmem:[%s172 + $0x8] sm:$0xf] %vm1964, %v1784
      %1968 = vst.msk [vmem:[%s172 + $0xc] sm:$0xf] %vm1964, %v1785
      %1969 = vst.msk [vmem:[%s172 + $0x10] sm:$0xf] %vm1964, %v1786
      %1970 = vst.msk [vmem:[%s172 + $0x14] sm:$0xf] %vm1964, %v1787
      %1971 = vst.msk [vmem:[%s172 + $0x18] sm:$0xf] %vm1964, %v1788
      %1972 = vst.msk [vmem:[%s172 + $0x1c] sm:$0xf] %vm1964, %v1789
      %1973 = vst.msk [vmem:[%s172 + $0x20] sm:$0xf] %vm1964, %v1790
      %1974 = vst.msk [vmem:[%s172 + $0x24] sm:$0xf] %vm1964, %v1791
      %1975 = vst.msk [vmem:[%s172 + $0x28] sm:$0xf] %vm1964, %v1792
      %1976 = vst.msk [vmem:[%s172 + $0x2c] sm:$0xf] %vm1964, %v1793
      %1977 = vst.msk [vmem:[%s172 + $0x30] sm:$0xf] %vm1964, %v1794
      %1978 = vst.msk [vmem:[%s172 + $0x34] sm:$0xf] %vm1964, %v1795
      %1979 = vst.msk [vmem:[%s172 + $0x38] sm:$0xf] %vm1964, %v1796
      %1980 = vst.msk [vmem:[%s172 + $0x3c] sm:$0xf] %vm1964, %v1797
      %1981 = vst.msk [vmem:[%s172 + $0x40] sm:$0xf] %vm1964, %v1798
      %1982 = vst.msk [vmem:[%s172 + $0x44] sm:$0xf] %vm1964, %v1799
      %1983 = vst.msk [vmem:[%s172 + $0x48] sm:$0xf] %vm1964, %v1800
      %1984 = vst.msk [vmem:[%s172 + $0x4c] sm:$0xf] %vm1964, %v1801
      %1985 = vst.msk [vmem:[%s172 + $0x50] sm:$0xf] %vm1964, %v1802
      %1986 = vst.msk [vmem:[%s172 + $0x54] sm:$0xf] %vm1964, %v1803
      %1987 = vst.msk [vmem:[%s172 + $0x58] sm:$0xf] %vm1964, %v1804
      %1988 = vst.msk [vmem:[%s172 + $0x5c] sm:$0xf] %vm1964, %v1805
      %1989 = vst.msk [vmem:[%s172 + $0x60] sm:$0xf] %vm1964, %v1806
      %1990 = vst.msk [vmem:[%s172 + $0x64] sm:$0xf] %vm1964, %v1807
      %1991 = vst.msk [vmem:[%s172 + $0x68] sm:$0xf] %vm1964, %v1808
      %1992 = vst.msk [vmem:[%s172 + $0x6c] sm:$0xf] %vm1964, %v1809
      %1993 = vst.msk [vmem:[%s172 + $0x70] sm:$0xf] %vm1964, %v1810
      %1994 = vst.msk [vmem:[%s172 + $0x74] sm:$0xf] %vm1964, %v1811
      %1995 = vst.msk [vmem:[%s172 + $0x78] sm:$0xf] %vm1964, %v1812
      %1996 = vst.msk [vmem:[%s172 + $0x7c] sm:$0xf] %vm1964, %v1813
      %1997 = vst.msk [vmem:[%s172 + $0x80] sm:$0xf] %vm1964, %v1814
      %1998 = vst.msk [vmem:[%s172 + $0x84] sm:$0xf] %vm1964, %v1815
      %1999 = vst.msk [vmem:[%s172 + $0x88] sm:$0xf] %vm1964, %v1816
      %2000 = vst.msk [vmem:[%s172 + $0x8c] sm:$0xf] %vm1964, %v1817
      %2001 = vst.msk [vmem:[%s172 + $0x90] sm:$0xf] %vm1964, %v1818
      %2002 = vst.msk [vmem:[%s172 + $0x94] sm:$0xf] %vm1964, %v1819
      %2003 = vst.msk [vmem:[%s172 + $0x98] sm:$0xf] %vm1964, %v1820
      %2004 = vst.msk [vmem:[%s172 + $0x9c] sm:$0xf] %vm1964, %v1821
      %2005 = vst.msk [vmem:[%s172 + $0xa0] sm:$0xf] %vm1964, %v1822
      %2006 = vst.msk [vmem:[%s172 + $0xa4] sm:$0xf] %vm1964, %v1823
      %2007 = vst.msk [vmem:[%s172 + $0xa8] sm:$0xf] %vm1964, %v1824
      %2008 = vst.msk [vmem:[%s172 + $0xac] sm:$0xf] %vm1964, %v1825
      %2009 = vst.msk [vmem:[%s172 + $0xb0] sm:$0xf] %vm1964, %v1826
      %2010 = vst.msk [vmem:[%s172 + $0xb4] sm:$0xf] %vm1964, %v1827
      %2011 = vst.msk [vmem:[%s172 + $0xb8] sm:$0xf] %vm1964, %v1828
      %2012 = vst.msk [vmem:[%s172 + $0xbc] sm:$0xf] %vm1964, %v1829
      %2013 = vst.msk [vmem:[%s172 + $0xc0] sm:$0xf] %vm1964, %v1830
      %2014 = vst.msk [vmem:[%s172 + $0xc4] sm:$0xf] %vm1964, %v1831
      %2015 = vst.msk [vmem:[%s172 + $0xc8] sm:$0xf] %vm1964, %v1832
      %2016 = vst.msk [vmem:[%s172 + $0xcc] sm:$0xf] %vm1964, %v1833
      %2017 = vst.msk [vmem:[%s172 + $0xd0] sm:$0xf] %vm1964, %v1834
      %2018 = vst.msk [vmem:[%s172 + $0xd4] sm:$0xf] %vm1964, %v1835
      %2019 = vst.msk [vmem:[%s172 + $0xd8] sm:$0xf] %vm1964, %v1836
      %2020 = vst.msk [vmem:[%s172 + $0xdc] sm:$0xf] %vm1964, %v1837
      %2021 = vst.msk [vmem:[%s172 + $0xe0] sm:$0xf] %vm1964, %v1838
      %2022 = vst.msk [vmem:[%s172 + $0xe4] sm:$0xf] %vm1964, %v1839
      %2023 = vst.msk [vmem:[%s172 + $0xe8] sm:$0xf] %vm1964, %v1840
      %2024 = vst.msk [vmem:[%s172 + $0xec] sm:$0xf] %vm1964, %v1841
      %2025 = vst.msk [vmem:[%s172 + $0xf0] sm:$0xf] %vm1964, %v1842
      %2026 = vst.msk [vmem:[%s172 + $0xf4] sm:$0xf] %vm1964, %v1843
      %2027 = vst.msk [vmem:[%s172 + $0xf8] sm:$0xf] %vm1964, %v1844
      %2028 = vst.msk [vmem:[%s172 + $0xfc] sm:$0xf] %vm1964, %v1845
      %2029 = vst.msk [vmem:[%s172 + $0x100] sm:$0xf] %vm1964, %v1846
      %2030 = vst.msk [vmem:[%s172 + $0x104] sm:$0xf] %vm1964, %v1847
      %2031 = vst.msk [vmem:[%s172 + $0x108] sm:$0xf] %vm1964, %v1848
      %2032 = vst.msk [vmem:[%s172 + $0x10c] sm:$0xf] %vm1964, %v1849
      %2033 = vst.msk [vmem:[%s172 + $0x110] sm:$0xf] %vm1964, %v1850
      %2034 = vst.msk [vmem:[%s172 + $0x114] sm:$0xf] %vm1964, %v1851
      %2035 = vst.msk [vmem:[%s172 + $0x118] sm:$0xf] %vm1964, %v1852
      %2036 = vst.msk [vmem:[%s172 + $0x11c] sm:$0xf] %vm1964, %v1853
      %2037 = vst.msk [vmem:[%s172 + $0x120] sm:$0xf] %vm1964, %v1854
      %2038 = vst.msk [vmem:[%s172 + $0x124] sm:$0xf] %vm1964, %v1855
      %2039 = vst.msk [vmem:[%s172 + $0x128] sm:$0xf] %vm1964, %v1856
      %2040 = vst.msk [vmem:[%s172 + $0x12c] sm:$0xf] %vm1964, %v1857
      %2041 = vst.msk [vmem:[%s172 + $0x130] sm:$0xf] %vm1964, %v1858
      %2042 = vst.msk [vmem:[%s172 + $0x134] sm:$0xf] %vm1964, %v1859
      %2043 = vst.msk [vmem:[%s172 + $0x138] sm:$0xf] %vm1964, %v1860
      %2044 = vst.msk [vmem:[%s172 + $0x13c] sm:$0xf] %vm1964, %v1861
      %2045 = vst.msk [vmem:[%s172 + $0x140] sm:$0xf] %vm1964, %v1862
      %2046 = vst.msk [vmem:[%s172 + $0x144] sm:$0xf] %vm1964, %v1863
      %2047 = vst.msk [vmem:[%s172 + $0x148] sm:$0xf] %vm1964, %v1864
      %2048 = vst.msk [vmem:[%s172 + $0x14c] sm:$0xf] %vm1964, %v1865
      %2049 = vst.msk [vmem:[%s172 + $0x150] sm:$0xf] %vm1964, %v1866
      %2050 = vst.msk [vmem:[%s172 + $0x154] sm:$0xf] %vm1964, %v1867
      %2051 = vst.msk [vmem:[%s172 + $0x158] sm:$0xf] %vm1964, %v1868
      %2052 = vst.msk [vmem:[%s172 + $0x15c] sm:$0xf] %vm1964, %v1869
      %2053 = vst.msk [vmem:[%s172 + $0x160] sm:$0xf] %vm1964, %v1870
      %2054 = vst.msk [vmem:[%s172 + $0x164] sm:$0xf] %vm1964, %v1871
      %2055 = vst.msk [vmem:[%s172 + $0x168] sm:$0xf] %vm1964, %v1872
      %2056 = vst.msk [vmem:[%s172 + $0x16c] sm:$0xf] %vm1964, %v1873
      %2057 = vst.msk [vmem:[%s172 + $0x170] sm:$0xf] %vm1964, %v1874
      %2058 = vst.msk [vmem:[%s172 + $0x174] sm:$0xf] %vm1964, %v1875
      %2059 = vst.msk [vmem:[%s172 + $0x178] sm:$0xf] %vm1964, %v1876
      %2060 = vst.msk [vmem:[%s172 + $0x17c] sm:$0xf] %vm1964, %v1877
      %2061 = vst.msk [vmem:[%s172 + $0x180] sm:$0xf] %vm1964, %v1878
      %2062 = vst.msk [vmem:[%s172 + $0x184] sm:$0xf] %vm1964, %v1879
      %2063 = vst.msk [vmem:[%s172 + $0x188] sm:$0xf] %vm1964, %v1880
      %2064 = vst.msk [vmem:[%s172 + $0x18c] sm:$0xf] %vm1964, %v1881
      %2065 = vst.msk [vmem:[%s172 + $0x190] sm:$0xf] %vm1964, %v1882
      %2066 = vst.msk [vmem:[%s172 + $0x194] sm:$0xf] %vm1964, %v1883
      %2067 = vst.msk [vmem:[%s172 + $0x198] sm:$0xf] %vm1964, %v1884
      %2068 = vst.msk [vmem:[%s172 + $0x19c] sm:$0xf] %vm1964, %v1885
      %2069 = vst.msk [vmem:[%s172 + $0x1a0] sm:$0xf] %vm1964, %v1886
      %2070 = vst.msk [vmem:[%s172 + $0x1a4] sm:$0xf] %vm1964, %v1887
      %2071 = vst.msk [vmem:[%s172 + $0x1a8] sm:$0xf] %vm1964, %v1888
      %2072 = vst.msk [vmem:[%s172 + $0x1ac] sm:$0xf] %vm1964, %v1889
      %2073 = vst.msk [vmem:[%s172 + $0x1b0] sm:$0xf] %vm1964, %v1890
      %2074 = vst.msk [vmem:[%s172 + $0x1b4] sm:$0xf] %vm1964, %v1891
      %2075 = vst.msk [vmem:[%s172 + $0x1b8] sm:$0xf] %vm1964, %v1892
      %2076 = vst.msk [vmem:[%s172 + $0x1bc] sm:$0xf] %vm1964, %v1893
      %2077 = vst.msk [vmem:[%s172 + $0x1c0] sm:$0xf] %vm1964, %v1894
      %2078 = vst.msk [vmem:[%s172 + $0x1c4] sm:$0xf] %vm1964, %v1895
      %2079 = vst.msk [vmem:[%s172 + $0x1c8] sm:$0xf] %vm1964, %v1896
      %2080 = vst.msk [vmem:[%s172 + $0x1cc] sm:$0xf] %vm1964, %v1897
      %2081 = vst.msk [vmem:[%s172 + $0x1d0] sm:$0xf] %vm1964, %v1898
      %2082 = vst.msk [vmem:[%s172 + $0x1d4] sm:$0xf] %vm1964, %v1899
      %2083 = vst.msk [vmem:[%s172 + $0x1d8] sm:$0xf] %vm1964, %v1900
      %2084 = vst.msk [vmem:[%s172 + $0x1dc] sm:$0xf] %vm1964, %v1901
      %2085 = vst.msk [vmem:[%s172 + $0x1e0] sm:$0xf] %vm1964, %v1902
      %2086 = vst.msk [vmem:[%s172 + $0x1e4] sm:$0xf] %vm1964, %v1903
      %2087 = vst.msk [vmem:[%s172 + $0x1e8] sm:$0xf] %vm1964, %v1904
      %2088 = vst.msk [vmem:[%s172 + $0x1ec] sm:$0xf] %vm1964, %v1905
      %2089 = vst.msk [vmem:[%s172 + $0x1f0] sm:$0xf] %vm1964, %v1906
      %2090 = vst.msk [vmem:[%s172 + $0x1f4] sm:$0xf] %vm1964, %v1907
      %2091 = vst.msk [vmem:[%s172 + $0x1f8] sm:$0xf] %vm1964, %v1908
      %2092 = vst.msk [vmem:[%s172 + $0x1fc] sm:$0xf] %vm1964, %v1909
      %2093 = vst.msk [vmem:[%s172 + $0x200] sm:$0xf] %vm1964, %v1910
      %2094 = vst.msk [vmem:[%s172 + $0x204] sm:$0xf] %vm1964, %v1911
      %2095 = vst.msk [vmem:[%s172 + $0x208] sm:$0xf] %vm1964, %v1912
      %2096 = vst.msk [vmem:[%s172 + $0x20c] sm:$0xf] %vm1964, %v1913
      %2097 = vst.msk [vmem:[%s172 + $0x210] sm:$0xf] %vm1964, %v1914
      %2098 = vst.msk [vmem:[%s172 + $0x214] sm:$0xf] %vm1964, %v1915
      %2099 = vst.msk [vmem:[%s172 + $0x218] sm:$0xf] %vm1964, %v1916
      %2100 = vst.msk [vmem:[%s172 + $0x21c] sm:$0xf] %vm1964, %v1917
      %2101 = vst.msk [vmem:[%s172 + $0x220] sm:$0xf] %vm1964, %v1918
      %2102 = vst.msk [vmem:[%s172 + $0x224] sm:$0xf] %vm1964, %v1919
      %2103 = vst.msk [vmem:[%s172 + $0x228] sm:$0xf] %vm1964, %v1920
      %2104 = vst.msk [vmem:[%s172 + $0x22c] sm:$0xf] %vm1964, %v1921
      %2105 = vst.msk [vmem:[%s172 + $0x230] sm:$0xf] %vm1964, %v1922
      %2106 = vst.msk [vmem:[%s172 + $0x234] sm:$0xf] %vm1964, %v1923
      %2107 = vst.msk [vmem:[%s172 + $0x238] sm:$0xf] %vm1964, %v1924
      %2108 = vst.msk [vmem:[%s172 + $0x23c] sm:$0xf] %vm1964, %v1925
      %2109 = vst.msk [vmem:[%s172 + $0x240] sm:$0xf] %vm1964, %v1926
      %2110 = vst.msk [vmem:[%s172 + $0x244] sm:$0xf] %vm1964, %v1927
      %2111 = vst.msk [vmem:[%s172 + $0x248] sm:$0xf] %vm1964, %v1928
      %2112 = vst.msk [vmem:[%s172 + $0x24c] sm:$0xf] %vm1964, %v1929
      %2113 = vst.msk [vmem:[%s172 + $0x250] sm:$0xf] %vm1964, %v1930
      %2114 = vst.msk [vmem:[%s172 + $0x254] sm:$0xf] %vm1964, %v1931
      %2115 = vst.msk [vmem:[%s172 + $0x258] sm:$0xf] %vm1964, %v1932
      %2116 = vst.msk [vmem:[%s172 + $0x25c] sm:$0xf] %vm1964, %v1933
      %2117 = vst.msk [vmem:[%s172 + $0x260] sm:$0xf] %vm1964, %v1934
      %2118 = vst.msk [vmem:[%s172 + $0x264] sm:$0xf] %vm1964, %v1935
      %2119 = vst.msk [vmem:[%s172 + $0x268] sm:$0xf] %vm1964, %v1936
      %2120 = vst.msk [vmem:[%s172 + $0x26c] sm:$0xf] %vm1964, %v1937
      %2121 = vst.msk [vmem:[%s172 + $0x270] sm:$0xf] %vm1964, %v1938
      %2122 = vst.msk [vmem:[%s172 + $0x274] sm:$0xf] %vm1964, %v1939
      %2123 = vst.msk [vmem:[%s172 + $0x278] sm:$0xf] %vm1964, %v1940
      %2124 = vst.msk [vmem:[%s172 + $0x27c] sm:$0xf] %vm1964, %v1941
      %2125 = vst.msk [vmem:[%s172 + $0x280] sm:$0xf] %vm1964, %v1942
      %2126 = vst.msk [vmem:[%s172 + $0x284] sm:$0xf] %vm1964, %v1943
      %2127 = vst.msk [vmem:[%s172 + $0x288] sm:$0xf] %vm1964, %v1944
      %2128 = vst.msk [vmem:[%s172 + $0x28c] sm:$0xf] %vm1964, %v1945
      %2129 = vst.msk [vmem:[%s172 + $0x290] sm:$0xf] %vm1964, %v1946
      %2130 = vst.msk [vmem:[%s172 + $0x294] sm:$0xf] %vm1964, %v1947
      %2131 = vst.msk [vmem:[%s172 + $0x298] sm:$0xf] %vm1964, %v1948
      %2132 = vst.msk [vmem:[%s172 + $0x29c] sm:$0xf] %vm1964, %v1949
      %2133 = vst.msk [vmem:[%s172 + $0x2a0] sm:$0xf] %vm1964, %v1950
      %2134 = vst.msk [vmem:[%s172 + $0x2a4] sm:$0xf] %vm1964, %v1951
      %2135 = vst.msk [vmem:[%s172 + $0x2a8] sm:$0xf] %vm1964, %v1952
      %2136 = vst.msk [vmem:[%s172 + $0x2ac] sm:$0xf] %vm1964, %v1953
      %2137 = vst.msk [vmem:[%s172 + $0x2b0] sm:$0xf] %vm1964, %v1954
      %2138 = vst.msk [vmem:[%s172 + $0x2b4] sm:$0xf] %vm1964, %v1955
      %2139 = vst.msk [vmem:[%s172 + $0x2b8] sm:$0xf] %vm1964, %v1956
      %2140 = vst.msk [vmem:[%s172 + $0x2bc] sm:$0xf] %vm1964, %v1957
      %2141 = vst.msk [vmem:[%s172 + $0x2c0] sm:$0xf] %vm1964, %v1958
      %2142 = vst.msk [vmem:[%s172 + $0x2c4] sm:$0xf] %vm1964, %v1959
      %2143 = vst.msk [vmem:[%s172 + $0x2c8] sm:$0xf] %vm1964, %v1960
      %2144 = vst.msk [vmem:[%s172 + $0x2cc] sm:$0xf] %vm1964, %v1961
      %2145 = vst.msk [vmem:[%s172 + $0x2d0] sm:$0xf] %vm1964, %v1962
      %2146 = vst.msk [vmem:[%s172 + $0x2d4] sm:$0xf] %vm1964, %v1963
      %s2147 = smul.u32 182, %s14
      %p2148 = scmp.lt.s32.totalorder %s2147, 363
      %s2149 = scalar_select %p2148, %s2147, 363
      %s2150 = smul.addr %s2149, 4
      %s2151 = scalar_lea.vmem %s3, %s2150
      // Predicated region
      $region33: #{perception_forward.2} parent=31 // pred_check
        %p2152 = pneg %p100
      $region34: #{perception_forward.2} parent=31 // pred_check_branch
        %2154 = sbr.rel (%p2152) target = $region36
      $region35: #{perception_forward.2} parent=31 // pred_region
        %s2155 = smul.u32 182, %s14
      $region36: #{perception_forward.2} parent=31 // pred_fallthru
        _
    $region32: #{perception_forward.2} parent=5 // pred_fallthru
      _
    %p2156 = scmp.le.s32.totalorder 2, %s9
    // Predicated region
    $region37: #{perception_forward.2} parent=5 // pred_check
      %p2157 = pneg %p2156
    $region38: #{perception_forward.2} parent=5 // pred_check_branch
      %2159 = sbr.rel (%p2157) target = $region40
    $region39: #{perception_forward.2} parent=5 // pred_region
      %s2160 = ssub.s32 %s9, 2
      // Predicated region
      $region41: #{perception_forward.2} parent=39 // pred_check
        %p2161 = pneg %p106
      $region42: #{perception_forward.2} parent=39 // pred_check_branch
        %2163 = sbr.rel (%p2161) target = $region44
      $region43: #{perception_forward.2} parent=39 // pred_region
        %s2164 = smul.u32 182, %s15
        %p2165 = scmp.lt.s32.totalorder %s2164, 363
        %s2166 = scalar_select %p2165, %s2164, 363
        %s2167 = smul.addr %s2166, 4
        %s2168 = scalar_lea.vmem %s3, %s2167
      $region44: #{perception_forward.2} parent=39 // pred_fallthru
        _
    $region40: #{perception_forward.2} parent=5 // pred_fallthru
      _
  $region6: #{perception_forward.2} parent=0 // loop_footer
    %s13 = sadd.s32 1, %s9
  $region7: #{perception_forward.2} parent=0 // loop_footer_branch
    %8 = sbr.rel target = $region3
  $region8: #{perception_forward.2} parent=0 // loop_exit
    _

// kernel: perception_forward.3
$region0: #{perception_forward.3}
  #allocation0 [shape = 'u32[]', space=smem, size = 0x4, offset = 0x4, fixed_abs, tag = 'smem constant byte address 0x4 - core index']
  #allocation1 [shape = 'u32[72,128]{1,0:T(1,128)}', space=vmem, size = 0x9000, scoped, tag = 'internal scratch']
  %s0 = inlined_call_operand.vmem [shape: bf16[648,600], index: 0, kind: input, shape index: {}]
  %s1 = inlined_call_operand.vmem [shape: bf16[600,32], index: 1, kind: input, shape index: {}]
  %s2 = inlined_call_operand.vmem [shape: f32[1,32], index: 2, kind: input, shape index: {}]
  %s3 = inlined_call_operand.vmem [shape: f32[25,32,64], index: 3, kind: input, shape index: {}]
  %s4 = inlined_call_operand.vmem [shape: f32[1,64], index: 4, kind: input, shape index: {}]
  %s5 = inlined_call_operand.vmem [shape: f32[162,126], index: 5, kind: input, shape index: {}]
  %s6 = inlined_call_operand.vmem [shape: f32[9,64,64], index: 6, kind: input, shape index: {}]
  %s7 = inlined_call_operand.vmem [shape: f32[1,64], index: 7, kind: input, shape index: {}]
  %s8 = inlined_call_operand.vmem [shape: f32[9,64,64], index: 8, kind: input, shape index: {}]
  %s9 = inlined_call_operand.vmem [shape: f32[1,64], index: 9, kind: input, shape index: {}]
  %s10 = inlined_call_operand.vmem [shape: f32[1,64], index: 10, kind: input, shape index: {}]
  %s11 = inlined_call_operand.vmem [shape: f32[1,64], index: 11, kind: input, shape index: {}]
  %s12 = inlined_call_operand.vmem [shape: f32[64,64], index: 12, kind: input, shape index: {}]
  %s13 = inlined_call_operand.vmem [shape: f32[1,64], index: 13, kind: input, shape index: {}]
  %s14 = inlined_call_operand.vmem [shape: f32[2,1], index: 14, kind: input, shape index: {}]
  %s15 = inlined_call_operand.hbm [shape: f32[2,128], index: 15, kind: output, shape index: {}]
  %s16 = sld [smem:[#allocation0]]
  $region70: #{perception_forward.3} parent=0
    _
  %s18 = ssub.s32 1, %s16
  %s19 = scalar_select 0, %s18, %s16
  $region1: #{perception_forward.3} parent=0
    #allocation2 [shape = 'u8[1024]{0}', space=vmem, size = 0x400, scoped, tag = 'output window, operand 0, single buffered']
    #allocation3 [shape = 's32[1]{0}', space=sflag, size = 0x4, scoped, tag = 'scoped memory for perception_forward.3']
    %20 = vsyncpa [#allocation3], 0
    // Predicated region
    $region2: #{perception_forward.3} parent=1 // pred_check
      _
    $region3: #{perception_forward.3} parent=1 // pred_check_branch
      %22 = sbr.rel (0) target = $region5
    $region4: #{perception_forward.3} parent=1 // pred_region
      _
    $region5: #{perception_forward.3} parent=1 // pred_fallthru
      _
    // Predicated region
    $region6: #{perception_forward.3} parent=1 // pred_check
      _
    $region7: #{perception_forward.3} parent=1 // pred_check_branch
      %24 = sbr.rel (0) target = $region9
    $region8: #{perception_forward.3} parent=1 // pred_region
      _
    $region9: #{perception_forward.3} parent=1 // pred_fallthru
      _
    // Predicated region
    $region10: #{perception_forward.3} parent=1 // pred_check
      _
    $region11: #{perception_forward.3} parent=1 // pred_check_branch
      %26 = sbr.rel (0) target = $region13
    $region12: #{perception_forward.3} parent=1 // pred_region
      _
    $region13: #{perception_forward.3} parent=1 // pred_fallthru
      _
    // Predicated region
    $region14: #{perception_forward.3} parent=1 // pred_check
      _
    $region15: #{perception_forward.3} parent=1 // pred_check_branch
      %28 = sbr.rel (0) target = $region17
    $region16: #{perception_forward.3} parent=1 // pred_region
      _
    $region17: #{perception_forward.3} parent=1 // pred_fallthru
      _
    // Predicated region
    $region18: #{perception_forward.3} parent=1 // pred_check
      _
    $region19: #{perception_forward.3} parent=1 // pred_check_branch
      %30 = sbr.rel (0) target = $region21
    $region20: #{perception_forward.3} parent=1 // pred_region
      _
    $region21: #{perception_forward.3} parent=1 // pred_fallthru
      _
    // Predicated region
    $region22: #{perception_forward.3} parent=1 // pred_check
      _
    $region23: #{perception_forward.3} parent=1 // pred_check_branch
      %32 = sbr.rel (0) target = $region25
    $region24: #{perception_forward.3} parent=1 // pred_region
      _
    $region25: #{perception_forward.3} parent=1 // pred_fallthru
      _
    // Predicated region
    $region26: #{perception_forward.3} parent=1 // pred_check
      _
    $region27: #{perception_forward.3} parent=1 // pred_check_branch
      %34 = sbr.rel (0) target = $region29
    $region28: #{perception_forward.3} parent=1 // pred_region
      _
    $region29: #{perception_forward.3} parent=1 // pred_fallthru
      _
    // Predicated region
    $region30: #{perception_forward.3} parent=1 // pred_check
      _
    $region31: #{perception_forward.3} parent=1 // pred_check_branch
      %36 = sbr.rel (0) target = $region33
    $region32: #{perception_forward.3} parent=1 // pred_region
      _
    $region33: #{perception_forward.3} parent=1 // pred_fallthru
      _
    // Predicated region
    $region34: #{perception_forward.3} parent=1 // pred_check
      _
    $region35: #{perception_forward.3} parent=1 // pred_check_branch
      %38 = sbr.rel (0) target = $region37
    $region36: #{perception_forward.3} parent=1 // pred_region
      _
    $region37: #{perception_forward.3} parent=1 // pred_fallthru
      _
    // Predicated region
    $region38: #{perception_forward.3} parent=1 // pred_check
      _
    $region39: #{perception_forward.3} parent=1 // pred_check_branch
      %40 = sbr.rel (0) target = $region41
    $region40: #{perception_forward.3} parent=1 // pred_region
      _
    $region41: #{perception_forward.3} parent=1 // pred_fallthru
      _
    // Predicated region
    $region42: #{perception_forward.3} parent=1 // pred_check
      _
    $region43: #{perception_forward.3} parent=1 // pred_check_branch
      %42 = sbr.rel (0) target = $region45
    $region44: #{perception_forward.3} parent=1 // pred_region
      _
    $region45: #{perception_forward.3} parent=1 // pred_fallthru
      _
    // Predicated region
    $region46: #{perception_forward.3} parent=1 // pred_check
      _
    $region47: #{perception_forward.3} parent=1 // pred_check_branch
      %44 = sbr.rel (0) target = $region49
    $region48: #{perception_forward.3} parent=1 // pred_region
      _
    $region49: #{perception_forward.3} parent=1 // pred_fallthru
      _
    // Predicated region
    $region50: #{perception_forward.3} parent=1 // pred_check
      _
    $region51: #{perception_forward.3} parent=1 // pred_check_branch
      %46 = sbr.rel (0) target = $region53
    $region52: #{perception_forward.3} parent=1 // pred_region
      _
    $region53: #{perception_forward.3} parent=1 // pred_fallthru
      _
    // Predicated region
    $region54: #{perception_forward.3} parent=1 // pred_check
      _
    $region55: #{perception_forward.3} parent=1 // pred_check_branch
      %48 = sbr.rel (0) target = $region57
    $region56: #{perception_forward.3} parent=1 // pred_region
      _
    $region57: #{perception_forward.3} parent=1 // pred_fallthru
      _
    // Predicated region
    $region58: #{perception_forward.3} parent=1 // pred_check
      _
    $region59: #{perception_forward.3} parent=1 // pred_check_branch
      %50 = sbr.rel (0) target = $region61
    $region60: #{perception_forward.3} parent=1 // pred_region
      _
    $region61: #{perception_forward.3} parent=1 // pred_fallthru
      _
    %v52 = vld [vmem:[%s14] sm:$0x3]
    %v53 = vld [vmem:[%s10] sm:$0x1]
    %55 = vset.pattern.permute.xlu0 0
    %56 = vperm.xlu0 %55, %v52
    %v57 = vpop.permute.xlu0 %56
    %v60 = vperm.slane %v53, 0
    %v62 = vmul.f32 %v57, %v60
    %v63 = vld [vmem:[%s11] sm:$0x1]
    %v65 = vperm.slane %v63, 0
    %v67 = vadd.f32 %v62, %v65
    %v68 = vmax.f32 %v67, 0.0
    %v69 = vld [vmem:[%s12] sm:$0xff]
    %v70 = vld [vmem:[%s12 + $0x8] sm:$0xff]
    %v71 = vld [vmem:[%s12 + $0x10] sm:$0xff]
    %v72 = vld [vmem:[%s12 + $0x18] sm:$0xff]
    %v73 = vld [vmem:[%s12 + $0x20] sm:$0xff]
    %v74 = vld [vmem:[%s12 + $0x28] sm:$0xff]
    %v75 = vld [vmem:[%s12 + $0x30] sm:$0xff]
    %v76 = vld [vmem:[%s12 + $0x38] sm:$0xff]
    %v77 = vld [vmem:[%s13] sm:$0x1]
    %v79 = vperm.slane %v77, 0
    %vm81 = vcmask 523264
    %v83 = vsel %vm81, %v68, 0
    %85 = vmatpush.msra.mxu0 0.0
    %86 = vmatpush.msra.mxu0 0.0
    %87 = vmatpush.msra.mxu0 0.0
    %88 = vmatpush.msra.mxu0 0.0
    %89 = vmatpush.msra.mxu0 0.0
    %90 = vmatpush.msra.mxu0 0.0
    %91 = vmatpush.msra.mxu0 0.0
    %92 = vmatpush.msra.mxu0 0.0
    %93 = vmatpush.msra.mxu0 %v76
    %94 = vmatpush.msra.mxu0 %v75
    %95 = vmatpush.msra.mxu0 %v74
    %96 = vmatpush.msra.mxu0 %v73
    %97 = vmatpush.msra.mxu0 %v72
    %98 = vmatpush.msra.mxu0 %v71
    %99 = vmatpush.msra.mxu0 %v70
    %100 = vmatpush.msra.mxu0 %v69
    %101 = vmatmul.f32.gmra.mxu0 %v83
    %v102 = vpop.f32.mrf.mxu0
    %v103 = vadd.f32 %v79, %v102
    %104 = vdwg.mxu0
    %v105 = vmax.f32 %v103, 0.0
    %107 = vrot.lane.b32.xlu0 %v105, 64
    %v108 = vpop.permute.xlu0 %107
    %vm110 = vcmask 1041920
    %111 = vst.msk [vmem:[#allocation2] sm:$0x3] %vm110, %v108
    %v112 = vld [vmem:[%s0] sm:$0xff]
    %v113 = vld [vmem:[%s0 + $0x8] sm:$0xff]
    %v114 = vld [vmem:[%s0 + $0x10] sm:$0xf]
    %v115 = vld [vmem:[%s0 + $0x14] sm:$0xff]
    %v116 = vld [vmem:[%s0 + $0x1c] sm:$0xff]
    %v117 = vld [vmem:[%s0 + $0x24] sm:$0xf]
    %v118 = vld [vmem:[%s0 + $0x28] sm:$0xff]
    %v119 = vld [vmem:[%s0 + $0x30] sm:$0xff]
    %v120 = vld [vmem:[%s0 + $0x38] sm:$0xf]
    %v121 = vld [vmem:[%s0 + $0x3c] sm:$0xff]
    %v122 = vld [vmem:[%s0 + $0x44] sm:$0xff]
    %v123 = vld [vmem:[%s0 + $0x4c] sm:$0xf]
    %v124 = vld [vmem:[%s0 + $0x50] sm:$0xff]
    %v125 = vld [vmem:[%s0 + $0x58] sm:$0xff]
    %v126 = vld [vmem:[%s0 + $0x60] sm:$0xf]
    %v127 = vld [vmem:[%s0 + $0x64] sm:$0xff]
    %v128 = vld [vmem:[%s0 + $0x6c] sm:$0xff]
    %v129 = vld [vmem:[%s0 + $0x74] sm:$0xf]
    %v130 = vld [vmem:[%s0 + $0x78] sm:$0xff]
    %v131 = vld [vmem:[%s0 + $0x80] sm:$0xff]
    %v132 = vld [vmem:[%s0 + $0x88] sm:$0xf]
    %v133 = vld [vmem:[%s0 + $0x8c] sm:$0xff]
    %v134 = vld [vmem:[%s0 + $0x94] sm:$0xff]
    %v135 = vld [vmem:[%s0 + $0x9c] sm:$0xf]
    %v136 = vld [vmem:[%s0 + $0xa0] sm:$0xff]
    %v137 = vld [vmem:[%s0 + $0xa8] sm:$0xff]
    %v138 = vld [vmem:[%s0 + $0xb0] sm:$0xf]
    %v139 = vld [vmem:[%s0 + $0xb4] sm:$0xff]
    %v140 = vld [vmem:[%s0 + $0xbc] sm:$0xff]
    %v141 = vld [vmem:[%s0 + $0xc4] sm:$0xf]
    %v142 = vld [vmem:[%s0 + $0xc8] sm:$0xff]
    %v143 = vld [vmem:[%s0 + $0xd0] sm:$0xff]
    %v144 = vld [vmem:[%s0 + $0xd8] sm:$0xf]
    %v145 = vld [vmem:[%s0 + $0xdc] sm:$0xff]
    %v146 = vld [vmem:[%s0 + $0xe4] sm:$0xff]
    %v147 = vld [vmem:[%s0 + $0xec] sm:$0xf]
    %v148 = vld [vmem:[%s0 + $0xf0] sm:$0xff]
    %v149 = vld [vmem:[%s0 + $0xf8] sm:$0xff]
    %v150 = vld [vmem:[%s0 + $0x100] sm:$0xf]
    %v151 = vld [vmem:[%s0 + $0x104] sm:$0xff]
    %v152 = vld [vmem:[%s0 + $0x10c] sm:$0xff]
    %v153 = vld [vmem:[%s0 + $0x114] sm:$0xf]
    %v154 = vld [vmem:[%s0 + $0x118] sm:$0xff]
    %v155 = vld [vmem:[%s0 + $0x120] sm:$0xff]
    %v156 = vld [vmem:[%s0 + $0x128] sm:$0xf]
    %v157 = vld [vmem:[%s0 + $0x12c] sm:$0xff]
    %v158 = vld [vmem:[%s0 + $0x134] sm:$0xff]
    %v159 = vld [vmem:[%s0 + $0x13c] sm:$0xf]
    %v160 = vld [vmem:[%s0 + $0x140] sm:$0xff]
    %v161 = vld [vmem:[%s0 + $0x148] sm:$0xff]
    %v162 = vld [vmem:[%s0 + $0x150] sm:$0xf]
    %v163 = vld [vmem:[%s0 + $0x154] sm:$0xff]
    %v164 = vld [vmem:[%s0 + $0x15c] sm:$0xff]
    %v165 = vld [vmem:[%s0 + $0x164] sm:$0xf]
    %v166 = vld [vmem:[%s0 + $0x168] sm:$0xff]
    %v167 = vld [vmem:[%s0 + $0x170] sm:$0xff]
    %v168 = vld [vmem:[%s0 + $0x178] sm:$0xf]
    %v169 = vld [vmem:[%s0 + $0x17c] sm:$0xff]
    %v170 = vld [vmem:[%s0 + $0x184] sm:$0xff]
    %v171 = vld [vmem:[%s0 + $0x18c] sm:$0xf]
    %v172 = vld [vmem:[%s0 + $0x190] sm:$0xff]
    %v173 = vld [vmem:[%s0 + $0x198] sm:$0xff]
    %v174 = vld [vmem:[%s0 + $0x1a0] sm:$0xf]
    %v175 = vld [vmem:[%s0 + $0x1a4] sm:$0xff]
    %v176 = vld [vmem:[%s0 + $0x1ac] sm:$0xff]
    %v177 = vld [vmem:[%s0 + $0x1b4] sm:$0xf]
    %v178 = vld [vmem:[%s0 + $0x1b8] sm:$0xff]
    %v179 = vld [vmem:[%s0 + $0x1c0] sm:$0xff]
    %v180 = vld [vmem:[%s0 + $0x1c8] sm:$0xf]
    %v181 = vld [vmem:[%s0 + $0x1cc] sm:$0xff]
    %v182 = vld [vmem:[%s0 + $0x1d4] sm:$0xff]
    %v183 = vld [vmem:[%s0 + $0x1dc] sm:$0xf]
    %v184 = vld [vmem:[%s0 + $0x1e0] sm:$0xff]
    %v185 = vld [vmem:[%s0 + $0x1e8] sm:$0xff]
    %v186 = vld [vmem:[%s0 + $0x1f0] sm:$0xf]
    %v187 = vld [vmem:[%s0 + $0x1f4] sm:$0xff]
    %v188 = vld [vmem:[%s0 + $0x1fc] sm:$0xff]
    %v189 = vld [vmem:[%s0 + $0x204] sm:$0xf]
    %v190 = vld [vmem:[%s0 + $0x208] sm:$0xff]
    %v191 = vld [vmem:[%s0 + $0x210] sm:$0xff]
    %v192 = vld [vmem:[%s0 + $0x218] sm:$0xf]
    %v193 = vld [vmem:[%s0 + $0x21c] sm:$0xff]
    %v194 = vld [vmem:[%s0 + $0x224] sm:$0xff]
    %v195 = vld [vmem:[%s0 + $0x22c] sm:$0xf]
    %v196 = vld [vmem:[%s0 + $0x230] sm:$0xff]
    %v197 = vld [vmem:[%s0 + $0x238] sm:$0xff]
    %v198 = vld [vmem:[%s0 + $0x240] sm:$0xf]
    %v199 = vld [vmem:[%s0 + $0x244] sm:$0xff]
    %v200 = vld [vmem:[%s0 + $0x24c] sm:$0xff]
    %v201 = vld [vmem:[%s0 + $0x254] sm:$0xf]
    %v202 = vld [vmem:[%s0 + $0x258] sm:$0xff]
    %v203 = vld [vmem:[%s0 + $0x260] sm:$0xff]
    %v204 = vld [vmem:[%s0 + $0x268] sm:$0xf]
    %v205 = vld [vmem:[%s0 + $0x26c] sm:$0xff]
    %v206 = vld [vmem:[%s0 + $0x274] sm:$0xff]
    %v207 = vld [vmem:[%s0 + $0x27c] sm:$0xf]
    %v208 = vld [vmem:[%s0 + $0x280] sm:$0xff]
    %v209 = vld [vmem:[%s0 + $0x288] sm:$0xff]
    %v210 = vld [vmem:[%s0 + $0x290] sm:$0xf]
    %v211 = vld [vmem:[%s0 + $0x294] sm:$0xff]
    %v212 = vld [vmem:[%s0 + $0x29c] sm:$0xff]
    %v213 = vld [vmem:[%s0 + $0x2a4] sm:$0xf]
    %v214 = vld [vmem:[%s0 + $0x2a8] sm:$0xff]
    %v215 = vld [vmem:[%s0 + $0x2b0] sm:$0xff]
    %v216 = vld [vmem:[%s0 + $0x2b8] sm:$0xf]
    %v217 = vld [vmem:[%s0 + $0x2bc] sm:$0xff]
    %v218 = vld [vmem:[%s0 + $0x2c4] sm:$0xff]
    %v219 = vld [vmem:[%s0 + $0x2cc] sm:$0xf]
    %v220 = vld [vmem:[%s0 + $0x2d0] sm:$0xff]
    %v221 = vld [vmem:[%s0 + $0x2d8] sm:$0xff]
    %v222 = vld [vmem:[%s0 + $0x2e0] sm:$0xf]
    %v223 = vld [vmem:[%s0 + $0x2e4] sm:$0xff]
    %v224 = vld [vmem:[%s0 + $0x2ec] sm:$0xff]
    %v225 = vld [vmem:[%s0 + $0x2f4] sm:$0xf]
    %v226 = vld [vmem:[%s0 + $0x2f8] sm:$0xff]
    %v227 = vld [vmem:[%s0 + $0x300] sm:$0xff]
    %v228 = vld [vmem:[%s0 + $0x308] sm:$0xf]
    %v229 = vld [vmem:[%s0 + $0x30c] sm:$0xff]
    %v230 = vld [vmem:[%s0 + $0x314] sm:$0xff]
    %v231 = vld [vmem:[%s0 + $0x31c] sm:$0xf]
    %v232 = vld [vmem:[%s0 + $0x320] sm:$0xff]
    %v233 = vld [vmem:[%s0 + $0x328] sm:$0xff]
    %v234 = vld [vmem:[%s0 + $0x330] sm:$0xf]
    %v235 = vld [vmem:[%s0 + $0x334] sm:$0xff]
    %v236 = vld [vmem:[%s0 + $0x33c] sm:$0xff]
    %v237 = vld [vmem:[%s0 + $0x344] sm:$0xf]
    %v238 = vld [vmem:[%s0 + $0x348] sm:$0xff]
    %v239 = vld [vmem:[%s0 + $0x350] sm:$0xff]
    %v240 = vld [vmem:[%s0 + $0x358] sm:$0xf]
    %v241 = vld [vmem:[%s0 + $0x35c] sm:$0xff]
    %v242 = vld [vmem:[%s0 + $0x364] sm:$0xff]
    %v243 = vld [vmem:[%s0 + $0x36c] sm:$0xf]
    %v244 = vld [vmem:[%s0 + $0x370] sm:$0xff]
    %v245 = vld [vmem:[%s0 + $0x378] sm:$0xff]
    %v246 = vld [vmem:[%s0 + $0x380] sm:$0xf]
    %v247 = vld [vmem:[%s0 + $0x384] sm:$0xff]
    %v248 = vld [vmem:[%s0 + $0x38c] sm:$0xff]
    %v249 = vld [vmem:[%s0 + $0x394] sm:$0xf]
    %v250 = vld [vmem:[%s0 + $0x398] sm:$0xff]
    %v251 = vld [vmem:[%s0 + $0x3a0] sm:$0xff]
    %v252 = vld [vmem:[%s0 + $0x3a8] sm:$0xf]
    %v253 = vld [vmem:[%s0 + $0x3ac] sm:$0xff]
    %v254 = vld [vmem:[%s0 + $0x3b4] sm:$0xff]
    %v255 = vld [vmem:[%s0 + $0x3bc] sm:$0xf]
    %v256 = vld [vmem:[%s0 + $0x3c0] sm:$0xff]
    %v257 = vld [vmem:[%s0 + $0x3c8] sm:$0xff]
    %v258 = vld [vmem:[%s0 + $0x3d0] sm:$0xf]
    %v259 = vld [vmem:[%s0 + $0x3d4] sm:$0xff]
    %v260 = vld [vmem:[%s0 + $0x3dc] sm:$0xff]
    %v261 = vld [vmem:[%s0 + $0x3e4] sm:$0xf]
    %v262 = vld [vmem:[%s0 + $0x3e8] sm:$0xff]
    %v263 = vld [vmem:[%s0 + $0x3f0] sm:$0xff]
    %v264 = vld [vmem:[%s0 + $0x3f8] sm:$0xf]
    %v265 = vld [vmem:[%s0 + $0x3fc] sm:$0xff]
    %v266 = vld [vmem:[%s0 + $0x404] sm:$0xff]
    %v267 = vld [vmem:[%s0 + $0x40c] sm:$0xf]
    %v268 = vld [vmem:[%s0 + $0x410] sm:$0xff]
    %v269 = vld [vmem:[%s0 + $0x418] sm:$0xff]
    %v270 = vld [vmem:[%s0 + $0x420] sm:$0xf]
    %v271 = vld [vmem:[%s0 + $0x424] sm:$0xff]
    %v272 = vld [vmem:[%s0 + $0x42c] sm:$0xff]
    %v273 = vld [vmem:[%s0 + $0x434] sm:$0xf]
    %v274 = vld [vmem:[%s0 + $0x438] sm:$0xff]
    %v275 = vld [vmem:[%s0 + $0x440] sm:$0xff]
    %v276 = vld [vmem:[%s0 + $0x448] sm:$0xf]
    %v277 = vld [vmem:[%s0 + $0x44c] sm:$0xff]
    %v278 = vld [vmem:[%s0 + $0x454] sm:$0xff]
    %v279 = vld [vmem:[%s0 + $0x45c] sm:$0xf]
    %v280 = vld [vmem:[%s0 + $0x460] sm:$0xff]
    %v281 = vld [vmem:[%s0 + $0x468] sm:$0xff]
    %v282 = vld [vmem:[%s0 + $0x470] sm:$0xf]
    %v283 = vld [vmem:[%s0 + $0x474] sm:$0xff]
    %v284 = vld [vmem:[%s0 + $0x47c] sm:$0xff]
    %v285 = vld [vmem:[%s0 + $0x484] sm:$0xf]
    %v286 = vld [vmem:[%s0 + $0x488] sm:$0xff]
    %v287 = vld [vmem:[%s0 + $0x490] sm:$0xff]
    %v288 = vld [vmem:[%s0 + $0x498] sm:$0xf]
    %v289 = vld [vmem:[%s0 + $0x49c] sm:$0xff]
    %v290 = vld [vmem:[%s0 + $0x4a4] sm:$0xff]
    %v291 = vld [vmem:[%s0 + $0x4ac] sm:$0xf]
    %v292 = vld [vmem:[%s0 + $0x4b0] sm:$0xff]
    %v293 = vld [vmem:[%s0 + $0x4b8] sm:$0xff]
    %v294 = vld [vmem:[%s0 + $0x4c0] sm:$0xf]
    %v295 = vld [vmem:[%s0 + $0x4c4] sm:$0xff]
    %v296 = vld [vmem:[%s0 + $0x4cc] sm:$0xff]
    %v297 = vld [vmem:[%s0 + $0x4d4] sm:$0xf]
    %v298 = vld [vmem:[%s0 + $0x4d8] sm:$0xff]
    %v299 = vld [vmem:[%s0 + $0x4e0] sm:$0xff]
    %v300 = vld [vmem:[%s0 + $0x4e8] sm:$0xf]
    %v301 = vld [vmem:[%s0 + $0x4ec] sm:$0xff]
    %v302 = vld [vmem:[%s0 + $0x4f4] sm:$0xff]
    %v303 = vld [vmem:[%s0 + $0x4fc] sm:$0xf]
    %v304 = vld [vmem:[%s0 + $0x500] sm:$0xff]
    %v305 = vld [vmem:[%s0 + $0x508] sm:$0xff]
    %v306 = vld [vmem:[%s0 + $0x510] sm:$0xf]
    %v307 = vld [vmem:[%s0 + $0x514] sm:$0xff]
    %v308 = vld [vmem:[%s0 + $0x51c] sm:$0xff]
    %v309 = vld [vmem:[%s0 + $0x524] sm:$0xf]
    %v310 = vld [vmem:[%s0 + $0x528] sm:$0xff]
    %v311 = vld [vmem:[%s0 + $0x530] sm:$0xff]
    %v312 = vld [vmem:[%s0 + $0x538] sm:$0xf]
    %v313 = vld [vmem:[%s0 + $0x53c] sm:$0xff]
    %v314 = vld [vmem:[%s0 + $0x544] sm:$0xff]
    %v315 = vld [vmem:[%s0 + $0x54c] sm:$0xf]
    %v316 = vld [vmem:[%s0 + $0x550] sm:$0xff]
    %v317 = vld [vmem:[%s0 + $0x558] sm:$0xff]
    %v318 = vld [vmem:[%s0 + $0x560] sm:$0xf]
    %v319 = vld [vmem:[%s0 + $0x564] sm:$0xff]
    %v320 = vld [vmem:[%s0 + $0x56c] sm:$0xff]
    %v321 = vld [vmem:[%s0 + $0x574] sm:$0xf]
    %v322 = vld [vmem:[%s0 + $0x578] sm:$0xff]
    %v323 = vld [vmem:[%s0 + $0x580] sm:$0xff]
    %v324 = vld [vmem:[%s0 + $0x588] sm:$0xf]
    %v325 = vld [vmem:[%s0 + $0x58c] sm:$0xff]
    %v326 = vld [vmem:[%s0 + $0x594] sm:$0xff]
    %v327 = vld [vmem:[%s0 + $0x59c] sm:$0xf]
    %v328 = vld [vmem:[%s0 + $0x5a0] sm:$0xff]
    %v329 = vld [vmem:[%s0 + $0x5a8] sm:$0xff]
    %v330 = vld [vmem:[%s0 + $0x5b0] sm:$0xf]
    %v331 = vld [vmem:[%s0 + $0x5b4] sm:$0xff]
    %v332 = vld [vmem:[%s0 + $0x5bc] sm:$0xff]
    %v333 = vld [vmem:[%s0 + $0x5c4] sm:$0xf]
    %v334 = vld [vmem:[%s0 + $0x5c8] sm:$0xff]
    %v335 = vld [vmem:[%s0 + $0x5d0] sm:$0xff]
    %v336 = vld [vmem:[%s0 + $0x5d8] sm:$0xf]
    %v337 = vld [vmem:[%s0 + $0x5dc] sm:$0xff]
    %v338 = vld [vmem:[%s0 + $0x5e4] sm:$0xff]
    %v339 = vld [vmem:[%s0 + $0x5ec] sm:$0xf]
    %v340 = vld [vmem:[%s0 + $0x5f0] sm:$0xff]
    %v341 = vld [vmem:[%s0 + $0x5f8] sm:$0xff]
    %v342 = vld [vmem:[%s0 + $0x600] sm:$0xf]
    %v343 = vld [vmem:[%s0 + $0x604] sm:$0xff]
    %v344 = vld [vmem:[%s0 + $0x60c] sm:$0xff]
    %v345 = vld [vmem:[%s0 + $0x614] sm:$0xf]
    %v346 = vld [vmem:[%s0 + $0x618] sm:$0xff]
    %v347 = vld [vmem:[%s0 + $0x620] sm:$0xff]
    %v348 = vld [vmem:[%s0 + $0x628] sm:$0xf]
    %v349 = vld [vmem:[%s0 + $0x62c] sm:$0xff]
    %v350 = vld [vmem:[%s0 + $0x634] sm:$0xff]
    %v351 = vld [vmem:[%s0 + $0x63c] sm:$0xf]
    %v352 = vld [vmem:[%s0 + $0x640] sm:$0xff]
    %v353 = vld [vmem:[%s0 + $0x648] sm:$0xff]
    %v354 = vld [vmem:[%s0 + $0x650] sm:$0xf]
    %v355 = vld [vmem:[%s1] sm:$0xf]
    %v356 = vld [vmem:[%s1 + $0x4] sm:$0xf]
    %v357 = vld [vmem:[%s1 + $0x8] sm:$0xf]
    %v358 = vld [vmem:[%s1 + $0xc] sm:$0xf]
    %v359 = vld [vmem:[%s1 + $0x10] sm:$0xf]
    %v360 = vld [vmem:[%s1 + $0x14] sm:$0xf]
    %v361 = vld [vmem:[%s1 + $0x18] sm:$0xf]
    %v362 = vld [vmem:[%s1 + $0x1c] sm:$0xf]
    %v363 = vld [vmem:[%s1 + $0x20] sm:$0xf]
    %v364 = vld [vmem:[%s1 + $0x24] sm:$0xf]
    %v365 = vld [vmem:[%s1 + $0x28] sm:$0xf]
    %v366 = vld [vmem:[%s1 + $0x2c] sm:$0xf]
    %v367 = vld [vmem:[%s1 + $0x30] sm:$0xf]
    %v368 = vld [vmem:[%s1 + $0x34] sm:$0xf]
    %v369 = vld [vmem:[%s1 + $0x38] sm:$0xf]
    %v370 = vld [vmem:[%s1 + $0x3c] sm:$0xf]
    %v371 = vld [vmem:[%s1 + $0x40] sm:$0xf]
    %v372 = vld [vmem:[%s1 + $0x44] sm:$0xf]
    %v373 = vld [vmem:[%s1 + $0x48] sm:$0xf]
    %v374 = vld [vmem:[%s1 + $0x4c] sm:$0xf]
    %v375 = vld [vmem:[%s1 + $0x50] sm:$0xf]
    %v376 = vld [vmem:[%s1 + $0x54] sm:$0xf]
    %v377 = vld [vmem:[%s1 + $0x58] sm:$0xf]
    %v378 = vld [vmem:[%s1 + $0x5c] sm:$0xf]
    %v379 = vld [vmem:[%s1 + $0x60] sm:$0xf]
    %v380 = vld [vmem:[%s1 + $0x64] sm:$0xf]
    %v381 = vld [vmem:[%s1 + $0x68] sm:$0xf]
    %v382 = vld [vmem:[%s1 + $0x6c] sm:$0xf]
    %v383 = vld [vmem:[%s1 + $0x70] sm:$0xf]
    %v384 = vld [vmem:[%s1 + $0x74] sm:$0xf]
    %v385 = vld [vmem:[%s1 + $0x78] sm:$0xf]
    %v386 = vld [vmem:[%s1 + $0x7c] sm:$0xf]
    %v387 = vld [vmem:[%s1 + $0x80] sm:$0xf]
    %v388 = vld [vmem:[%s1 + $0x84] sm:$0xf]
    %v389 = vld [vmem:[%s1 + $0x88] sm:$0xf]
    %v390 = vld [vmem:[%s1 + $0x8c] sm:$0xf]
    %v391 = vld [vmem:[%s1 + $0x90] sm:$0xf]
    %v392 = vld [vmem:[%s1 + $0x94] sm:$0xf]
    %v393 = vld [vmem:[%s1 + $0x98] sm:$0xf]
    %v394 = vld [vmem:[%s1 + $0x9c] sm:$0xf]
    %v395 = vld [vmem:[%s1 + $0xa0] sm:$0xf]
    %v396 = vld [vmem:[%s1 + $0xa4] sm:$0xf]
    %v397 = vld [vmem:[%s1 + $0xa8] sm:$0xf]
    %v398 = vld [vmem:[%s1 + $0xac] sm:$0xf]
    %v399 = vld [vmem:[%s1 + $0xb0] sm:$0xf]
    %v400 = vld [vmem:[%s1 + $0xb4] sm:$0xf]
    %v401 = vld [vmem:[%s1 + $0xb8] sm:$0xf]
    %v402 = vld [vmem:[%s1 + $0xbc] sm:$0xf]
    %v403 = vld [vmem:[%s1 + $0xc0] sm:$0xf]
    %v404 = vld [vmem:[%s1 + $0xc4] sm:$0xf]
    %v405 = vld [vmem:[%s1 + $0xc8] sm:$0xf]
    %v406 = vld [vmem:[%s1 + $0xcc] sm:$0xf]
    %v407 = vld [vmem:[%s1 + $0xd0] sm:$0xf]
    %v408 = vld [vmem:[%s1 + $0xd4] sm:$0xf]
    %v409 = vld [vmem:[%s1 + $0xd8] sm:$0xf]
    %v410 = vld [vmem:[%s1 + $0xdc] sm:$0xf]
    %v411 = vld [vmem:[%s1 + $0xe0] sm:$0xf]
    %v412 = vld [vmem:[%s1 + $0xe4] sm:$0xf]
    %v413 = vld [vmem:[%s1 + $0xe8] sm:$0xf]
    %v414 = vld [vmem:[%s1 + $0xec] sm:$0xf]
    %v415 = vld [vmem:[%s1 + $0xf0] sm:$0xf]
    %v416 = vld [vmem:[%s1 + $0xf4] sm:$0xf]
    %v417 = vld [vmem:[%s1 + $0xf8] sm:$0xf]
    %v418 = vld [vmem:[%s1 + $0xfc] sm:$0xf]
    %v419 = vld [vmem:[%s1 + $0x100] sm:$0xf]
    %v420 = vld [vmem:[%s1 + $0x104] sm:$0xf]
    %v421 = vld [vmem:[%s1 + $0x108] sm:$0xf]
    %v422 = vld [vmem:[%s1 + $0x10c] sm:$0xf]
    %v423 = vld [vmem:[%s1 + $0x110] sm:$0xf]
    %v424 = vld [vmem:[%s1 + $0x114] sm:$0xf]
    %v425 = vld [vmem:[%s1 + $0x118] sm:$0xf]
    %v426 = vld [vmem:[%s1 + $0x11c] sm:$0xf]
    %v427 = vld [vmem:[%s1 + $0x120] sm:$0xf]
    %v428 = vld [vmem:[%s1 + $0x124] sm:$0xf]
    %v429 = vld [vmem:[%s1 + $0x128] sm:$0xf]
    %v430 = vld [vmem:[%s2] sm:$0x1]
    %v432 = vperm.slane %v430, 0
    %v677 = vunpack.c.l.b16 %v112
    %v678 = vunpack.c.h.b16 %v112
    %v679 = vunpack.c.l.b16 %v113
    %v680 = vunpack.c.h.b16 %v113
    %v681 = vunpack.c.l.b16 %v114
    %v682 = vunpack.c.l.b16 %v115
    %v683 = vunpack.c.h.b16 %v115
    %v684 = vunpack.c.l.b16 %v116
    %v685 = vunpack.c.h.b16 %v116
    %v686 = vunpack.c.l.b16 %v117
    %v687 = vunpack.c.l.b16 %v118
    %v688 = vunpack.c.h.b16 %v118
    %v689 = vunpack.c.l.b16 %v119
    %v690 = vunpack.c.h.b16 %v119
    %v691 = vunpack.c.l.b16 %v120
    %v692 = vunpack.c.l.b16 %v121
    %v693 = vunpack.c.h.b16 %v121
    %v694 = vunpack.c.l.b16 %v122
    %v695 = vunpack.c.h.b16 %v122
    %v696 = vunpack.c.l.b16 %v123
    %v697 = vunpack.c.l.b16 %v124
    %v698 = vunpack.c.h.b16 %v124
    %v699 = vunpack.c.l.b16 %v125
    %v700 = vunpack.c.h.b16 %v125
    %v701 = vunpack.c.l.b16 %v126
    %v702 = vunpack.c.l.b16 %v127
    %v703 = vunpack.c.h.b16 %v127
    %v704 = vunpack.c.l.b16 %v128
    %v705 = vunpack.c.h.b16 %v128
    %v706 = vunpack.c.l.b16 %v129
    %v707 = vunpack.c.l.b16 %v130
    %v708 = vunpack.c.h.b16 %v130
    %v709 = vunpack.c.l.b16 %v131
    %v710 = vunpack.c.h.b16 %v131
    %v711 = vunpack.c.l.b16 %v132
    %v712 = vunpack.c.l.b16 %v133
    %v713 = vunpack.c.h.b16 %v133
    %v714 = vunpack.c.l.b16 %v134
    %v715 = vunpack.c.h.b16 %v134
    %v716 = vunpack.c.l.b16 %v135
    %v717 = vunpack.c.l.b16 %v136
    %v718 = vunpack.c.h.b16 %v136
    %v719 = vunpack.c.l.b16 %v137
    %v720 = vunpack.c.h.b16 %v137
    %v721 = vunpack.c.l.b16 %v138
    %v722 = vunpack.c.l.b16 %v139
    %v723 = vunpack.c.h.b16 %v139
    %v724 = vunpack.c.l.b16 %v140
    %v725 = vunpack.c.h.b16 %v140
    %v726 = vunpack.c.l.b16 %v141
    %v727 = vunpack.c.l.b16 %v142
    %v728 = vunpack.c.h.b16 %v142
    %v729 = vunpack.c.l.b16 %v143
    %v730 = vunpack.c.h.b16 %v143
    %v731 = vunpack.c.l.b16 %v144
    %v732 = vunpack.c.l.b16 %v145
    %v733 = vunpack.c.h.b16 %v145
    %v734 = vunpack.c.l.b16 %v146
    %v735 = vunpack.c.h.b16 %v146
    %v736 = vunpack.c.l.b16 %v147
    %v737 = vunpack.c.l.b16 %v148
    %v738 = vunpack.c.h.b16 %v148
    %v739 = vunpack.c.l.b16 %v149
    %v740 = vunpack.c.h.b16 %v149
    %v741 = vunpack.c.l.b16 %v150
    %v742 = vunpack.c.l.b16 %v151
    %v743 = vunpack.c.h.b16 %v151
    %v744 = vunpack.c.l.b16 %v152
    %v745 = vunpack.c.h.b16 %v152
    %v746 = vunpack.c.l.b16 %v153
    %v747 = vunpack.c.l.b16 %v154
    %v748 = vunpack.c.h.b16 %v154
    %v749 = vunpack.c.l.b16 %v155
    %v750 = vunpack.c.h.b16 %v155
    %v751 = vunpack.c.l.b16 %v156
    %v752 = vunpack.c.l.b16 %v157
    %v753 = vunpack.c.h.b16 %v157
    %v754 = vunpack.c.l.b16 %v158
    %v755 = vunpack.c.h.b16 %v158
    %v756 = vunpack.c.l.b16 %v159
    %v757 = vunpack.c.l.b16 %v160
    %v758 = vunpack.c.h.b16 %v160
    %v759 = vunpack.c.l.b16 %v161
    %v760 = vunpack.c.h.b16 %v161
    %v761 = vunpack.c.l.b16 %v162
    %v762 = vunpack.c.l.b16 %v163
    %v763 = vunpack.c.h.b16 %v163
    %v764 = vunpack.c.l.b16 %v164
    %v765 = vunpack.c.h.b16 %v164
    %v766 = vunpack.c.l.b16 %v165
    %v767 = vunpack.c.l.b16 %v166
    %v768 = vunpack.c.h.b16 %v166
    %v769 = vunpack.c.l.b16 %v167
    %v770 = vunpack.c.h.b16 %v167
    %v771 = vunpack.c.l.b16 %v168
    %v772 = vunpack.c.l.b16 %v169
    %v773 = vunpack.c.h.b16 %v169
    %v774 = vunpack.c.l.b16 %v170
    %v775 = vunpack.c.h.b16 %v170
    %v776 = vunpack.c.l.b16 %v171
    %v777 = vunpack.c.l.b16 %v172
    %v778 = vunpack.c.h.b16 %v172
    %v779 = vunpack.c.l.b16 %v173
    %v780 = vunpack.c.h.b16 %v173
    %v781 = vunpack.c.l.b16 %v174
    %v782 = vunpack.c.l.b16 %v175
    %v783 = vunpack.c.h.b16 %v175
    %v784 = vunpack.c.l.b16 %v176
    %v785 = vunpack.c.h.b16 %v176
    %v786 = vunpack.c.l.b16 %v177
    %v787 = vunpack.c.l.b16 %v178
    %v788 = vunpack.c.h.b16 %v178
    %v789 = vunpack.c.l.b16 %v179
    %v790 = vunpack.c.h.b16 %v179
    %v791 = vunpack.c.l.b16 %v180
    %v792 = vunpack.c.l.b16 %v181
    %v793 = vunpack.c.h.b16 %v181
    %v794 = vunpack.c.l.b16 %v182
    %v795 = vunpack.c.h.b16 %v182
    %v796 = vunpack.c.l.b16 %v183
    %v797 = vunpack.c.l.b16 %v184
    %v798 = vunpack.c.h.b16 %v184
    %v799 = vunpack.c.l.b16 %v185
    %v800 = vunpack.c.h.b16 %v185
    %v801 = vunpack.c.l.b16 %v186
    %v802 = vunpack.c.l.b16 %v187
    %v803 = vunpack.c.h.b16 %v187
    %v804 = vunpack.c.l.b16 %v188
    %v805 = vunpack.c.h.b16 %v188
    %v806 = vunpack.c.l.b16 %v189
    %v807 = vunpack.c.l.b16 %v190
    %v808 = vunpack.c.h.b16 %v190
    %v809 = vunpack.c.l.b16 %v191
    %v810 = vunpack.c.h.b16 %v191
    %v811 = vunpack.c.l.b16 %v192
    %v812 = vunpack.c.l.b16 %v193
    %v813 = vunpack.c.h.b16 %v193
    %v814 = vunpack.c.l.b16 %v194
    %v815 = vunpack.c.h.b16 %v194
    %v816 = vunpack.c.l.b16 %v195
    %v817 = vunpack.c.l.b16 %v196
    %v818 = vunpack.c.h.b16 %v196
    %v819 = vunpack.c.l.b16 %v197
    %v820 = vunpack.c.h.b16 %v197
    %v821 = vunpack.c.l.b16 %v198
    %v822 = vunpack.c.l.b16 %v199
    %v823 = vunpack.c.h.b16 %v199
    %v824 = vunpack.c.l.b16 %v200
    %v825 = vunpack.c.h.b16 %v200
    %v826 = vunpack.c.l.b16 %v201
    %v827 = vunpack.c.l.b16 %v202
    %v828 = vunpack.c.h.b16 %v202
    %v829 = vunpack.c.l.b16 %v203
    %v830 = vunpack.c.h.b16 %v203
    %v831 = vunpack.c.l.b16 %v204
    %v832 = vunpack.c.l.b16 %v205
    %v833 = vunpack.c.h.b16 %v205
    %v834 = vunpack.c.l.b16 %v206
    %v835 = vunpack.c.h.b16 %v206
    %v836 = vunpack.c.l.b16 %v207
    %v837 = vunpack.c.l.b16 %v208
    %v838 = vunpack.c.h.b16 %v208
    %v839 = vunpack.c.l.b16 %v209
    %v840 = vunpack.c.h.b16 %v209
    %v841 = vunpack.c.l.b16 %v210
    %v842 = vunpack.c.l.b16 %v211
    %v843 = vunpack.c.h.b16 %v211
    %v844 = vunpack.c.l.b16 %v212
    %v845 = vunpack.c.h.b16 %v212
    %v846 = vunpack.c.l.b16 %v213
    %v847 = vunpack.c.l.b16 %v214
    %v848 = vunpack.c.h.b16 %v214
    %v849 = vunpack.c.l.b16 %v215
    %v850 = vunpack.c.h.b16 %v215
    %v851 = vunpack.c.l.b16 %v216
    %v852 = vunpack.c.l.b16 %v217
    %v853 = vunpack.c.h.b16 %v217
    %v854 = vunpack.c.l.b16 %v218
    %v855 = vunpack.c.h.b16 %v218
    %v856 = vunpack.c.l.b16 %v219
    %v857 = vunpack.c.l.b16 %v220
    %v858 = vunpack.c.h.b16 %v220
    %v859 = vunpack.c.l.b16 %v221
    %v860 = vunpack.c.h.b16 %v221
    %v861 = vunpack.c.l.b16 %v222
    %v862 = vunpack.c.l.b16 %v223
    %v863 = vunpack.c.h.b16 %v223
    %v864 = vunpack.c.l.b16 %v224
    %v865 = vunpack.c.h.b16 %v224
    %v866 = vunpack.c.l.b16 %v225
    %v867 = vunpack.c.l.b16 %v226
    %v868 = vunpack.c.h.b16 %v226
    %v869 = vunpack.c.l.b16 %v227
    %v870 = vunpack.c.h.b16 %v227
    %v871 = vunpack.c.l.b16 %v228
    %v872 = vunpack.c.l.b16 %v229
    %v873 = vunpack.c.h.b16 %v229
    %v874 = vunpack.c.l.b16 %v230
    %v875 = vunpack.c.h.b16 %v230
    %v876 = vunpack.c.l.b16 %v231
    %v877 = vunpack.c.l.b16 %v232
    %v878 = vunpack.c.h.b16 %v232
    %v879 = vunpack.c.l.b16 %v233
    %v880 = vunpack.c.h.b16 %v233
    %v881 = vunpack.c.l.b16 %v234
    %v882 = vunpack.c.l.b16 %v235
    %v883 = vunpack.c.h.b16 %v235
    %v884 = vunpack.c.l.b16 %v236
    %v885 = vunpack.c.h.b16 %v236
    %v886 = vunpack.c.l.b16 %v237
    %v887 = vunpack.c.l.b16 %v238
    %v888 = vunpack.c.h.b16 %v238
    %v889 = vunpack.c.l.b16 %v239
    %v890 = vunpack.c.h.b16 %v239
    %v891 = vunpack.c.l.b16 %v240
    %v892 = vunpack.c.l.b16 %v241
    %v893 = vunpack.c.h.b16 %v241
    %v894 = vunpack.c.l.b16 %v242
    %v895 = vunpack.c.h.b16 %v242
    %v896 = vunpack.c.l.b16 %v243
    %v897 = vunpack.c.l.b16 %v244
    %v898 = vunpack.c.h.b16 %v244
    %v899 = vunpack.c.l.b16 %v245
    %v900 = vunpack.c.h.b16 %v245
    %v901 = vunpack.c.l.b16 %v246
    %v902 = vunpack.c.l.b16 %v247
    %v903 = vunpack.c.h.b16 %v247
    %v904 = vunpack.c.l.b16 %v248
    %v905 = vunpack.c.h.b16 %v248
    %v906 = vunpack.c.l.b16 %v249
    %v907 = vunpack.c.l.b16 %v250
    %v908 = vunpack.c.h.b16 %v250
    %v909 = vunpack.c.l.b16 %v251
    %v910 = vunpack.c.h.b16 %v251
    %v911 = vunpack.c.l.b16 %v252
    %v912 = vunpack.c.l.b16 %v253
    %v913 = vunpack.c.h.b16 %v253
    %v914 = vunpack.c.l.b16 %v254
    %v915 = vunpack.c.h.b16 %v254
    %v916 = vunpack.c.l.b16 %v255
    %v917 = vunpack.c.l.b16 %v256
    %v918 = vunpack.c.h.b16 %v256
    %v919 = vunpack.c.l.b16 %v257
    %v920 = vunpack.c.h.b16 %v257
    %v921 = vunpack.c.l.b16 %v258
    %v922 = vunpack.c.l.b16 %v259
    %v923 = vunpack.c.h.b16 %v259
    %v924 = vunpack.c.l.b16 %v260
    %v925 = vunpack.c.h.b16 %v260
    %v926 = vunpack.c.l.b16 %v261
    %v927 = vunpack.c.l.b16 %v262
    %v928 = vunpack.c.h.b16 %v262
    %v929 = vunpack.c.l.b16 %v263
    %v930 = vunpack.c.h.b16 %v263
    %v931 = vunpack.c.l.b16 %v264
    %v932 = vunpack.c.l.b16 %v265
    %v933 = vunpack.c.h.b16 %v265
    %v934 = vunpack.c.l.b16 %v266
    %v935 = vunpack.c.h.b16 %v266
    %v936 = vunpack.c.l.b16 %v267
    %v937 = vunpack.c.l.b16 %v268
    %v938 = vunpack.c.h.b16 %v268
    %v939 = vunpack.c.l.b16 %v269
    %v940 = vunpack.c.h.b16 %v269
    %v941 = vunpack.c.l.b16 %v270
    %v942 = vunpack.c.l.b16 %v271
    %v943 = vunpack.c.h.b16 %v271
    %v944 = vunpack.c.l.b16 %v272
    %v945 = vunpack.c.h.b16 %v272
    %v946 = vunpack.c.l.b16 %v273
    %v947 = vunpack.c.l.b16 %v274
    %v948 = vunpack.c.h.b16 %v274
    %v949 = vunpack.c.l.b16 %v275
    %v950 = vunpack.c.h.b16 %v275
    %v951 = vunpack.c.l.b16 %v276
    %v952 = vunpack.c.l.b16 %v277
    %v953 = vunpack.c.h.b16 %v277
    %v954 = vunpack.c.l.b16 %v278
    %v955 = vunpack.c.h.b16 %v278
    %v956 = vunpack.c.l.b16 %v279
    %v957 = vunpack.c.l.b16 %v280
    %v958 = vunpack.c.h.b16 %v280
    %v959 = vunpack.c.l.b16 %v281
    %v960 = vunpack.c.h.b16 %v281
    %v961 = vunpack.c.l.b16 %v282
    %v962 = vunpack.c.l.b16 %v283
    %v963 = vunpack.c.h.b16 %v283
    %v964 = vunpack.c.l.b16 %v284
    %v965 = vunpack.c.h.b16 %v284
    %v966 = vunpack.c.l.b16 %v285
    %v967 = vunpack.c.l.b16 %v286
    %v968 = vunpack.c.h.b16 %v286
    %v969 = vunpack.c.l.b16 %v287
    %v970 = vunpack.c.h.b16 %v287
    %v971 = vunpack.c.l.b16 %v288
    %v972 = vunpack.c.l.b16 %v289
    %v973 = vunpack.c.h.b16 %v289
    %v974 = vunpack.c.l.b16 %v290
    %v975 = vunpack.c.h.b16 %v290
    %v976 = vunpack.c.l.b16 %v291
    %v977 = vunpack.c.l.b16 %v292
    %v978 = vunpack.c.h.b16 %v292
    %v979 = vunpack.c.l.b16 %v293
    %v980 = vunpack.c.h.b16 %v293
    %v981 = vunpack.c.l.b16 %v294
    %v982 = vunpack.c.l.b16 %v295
    %v983 = vunpack.c.h.b16 %v295
    %v984 = vunpack.c.l.b16 %v296
    %v985 = vunpack.c.h.b16 %v296
    %v986 = vunpack.c.l.b16 %v297
    %v987 = vunpack.c.l.b16 %v298
    %v988 = vunpack.c.h.b16 %v298
    %v989 = vunpack.c.l.b16 %v299
    %v990 = vunpack.c.h.b16 %v299
    %v991 = vunpack.c.l.b16 %v300
    %v992 = vunpack.c.l.b16 %v301
    %v993 = vunpack.c.h.b16 %v301
    %v994 = vunpack.c.l.b16 %v302
    %v995 = vunpack.c.h.b16 %v302
    %v996 = vunpack.c.l.b16 %v303
    %v997 = vunpack.c.l.b16 %v304
    %v998 = vunpack.c.h.b16 %v304
    %v999 = vunpack.c.l.b16 %v305
    %v1000 = vunpack.c.h.b16 %v305
    %v1001 = vunpack.c.l.b16 %v306
    %v1002 = vunpack.c.l.b16 %v307
    %v1003 = vunpack.c.h.b16 %v307
    %v1004 = vunpack.c.l.b16 %v308
    %v1005 = vunpack.c.h.b16 %v308
    %v1006 = vunpack.c.l.b16 %v309
    %v1007 = vunpack.c.l.b16 %v310
    %v1008 = vunpack.c.h.b16 %v310
    %v1009 = vunpack.c.l.b16 %v311
    %v1010 = vunpack.c.h.b16 %v311
    %v1011 = vunpack.c.l.b16 %v312
    %v1012 = vunpack.c.l.b16 %v313
    %v1013 = vunpack.c.h.b16 %v313
    %v1014 = vunpack.c.l.b16 %v314
    %v1015 = vunpack.c.h.b16 %v314
    %v1016 = vunpack.c.l.b16 %v315
    %v1017 = vunpack.c.l.b16 %v316
    %v1018 = vunpack.c.h.b16 %v316
    %v1019 = vunpack.c.l.b16 %v317
    %v1020 = vunpack.c.h.b16 %v317
    %v1021 = vunpack.c.l.b16 %v318
    %v1022 = vunpack.c.l.b16 %v319
    %v1023 = vunpack.c.h.b16 %v319
    %v1024 = vunpack.c.l.b16 %v320
    %v1025 = vunpack.c.h.b16 %v320
    %v1026 = vunpack.c.l.b16 %v321
    %v1027 = vunpack.c.l.b16 %v322
    %v1028 = vunpack.c.h.b16 %v322
    %v1029 = vunpack.c.l.b16 %v323
    %v1030 = vunpack.c.h.b16 %v323
    %v1031 = vunpack.c.l.b16 %v324
    %v1032 = vunpack.c.l.b16 %v325
    %v1033 = vunpack.c.h.b16 %v325
    %v1034 = vunpack.c.l.b16 %v326
    %v1035 = vunpack.c.h.b16 %v326
    %v1036 = vunpack.c.l.b16 %v327
    %v1037 = vunpack.c.l.b16 %v328
    %v1038 = vunpack.c.h.b16 %v328
    %v1039 = vunpack.c.l.b16 %v329
    %v1040 = vunpack.c.h.b16 %v329
    %v1041 = vunpack.c.l.b16 %v330
    %v1042 = vunpack.c.l.b16 %v331
    %v1043 = vunpack.c.h.b16 %v331
    %v1044 = vunpack.c.l.b16 %v332
    %v1045 = vunpack.c.h.b16 %v332
    %v1046 = vunpack.c.l.b16 %v333
    %v1047 = vunpack.c.l.b16 %v334
    %v1048 = vunpack.c.h.b16 %v334
    %v1049 = vunpack.c.l.b16 %v335
    %v1050 = vunpack.c.h.b16 %v335
    %v1051 = vunpack.c.l.b16 %v336
    %v1052 = vunpack.c.l.b16 %v337
    %v1053 = vunpack.c.h.b16 %v337
    %v1054 = vunpack.c.l.b16 %v338
    %v1055 = vunpack.c.h.b16 %v338
    %v1056 = vunpack.c.l.b16 %v339
    %v1057 = vunpack.c.l.b16 %v340
    %v1058 = vunpack.c.h.b16 %v340
    %v1059 = vunpack.c.l.b16 %v341
    %v1060 = vunpack.c.h.b16 %v341
    %v1061 = vunpack.c.l.b16 %v342
    %v1062 = vunpack.c.l.b16 %v343
    %v1063 = vunpack.c.h.b16 %v343
    %v1064 = vunpack.c.l.b16 %v344
    %v1065 = vunpack.c.h.b16 %v344
    %v1066 = vunpack.c.l.b16 %v345
    %v1067 = vunpack.c.l.b16 %v346
    %v1068 = vunpack.c.h.b16 %v346
    %v1069 = vunpack.c.l.b16 %v347
    %v1070 = vunpack.c.h.b16 %v347
    %v1071 = vunpack.c.l.b16 %v348
    %v1072 = vunpack.c.l.b16 %v349
    %v1073 = vunpack.c.h.b16 %v349
    %v1074 = vunpack.c.l.b16 %v350
    %v1075 = vunpack.c.h.b16 %v350
    %v1076 = vunpack.c.l.b16 %v351
    %v1077 = vunpack.c.l.b16 %v352
    %v1078 = vunpack.c.h.b16 %v352
    %v1079 = vunpack.c.l.b16 %v353
    %v1080 = vunpack.c.h.b16 %v353
    %v1081 = vunpack.c.l.b16 %v354
    %v1082 = vpack.c.b16 %v682, %v677
    %v1083 = vpack.c.b16 %v683, %v678
    %v1084 = vpack.c.b16 %v684, %v679
    %v1085 = vpack.c.b16 %v685, %v680
    %v1086 = vpack.c.b16 %v686, %v681
    %v1087 = vpack.c.b16 %v692, %v687
    %v1088 = vpack.c.b16 %v693, %v688
    %v1089 = vpack.c.b16 %v694, %v689
    %v1090 = vpack.c.b16 %v695, %v690
    %v1091 = vpack.c.b16 %v696, %v691
    %v1092 = vpack.c.b16 %v702, %v697
    %v1093 = vpack.c.b16 %v703, %v698
    %v1094 = vpack.c.b16 %v704, %v699
    %v1095 = vpack.c.b16 %v705, %v700
    %v1096 = vpack.c.b16 %v706, %v701
    %v1097 = vpack.c.b16 %v712, %v707
    %v1098 = vpack.c.b16 %v713, %v708
    %v1099 = vpack.c.b16 %v714, %v709
    %v1100 = vpack.c.b16 %v715, %v710
    %v1101 = vpack.c.b16 %v716, %v711
    %v1102 = vpack.c.b16 %v722, %v717
    %v1103 = vpack.c.b16 %v723, %v718
    %v1104 = vpack.c.b16 %v724, %v719
    %v1105 = vpack.c.b16 %v725, %v720
    %v1106 = vpack.c.b16 %v726, %v721
    %v1107 = vpack.c.b16 %v732, %v727
    %v1108 = vpack.c.b16 %v733, %v728
    %v1109 = vpack.c.b16 %v734, %v729
    %v1110 = vpack.c.b16 %v735, %v730
    %v1111 = vpack.c.b16 %v736, %v731
    %v1112 = vpack.c.b16 %v742, %v737
    %v1113 = vpack.c.b16 %v743, %v738
    %v1114 = vpack.c.b16 %v744, %v739
    %v1115 = vpack.c.b16 %v745, %v740
    %v1116 = vpack.c.b16 %v746, %v741
    %v1117 = vpack.c.b16 %v752, %v747
    %v1118 = vpack.c.b16 %v753, %v748
    %v1119 = vpack.c.b16 %v754, %v749
    %v1120 = vpack.c.b16 %v755, %v750
    %v1121 = vpack.c.b16 %v756, %v751
    %v1122 = vpack.c.b16 %v762, %v757
    %v1123 = vpack.c.b16 %v763, %v758
    %v1124 = vpack.c.b16 %v764, %v759
    %v1125 = vpack.c.b16 %v765, %v760
    %v1126 = vpack.c.b16 %v766, %v761
    %v1127 = vpack.c.b16 %v772, %v767
    %v1128 = vpack.c.b16 %v773, %v768
    %v1129 = vpack.c.b16 %v774, %v769
    %v1130 = vpack.c.b16 %v775, %v770
    %v1131 = vpack.c.b16 %v776, %v771
    %v1132 = vpack.c.b16 %v782, %v777
    %v1133 = vpack.c.b16 %v783, %v778
    %v1134 = vpack.c.b16 %v784, %v779
    %v1135 = vpack.c.b16 %v785, %v780
    %v1136 = vpack.c.b16 %v786, %v781
    %v1137 = vpack.c.b16 %v792, %v787
    %v1138 = vpack.c.b16 %v793, %v788
    %v1139 = vpack.c.b16 %v794, %v789
    %v1140 = vpack.c.b16 %v795, %v790
    %v1141 = vpack.c.b16 %v796, %v791
    %v1142 = vpack.c.b16 %v802, %v797
    %v1143 = vpack.c.b16 %v803, %v798
    %v1144 = vpack.c.b16 %v804, %v799
    %v1145 = vpack.c.b16 %v805, %v800
    %v1146 = vpack.c.b16 %v806, %v801
    %v1147 = vpack.c.b16 %v812, %v807
    %v1148 = vpack.c.b16 %v813, %v808
    %v1149 = vpack.c.b16 %v814, %v809
    %v1150 = vpack.c.b16 %v815, %v810
    %v1151 = vpack.c.b16 %v816, %v811
    %v1152 = vpack.c.b16 %v822, %v817
    %v1153 = vpack.c.b16 %v823, %v818
    %v1154 = vpack.c.b16 %v824, %v819
    %v1155 = vpack.c.b16 %v825, %v820
    %v1156 = vpack.c.b16 %v826, %v821
    %v1157 = vpack.c.b16 %v832, %v827
    %v1158 = vpack.c.b16 %v833, %v828
    %v1159 = vpack.c.b16 %v834, %v829
    %v1160 = vpack.c.b16 %v835, %v830
    %v1161 = vpack.c.b16 %v836, %v831
    %v1162 = vpack.c.b16 %v842, %v837
    %v1163 = vpack.c.b16 %v843, %v838
    %v1164 = vpack.c.b16 %v844, %v839
    %v1165 = vpack.c.b16 %v845, %v840
    %v1166 = vpack.c.b16 %v846, %v841
    %v1167 = vpack.c.b16 %v852, %v847
    %v1168 = vpack.c.b16 %v853, %v848
    %v1169 = vpack.c.b16 %v854, %v849
    %v1170 = vpack.c.b16 %v855, %v850
    %v1171 = vpack.c.b16 %v856, %v851
    %v1172 = vpack.c.b16 %v862, %v857
    %v1173 = vpack.c.b16 %v863, %v858
    %v1174 = vpack.c.b16 %v864, %v859
    %v1175 = vpack.c.b16 %v865, %v860
    %v1176 = vpack.c.b16 %v866, %v861
    %v1177 = vpack.c.b16 %v872, %v867
    %v1178 = vpack.c.b16 %v873, %v868
    %v1179 = vpack.c.b16 %v874, %v869
    %v1180 = vpack.c.b16 %v875, %v870
    %v1181 = vpack.c.b16 %v876, %v871
    %v1182 = vpack.c.b16 %v882, %v877
    %v1183 = vpack.c.b16 %v883, %v878
    %v1184 = vpack.c.b16 %v884, %v879
    %v1185 = vpack.c.b16 %v885, %v880
    %v1186 = vpack.c.b16 %v886, %v881
    %v1187 = vpack.c.b16 %v892, %v887
    %v1188 = vpack.c.b16 %v893, %v888
    %v1189 = vpack.c.b16 %v894, %v889
    %v1190 = vpack.c.b16 %v895, %v890
    %v1191 = vpack.c.b16 %v896, %v891
    %v1192 = vpack.c.b16 %v902, %v897
    %v1193 = vpack.c.b16 %v903, %v898
    %v1194 = vpack.c.b16 %v904, %v899
    %v1195 = vpack.c.b16 %v905, %v900
    %v1196 = vpack.c.b16 %v906, %v901
    %v1197 = vpack.c.b16 %v912, %v907
    %v1198 = vpack.c.b16 %v913, %v908
    %v1199 = vpack.c.b16 %v914, %v909
    %v1200 = vpack.c.b16 %v915, %v910
    %v1201 = vpack.c.b16 %v916, %v911
    %v1202 = vpack.c.b16 %v922, %v917
    %v1203 = vpack.c.b16 %v923, %v918
    %v1204 = vpack.c.b16 %v924, %v919
    %v1205 = vpack.c.b16 %v925, %v920
    %v1206 = vpack.c.b16 %v926, %v921
    %v1207 = vpack.c.b16 %v932, %v927
    %v1208 = vpack.c.b16 %v933, %v928
    %v1209 = vpack.c.b16 %v934, %v929
    %v1210 = vpack.c.b16 %v935, %v930
    %v1211 = vpack.c.b16 %v936, %v931
    %v1212 = vpack.c.b16 %v942, %v937
    %v1213 = vpack.c.b16 %v943, %v938
    %v1214 = vpack.c.b16 %v944, %v939
    %v1215 = vpack.c.b16 %v945, %v940
    %v1216 = vpack.c.b16 %v946, %v941
    %v1217 = vpack.c.b16 %v952, %v947
    %v1218 = vpack.c.b16 %v953, %v948
    %v1219 = vpack.c.b16 %v954, %v949
    %v1220 = vpack.c.b16 %v955, %v950
    %v1221 = vpack.c.b16 %v956, %v951
    %v1222 = vpack.c.b16 %v962, %v957
    %v1223 = vpack.c.b16 %v963, %v958
    %v1224 = vpack.c.b16 %v964, %v959
    %v1225 = vpack.c.b16 %v965, %v960
    %v1226 = vpack.c.b16 %v966, %v961
    %v1227 = vpack.c.b16 %v972, %v967
    %v1228 = vpack.c.b16 %v973, %v968
    %v1229 = vpack.c.b16 %v974, %v969
    %v1230 = vpack.c.b16 %v975, %v970
    %v1231 = vpack.c.b16 %v976, %v971
    %v1232 = vpack.c.b16 %v982, %v977
    %v1233 = vpack.c.b16 %v983, %v978
    %v1234 = vpack.c.b16 %v984, %v979
    %v1235 = vpack.c.b16 %v985, %v980
    %v1236 = vpack.c.b16 %v986, %v981
    %v1237 = vpack.c.b16 %v992, %v987
    %v1238 = vpack.c.b16 %v993, %v988
    %v1239 = vpack.c.b16 %v994, %v989
    %v1240 = vpack.c.b16 %v995, %v990
    %v1241 = vpack.c.b16 %v996, %v991
    %v1242 = vpack.c.b16 %v1002, %v997
    %v1243 = vpack.c.b16 %v1003, %v998
    %v1244 = vpack.c.b16 %v1004, %v999
    %v1245 = vpack.c.b16 %v1005, %v1000
    %v1246 = vpack.c.b16 %v1006, %v1001
    %v1247 = vpack.c.b16 %v1012, %v1007
    %v1248 = vpack.c.b16 %v1013, %v1008
    %v1249 = vpack.c.b16 %v1014, %v1009
    %v1250 = vpack.c.b16 %v1015, %v1010
    %v1251 = vpack.c.b16 %v1016, %v1011
    %v1252 = vpack.c.b16 %v1022, %v1017
    %v1253 = vpack.c.b16 %v1023, %v1018
    %v1254 = vpack.c.b16 %v1024, %v1019
    %v1255 = vpack.c.b16 %v1025, %v1020
    %v1256 = vpack.c.b16 %v1026, %v1021
    %v1257 = vpack.c.b16 %v1032, %v1027
    %v1258 = vpack.c.b16 %v1033, %v1028
    %v1259 = vpack.c.b16 %v1034, %v1029
    %v1260 = vpack.c.b16 %v1035, %v1030
    %v1261 = vpack.c.b16 %v1036, %v1031
    %v1262 = vpack.c.b16 %v1042, %v1037
    %v1263 = vpack.c.b16 %v1043, %v1038
    %v1264 = vpack.c.b16 %v1044, %v1039
    %v1265 = vpack.c.b16 %v1045, %v1040
    %v1266 = vpack.c.b16 %v1046, %v1041
    %v1267 = vpack.c.b16 %v1052, %v1047
    %v1268 = vpack.c.b16 %v1053, %v1048
    %v1269 = vpack.c.b16 %v1054, %v1049
    %v1270 = vpack.c.b16 %v1055, %v1050
    %v1271 = vpack.c.b16 %v1056, %v1051
    %v1272 = vpack.c.b16 %v1062, %v1057
    %v1273 = vpack.c.b16 %v1063, %v1058
    %v1274 = vpack.c.b16 %v1064, %v1059
    %v1275 = vpack.c.b16 %v1065, %v1060
    %v1276 = vpack.c.b16 %v1066, %v1061
    %v1277 = vpack.c.b16 %v1072, %v1067
    %v1278 = vpack.c.b16 %v1073, %v1068
    %v1279 = vpack.c.b16 %v1074, %v1069
    %v1280 = vpack.c.b16 %v1075, %v1070
    %v1281 = vpack.c.b16 %v1076, %v1071
    %v1282 = vpack.c.b16 %v1077, %v1077
    %v1283 = vpack.c.b16 %v1078, %v1078
    %v1284 = vpack.c.b16 %v1079, %v1079
    %v1285 = vpack.c.b16 %v1080, %v1080
    %v1286 = vpack.c.b16 %v1081, %v1081
    %v1526 = vunpack.c.l.b16 %v355
    %v1527 = vunpack.c.l.b16 %v356
    %v1528 = vunpack.c.l.b16 %v357
    %v1529 = vunpack.c.l.b16 %v358
    %v1530 = vunpack.c.l.b16 %v359
    %v1531 = vunpack.c.l.b16 %v360
    %v1532 = vunpack.c.l.b16 %v361
    %v1533 = vunpack.c.l.b16 %v362
    %v1534 = vunpack.c.l.b16 %v363
    %v1535 = vunpack.c.l.b16 %v364
    %v1536 = vunpack.c.l.b16 %v365
    %v1537 = vunpack.c.l.b16 %v366
    %v1538 = vunpack.c.l.b16 %v367
    %v1539 = vunpack.c.l.b16 %v368
    %v1540 = vunpack.c.l.b16 %v369
    %v1541 = vunpack.c.l.b16 %v370
    %v1542 = vunpack.c.l.b16 %v371
    %v1543 = vunpack.c.l.b16 %v372
    %v1544 = vunpack.c.l.b16 %v373
    %v1545 = vunpack.c.l.b16 %v374
    %v1546 = vunpack.c.l.b16 %v375
    %v1547 = vunpack.c.l.b16 %v376
    %v1548 = vunpack.c.l.b16 %v377
    %v1549 = vunpack.c.l.b16 %v378
    %v1550 = vunpack.c.l.b16 %v379
    %v1551 = vunpack.c.l.b16 %v380
    %v1552 = vunpack.c.l.b16 %v381
    %v1553 = vunpack.c.l.b16 %v382
    %v1554 = vunpack.c.l.b16 %v383
    %v1555 = vunpack.c.l.b16 %v384
    %v1556 = vunpack.c.l.b16 %v385
    %v1557 = vunpack.c.l.b16 %v386
    %v1558 = vunpack.c.l.b16 %v387
    %v1559 = vunpack.c.l.b16 %v388
    %v1560 = vunpack.c.l.b16 %v389
    %v1561 = vunpack.c.l.b16 %v390
    %v1562 = vunpack.c.l.b16 %v391
    %v1563 = vunpack.c.l.b16 %v392
    %v1564 = vunpack.c.l.b16 %v393
    %v1565 = vunpack.c.l.b16 %v394
    %v1566 = vunpack.c.l.b16 %v395
    %v1567 = vunpack.c.l.b16 %v396
    %v1568 = vunpack.c.l.b16 %v397
    %v1569 = vunpack.c.l.b16 %v398
    %v1570 = vunpack.c.l.b16 %v399
    %v1571 = vunpack.c.l.b16 %v400
    %v1572 = vunpack.c.l.b16 %v401
    %v1573 = vunpack.c.l.b16 %v402
    %v1574 = vunpack.c.l.b16 %v403
    %v1575 = vunpack.c.l.b16 %v404
    %v1576 = vunpack.c.l.b16 %v405
    %v1577 = vunpack.c.l.b16 %v406
    %v1578 = vunpack.c.l.b16 %v407
    %v1579 = vunpack.c.l.b16 %v408
    %v1580 = vunpack.c.l.b16 %v409
    %v1581 = vunpack.c.l.b16 %v410
    %v1582 = vunpack.c.l.b16 %v411
    %v1583 = vunpack.c.l.b16 %v412
    %v1584 = vunpack.c.l.b16 %v413
    %v1585 = vunpack.c.l.b16 %v414
    %v1586 = vunpack.c.l.b16 %v415
    %v1587 = vunpack.c.l.b16 %v416
    %v1588 = vunpack.c.l.b16 %v417
    %v1589 = vunpack.c.l.b16 %v418
    %v1590 = vunpack.c.l.b16 %v419
    %v1591 = vunpack.c.l.b16 %v420
    %v1592 = vunpack.c.l.b16 %v421
    %v1593 = vunpack.c.l.b16 %v422
    %v1594 = vunpack.c.l.b16 %v423
    %v1595 = vunpack.c.l.b16 %v424
    %v1596 = vunpack.c.l.b16 %v425
    %v1597 = vunpack.c.l.b16 %v426
    %v1598 = vunpack.c.l.b16 %v427
    %v1599 = vunpack.c.l.b16 %v428
    %v1600 = vunpack.c.l.b16 %v429
    %v1601 = vpack.c.b16 %v1527, %v1526
    %v1602 = vpack.c.b16 %v1529, %v1528
    %v1603 = vpack.c.b16 %v1531, %v1530
    %v1604 = vpack.c.b16 %v1533, %v1532
    %v1605 = vpack.c.b16 %v1535, %v1534
    %v1606 = vpack.c.b16 %v1537, %v1536
    %v1607 = vpack.c.b16 %v1539, %v1538
    %v1608 = vpack.c.b16 %v1541, %v1540
    %v1609 = vpack.c.b16 %v1543, %v1542
    %v1610 = vpack.c.b16 %v1545, %v1544
    %v1611 = vpack.c.b16 %v1547, %v1546
    %v1612 = vpack.c.b16 %v1549, %v1548
    %v1613 = vpack.c.b16 %v1551, %v1550
    %v1614 = vpack.c.b16 %v1553, %v1552
    %v1615 = vpack.c.b16 %v1555, %v1554
    %v1616 = vpack.c.b16 %v1557, %v1556
    %v1617 = vpack.c.b16 %v1559, %v1558
    %v1618 = vpack.c.b16 %v1561, %v1560
    %v1619 = vpack.c.b16 %v1563, %v1562
    %v1620 = vpack.c.b16 %v1565, %v1564
    %v1621 = vpack.c.b16 %v1567, %v1566
    %v1622 = vpack.c.b16 %v1569, %v1568
    %v1623 = vpack.c.b16 %v1571, %v1570
    %v1624 = vpack.c.b16 %v1573, %v1572
    %v1625 = vpack.c.b16 %v1575, %v1574
    %v1626 = vpack.c.b16 %v1577, %v1576
    %v1627 = vpack.c.b16 %v1579, %v1578
    %v1628 = vpack.c.b16 %v1581, %v1580
    %v1629 = vpack.c.b16 %v1583, %v1582
    %v1630 = vpack.c.b16 %v1585, %v1584
    %v1631 = vpack.c.b16 %v1587, %v1586
    %v1632 = vpack.c.b16 %v1589, %v1588
    %v1633 = vpack.c.b16 %v1591, %v1590
    %v1634 = vpack.c.b16 %v1593, %v1592
    %v1635 = vpack.c.b16 %v1595, %v1594
    %v1636 = vpack.c.b16 %v1597, %v1596
    %v1637 = vpack.c.b16 %v1599, %v1598
    %v1638 = vpack.c.b16 %v1600, %v1600
    %vm1676 = vcmask 719872
    %v1678 = vsel %vm1676, %v1086, 0
    %v1681 = vsel %vm1676, %v1091, 0
    %v1684 = vsel %vm1676, %v1096, 0
    %v1687 = vsel %vm1676, %v1101, 0
    %v1690 = vsel %vm1676, %v1106, 0
    %v1693 = vsel %vm1676, %v1111, 0
    %v1696 = vsel %vm1676, %v1116, 0
    %v1699 = vsel %vm1676, %v1121, 0
    %v1702 = vsel %vm1676, %v1126, 0
    %v1705 = vsel %vm1676, %v1131, 0
    %v1708 = vsel %vm1676, %v1136, 0
    %v1711 = vsel %vm1676, %v1141, 0
    %v1714 = vsel %vm1676, %v1146, 0
    %v1717 = vsel %vm1676, %v1151, 0
    %v1720 = vsel %vm1676, %v1156, 0
    %v1723 = vsel %vm1676, %v1161, 0
    %v1726 = vsel %vm1676, %v1166, 0
    %v1729 = vsel %vm1676, %v1171, 0
    %v1732 = vsel %vm1676, %v1176, 0
    %v1735 = vsel %vm1676, %v1181, 0
    %v1738 = vsel %vm1676, %v1186, 0
    %v1741 = vsel %vm1676, %v1191, 0
    %v1744 = vsel %vm1676, %v1196, 0
    %v1747 = vsel %vm1676, %v1201, 0
    %v1750 = vsel %vm1676, %v1206, 0
    %v1753 = vsel %vm1676, %v1211, 0
    %v1756 = vsel %vm1676, %v1216, 0
    %v1759 = vsel %vm1676, %v1221, 0
    %v1762 = vsel %vm1676, %v1226, 0
    %v1765 = vsel %vm1676, %v1231, 0
    %v1768 = vsel %vm1676, %v1236, 0
    %v1771 = vsel %vm1676, %v1241, 0
    %v1774 = vsel %vm1676, %v1246, 0
    %v1777 = vsel %vm1676, %v1251, 0
    %v1780 = vsel %vm1676, %v1256, 0
    %v1783 = vsel %vm1676, %v1261, 0
    %v1786 = vsel %vm1676, %v1266, 0
    %v1789 = vsel %vm1676, %v1271, 0
    %v1792 = vsel %vm1676, %v1276, 0
    %v1795 = vsel %vm1676, %v1281, 0
    %v1798 = vsel %vm1676, %v1286, 0
    %vm1800 = vcmask 1043456
    %v1802 = vsel %vm1800, %v1638, 0
    %1804 = vmatpush.bf16.msra.mxu0 %v1608
    %1805 = vmatpush.bf16.msra.mxu0 %v1607
    %1806 = vmatpush.bf16.msra.mxu0 %v1606
    %1807 = vmatpush.bf16.msra.mxu0 %v1605
    %1808 = vmatpush.bf16.msra.mxu0 %v1604
    %1809 = vmatpush.bf16.msra.mxu0 %v1603
    %1810 = vmatpush.bf16.msra.mxu0 %v1602
    %1811 = vmatpush.bf16.msra.mxu0 %v1601
    %1812 = vmatmul.bf16.gmra.mxu0 %v1082
    %v1813 = vpop.f32.mrf.mxu0
    %v1814 = vadd.f32 %v432, %v1813
    %v1815 = vpop.f32.mrf.mxu0
    %v1816 = vadd.f32 %v432, %v1815
    %1817 = vmatmul.bf16.gmra.mxu0 %v1087
    %v1818 = vpop.f32.mrf.mxu0
    %v1819 = vadd.f32 %v432, %v1818
    %v1820 = vpop.f32.mrf.mxu0
    %v1821 = vadd.f32 %v432, %v1820
    %1822 = vmatmul.bf16.gmra.mxu0 %v1092
    %v1823 = vpop.f32.mrf.mxu0
    %v1824 = vadd.f32 %v432, %v1823
    %v1825 = vpop.f32.mrf.mxu0
    %v1826 = vadd.f32 %v432, %v1825
    %1827 = vmatmul.bf16.gmra.mxu0 %v1097
    %v1828 = vpop.f32.mrf.mxu0
    %v1829 = vadd.f32 %v432, %v1828
    %v1830 = vpop.f32.mrf.mxu0
    %v1831 = vadd.f32 %v432, %v1830
    %1832 = vmatmul.bf16.gmra.mxu0 %v1102
    %v1833 = vpop.f32.mrf.mxu0
    %v1834 = vadd.f32 %v432, %v1833
    %v1835 = vpop.f32.mrf.mxu0
    %v1836 = vadd.f32 %v432, %v1835
    %1837 = vmatmul.bf16.gmra.mxu0 %v1107
    %v1838 = vpop.f32.mrf.mxu0
    %v1839 = vadd.f32 %v432, %v1838
    %v1840 = vpop.f32.mrf.mxu0
    %v1841 = vadd.f32 %v432, %v1840
    %1842 = vmatmul.bf16.gmra.mxu0 %v1112
    %v1843 = vpop.f32.mrf.mxu0
    %v1844 = vadd.f32 %v432, %v1843
    %v1845 = vpop.f32.mrf.mxu0
    %v1846 = vadd.f32 %v432, %v1845
    %1847 = vmatmul.bf16.gmra.mxu0 %v1117
    %v1848 = vpop.f32.mrf.mxu0
    %v1849 = vadd.f32 %v432, %v1848
    %v1850 = vpop.f32.mrf.mxu0
    %v1851 = vadd.f32 %v432, %v1850
    %1852 = vmatmul.bf16.gmra.mxu0 %v1122
    %v1853 = vpop.f32.mrf.mxu0
    %v1854 = vadd.f32 %v432, %v1853
    %v1855 = vpop.f32.mrf.mxu0
    %v1856 = vadd.f32 %v432, %v1855
    %1857 = vmatmul.bf16.gmra.mxu0 %v1127
    %v1858 = vpop.f32.mrf.mxu0
    %v1859 = vadd.f32 %v432, %v1858
    %v1860 = vpop.f32.mrf.mxu0
    %v1861 = vadd.f32 %v432, %v1860
    %1862 = vmatmul.bf16.gmra.mxu0 %v1132
    %v1863 = vpop.f32.mrf.mxu0
    %v1864 = vadd.f32 %v432, %v1863
    %v1865 = vpop.f32.mrf.mxu0
    %v1866 = vadd.f32 %v432, %v1865
    %1867 = vmatmul.bf16.gmra.mxu0 %v1137
    %v1868 = vpop.f32.mrf.mxu0
    %v1869 = vadd.f32 %v432, %v1868
    %v1870 = vpop.f32.mrf.mxu0
    %v1871 = vadd.f32 %v432, %v1870
    %1872 = vmatmul.bf16.gmra.mxu0 %v1142
    %v1873 = vpop.f32.mrf.mxu0
    %v1874 = vadd.f32 %v432, %v1873
    %v1875 = vpop.f32.mrf.mxu0
    %v1876 = vadd.f32 %v432, %v1875
    %1877 = vmatmul.bf16.gmra.mxu0 %v1147
    %v1878 = vpop.f32.mrf.mxu0
    %v1879 = vadd.f32 %v432, %v1878
    %v1880 = vpop.f32.mrf.mxu0
    %v1881 = vadd.f32 %v432, %v1880
    %1882 = vmatmul.bf16.gmra.mxu0 %v1152
    %v1883 = vpop.f32.mrf.mxu0
    %v1884 = vadd.f32 %v432, %v1883
    %v1885 = vpop.f32.mrf.mxu0
    %v1886 = vadd.f32 %v432, %v1885
    %1887 = vmatmul.bf16.gmra.mxu0 %v1157
    %v1888 = vpop.f32.mrf.mxu0
    %v1889 = vadd.f32 %v432, %v1888
    %v1890 = vpop.f32.mrf.mxu0
    %v1891 = vadd.f32 %v432, %v1890
    %1892 = vmatmul.bf16.gmra.mxu0 %v1162
    %v1893 = vpop.f32.mrf.mxu0
    %v1894 = vadd.f32 %v432, %v1893
    %v1895 = vpop.f32.mrf.mxu0
    %v1896 = vadd.f32 %v432, %v1895
    %1897 = vmatmul.bf16.gmra.mxu0 %v1167
    %v1898 = vpop.f32.mrf.mxu0
    %v1899 = vadd.f32 %v432, %v1898
    %v1900 = vpop.f32.mrf.mxu0
    %v1901 = vadd.f32 %v432, %v1900
    %1902 = vmatmul.bf16.gmra.mxu0 %v1172
    %v1903 = vpop.f32.mrf.mxu0
    %v1904 = vadd.f32 %v432, %v1903
    %v1905 = vpop.f32.mrf.mxu0
    %v1906 = vadd.f32 %v432, %v1905
    %1907 = vmatmul.bf16.gmra.mxu0 %v1177
    %v1908 = vpop.f32.mrf.mxu0
    %v1909 = vadd.f32 %v432, %v1908
    %v1910 = vpop.f32.mrf.mxu0
    %v1911 = vadd.f32 %v432, %v1910
    %1912 = vmatmul.bf16.gmra.mxu0 %v1182
    %v1913 = vpop.f32.mrf.mxu0
    %v1914 = vadd.f32 %v432, %v1913
    %v1915 = vpop.f32.mrf.mxu0
    %v1916 = vadd.f32 %v432, %v1915
    %1917 = vmatmul.bf16.gmra.mxu0 %v1187
    %v1918 = vpop.f32.mrf.mxu0
    %v1919 = vadd.f32 %v432, %v1918
    %v1920 = vpop.f32.mrf.mxu0
    %v1921 = vadd.f32 %v432, %v1920
    %1922 = vmatmul.bf16.gmra.mxu0 %v1192
    %v1923 = vpop.f32.mrf.mxu0
    %v1924 = vadd.f32 %v432, %v1923
    %v1925 = vpop.f32.mrf.mxu0
    %v1926 = vadd.f32 %v432, %v1925
    %1927 = vmatmul.bf16.gmra.mxu0 %v1197
    %v1928 = vpop.f32.mrf.mxu0
    %v1929 = vadd.f32 %v432, %v1928
    %v1930 = vpop.f32.mrf.mxu0
    %v1931 = vadd.f32 %v432, %v1930
    %1932 = vmatmul.bf16.gmra.mxu0 %v1202
    %v1933 = vpop.f32.mrf.mxu0
    %v1934 = vadd.f32 %v432, %v1933
    %v1935 = vpop.f32.mrf.mxu0
    %v1936 = vadd.f32 %v432, %v1935
    %1937 = vmatmul.bf16.gmra.mxu0 %v1207
    %v1938 = vpop.f32.mrf.mxu0
    %v1939 = vadd.f32 %v432, %v1938
    %v1940 = vpop.f32.mrf.mxu0
    %v1941 = vadd.f32 %v432, %v1940
    %1942 = vmatmul.bf16.gmra.mxu0 %v1212
    %v1943 = vpop.f32.mrf.mxu0
    %v1944 = vadd.f32 %v432, %v1943
    %v1945 = vpop.f32.mrf.mxu0
    %v1946 = vadd.f32 %v432, %v1945
    %1947 = vmatmul.bf16.gmra.mxu0 %v1217
    %v1948 = vpop.f32.mrf.mxu0
    %v1949 = vadd.f32 %v432, %v1948
    %v1950 = vpop.f32.mrf.mxu0
    %v1951 = vadd.f32 %v432, %v1950
    %1952 = vmatmul.bf16.gmra.mxu0 %v1222
    %v1953 = vpop.f32.mrf.mxu0
    %v1954 = vadd.f32 %v432, %v1953
    %v1955 = vpop.f32.mrf.mxu0
    %v1956 = vadd.f32 %v432, %v1955
    %1957 = vmatmul.bf16.gmra.mxu0 %v1227
    %v1958 = vpop.f32.mrf.mxu0
    %v1959 = vadd.f32 %v432, %v1958
    %v1960 = vpop.f32.mrf.mxu0
    %1961 = vmatmul.bf16.gmra.mxu0 %v1232
    %v1962 = vpop.f32.mrf.mxu0
    %v1963 = vadd.f32 %v432, %v1962
    %v1964 = vpop.f32.mrf.mxu0
    %v1965 = vadd.f32 %v432, %v1964
    %1966 = vmatmul.bf16.gmra.mxu0 %v1237
    %v1967 = vpop.f32.mrf.mxu0
    %v1968 = vadd.f32 %v432, %v1967
    %v1969 = vpop.f32.mrf.mxu0
    %v1970 = vadd.f32 %v432, %v1969
    %1971 = vmatmul.bf16.gmra.mxu0 %v1242
    %v1972 = vpop.f32.mrf.mxu0
    %v1973 = vadd.f32 %v432, %v1972
    %v1974 = vpop.f32.mrf.mxu0
    %v1975 = vadd.f32 %v432, %v1974
    %1976 = vmatmul.bf16.gmra.mxu0 %v1247
    %v1977 = vpop.f32.mrf.mxu0
    %v1978 = vadd.f32 %v432, %v1977
    %v1979 = vpop.f32.mrf.mxu0
    %v1980 = vadd.f32 %v432, %v1979
    %1981 = vmatmul.bf16.gmra.mxu0 %v1252
    %v1982 = vpop.f32.mrf.mxu0
    %v1983 = vadd.f32 %v432, %v1982
    %v1984 = vpop.f32.mrf.mxu0
    %v1985 = vadd.f32 %v432, %v1984
    %1986 = vmatmul.bf16.gmra.mxu0 %v1257
    %v1987 = vpop.f32.mrf.mxu0
    %v1988 = vadd.f32 %v432, %v1987
    %v1989 = vpop.f32.mrf.mxu0
    %v1990 = vadd.f32 %v432, %v1989
    %1991 = vmatmul.bf16.gmra.mxu0 %v1262
    %v1992 = vpop.f32.mrf.mxu0
    %v1993 = vadd.f32 %v432, %v1992
    %v1994 = vpop.f32.mrf.mxu0
    %v1995 = vadd.f32 %v432, %v1994
    %1996 = vmatmul.bf16.gmra.mxu0 %v1267
    %v1997 = vpop.f32.mrf.mxu0
    %v1998 = vadd.f32 %v432, %v1997
    %v1999 = vpop.f32.mrf.mxu0
    %v2000 = vadd.f32 %v432, %v1999
    %2001 = vmatmul.bf16.gmra.mxu0 %v1272
    %v2002 = vpop.f32.mrf.mxu0
    %v2003 = vadd.f32 %v432, %v2002
    %v2004 = vpop.f32.mrf.mxu0
    %v2005 = vadd.f32 %v432, %v2004
    %2006 = vmatmul.bf16.gmra.mxu0 %v1277
    %v2007 = vpop.f32.mrf.mxu0
    %v2008 = vadd.f32 %v432, %v2007
    %v2009 = vpop.f32.mrf.mxu0
    %2010 = vmatmul.bf16.gmra.mxu0 %v1282
    %v2011 = vpop.f32.mrf.mxu0
    %v2012 = vpop.f32.mrf.mxu0
    %2013 = vdwg.mxu0
    %2014 = vmatpush.bf16.msra.mxu0 %v1616
    %2015 = vmatpush.bf16.msra.mxu0 %v1615
    %2016 = vmatpush.bf16.msra.mxu0 %v1614
    %2017 = vmatpush.bf16.msra.mxu0 %v1613
    %2018 = vmatpush.bf16.msra.mxu0 %v1612
    %2019 = vmatpush.bf16.msra.mxu0 %v1611
    %2020 = vmatpush.bf16.msra.mxu0 %v1610
    %2021 = vmatpush.bf16.msra.mxu0 %v1609
    %2022 = vmatmul.bf16.gmra.mxu0 %v1083
    %v2023 = vpop.f32.mrf.mxu0
    %v2024 = vadd.f32 %v1814, %v2023
    %v2025 = vpop.f32.mrf.mxu0
    %v2026 = vadd.f32 %v1816, %v2025
    %2027 = vmatmul.bf16.gmra.mxu0 %v1088
    %v2028 = vpop.f32.mrf.mxu0
    %v2029 = vadd.f32 %v1819, %v2028
    %v2030 = vpop.f32.mrf.mxu0
    %v2031 = vadd.f32 %v1821, %v2030
    %2032 = vmatmul.bf16.gmra.mxu0 %v1093
    %v2033 = vpop.f32.mrf.mxu0
    %v2034 = vadd.f32 %v1824, %v2033
    %v2035 = vpop.f32.mrf.mxu0
    %v2036 = vadd.f32 %v1826, %v2035
    %2037 = vmatmul.bf16.gmra.mxu0 %v1098
    %v2038 = vpop.f32.mrf.mxu0
    %v2039 = vadd.f32 %v1829, %v2038
    %v2040 = vpop.f32.mrf.mxu0
    %v2041 = vadd.f32 %v1831, %v2040
    %2042 = vmatmul.bf16.gmra.mxu0 %v1103
    %v2043 = vpop.f32.mrf.mxu0
    %v2044 = vadd.f32 %v1834, %v2043
    %v2045 = vpop.f32.mrf.mxu0
    %v2046 = vadd.f32 %v1836, %v2045
    %2047 = vmatmul.bf16.gmra.mxu0 %v1108
    %v2048 = vpop.f32.mrf.mxu0
    %v2049 = vadd.f32 %v1839, %v2048
    %v2050 = vpop.f32.mrf.mxu0
    %v2051 = vadd.f32 %v1841, %v2050
    %2052 = vmatmul.bf16.gmra.mxu0 %v1113
    %v2053 = vpop.f32.mrf.mxu0
    %v2054 = vadd.f32 %v1844, %v2053
    %v2055 = vpop.f32.mrf.mxu0
    %v2056 = vadd.f32 %v1846, %v2055
    %2057 = vmatmul.bf16.gmra.mxu0 %v1118
    %v2058 = vpop.f32.mrf.mxu0
    %v2059 = vadd.f32 %v1849, %v2058
    %v2060 = vpop.f32.mrf.mxu0
    %v2061 = vadd.f32 %v1851, %v2060
    %2062 = vmatmul.bf16.gmra.mxu0 %v1123
    %v2063 = vpop.f32.mrf.mxu0
    %v2064 = vadd.f32 %v1854, %v2063
    %v2065 = vpop.f32.mrf.mxu0
    %v2066 = vadd.f32 %v1856, %v2065
    %2067 = vmatmul.bf16.gmra.mxu0 %v1128
    %v2068 = vpop.f32.mrf.mxu0
    %v2069 = vadd.f32 %v1859, %v2068
    %v2070 = vpop.f32.mrf.mxu0
    %v2071 = vadd.f32 %v1861, %v2070
    %2072 = vmatmul.bf16.gmra.mxu0 %v1133
    %v2073 = vpop.f32.mrf.mxu0
    %v2074 = vadd.f32 %v1864, %v2073
    %v2075 = vpop.f32.mrf.mxu0
    %v2076 = vadd.f32 %v1866, %v2075
    %2077 = vmatmul.bf16.gmra.mxu0 %v1138
    %v2078 = vpop.f32.mrf.mxu0
    %v2079 = vadd.f32 %v1869, %v2078
    %v2080 = vpop.f32.mrf.mxu0
    %v2081 = vadd.f32 %v1871, %v2080
    %2082 = vmatmul.bf16.gmra.mxu0 %v1143
    %v2083 = vpop.f32.mrf.mxu0
    %v2084 = vadd.f32 %v1874, %v2083
    %v2085 = vpop.f32.mrf.mxu0
    %v2086 = vadd.f32 %v1876, %v2085
    %2087 = vmatmul.bf16.gmra.mxu0 %v1148
    %v2088 = vpop.f32.mrf.mxu0
    %v2089 = vadd.f32 %v1879, %v2088
    %v2090 = vpop.f32.mrf.mxu0
    %v2091 = vadd.f32 %v1881, %v2090
    %2092 = vmatmul.bf16.gmra.mxu0 %v1153
    %v2093 = vpop.f32.mrf.mxu0
    %v2094 = vadd.f32 %v1884, %v2093
    %v2095 = vpop.f32.mrf.mxu0
    %v2096 = vadd.f32 %v1886, %v2095
    %2097 = vmatmul.bf16.gmra.mxu0 %v1158
    %v2098 = vpop.f32.mrf.mxu0
    %v2099 = vadd.f32 %v1889, %v2098
    %v2100 = vpop.f32.mrf.mxu0
    %v2101 = vadd.f32 %v1891, %v2100
    %2102 = vmatmul.bf16.gmra.mxu0 %v1163
    %v2103 = vpop.f32.mrf.mxu0
    %v2104 = vadd.f32 %v1894, %v2103
    %v2105 = vpop.f32.mrf.mxu0
    %v2106 = vadd.f32 %v1896, %v2105
    %2107 = vmatmul.bf16.gmra.mxu0 %v1168
    %v2108 = vpop.f32.mrf.mxu0
    %v2109 = vadd.f32 %v1899, %v2108
    %v2110 = vpop.f32.mrf.mxu0
    %v2111 = vadd.f32 %v1901, %v2110
    %2112 = vmatmul.bf16.gmra.mxu0 %v1173
    %v2113 = vpop.f32.mrf.mxu0
    %v2114 = vadd.f32 %v1904, %v2113
    %v2115 = vpop.f32.mrf.mxu0
    %v2116 = vadd.f32 %v1906, %v2115
    %2117 = vmatmul.bf16.gmra.mxu0 %v1178
    %v2118 = vpop.f32.mrf.mxu0
    %v2119 = vadd.f32 %v1909, %v2118
    %v2120 = vpop.f32.mrf.mxu0
    %v2121 = vadd.f32 %v1911, %v2120
    %2122 = vmatmul.bf16.gmra.mxu0 %v1183
    %v2123 = vpop.f32.mrf.mxu0
    %v2124 = vadd.f32 %v1914, %v2123
    %v2125 = vpop.f32.mrf.mxu0
    %v2126 = vadd.f32 %v1916, %v2125
    %2127 = vmatmul.bf16.gmra.mxu0 %v1188
    %v2128 = vpop.f32.mrf.mxu0
    %v2129 = vadd.f32 %v1919, %v2128
    %v2130 = vpop.f32.mrf.mxu0
    %v2131 = vadd.f32 %v1921, %v2130
    %2132 = vmatmul.bf16.gmra.mxu0 %v1193
    %v2133 = vpop.f32.mrf.mxu0
    %v2134 = vadd.f32 %v1924, %v2133
    %v2135 = vpop.f32.mrf.mxu0
    %v2136 = vadd.f32 %v1926, %v2135
    %2137 = vmatmul.bf16.gmra.mxu0 %v1198
    %v2138 = vpop.f32.mrf.mxu0
    %v2139 = vadd.f32 %v1929, %v2138
    %v2140 = vpop.f32.mrf.mxu0
    %v2141 = vadd.f32 %v1931, %v2140
    %2142 = vmatmul.bf16.gmra.mxu0 %v1203
    %v2143 = vpop.f32.mrf.mxu0
    %v2144 = vadd.f32 %v1934, %v2143
    %v2145 = vpop.f32.mrf.mxu0
    %v2146 = vadd.f32 %v1936, %v2145
    %2147 = vmatmul.bf16.gmra.mxu0 %v1208
    %v2148 = vpop.f32.mrf.mxu0
    %v2149 = vadd.f32 %v1939, %v2148
    %v2150 = vpop.f32.mrf.mxu0
    %v2151 = vadd.f32 %v1941, %v2150
    %2152 = vmatmul.bf16.gmra.mxu0 %v1213
    %v2153 = vpop.f32.mrf.mxu0
    %v2154 = vadd.f32 %v1944, %v2153
    %v2155 = vpop.f32.mrf.mxu0
    %v2156 = vadd.f32 %v1946, %v2155
    %2157 = vmatmul.bf16.gmra.mxu0 %v1218
    %v2158 = vpop.f32.mrf.mxu0
    %v2159 = vadd.f32 %v1949, %v2158
    %v2160 = vpop.f32.mrf.mxu0
    %v2161 = vadd.f32 %v1951, %v2160
    %2162 = vmatmul.bf16.gmra.mxu0 %v1223
    %v2163 = vpop.f32.mrf.mxu0
    %v2164 = vadd.f32 %v1954, %v2163
    %v2165 = vpop.f32.mrf.mxu0
    %v2166 = vadd.f32 %v1956, %v2165
    %2167 = vmatmul.bf16.gmra.mxu0 %v1228
    %v2168 = vpop.f32.mrf.mxu0
    %v2169 = vadd.f32 %v1959, %v2168
    %v2170 = vpop.f32.mrf.mxu0
    %2171 = vmatmul.bf16.gmra.mxu0 %v1233
    %v2172 = vpop.f32.mrf.mxu0
    %v2173 = vadd.f32 %v1963, %v2172
    %v2174 = vpop.f32.mrf.mxu0
    %v2175 = vadd.f32 %v1965, %v2174
    %2176 = vmatmul.bf16.gmra.mxu0 %v1238
    %v2177 = vpop.f32.mrf.mxu0
    %v2178 = vadd.f32 %v1968, %v2177
    %v2179 = vpop.f32.mrf.mxu0
    %v2180 = vadd.f32 %v1970, %v2179
    %2181 = vmatmul.bf16.gmra.mxu0 %v1243
    %v2182 = vpop.f32.mrf.mxu0
    %v2183 = vadd.f32 %v1973, %v2182
    %v2184 = vpop.f32.mrf.mxu0
    %v2185 = vadd.f32 %v1975, %v2184
    %2186 = vmatmul.bf16.gmra.mxu0 %v1248
    %v2187 = vpop.f32.mrf.mxu0
    %v2188 = vadd.f32 %v1978, %v2187
    %v2189 = vpop.f32.mrf.mxu0
    %v2190 = vadd.f32 %v1980, %v2189
    %2191 = vmatmul.bf16.gmra.mxu0 %v1253
    %v2192 = vpop.f32.mrf.mxu0
    %v2193 = vadd.f32 %v1983, %v2192
    %v2194 = vpop.f32.mrf.mxu0
    %v2195 = vadd.f32 %v1985, %v2194
    %2196 = vmatmul.bf16.gmra.mxu0 %v1258
    %v2197 = vpop.f32.mrf.mxu0
    %v2198 = vadd.f32 %v1988, %v2197
    %v2199 = vpop.f32.mrf.mxu0
    %v2200 = vadd.f32 %v1990, %v2199
    %2201 = vmatmul.bf16.gmra.mxu0 %v1263
    %v2202 = vpop.f32.mrf.mxu0
    %v2203 = vadd.f32 %v1993, %v2202
    %v2204 = vpop.f32.mrf.mxu0
    %v2205 = vadd.f32 %v1995, %v2204
    %2206 = vmatmul.bf16.gmra.mxu0 %v1268
    %v2207 = vpop.f32.mrf.mxu0
    %v2208 = vadd.f32 %v1998, %v2207
    %v2209 = vpop.f32.mrf.mxu0
    %v2210 = vadd.f32 %v2000, %v2209
    %2211 = vmatmul.bf16.gmra.mxu0 %v1273
    %v2212 = vpop.f32.mrf.mxu0
    %v2213 = vadd.f32 %v2003, %v2212
    %v2214 = vpop.f32.mrf.mxu0
    %v2215 = vadd.f32 %v2005, %v2214
    %2216 = vmatmul.bf16.gmra.mxu0 %v1278
    %v2217 = vpop.f32.mrf.mxu0
    %v2218 = vadd.f32 %v2008, %v2217
    %v2219 = vpop.f32.mrf.mxu0
    %2220 = vmatmul.bf16.gmra.mxu0 %v1283
    %v2221 = vpop.f32.mrf.mxu0
    %v2222 = vpop.f32.mrf.mxu0
    %2223 = vdwg.mxu0
    %2224 = vmatpush.bf16.msra.mxu0 %v1624
    %2225 = vmatpush.bf16.msra.mxu0 %v1623
    %2226 = vmatpush.bf16.msra.mxu0 %v1622
    %2227 = vmatpush.bf16.msra.mxu0 %v1621
    %2228 = vmatpush.bf16.msra.mxu0 %v1620
    %2229 = vmatpush.bf16.msra.mxu0 %v1619
    %2230 = vmatpush.bf16.msra.mxu0 %v1618
    %2231 = vmatpush.bf16.msra.mxu0 %v1617
    %2232 = vmatmul.bf16.gmra.mxu0 %v1084
    %v2233 = vpop.f32.mrf.mxu0
    %v2234 = vadd.f32 %v2024, %v2233
    %v2235 = vpop.f32.mrf.mxu0
    %v2236 = vadd.f32 %v2026, %v2235
    %2237 = vmatmul.bf16.gmra.mxu0 %v1089
    %v2238 = vpop.f32.mrf.mxu0
    %v2239 = vadd.f32 %v2029, %v2238
    %v2240 = vpop.f32.mrf.mxu0
    %v2241 = vadd.f32 %v2031, %v2240
    %2242 = vmatmul.bf16.gmra.mxu0 %v1094
    %v2243 = vpop.f32.mrf.mxu0
    %v2244 = vadd.f32 %v2034, %v2243
    %v2245 = vpop.f32.mrf.mxu0
    %v2246 = vadd.f32 %v2036, %v2245
    %2247 = vmatmul.bf16.gmra.mxu0 %v1099
    %v2248 = vpop.f32.mrf.mxu0
    %v2249 = vadd.f32 %v2039, %v2248
    %v2250 = vpop.f32.mrf.mxu0
    %v2251 = vadd.f32 %v2041, %v2250
    %2252 = vmatmul.bf16.gmra.mxu0 %v1104
    %v2253 = vpop.f32.mrf.mxu0
    %v2254 = vadd.f32 %v2044, %v2253
    %v2255 = vpop.f32.mrf.mxu0
    %v2256 = vadd.f32 %v2046, %v2255
    %2257 = vmatmul.bf16.gmra.mxu0 %v1109
    %v2258 = vpop.f32.mrf.mxu0
    %v2259 = vadd.f32 %v2049, %v2258
    %v2260 = vpop.f32.mrf.mxu0
    %v2261 = vadd.f32 %v2051, %v2260
    %2262 = vmatmul.bf16.gmra.mxu0 %v1114
    %v2263 = vpop.f32.mrf.mxu0
    %v2264 = vadd.f32 %v2054, %v2263
    %v2265 = vpop.f32.mrf.mxu0
    %v2266 = vadd.f32 %v2056, %v2265
    %2267 = vmatmul.bf16.gmra.mxu0 %v1119
    %v2268 = vpop.f32.mrf.mxu0
    %v2269 = vadd.f32 %v2059, %v2268
    %v2270 = vpop.f32.mrf.mxu0
    %v2271 = vadd.f32 %v2061, %v2270
    %2272 = vmatmul.bf16.gmra.mxu0 %v1124
    %v2273 = vpop.f32.mrf.mxu0
    %v2274 = vadd.f32 %v2064, %v2273
    %v2275 = vpop.f32.mrf.mxu0
    %v2276 = vadd.f32 %v2066, %v2275
    %2277 = vmatmul.bf16.gmra.mxu0 %v1129
    %v2278 = vpop.f32.mrf.mxu0
    %v2279 = vadd.f32 %v2069, %v2278
    %v2280 = vpop.f32.mrf.mxu0
    %v2281 = vadd.f32 %v2071, %v2280
    %2282 = vmatmul.bf16.gmra.mxu0 %v1134
    %v2283 = vpop.f32.mrf.mxu0
    %v2284 = vadd.f32 %v2074, %v2283
    %v2285 = vpop.f32.mrf.mxu0
    %v2286 = vadd.f32 %v2076, %v2285
    %2287 = vmatmul.bf16.gmra.mxu0 %v1139
    %v2288 = vpop.f32.mrf.mxu0
    %v2289 = vadd.f32 %v2079, %v2288
    %v2290 = vpop.f32.mrf.mxu0
    %v2291 = vadd.f32 %v2081, %v2290
    %2292 = vmatmul.bf16.gmra.mxu0 %v1144
    %v2293 = vpop.f32.mrf.mxu0
    %v2294 = vadd.f32 %v2084, %v2293
    %v2295 = vpop.f32.mrf.mxu0
    %v2296 = vadd.f32 %v2086, %v2295
    %2297 = vmatmul.bf16.gmra.mxu0 %v1149
    %v2298 = vpop.f32.mrf.mxu0
    %v2299 = vadd.f32 %v2089, %v2298
    %v2300 = vpop.f32.mrf.mxu0
    %v2301 = vadd.f32 %v2091, %v2300
    %2302 = vmatmul.bf16.gmra.mxu0 %v1154
    %v2303 = vpop.f32.mrf.mxu0
    %v2304 = vadd.f32 %v2094, %v2303
    %v2305 = vpop.f32.mrf.mxu0
    %v2306 = vadd.f32 %v2096, %v2305
    %2307 = vmatmul.bf16.gmra.mxu0 %v1159
    %v2308 = vpop.f32.mrf.mxu0
    %v2309 = vadd.f32 %v2099, %v2308
    %v2310 = vpop.f32.mrf.mxu0
    %v2311 = vadd.f32 %v2101, %v2310
    %2312 = vmatmul.bf16.gmra.mxu0 %v1164
    %v2313 = vpop.f32.mrf.mxu0
    %v2314 = vadd.f32 %v2104, %v2313
    %v2315 = vpop.f32.mrf.mxu0
    %v2316 = vadd.f32 %v2106, %v2315
    %2317 = vmatmul.bf16.gmra.mxu0 %v1169
    %v2318 = vpop.f32.mrf.mxu0
    %v2319 = vadd.f32 %v2109, %v2318
    %v2320 = vpop.f32.mrf.mxu0
    %v2321 = vadd.f32 %v2111, %v2320
    %2322 = vmatmul.bf16.gmra.mxu0 %v1174
    %v2323 = vpop.f32.mrf.mxu0
    %v2324 = vadd.f32 %v2114, %v2323
    %v2325 = vpop.f32.mrf.mxu0
    %v2326 = vadd.f32 %v2116, %v2325
    %2327 = vmatmul.bf16.gmra.mxu0 %v1179
    %v2328 = vpop.f32.mrf.mxu0
    %v2329 = vadd.f32 %v2119, %v2328
    %v2330 = vpop.f32.mrf.mxu0
    %v2331 = vadd.f32 %v2121, %v2330
    %2332 = vmatmul.bf16.gmra.mxu0 %v1184
    %v2333 = vpop.f32.mrf.mxu0
    %v2334 = vadd.f32 %v2124, %v2333
    %v2335 = vpop.f32.mrf.mxu0
    %v2336 = vadd.f32 %v2126, %v2335
    %2337 = vmatmul.bf16.gmra.mxu0 %v1189
    %v2338 = vpop.f32.mrf.mxu0
    %v2339 = vadd.f32 %v2129, %v2338
    %v2340 = vpop.f32.mrf.mxu0
    %v2341 = vadd.f32 %v2131, %v2340
    %2342 = vmatmul.bf16.gmra.mxu0 %v1194
    %v2343 = vpop.f32.mrf.mxu0
    %v2344 = vadd.f32 %v2134, %v2343
    %v2345 = vpop.f32.mrf.mxu0
    %v2346 = vadd.f32 %v2136, %v2345
    %2347 = vmatmul.bf16.gmra.mxu0 %v1199
    %v2348 = vpop.f32.mrf.mxu0
    %v2349 = vadd.f32 %v2139, %v2348
    %v2350 = vpop.f32.mrf.mxu0
    %v2351 = vadd.f32 %v2141, %v2350
    %2352 = vmatmul.bf16.gmra.mxu0 %v1204
    %v2353 = vpop.f32.mrf.mxu0
    %v2354 = vadd.f32 %v2144, %v2353
    %v2355 = vpop.f32.mrf.mxu0
    %v2356 = vadd.f32 %v2146, %v2355
    %2357 = vmatmul.bf16.gmra.mxu0 %v1209
    %v2358 = vpop.f32.mrf.mxu0
    %v2359 = vadd.f32 %v2149, %v2358
    %v2360 = vpop.f32.mrf.mxu0
    %v2361 = vadd.f32 %v2151, %v2360
    %2362 = vmatmul.bf16.gmra.mxu0 %v1214
    %v2363 = vpop.f32.mrf.mxu0
    %v2364 = vadd.f32 %v2154, %v2363
    %v2365 = vpop.f32.mrf.mxu0
    %v2366 = vadd.f32 %v2156, %v2365
    %2367 = vmatmul.bf16.gmra.mxu0 %v1219
    %v2368 = vpop.f32.mrf.mxu0
    %v2369 = vadd.f32 %v2159, %v2368
    %v2370 = vpop.f32.mrf.mxu0
    %v2371 = vadd.f32 %v2161, %v2370
    %2372 = vmatmul.bf16.gmra.mxu0 %v1224
    %v2373 = vpop.f32.mrf.mxu0
    %v2374 = vadd.f32 %v2164, %v2373
    %v2375 = vpop.f32.mrf.mxu0
    %v2376 = vadd.f32 %v2166, %v2375
    %2377 = vmatmul.bf16.gmra.mxu0 %v1229
    %v2378 = vpop.f32.mrf.mxu0
    %v2379 = vadd.f32 %v2169, %v2378
    %v2380 = vpop.f32.mrf.mxu0
    %2381 = vmatmul.bf16.gmra.mxu0 %v1234
    %v2382 = vpop.f32.mrf.mxu0
    %v2383 = vadd.f32 %v2173, %v2382
    %v2384 = vpop.f32.mrf.mxu0
    %v2385 = vadd.f32 %v2175, %v2384
    %2386 = vmatmul.bf16.gmra.mxu0 %v1239
    %v2387 = vpop.f32.mrf.mxu0
    %v2388 = vadd.f32 %v2178, %v2387
    %v2389 = vpop.f32.mrf.mxu0
    %v2390 = vadd.f32 %v2180, %v2389
    %2391 = vmatmul.bf16.gmra.mxu0 %v1244
    %v2392 = vpop.f32.mrf.mxu0
    %v2393 = vadd.f32 %v2183, %v2392
    %v2394 = vpop.f32.mrf.mxu0
    %v2395 = vadd.f32 %v2185, %v2394
    %2396 = vmatmul.bf16.gmra.mxu0 %v1249
    %v2397 = vpop.f32.mrf.mxu0
    %v2398 = vadd.f32 %v2188, %v2397
    %v2399 = vpop.f32.mrf.mxu0
    %v2400 = vadd.f32 %v2190, %v2399
    %2401 = vmatmul.bf16.gmra.mxu0 %v1254
    %v2402 = vpop.f32.mrf.mxu0
    %v2403 = vadd.f32 %v2193, %v2402
    %v2404 = vpop.f32.mrf.mxu0
    %v2405 = vadd.f32 %v2195, %v2404
    %2406 = vmatmul.bf16.gmra.mxu0 %v1259
    %v2407 = vpop.f32.mrf.mxu0
    %v2408 = vadd.f32 %v2198, %v2407
    %v2409 = vpop.f32.mrf.mxu0
    %v2410 = vadd.f32 %v2200, %v2409
    %2411 = vmatmul.bf16.gmra.mxu0 %v1264
    %v2412 = vpop.f32.mrf.mxu0
    %v2413 = vadd.f32 %v2203, %v2412
    %v2414 = vpop.f32.mrf.mxu0
    %v2415 = vadd.f32 %v2205, %v2414
    %2416 = vmatmul.bf16.gmra.mxu0 %v1269
    %v2417 = vpop.f32.mrf.mxu0
    %v2418 = vadd.f32 %v2208, %v2417
    %v2419 = vpop.f32.mrf.mxu0
    %v2420 = vadd.f32 %v2210, %v2419
    %2421 = vmatmul.bf16.gmra.mxu0 %v1274
    %v2422 = vpop.f32.mrf.mxu0
    %v2423 = vadd.f32 %v2213, %v2422
    %v2424 = vpop.f32.mrf.mxu0
    %v2425 = vadd.f32 %v2215, %v2424
    %2426 = vmatmul.bf16.gmra.mxu0 %v1279
    %v2427 = vpop.f32.mrf.mxu0
    %v2428 = vadd.f32 %v2218, %v2427
    %v2429 = vpop.f32.mrf.mxu0
    %2430 = vmatmul.bf16.gmra.mxu0 %v1284
    %v2431 = vpop.f32.mrf.mxu0
    %v2432 = vpop.f32.mrf.mxu0
    %2433 = vdwg.mxu0
    %2434 = vmatpush.bf16.msra.mxu0 %v1632
    %2435 = vmatpush.bf16.msra.mxu0 %v1631
    %2436 = vmatpush.bf16.msra.mxu0 %v1630
    %2437 = vmatpush.bf16.msra.mxu0 %v1629
    %2438 = vmatpush.bf16.msra.mxu0 %v1628
    %2439 = vmatpush.bf16.msra.mxu0 %v1627
    %2440 = vmatpush.bf16.msra.mxu0 %v1626
    %2441 = vmatpush.bf16.msra.mxu0 %v1625
    %2442 = vmatmul.bf16.gmra.mxu0 %v1085
    %v2443 = vpop.f32.mrf.mxu0
    %v2444 = vadd.f32 %v2234, %v2443
    %v2445 = vpop.f32.mrf.mxu0
    %v2446 = vadd.f32 %v2236, %v2445
    %2447 = vmatmul.bf16.gmra.mxu0 %v1090
    %v2448 = vpop.f32.mrf.mxu0
    %v2449 = vadd.f32 %v2239, %v2448
    %v2450 = vpop.f32.mrf.mxu0
    %v2451 = vadd.f32 %v2241, %v2450
    %2452 = vmatmul.bf16.gmra.mxu0 %v1095
    %v2453 = vpop.f32.mrf.mxu0
    %v2454 = vadd.f32 %v2244, %v2453
    %v2455 = vpop.f32.mrf.mxu0
    %v2456 = vadd.f32 %v2246, %v2455
    %2457 = vmatmul.bf16.gmra.mxu0 %v1100
    %v2458 = vpop.f32.mrf.mxu0
    %v2459 = vadd.f32 %v2249, %v2458
    %v2460 = vpop.f32.mrf.mxu0
    %v2461 = vadd.f32 %v2251, %v2460
    %2462 = vmatmul.bf16.gmra.mxu0 %v1105
    %v2463 = vpop.f32.mrf.mxu0
    %v2464 = vadd.f32 %v2254, %v2463
    %v2465 = vpop.f32.mrf.mxu0
    %v2466 = vadd.f32 %v2256, %v2465
    %2467 = vmatmul.bf16.gmra.mxu0 %v1110
    %v2468 = vpop.f32.mrf.mxu0
    %v2469 = vadd.f32 %v2259, %v2468
    %v2470 = vpop.f32.mrf.mxu0
    %v2471 = vadd.f32 %v2261, %v2470
    %2472 = vmatmul.bf16.gmra.mxu0 %v1115
    %v2473 = vpop.f32.mrf.mxu0
    %v2474 = vadd.f32 %v2264, %v2473
    %v2475 = vpop.f32.mrf.mxu0
    %v2476 = vadd.f32 %v2266, %v2475
    %2477 = vmatmul.bf16.gmra.mxu0 %v1120
    %v2478 = vpop.f32.mrf.mxu0
    %v2479 = vadd.f32 %v2269, %v2478
    %v2480 = vpop.f32.mrf.mxu0
    %v2481 = vadd.f32 %v2271, %v2480
    %2482 = vmatmul.bf16.gmra.mxu0 %v1125
    %v2483 = vpop.f32.mrf.mxu0
    %v2484 = vadd.f32 %v2274, %v2483
    %v2485 = vpop.f32.mrf.mxu0
    %v2486 = vadd.f32 %v2276, %v2485
    %2487 = vmatmul.bf16.gmra.mxu0 %v1130
    %v2488 = vpop.f32.mrf.mxu0
    %v2489 = vadd.f32 %v2279, %v2488
    %v2490 = vpop.f32.mrf.mxu0
    %v2491 = vadd.f32 %v2281, %v2490
    %2492 = vmatmul.bf16.gmra.mxu0 %v1135
    %v2493 = vpop.f32.mrf.mxu0
    %v2494 = vadd.f32 %v2284, %v2493
    %v2495 = vpop.f32.mrf.mxu0
    %v2496 = vadd.f32 %v2286, %v2495
    %2497 = vmatmul.bf16.gmra.mxu0 %v1140
    %v2498 = vpop.f32.mrf.mxu0
    %v2499 = vadd.f32 %v2289, %v2498
    %v2500 = vpop.f32.mrf.mxu0
    %v2501 = vadd.f32 %v2291, %v2500
    %2502 = vmatmul.bf16.gmra.mxu0 %v1145
    %v2503 = vpop.f32.mrf.mxu0
    %v2504 = vadd.f32 %v2294, %v2503
    %v2505 = vpop.f32.mrf.mxu0
    %v2506 = vadd.f32 %v2296, %v2505
    %2507 = vmatmul.bf16.gmra.mxu0 %v1150
    %v2508 = vpop.f32.mrf.mxu0
    %v2509 = vadd.f32 %v2299, %v2508
    %v2510 = vpop.f32.mrf.mxu0
    %v2511 = vadd.f32 %v2301, %v2510
    %2512 = vmatmul.bf16.gmra.mxu0 %v1155
    %v2513 = vpop.f32.mrf.mxu0
    %v2514 = vadd.f32 %v2304, %v2513
    %v2515 = vpop.f32.mrf.mxu0
    %v2516 = vadd.f32 %v2306, %v2515
    %2517 = vmatmul.bf16.gmra.mxu0 %v1160
    %v2518 = vpop.f32.mrf.mxu0
    %v2519 = vadd.f32 %v2309, %v2518
    %v2520 = vpop.f32.mrf.mxu0
    %v2521 = vadd.f32 %v2311, %v2520
    %2522 = vmatmul.bf16.gmra.mxu0 %v1165
    %v2523 = vpop.f32.mrf.mxu0
    %v2524 = vadd.f32 %v2314, %v2523
    %v2525 = vpop.f32.mrf.mxu0
    %v2526 = vadd.f32 %v2316, %v2525
    %2527 = vmatmul.bf16.gmra.mxu0 %v1170
    %v2528 = vpop.f32.mrf.mxu0
    %v2529 = vadd.f32 %v2319, %v2528
    %v2530 = vpop.f32.mrf.mxu0
    %v2531 = vadd.f32 %v2321, %v2530
    %2532 = vmatmul.bf16.gmra.mxu0 %v1175
    %v2533 = vpop.f32.mrf.mxu0
    %v2534 = vadd.f32 %v2324, %v2533
    %v2535 = vpop.f32.mrf.mxu0
    %v2536 = vadd.f32 %v2326, %v2535
    %2537 = vmatmul.bf16.gmra.mxu0 %v1180
    %v2538 = vpop.f32.mrf.mxu0
    %v2539 = vadd.f32 %v2329, %v2538
    %v2540 = vpop.f32.mrf.mxu0
    %v2541 = vadd.f32 %v2331, %v2540
    %2542 = vmatmul.bf16.gmra.mxu0 %v1185
    %v2543 = vpop.f32.mrf.mxu0
    %v2544 = vadd.f32 %v2334, %v2543
    %v2545 = vpop.f32.mrf.mxu0
    %v2546 = vadd.f32 %v2336, %v2545
    %2547 = vmatmul.bf16.gmra.mxu0 %v1190
    %v2548 = vpop.f32.mrf.mxu0
    %v2549 = vadd.f32 %v2339, %v2548
    %v2550 = vpop.f32.mrf.mxu0
    %v2551 = vadd.f32 %v2341, %v2550
    %2552 = vmatmul.bf16.gmra.mxu0 %v1195
    %v2553 = vpop.f32.mrf.mxu0
    %v2554 = vadd.f32 %v2344, %v2553
    %v2555 = vpop.f32.mrf.mxu0
    %v2556 = vadd.f32 %v2346, %v2555
    %2557 = vmatmul.bf16.gmra.mxu0 %v1200
    %v2558 = vpop.f32.mrf.mxu0
    %v2559 = vadd.f32 %v2349, %v2558
    %v2560 = vpop.f32.mrf.mxu0
    %v2561 = vadd.f32 %v2351, %v2560
    %2562 = vmatmul.bf16.gmra.mxu0 %v1205
    %v2563 = vpop.f32.mrf.mxu0
    %v2564 = vadd.f32 %v2354, %v2563
    %v2565 = vpop.f32.mrf.mxu0
    %v2566 = vadd.f32 %v2356, %v2565
    %2567 = vmatmul.bf16.gmra.mxu0 %v1210
    %v2568 = vpop.f32.mrf.mxu0
    %v2569 = vadd.f32 %v2359, %v2568
    %v2570 = vpop.f32.mrf.mxu0
    %v2571 = vadd.f32 %v2361, %v2570
    %2572 = vmatmul.bf16.gmra.mxu0 %v1215
    %v2573 = vpop.f32.mrf.mxu0
    %v2574 = vadd.f32 %v2364, %v2573
    %v2575 = vpop.f32.mrf.mxu0
    %v2576 = vadd.f32 %v2366, %v2575
    %2577 = vmatmul.bf16.gmra.mxu0 %v1220
    %v2578 = vpop.f32.mrf.mxu0
    %v2579 = vadd.f32 %v2369, %v2578
    %v2580 = vpop.f32.mrf.mxu0
    %v2581 = vadd.f32 %v2371, %v2580
    %2582 = vmatmul.bf16.gmra.mxu0 %v1225
    %v2583 = vpop.f32.mrf.mxu0
    %v2584 = vadd.f32 %v2374, %v2583
    %v2585 = vpop.f32.mrf.mxu0
    %v2586 = vadd.f32 %v2376, %v2585
    %2587 = vmatmul.bf16.gmra.mxu0 %v1230
    %v2588 = vpop.f32.mrf.mxu0
    %v2589 = vadd.f32 %v2379, %v2588
    %v2590 = vpop.f32.mrf.mxu0
    %2591 = vmatmul.bf16.gmra.mxu0 %v1235
    %v2592 = vpop.f32.mrf.mxu0
    %v2593 = vadd.f32 %v2383, %v2592
    %v2594 = vpop.f32.mrf.mxu0
    %v2595 = vadd.f32 %v2385, %v2594
    %2596 = vmatmul.bf16.gmra.mxu0 %v1240
    %v2597 = vpop.f32.mrf.mxu0
    %v2598 = vadd.f32 %v2388, %v2597
    %v2599 = vpop.f32.mrf.mxu0
    %v2600 = vadd.f32 %v2390, %v2599
    %2601 = vmatmul.bf16.gmra.mxu0 %v1245
    %v2602 = vpop.f32.mrf.mxu0
    %v2603 = vadd.f32 %v2393, %v2602
    %v2604 = vpop.f32.mrf.mxu0
    %v2605 = vadd.f32 %v2395, %v2604
    %2606 = vmatmul.bf16.gmra.mxu0 %v1250
    %v2607 = vpop.f32.mrf.mxu0
    %v2608 = vadd.f32 %v2398, %v2607
    %v2609 = vpop.f32.mrf.mxu0
    %v2610 = vadd.f32 %v2400, %v2609
    %2611 = vmatmul.bf16.gmra.mxu0 %v1255
    %v2612 = vpop.f32.mrf.mxu0
    %v2613 = vadd.f32 %v2403, %v2612
    %v2614 = vpop.f32.mrf.mxu0
    %v2615 = vadd.f32 %v2405, %v2614
    %2616 = vmatmul.bf16.gmra.mxu0 %v1260
    %v2617 = vpop.f32.mrf.mxu0
    %v2618 = vadd.f32 %v2408, %v2617
    %v2619 = vpop.f32.mrf.mxu0
    %v2620 = vadd.f32 %v2410, %v2619
    %2621 = vmatmul.bf16.gmra.mxu0 %v1265
    %v2622 = vpop.f32.mrf.mxu0
    %v2623 = vadd.f32 %v2413, %v2622
    %v2624 = vpop.f32.mrf.mxu0
    %v2625 = vadd.f32 %v2415, %v2624
    %2626 = vmatmul.bf16.gmra.mxu0 %v1270
    %v2627 = vpop.f32.mrf.mxu0
    %v2628 = vadd.f32 %v2418, %v2627
    %v2629 = vpop.f32.mrf.mxu0
    %v2630 = vadd.f32 %v2420, %v2629
    %2631 = vmatmul.bf16.gmra.mxu0 %v1275
    %v2632 = vpop.f32.mrf.mxu0
    %v2633 = vadd.f32 %v2423, %v2632
    %v2634 = vpop.f32.mrf.mxu0
    %v2635 = vadd.f32 %v2425, %v2634
    %2636 = vmatmul.bf16.gmra.mxu0 %v1280
    %v2637 = vpop.f32.mrf.mxu0
    %v2638 = vadd.f32 %v2428, %v2637
    %v2639 = vpop.f32.mrf.mxu0
    %2640 = vmatmul.bf16.gmra.mxu0 %v1285
    %v2641 = vpop.f32.mrf.mxu0
    %v2642 = vpop.f32.mrf.mxu0
    %2643 = vdwg.mxu0
    %2644 = vmatpush.bf16.msra.mxu0 0
    %2645 = vmatpush.bf16.msra.mxu0 0
    %2646 = vmatpush.bf16.msra.mxu0 %v1802
    %2647 = vmatpush.bf16.msra.mxu0 %v1637
    %2648 = vmatpush.bf16.msra.mxu0 %v1636
    %2649 = vmatpush.bf16.msra.mxu0 %v1635
    %2650 = vmatpush.bf16.msra.mxu0 %v1634
    %2651 = vmatpush.bf16.msra.mxu0 %v1633
    %2652 = vmatmul.bf16.gmra.mxu0 %v1678
    %v2653 = vpop.f32.mrf.mxu0
    %v2654 = vadd.f32 %v2444, %v2653
    %v2655 = vpop.f32.mrf.mxu0
    %v2656 = vadd.f32 %v2446, %v2655
    %2657 = vmatmul.bf16.gmra.mxu0 %v1681
    %v2658 = vpop.f32.mrf.mxu0
    %v2659 = vadd.f32 %v2449, %v2658
    %v2660 = vpop.f32.mrf.mxu0
    %v2661 = vadd.f32 %v2451, %v2660
    %2662 = vmatmul.bf16.gmra.mxu0 %v1684
    %v2663 = vpop.f32.mrf.mxu0
    %v2664 = vadd.f32 %v2454, %v2663
    %v2665 = vpop.f32.mrf.mxu0
    %v2666 = vadd.f32 %v2456, %v2665
    %2667 = vmatmul.bf16.gmra.mxu0 %v1687
    %v2668 = vpop.f32.mrf.mxu0
    %v2669 = vadd.f32 %v2459, %v2668
    %v2670 = vpop.f32.mrf.mxu0
    %v2671 = vadd.f32 %v2461, %v2670
    %2672 = vmatmul.bf16.gmra.mxu0 %v1690
    %v2673 = vpop.f32.mrf.mxu0
    %v2674 = vadd.f32 %v2464, %v2673
    %v2675 = vpop.f32.mrf.mxu0
    %v2676 = vadd.f32 %v2466, %v2675
    %2677 = vmatmul.bf16.gmra.mxu0 %v1693
    %v2678 = vpop.f32.mrf.mxu0
    %v2679 = vadd.f32 %v2469, %v2678
    %v2680 = vpop.f32.mrf.mxu0
    %v2681 = vadd.f32 %v2471, %v2680
    %2682 = vmatmul.bf16.gmra.mxu0 %v1696
    %v2683 = vpop.f32.mrf.mxu0
    %v2684 = vadd.f32 %v2474, %v2683
    %v2685 = vpop.f32.mrf.mxu0
    %v2686 = vadd.f32 %v2476, %v2685
    %2687 = vmatmul.bf16.gmra.mxu0 %v1699
    %v2688 = vpop.f32.mrf.mxu0
    %v2689 = vadd.f32 %v2479, %v2688
    %v2690 = vpop.f32.mrf.mxu0
    %v2691 = vadd.f32 %v2481, %v2690
    %2692 = vmatmul.bf16.gmra.mxu0 %v1702
    %v2693 = vpop.f32.mrf.mxu0
    %v2694 = vadd.f32 %v2484, %v2693
    %v2695 = vpop.f32.mrf.mxu0
    %v2696 = vadd.f32 %v2486, %v2695
    %2697 = vmatmul.bf16.gmra.mxu0 %v1705
    %v2698 = vpop.f32.mrf.mxu0
    %v2699 = vadd.f32 %v2489, %v2698
    %v2700 = vpop.f32.mrf.mxu0
    %v2701 = vadd.f32 %v2491, %v2700
    %2702 = vmatmul.bf16.gmra.mxu0 %v1708
    %v2703 = vpop.f32.mrf.mxu0
    %v2704 = vadd.f32 %v2494, %v2703
    %v2705 = vpop.f32.mrf.mxu0
    %v2706 = vadd.f32 %v2496, %v2705
    %2707 = vmatmul.bf16.gmra.mxu0 %v1711
    %v2708 = vpop.f32.mrf.mxu0
    %v2709 = vadd.f32 %v2499, %v2708
    %v2710 = vpop.f32.mrf.mxu0
    %v2711 = vadd.f32 %v2501, %v2710
    %2712 = vmatmul.bf16.gmra.mxu0 %v1714
    %v2713 = vpop.f32.mrf.mxu0
    %v2714 = vadd.f32 %v2504, %v2713
    %v2715 = vpop.f32.mrf.mxu0
    %v2716 = vadd.f32 %v2506, %v2715
    %2717 = vmatmul.bf16.gmra.mxu0 %v1717
    %v2718 = vpop.f32.mrf.mxu0
    %v2719 = vadd.f32 %v2509, %v2718
    %v2720 = vpop.f32.mrf.mxu0
    %v2721 = vadd.f32 %v2511, %v2720
    %2722 = vmatmul.bf16.gmra.mxu0 %v1720
    %v2723 = vpop.f32.mrf.mxu0
    %v2724 = vadd.f32 %v2514, %v2723
    %v2725 = vpop.f32.mrf.mxu0
    %v2726 = vadd.f32 %v2516, %v2725
    %2727 = vmatmul.bf16.gmra.mxu0 %v1723
    %v2728 = vpop.f32.mrf.mxu0
    %v2729 = vadd.f32 %v2519, %v2728
    %v2730 = vpop.f32.mrf.mxu0
    %v2731 = vadd.f32 %v2521, %v2730
    %2732 = vmatmul.bf16.gmra.mxu0 %v1726
    %v2733 = vpop.f32.mrf.mxu0
    %v2734 = vadd.f32 %v2524, %v2733
    %v2735 = vpop.f32.mrf.mxu0
    %v2736 = vadd.f32 %v2526, %v2735
    %2737 = vmatmul.bf16.gmra.mxu0 %v1729
    %v2738 = vpop.f32.mrf.mxu0
    %v2739 = vadd.f32 %v2529, %v2738
    %v2740 = vpop.f32.mrf.mxu0
    %v2741 = vadd.f32 %v2531, %v2740
    %2742 = vmatmul.bf16.gmra.mxu0 %v1732
    %v2743 = vpop.f32.mrf.mxu0
    %v2744 = vadd.f32 %v2534, %v2743
    %v2745 = vpop.f32.mrf.mxu0
    %v2746 = vadd.f32 %v2536, %v2745
    %2747 = vmatmul.bf16.gmra.mxu0 %v1735
    %v2748 = vpop.f32.mrf.mxu0
    %v2749 = vadd.f32 %v2539, %v2748
    %v2750 = vpop.f32.mrf.mxu0
    %v2751 = vadd.f32 %v2541, %v2750
    %2752 = vmatmul.bf16.gmra.mxu0 %v1738
    %v2753 = vpop.f32.mrf.mxu0
    %v2754 = vadd.f32 %v2544, %v2753
    %v2755 = vpop.f32.mrf.mxu0
    %v2756 = vadd.f32 %v2546, %v2755
    %2757 = vmatmul.bf16.gmra.mxu0 %v1741
    %v2758 = vpop.f32.mrf.mxu0
    %v2759 = vadd.f32 %v2549, %v2758
    %v2760 = vpop.f32.mrf.mxu0
    %v2761 = vadd.f32 %v2551, %v2760
    %2762 = vmatmul.bf16.gmra.mxu0 %v1744
    %v2763 = vpop.f32.mrf.mxu0
    %v2764 = vadd.f32 %v2554, %v2763
    %v2765 = vpop.f32.mrf.mxu0
    %v2766 = vadd.f32 %v2556, %v2765
    %2767 = vmatmul.bf16.gmra.mxu0 %v1747
    %v2768 = vpop.f32.mrf.mxu0
    %v2769 = vadd.f32 %v2559, %v2768
    %v2770 = vpop.f32.mrf.mxu0
    %v2771 = vadd.f32 %v2561, %v2770
    %2772 = vmatmul.bf16.gmra.mxu0 %v1750
    %v2773 = vpop.f32.mrf.mxu0
    %v2774 = vadd.f32 %v2564, %v2773
    %v2775 = vpop.f32.mrf.mxu0
    %v2776 = vadd.f32 %v2566, %v2775
    %2777 = vmatmul.bf16.gmra.mxu0 %v1753
    %v2778 = vpop.f32.mrf.mxu0
    %v2779 = vadd.f32 %v2569, %v2778
    %v2780 = vpop.f32.mrf.mxu0
    %v2781 = vadd.f32 %v2571, %v2780
    %2782 = vmatmul.bf16.gmra.mxu0 %v1756
    %v2783 = vpop.f32.mrf.mxu0
    %v2784 = vadd.f32 %v2574, %v2783
    %v2785 = vpop.f32.mrf.mxu0
    %v2786 = vadd.f32 %v2576, %v2785
    %2787 = vmatmul.bf16.gmra.mxu0 %v1759
    %v2788 = vpop.f32.mrf.mxu0
    %v2789 = vadd.f32 %v2579, %v2788
    %v2790 = vpop.f32.mrf.mxu0
    %v2791 = vadd.f32 %v2581, %v2790
    %2792 = vmatmul.bf16.gmra.mxu0 %v1762
    %v2793 = vpop.f32.mrf.mxu0
    %v2794 = vadd.f32 %v2584, %v2793
    %v2795 = vpop.f32.mrf.mxu0
    %v2796 = vadd.f32 %v2586, %v2795
    %2797 = vmatmul.bf16.gmra.mxu0 %v1765
    %v2798 = vpop.f32.mrf.mxu0
    %v2799 = vadd.f32 %v2589, %v2798
    %v2800 = vpop.f32.mrf.mxu0
    %2801 = vmatmul.bf16.gmra.mxu0 %v1768
    %v2802 = vpop.f32.mrf.mxu0
    %v2803 = vadd.f32 %v2593, %v2802
    %v2804 = vpop.f32.mrf.mxu0
    %v2805 = vadd.f32 %v2595, %v2804
    %2806 = vmatmul.bf16.gmra.mxu0 %v1771
    %v2807 = vpop.f32.mrf.mxu0
    %v2808 = vadd.f32 %v2598, %v2807
    %v2809 = vpop.f32.mrf.mxu0
    %v2810 = vadd.f32 %v2600, %v2809
    %2811 = vmatmul.bf16.gmra.mxu0 %v1774
    %v2812 = vpop.f32.mrf.mxu0
    %v2813 = vadd.f32 %v2603, %v2812
    %v2814 = vpop.f32.mrf.mxu0
    %v2815 = vadd.f32 %v2605, %v2814
    %2816 = vmatmul.bf16.gmra.mxu0 %v1777
    %v2817 = vpop.f32.mrf.mxu0
    %v2818 = vadd.f32 %v2608, %v2817
    %v2819 = vpop.f32.mrf.mxu0
    %v2820 = vadd.f32 %v2610, %v2819
    %2821 = vmatmul.bf16.gmra.mxu0 %v1780
    %v2822 = vpop.f32.mrf.mxu0
    %v2823 = vadd.f32 %v2613, %v2822
    %v2824 = vpop.f32.mrf.mxu0
    %v2825 = vadd.f32 %v2615, %v2824
    %2826 = vmatmul.bf16.gmra.mxu0 %v1783
    %v2827 = vpop.f32.mrf.mxu0
    %v2828 = vadd.f32 %v2618, %v2827
    %v2829 = vpop.f32.mrf.mxu0
    %v2830 = vadd.f32 %v2620, %v2829
    %2831 = vmatmul.bf16.gmra.mxu0 %v1786
    %v2832 = vpop.f32.mrf.mxu0
    %v2833 = vadd.f32 %v2623, %v2832
    %v2834 = vpop.f32.mrf.mxu0
    %v2835 = vadd.f32 %v2625, %v2834
    %2836 = vmatmul.bf16.gmra.mxu0 %v1789
    %v2837 = vpop.f32.mrf.mxu0
    %v2838 = vadd.f32 %v2628, %v2837
    %v2839 = vpop.f32.mrf.mxu0
    %v2840 = vadd.f32 %v2630, %v2839
    %2841 = vmatmul.bf16.gmra.mxu0 %v1792
    %v2842 = vpop.f32.mrf.mxu0
    %v2843 = vadd.f32 %v2633, %v2842
    %v2844 = vpop.f32.mrf.mxu0
    %v2845 = vadd.f32 %v2635, %v2844
    %2846 = vmatmul.bf16.gmra.mxu0 %v1795
    %v2847 = vpop.f32.mrf.mxu0
    %v2848 = vadd.f32 %v2638, %v2847
    %v2849 = vpop.f32.mrf.mxu0
    %2850 = vmatmul.bf16.gmra.mxu0 %v1798
    %v2851 = vpop.f32.mrf.mxu0
    %v2852 = vpop.f32.mrf.mxu0
    %2853 = vdwg.mxu0
    %v2854 = vmax.f32 %v2654, 0.0
    %v2855 = vmax.f32 %v2656, 0.0
    %v2856 = vmax.f32 %v2659, 0.0
    %v2857 = vmax.f32 %v2661, 0.0
    %v2858 = vmax.f32 %v2664, 0.0
    %v2859 = vmax.f32 %v2666, 0.0
    %v2860 = vmax.f32 %v2669, 0.0
    %v2861 = vmax.f32 %v2671, 0.0
    %v2862 = vmax.f32 %v2674, 0.0
    %v2863 = vmax.f32 %v2676, 0.0
    %v2864 = vmax.f32 %v2679, 0.0
    %v2865 = vmax.f32 %v2681, 0.0
    %v2866 = vmax.f32 %v2684, 0.0
    %v2867 = vmax.f32 %v2686, 0.0
    %v2868 = vmax.f32 %v2689, 0.0
    %v2869 = vmax.f32 %v2691, 0.0
    %v2870 = vmax.f32 %v2694, 0.0
    %v2871 = vmax.f32 %v2696, 0.0
    %v2872 = vmax.f32 %v2699, 0.0
    %v2873 = vmax.f32 %v2701, 0.0
    %v2874 = vmax.f32 %v2704, 0.0
    %v2875 = vmax.f32 %v2706, 0.0
    %v2876 = vmax.f32 %v2709, 0.0
    %v2877 = vmax.f32 %v2711, 0.0
    %v2878 = vmax.f32 %v2714, 0.0
    %v2879 = vmax.f32 %v2716, 0.0
    %v2880 = vmax.f32 %v2719, 0.0
    %v2881 = vmax.f32 %v2721, 0.0
    %v2882 = vmax.f32 %v2724, 0.0
    %v2883 = vmax.f32 %v2726, 0.0
    %v2884 = vmax.f32 %v2729, 0.0
    %v2885 = vmax.f32 %v2731, 0.0
    %v2886 = vmax.f32 %v2734, 0.0
    %v2887 = vmax.f32 %v2736, 0.0
    %v2888 = vmax.f32 %v2739, 0.0
    %v2889 = vmax.f32 %v2741, 0.0
    %v2890 = vmax.f32 %v2744, 0.0
    %v2891 = vmax.f32 %v2746, 0.0
    %v2892 = vmax.f32 %v2749, 0.0
    %v2893 = vmax.f32 %v2751, 0.0
    %v2894 = vmax.f32 %v2754, 0.0
    %v2895 = vmax.f32 %v2756, 0.0
    %v2896 = vmax.f32 %v2759, 0.0
    %v2897 = vmax.f32 %v2761, 0.0
    %v2898 = vmax.f32 %v2764, 0.0
    %v2899 = vmax.f32 %v2766, 0.0
    %v2900 = vmax.f32 %v2769, 0.0
    %v2901 = vmax.f32 %v2771, 0.0
    %v2902 = vmax.f32 %v2774, 0.0
    %v2903 = vmax.f32 %v2776, 0.0
    %v2904 = vmax.f32 %v2779, 0.0
    %v2905 = vmax.f32 %v2781, 0.0
    %v2906 = vmax.f32 %v2784, 0.0
    %v2907 = vmax.f32 %v2786, 0.0
    %v2908 = vmax.f32 %v2789, 0.0
    %v2909 = vmax.f32 %v2791, 0.0
    %v2910 = vmax.f32 %v2794, 0.0
    %v2911 = vmax.f32 %v2796, 0.0
    %v2912 = vmax.f32 %v2799, 0.0
    %v2913 = vmax.f32 %v2803, 0.0
    %v2914 = vmax.f32 %v2805, 0.0
    %v2915 = vmax.f32 %v2808, 0.0
    %v2916 = vmax.f32 %v2810, 0.0
    %v2917 = vmax.f32 %v2813, 0.0
    %v2918 = vmax.f32 %v2815, 0.0
    %v2919 = vmax.f32 %v2818, 0.0
    %v2920 = vmax.f32 %v2820, 0.0
    %v2921 = vmax.f32 %v2823, 0.0
    %v2922 = vmax.f32 %v2825, 0.0
    %v2923 = vmax.f32 %v2828, 0.0
    %v2924 = vmax.f32 %v2830, 0.0
    %v2925 = vmax.f32 %v2833, 0.0
    %v2926 = vmax.f32 %v2835, 0.0
    %v2927 = vmax.f32 %v2838, 0.0
    %v2928 = vmax.f32 %v2840, 0.0
    %v2929 = vmax.f32 %v2843, 0.0
    %v2930 = vmax.f32 %v2845, 0.0
    %v2931 = vmax.f32 %v2848, 0.0
    %v2932 = vld [vmem:[%s3] sm:$0xff]
    %v2933 = vld [vmem:[%s3 + $0x8] sm:$0xff]
    %v2934 = vld [vmem:[%s3 + $0x10] sm:$0xff]
    %v2935 = vld [vmem:[%s3 + $0x18] sm:$0xff]
    %s2936 = scalar_lea.vmem %s3, 32
    %v2937 = vld [vmem:[%s2936] sm:$0xff]
    %v2938 = vld [vmem:[%s2936 + $0x8] sm:$0xff]
    %v2939 = vld [vmem:[%s2936 + $0x10] sm:$0xff]
    %v2940 = vld [vmem:[%s2936 + $0x18] sm:$0xff]
    %vm2957 = vcmask 1045504
    %v2958 = vrot.slane %v2874, 2
    %v2959 = vrot.slane %v2875, 2
    %v2960 = vsel %vm2957, %v2958, %v2959
    %v2961 = vrot.slane %v2876, 2
    %v2962 = vsel %vm2957, %v2959, %v2961
    %v2963 = vrot.slane %v2877, 2
    %v2964 = vsel %vm2957, %v2961, %v2963
    %v2965 = vrot.slane %v2878, 2
    %v2966 = vsel %vm2957, %v2963, %v2965
    %v2967 = vrot.slane %v2879, 2
    %v2968 = vsel %vm2957, %v2965, %v2967
    %v2969 = vrot.slane %v2880, 2
    %v2970 = vsel %vm2957, %v2967, %v2969
    %v2971 = vrot.slane %v2881, 2
    %v2972 = vsel %vm2957, %v2969, %v2971
    %v2973 = vrot.slane %v2882, 2
    %v2974 = vsel %vm2957, %v2971, %v2973
    %v2975 = vrot.slane %v2883, 2
    %v2976 = vsel %vm2957, %v2973, %v2975
    %v2977 = vrot.slane %v2884, 2
    %v2978 = vsel %vm2957, %v2975, %v2977
    %v2979 = vrot.slane %v2885, 2
    %v2980 = vsel %vm2957, %v2977, %v2979
    %v2981 = vrot.slane %v2886, 2
    %v2982 = vsel %vm2957, %v2979, %v2981
    %v2983 = vrot.slane %v2887, 2
    %v2984 = vsel %vm2957, %v2981, %v2983
    %v2985 = vrot.slane %v2888, 2
    %v2986 = vsel %vm2957, %v2983, %v2985
    %v2987 = vrot.slane %v2889, 2
    %v2988 = vsel %vm2957, %v2985, %v2987
    %vm2989 = vcmask 261120
    %v2990 = vsel %vm2989, %v2960, 0
    %v2992 = vsel %vm2989, %v2962, 0
    %v2994 = vsel %vm2989, %v2964, 0
    %v2996 = vsel %vm2989, %v2966, 0
    %v2998 = vsel %vm2989, %v2968, 0
    %v3000 = vsel %vm2989, %v2970, 0
    %v3002 = vsel %vm2989, %v2972, 0
    %v3004 = vsel %vm2989, %v2974, 0
    %v3006 = vsel %vm2989, %v2976, 0
    %v3008 = vsel %vm2989, %v2978, 0
    %v3010 = vsel %vm2989, %v2980, 0
    %v3012 = vsel %vm2989, %v2982, 0
    %v3014 = vsel %vm2989, %v2984, 0
    %v3016 = vsel %vm2989, %v2986, 0
    %v3018 = vsel %vm2989, %v2988, 0
    %v3020 = vsel %vm2989, %v2987, 0
    %3022 = vmatpush.msra.mxu0 0.0
    %3023 = vmatpush.msra.mxu0 0.0
    %3024 = vmatpush.msra.mxu0 0.0
    %3025 = vmatpush.msra.mxu0 0.0
    %3026 = vmatpush.msra.mxu0 0.0
    %3027 = vmatpush.msra.mxu0 0.0
    %3028 = vmatpush.msra.mxu0 0.0
    %3029 = vmatpush.msra.mxu0 0.0
    %3030 = vmatpush.msra.mxu0 0.0
    %3031 = vmatpush.msra.mxu0 0.0
    %3032 = vmatpush.msra.mxu0 0.0
    %3033 = vmatpush.msra.mxu0 0.0
    %3034 = vmatpush.msra.mxu0 %v2940
    %3035 = vmatpush.msra.mxu0 %v2939
    %3036 = vmatpush.msra.mxu0 %v2938
    %3037 = vmatpush.msra.mxu0 %v2937
    %3038 = vmatmul.f32.gmra.mxu0 %v2990
    %v3039 = vpop.f32.mrf.mxu0
    %v3040 = vadd.f32 0.0, %v3039
    %3041 = vmatmul.f32.gmra.mxu0 %v2992
    %v3042 = vpop.f32.mrf.mxu0
    %v3043 = vadd.f32 0.0, %v3042
    %3044 = vmatmul.f32.gmra.mxu0 %v2994
    %v3045 = vpop.f32.mrf.mxu0
    %v3046 = vadd.f32 0.0, %v3045
    %3047 = vmatmul.f32.gmra.mxu0 %v2996
    %v3048 = vpop.f32.mrf.mxu0
    %v3049 = vadd.f32 0.0, %v3048
    %3050 = vmatmul.f32.gmra.mxu0 %v2998
    %v3051 = vpop.f32.mrf.mxu0
    %v3052 = vadd.f32 0.0, %v3051
    %3053 = vmatmul.f32.gmra.mxu0 %v3000
    %v3054 = vpop.f32.mrf.mxu0
    %v3055 = vadd.f32 0.0, %v3054
    %3056 = vmatmul.f32.gmra.mxu0 %v3002
    %v3057 = vpop.f32.mrf.mxu0
    %v3058 = vadd.f32 0.0, %v3057
    %3059 = vmatmul.f32.gmra.mxu0 %v3004
    %v3060 = vpop.f32.mrf.mxu0
    %v3061 = vadd.f32 0.0, %v3060
    %3062 = vmatmul.f32.gmra.mxu0 %v3006
    %v3063 = vpop.f32.mrf.mxu0
    %v3064 = vadd.f32 0.0, %v3063
    %3065 = vmatmul.f32.gmra.mxu0 %v3008
    %v3066 = vpop.f32.mrf.mxu0
    %v3067 = vadd.f32 0.0, %v3066
    %3068 = vmatmul.f32.gmra.mxu0 %v3010
    %v3069 = vpop.f32.mrf.mxu0
    %v3070 = vadd.f32 0.0, %v3069
    %3071 = vmatmul.f32.gmra.mxu0 %v3012
    %v3072 = vpop.f32.mrf.mxu0
    %v3073 = vadd.f32 0.0, %v3072
    %3074 = vmatmul.f32.gmra.mxu0 %v3014
    %v3075 = vpop.f32.mrf.mxu0
    %v3076 = vadd.f32 0.0, %v3075
    %3077 = vmatmul.f32.gmra.mxu0 %v3016
    %v3078 = vpop.f32.mrf.mxu0
    %v3079 = vadd.f32 0.0, %v3078
    %3080 = vmatmul.f32.gmra.mxu0 %v3018
    %v3081 = vpop.f32.mrf.mxu0
    %v3082 = vadd.f32 0.0, %v3081
    %3083 = vmatmul.f32.gmra.mxu0 %v3020
    %v3084 = vpop.f32.mrf.mxu0
    %v3085 = vadd.f32 0.0, %v3084
    %3086 = vdwg.mxu0
    %v3088 = vsel %vm2989, %v2854, 0
    %v3091 = vsel %vm2989, %v2855, 0
    %v3094 = vsel %vm2989, %v2856, 0
    %v3097 = vsel %vm2989, %v2857, 0
    %v3100 = vsel %vm2989, %v2858, 0
    %v3103 = vsel %vm2989, %v2859, 0
    %v3106 = vsel %vm2989, %v2860, 0
    %v3109 = vsel %vm2989, %v2861, 0
    %v3112 = vsel %vm2989, %v2862, 0
    %v3115 = vsel %vm2989, %v2863, 0
    %v3118 = vsel %vm2989, %v2864, 0
    %v3121 = vsel %vm2989, %v2865, 0
    %v3124 = vsel %vm2989, %v2866, 0
    %v3127 = vsel %vm2989, %v2867, 0
    %v3130 = vsel %vm2989, %v2868, 0
    %v3133 = vsel %vm2989, %v2869, 0
    %3135 = vmatpush.msra.mxu0 0.0
    %3136 = vmatpush.msra.mxu0 0.0
    %3137 = vmatpush.msra.mxu0 0.0
    %3138 = vmatpush.msra.mxu0 0.0
    %3139 = vmatpush.msra.mxu0 0.0
    %3140 = vmatpush.msra.mxu0 0.0
    %3141 = vmatpush.msra.mxu0 0.0
    %3142 = vmatpush.msra.mxu0 0.0
    %3143 = vmatpush.msra.mxu0 0.0
    %3144 = vmatpush.msra.mxu0 0.0
    %3145 = vmatpush.msra.mxu0 0.0
    %3146 = vmatpush.msra.mxu0 0.0
    %3147 = vmatpush.msra.mxu0 %v2935
    %3148 = vmatpush.msra.mxu0 %v2934
    %3149 = vmatpush.msra.mxu0 %v2933
    %3150 = vmatpush.msra.mxu0 %v2932
    %3151 = vmatmul.f32.gmra.mxu0 %v3088
    %v3152 = vpop.f32.mrf.mxu0
    %v3153 = vadd.f32 %v3040, %v3152
    %3154 = vmatmul.f32.gmra.mxu0 %v3091
    %v3155 = vpop.f32.mrf.mxu0
    %v3156 = vadd.f32 %v3043, %v3155
    %3157 = vmatmul.f32.gmra.mxu0 %v3094
    %v3158 = vpop.f32.mrf.mxu0
    %v3159 = vadd.f32 %v3046, %v3158
    %3160 = vmatmul.f32.gmra.mxu0 %v3097
    %v3161 = vpop.f32.mrf.mxu0
    %v3162 = vadd.f32 %v3049, %v3161
    %3163 = vmatmul.f32.gmra.mxu0 %v3100
    %v3164 = vpop.f32.mrf.mxu0
    %v3165 = vadd.f32 %v3052, %v3164
    %3166 = vmatmul.f32.gmra.mxu0 %v3103
    %v3167 = vpop.f32.mrf.mxu0
    %v3168 = vadd.f32 %v3055, %v3167
    %3169 = vmatmul.f32.gmra.mxu0 %v3106
    %v3170 = vpop.f32.mrf.mxu0
    %v3171 = vadd.f32 %v3058, %v3170
    %3172 = vmatmul.f32.gmra.mxu0 %v3109
    %v3173 = vpop.f32.mrf.mxu0
    %v3174 = vadd.f32 %v3061, %v3173
    %3175 = vmatmul.f32.gmra.mxu0 %v3112
    %v3176 = vpop.f32.mrf.mxu0
    %v3177 = vadd.f32 %v3064, %v3176
    %3178 = vmatmul.f32.gmra.mxu0 %v3115
    %v3179 = vpop.f32.mrf.mxu0
    %v3180 = vadd.f32 %v3067, %v3179
    %3181 = vmatmul.f32.gmra.mxu0 %v3118
    %v3182 = vpop.f32.mrf.mxu0
    %v3183 = vadd.f32 %v3070, %v3182
    %3184 = vmatmul.f32.gmra.mxu0 %v3121
    %v3185 = vpop.f32.mrf.mxu0
    %v3186 = vadd.f32 %v3073, %v3185
    %3187 = vmatmul.f32.gmra.mxu0 %v3124
    %v3188 = vpop.f32.mrf.mxu0
    %v3189 = vadd.f32 %v3076, %v3188
    %3190 = vmatmul.f32.gmra.mxu0 %v3127
    %v3191 = vpop.f32.mrf.mxu0
    %v3192 = vadd.f32 %v3079, %v3191
    %3193 = vmatmul.f32.gmra.mxu0 %v3130
    %v3194 = vpop.f32.mrf.mxu0
    %v3195 = vadd.f32 %v3082, %v3194
    %3196 = vmatmul.f32.gmra.mxu0 %v3133
    %v3197 = vpop.f32.mrf.mxu0
    %v3198 = vadd.f32 %v3085, %v3197
    %3199 = vdwg.mxu0
    %s3200 = scalar_lea.vmem %s3, 64
    %v3201 = vld [vmem:[%s3200] sm:$0xff]
    %v3202 = vld [vmem:[%s3200 + $0x8] sm:$0xff]
    %v3203 = vld [vmem:[%s3200 + $0x10] sm:$0xff]
    %v3204 = vld [vmem:[%s3200 + $0x18] sm:$0xff]
    %vm3205 = vcmask 1046528
    %v3206 = vrot.slane %v2854, 1
    %v3207 = vrot.slane %v2855, 1
    %v3208 = vsel %vm3205, %v3206, %v3207
    %v3209 = vrot.slane %v2856, 1
    %v3210 = vsel %vm3205, %v3207, %v3209
    %v3211 = vrot.slane %v2857, 1
    %v3212 = vsel %vm3205, %v3209, %v3211
    %v3213 = vrot.slane %v2858, 1
    %v3214 = vsel %vm3205, %v3211, %v3213
    %v3215 = vrot.slane %v2859, 1
    %v3216 = vsel %vm3205, %v3213, %v3215
    %v3217 = vrot.slane %v2860, 1
    %v3218 = vsel %vm3205, %v3215, %v3217
    %v3219 = vrot.slane %v2861, 1
    %v3220 = vsel %vm3205, %v3217, %v3219
    %v3221 = vrot.slane %v2862, 1
    %v3222 = vsel %vm3205, %v3219, %v3221
    %v3223 = vrot.slane %v2863, 1
    %v3224 = vsel %vm3205, %v3221, %v3223
    %v3225 = vrot.slane %v2864, 1
    %v3226 = vsel %vm3205, %v3223, %v3225
    %v3227 = vrot.slane %v2865, 1
    %v3228 = vsel %vm3205, %v3225, %v3227
    %v3229 = vrot.slane %v2866, 1
    %v3230 = vsel %vm3205, %v3227, %v3229
    %v3231 = vrot.slane %v2867, 1
    %v3232 = vsel %vm3205, %v3229, %v3231
    %v3233 = vrot.slane %v2868, 1
    %v3234 = vsel %vm3205, %v3231, %v3233
    %v3235 = vrot.slane %v2869, 1
    %v3236 = vsel %vm3205, %v3233, %v3235
    %v3237 = vsel %vm2989, %v3208, 0
    %v3239 = vsel %vm2989, %v3210, 0
    %v3241 = vsel %vm2989, %v3212, 0
    %v3243 = vsel %vm2989, %v3214, 0
    %v3245 = vsel %vm2989, %v3216, 0
    %v3247 = vsel %vm2989, %v3218, 0
    %v3249 = vsel %vm2989, %v3220, 0
    %v3251 = vsel %vm2989, %v3222, 0
    %v3253 = vsel %vm2989, %v3224, 0
    %v3255 = vsel %vm2989, %v3226, 0
    %v3257 = vsel %vm2989, %v3228, 0
    %v3259 = vsel %vm2989, %v3230, 0
    %v3261 = vsel %vm2989, %v3232, 0
    %v3263 = vsel %vm2989, %v3234, 0
    %v3265 = vsel %vm2989, %v3236, 0
    %v3267 = vsel %vm2989, %v3235, 0
    %3269 = vmatpush.msra.mxu0 0.0
    %3270 = vmatpush.msra.mxu0 0.0
    %3271 = vmatpush.msra.mxu0 0.0
    %3272 = vmatpush.msra.mxu0 0.0
    %3273 = vmatpush.msra.mxu0 0.0
    %3274 = vmatpush.msra.mxu0 0.0
    %3275 = vmatpush.msra.mxu0 0.0
    %3276 = vmatpush.msra.mxu0 0.0
    %3277 = vmatpush.msra.mxu0 0.0
    %3278 = vmatpush.msra.mxu0 0.0
    %3279 = vmatpush.msra.mxu0 0.0
    %3280 = vmatpush.msra.mxu0 0.0
    %3281 = vmatpush.msra.mxu0 %v3204
    %3282 = vmatpush.msra.mxu0 %v3203
    %3283 = vmatpush.msra.mxu0 %v3202
    %3284 = vmatpush.msra.mxu0 %v3201
    %3285 = vmatmul.f32.gmra.mxu0 %v3237
    %v3286 = vpop.f32.mrf.mxu0
    %v3287 = vadd.f32 0.0, %v3286
    %3288 = vmatmul.f32.gmra.mxu0 %v3239
    %v3289 = vpop.f32.mrf.mxu0
    %v3290 = vadd.f32 0.0, %v3289
    %3291 = vmatmul.f32.gmra.mxu0 %v3241
    %v3292 = vpop.f32.mrf.mxu0
    %v3293 = vadd.f32 0.0, %v3292
    %3294 = vmatmul.f32.gmra.mxu0 %v3243
    %v3295 = vpop.f32.mrf.mxu0
    %v3296 = vadd.f32 0.0, %v3295
    %3297 = vmatmul.f32.gmra.mxu0 %v3245
    %v3298 = vpop.f32.mrf.mxu0
    %v3299 = vadd.f32 0.0, %v3298
    %3300 = vmatmul.f32.gmra.mxu0 %v3247
    %v3301 = vpop.f32.mrf.mxu0
    %v3302 = vadd.f32 0.0, %v3301
    %3303 = vmatmul.f32.gmra.mxu0 %v3249
    %v3304 = vpop.f32.mrf.mxu0
    %v3305 = vadd.f32 0.0, %v3304
    %3306 = vmatmul.f32.gmra.mxu0 %v3251
    %v3307 = vpop.f32.mrf.mxu0
    %v3308 = vadd.f32 0.0, %v3307
    %3309 = vmatmul.f32.gmra.mxu0 %v3253
    %v3310 = vpop.f32.mrf.mxu0
    %v3311 = vadd.f32 0.0, %v3310
    %3312 = vmatmul.f32.gmra.mxu0 %v3255
    %v3313 = vpop.f32.mrf.mxu0
    %v3314 = vadd.f32 0.0, %v3313
    %3315 = vmatmul.f32.gmra.mxu0 %v3257
    %v3316 = vpop.f32.mrf.mxu0
    %v3317 = vadd.f32 0.0, %v3316
    %3318 = vmatmul.f32.gmra.mxu0 %v3259
    %v3319 = vpop.f32.mrf.mxu0
    %v3320 = vadd.f32 0.0, %v3319
    %3321 = vmatmul.f32.gmra.mxu0 %v3261
    %v3322 = vpop.f32.mrf.mxu0
    %v3323 = vadd.f32 0.0, %v3322
    %3324 = vmatmul.f32.gmra.mxu0 %v3263
    %v3325 = vpop.f32.mrf.mxu0
    %v3326 = vadd.f32 0.0, %v3325
    %3327 = vmatmul.f32.gmra.mxu0 %v3265
    %v3328 = vpop.f32.mrf.mxu0
    %v3329 = vadd.f32 0.0, %v3328
    %3330 = vmatmul.f32.gmra.mxu0 %v3267
    %v3331 = vpop.f32.mrf.mxu0
    %v3332 = vadd.f32 0.0, %v3331
    %3333 = vdwg.mxu0
    %v3334 = vadd.f32 %v3153, %v3287
    %v3335 = vadd.f32 %v3156, %v3290
    %v3336 = vadd.f32 %v3159, %v3293
    %v3337 = vadd.f32 %v3162, %v3296
    %v3338 = vadd.f32 %v3165, %v3299
    %v3339 = vadd.f32 %v3168, %v3302
    %v3340 = vadd.f32 %v3171, %v3305
    %v3341 = vadd.f32 %v3174, %v3308
    %v3342 = vadd.f32 %v3177, %v3311
    %v3343 = vadd.f32 %v3180, %v3314
    %v3344 = vadd.f32 %v3183, %v3317
    %v3345 = vadd.f32 %v3186, %v3320
    %v3346 = vadd.f32 %v3189, %v3323
    %v3347 = vadd.f32 %v3192, %v3326
    %v3348 = vadd.f32 %v3195, %v3329
    %v3349 = vadd.f32 %v3198, %v3332
    %s3350 = scalar_lea.vmem %s3, 96
    %v3351 = vld [vmem:[%s3350] sm:$0xff]
    %v3352 = vld [vmem:[%s3350 + $0x8] sm:$0xff]
    %v3353 = vld [vmem:[%s3350 + $0x10] sm:$0xff]
    %v3354 = vld [vmem:[%s3350 + $0x18] sm:$0xff]
    %vm3356 = vcmask 1044480
    %v3357 = vrot.slane %v2874, 3
    %v3358 = vrot.slane %v2875, 3
    %v3359 = vsel %vm3356, %v3357, %v3358
    %v3360 = vrot.slane %v2876, 3
    %v3361 = vsel %vm3356, %v3358, %v3360
    %v3362 = vrot.slane %v2877, 3
    %v3363 = vsel %vm3356, %v3360, %v3362
    %v3364 = vrot.slane %v2878, 3
    %v3365 = vsel %vm3356, %v3362, %v3364
    %v3366 = vrot.slane %v2879, 3
    %v3367 = vsel %vm3356, %v3364, %v3366
    %v3368 = vrot.slane %v2880, 3
    %v3369 = vsel %vm3356, %v3366, %v3368
    %v3370 = vrot.slane %v2881, 3
    %v3371 = vsel %vm3356, %v3368, %v3370
    %v3372 = vrot.slane %v2882, 3
    %v3373 = vsel %vm3356, %v3370, %v3372
    %v3374 = vrot.slane %v2883, 3
    %v3375 = vsel %vm3356, %v3372, %v3374
    %v3376 = vrot.slane %v2884, 3
    %v3377 = vsel %vm3356, %v3374, %v3376
    %v3378 = vrot.slane %v2885, 3
    %v3379 = vsel %vm3356, %v3376, %v3378
    %v3380 = vrot.slane %v2886, 3
    %v3381 = vsel %vm3356, %v3378, %v3380
    %v3382 = vrot.slane %v2887, 3
    %v3383 = vsel %vm3356, %v3380, %v3382
    %v3384 = vrot.slane %v2888, 3
    %v3385 = vsel %vm3356, %v3382, %v3384
    %v3386 = vrot.slane %v2889, 3
    %v3387 = vsel %vm3356, %v3384, %v3386
    %v3388 = vrot.slane %v2890, 3
    %v3389 = vsel %vm3356, %v3386, %v3388
    %v3390 = vsel %vm2989, %v3359, 0
    %v3392 = vsel %vm2989, %v3361, 0
    %v3394 = vsel %vm2989, %v3363, 0
    %v3396 = vsel %vm2989, %v3365, 0
    %v3398 = vsel %vm2989, %v3367, 0
    %v3400 = vsel %vm2989, %v3369, 0
    %v3402 = vsel %vm2989, %v3371, 0
    %v3404 = vsel %vm2989, %v3373, 0
    %v3406 = vsel %vm2989, %v3375, 0
    %v3408 = vsel %vm2989, %v3377, 0
    %v3410 = vsel %vm2989, %v3379, 0
    %v3412 = vsel %vm2989, %v3381, 0
    %v3414 = vsel %vm2989, %v3383, 0
    %v3416 = vsel %vm2989, %v3385, 0
    %v3418 = vsel %vm2989, %v3387, 0
    %v3420 = vsel %vm2989, %v3389, 0
    %3422 = vmatpush.msra.mxu0 0.0
    %3423 = vmatpush.msra.mxu0 0.0
    %3424 = vmatpush.msra.mxu0 0.0
    %3425 = vmatpush.msra.mxu0 0.0
    %3426 = vmatpush.msra.mxu0 0.0
    %3427 = vmatpush.msra.mxu0 0.0
    %3428 = vmatpush.msra.mxu0 0.0
    %3429 = vmatpush.msra.mxu0 0.0
    %3430 = vmatpush.msra.mxu0 0.0
    %3431 = vmatpush.msra.mxu0 0.0
    %3432 = vmatpush.msra.mxu0 0.0
    %3433 = vmatpush.msra.mxu0 0.0
    %3434 = vmatpush.msra.mxu0 %v3354
    %3435 = vmatpush.msra.mxu0 %v3353
    %3436 = vmatpush.msra.mxu0 %v3352
    %3437 = vmatpush.msra.mxu0 %v3351
    %3438 = vmatmul.f32.gmra.mxu0 %v3390
    %v3439 = vpop.f32.mrf.mxu0
    %v3440 = vadd.f32 0.0, %v3439
    %3441 = vmatmul.f32.gmra.mxu0 %v3392
    %v3442 = vpop.f32.mrf.mxu0
    %v3443 = vadd.f32 0.0, %v3442
    %3444 = vmatmul.f32.gmra.mxu0 %v3394
    %v3445 = vpop.f32.mrf.mxu0
    %v3446 = vadd.f32 0.0, %v3445
    %3447 = vmatmul.f32.gmra.mxu0 %v3396
    %v3448 = vpop.f32.mrf.mxu0
    %v3449 = vadd.f32 0.0, %v3448
    %3450 = vmatmul.f32.gmra.mxu0 %v3398
    %v3451 = vpop.f32.mrf.mxu0
    %v3452 = vadd.f32 0.0, %v3451
    %3453 = vmatmul.f32.gmra.mxu0 %v3400
    %v3454 = vpop.f32.mrf.mxu0
    %v3455 = vadd.f32 0.0, %v3454
    %3456 = vmatmul.f32.gmra.mxu0 %v3402
    %v3457 = vpop.f32.mrf.mxu0
    %v3458 = vadd.f32 0.0, %v3457
    %3459 = vmatmul.f32.gmra.mxu0 %v3404
    %v3460 = vpop.f32.mrf.mxu0
    %v3461 = vadd.f32 0.0, %v3460
    %3462 = vmatmul.f32.gmra.mxu0 %v3406
    %v3463 = vpop.f32.mrf.mxu0
    %v3464 = vadd.f32 0.0, %v3463
    %3465 = vmatmul.f32.gmra.mxu0 %v3408
    %v3466 = vpop.f32.mrf.mxu0
    %v3467 = vadd.f32 0.0, %v3466
    %3468 = vmatmul.f32.gmra.mxu0 %v3410
    %v3469 = vpop.f32.mrf.mxu0
    %v3470 = vadd.f32 0.0, %v3469
    %3471 = vmatmul.f32.gmra.mxu0 %v3412
    %v3472 = vpop.f32.mrf.mxu0
    %v3473 = vadd.f32 0.0, %v3472
    %3474 = vmatmul.f32.gmra.mxu0 %v3414
    %v3475 = vpop.f32.mrf.mxu0
    %v3476 = vadd.f32 0.0, %v3475
    %3477 = vmatmul.f32.gmra.mxu0 %v3416
    %v3478 = vpop.f32.mrf.mxu0
    %v3479 = vadd.f32 0.0, %v3478
    %3480 = vmatmul.f32.gmra.mxu0 %v3418
    %v3481 = vpop.f32.mrf.mxu0
    %v3482 = vadd.f32 0.0, %v3481
    %3483 = vmatmul.f32.gmra.mxu0 %v3420
    %v3484 = vpop.f32.mrf.mxu0
    %v3485 = vadd.f32 0.0, %v3484
    %3486 = vdwg.mxu0
    %v3487 = vadd.f32 %v3334, %v3440
    %v3488 = vadd.f32 %v3335, %v3443
    %v3489 = vadd.f32 %v3336, %v3446
    %v3490 = vadd.f32 %v3337, %v3449
    %v3491 = vadd.f32 %v3338, %v3452
    %v3492 = vadd.f32 %v3339, %v3455
    %v3493 = vadd.f32 %v3340, %v3458
    %v3494 = vadd.f32 %v3341, %v3461
    %v3495 = vadd.f32 %v3342, %v3464
    %v3496 = vadd.f32 %v3343, %v3467
    %v3497 = vadd.f32 %v3344, %v3470
    %v3498 = vadd.f32 %v3345, %v3473
    %v3499 = vadd.f32 %v3346, %v3476
    %v3500 = vadd.f32 %v3347, %v3479
    %v3501 = vadd.f32 %v3348, %v3482
    %v3502 = vadd.f32 %v3349, %v3485
    %s3503 = scalar_lea.vmem %s3, 128
    %v3504 = vld [vmem:[%s3503] sm:$0xff]
    %v3505 = vld [vmem:[%s3503 + $0x8] sm:$0xff]
    %v3506 = vld [vmem:[%s3503 + $0x10] sm:$0xff]
    %v3507 = vld [vmem:[%s3503 + $0x18] sm:$0xff]
    %v3508 = vrot.slane %v2854, 2
    %v3509 = vrot.slane %v2855, 2
    %v3510 = vsel %vm2957, %v3508, %v3509
    %v3511 = vrot.slane %v2856, 2
    %v3512 = vsel %vm2957, %v3509, %v3511
    %v3513 = vrot.slane %v2857, 2
    %v3514 = vsel %vm2957, %v3511, %v3513
    %v3515 = vrot.slane %v2858, 2
    %v3516 = vsel %vm2957, %v3513, %v3515
    %v3517 = vrot.slane %v2859, 2
    %v3518 = vsel %vm2957, %v3515, %v3517
    %v3519 = vrot.slane %v2860, 2
    %v3520 = vsel %vm2957, %v3517, %v3519
    %v3521 = vrot.slane %v2861, 2
    %v3522 = vsel %vm2957, %v3519, %v3521
    %v3523 = vrot.slane %v2862, 2
    %v3524 = vsel %vm2957, %v3521, %v3523
    %v3525 = vrot.slane %v2863, 2
    %v3526 = vsel %vm2957, %v3523, %v3525
    %v3527 = vrot.slane %v2864, 2
    %v3528 = vsel %vm2957, %v3525, %v3527
    %v3529 = vrot.slane %v2865, 2
    %v3530 = vsel %vm2957, %v3527, %v3529
    %v3531 = vrot.slane %v2866, 2
    %v3532 = vsel %vm2957, %v3529, %v3531
    %v3533 = vrot.slane %v2867, 2
    %v3534 = vsel %vm2957, %v3531, %v3533
    %v3535 = vrot.slane %v2868, 2
    %v3536 = vsel %vm2957, %v3533, %v3535
    %v3537 = vrot.slane %v2869, 2
    %v3538 = vsel %vm2957, %v3535, %v3537
    %v3539 = vsel %vm2989, %v3510, 0
    %v3541 = vsel %vm2989, %v3512, 0
    %v3543 = vsel %vm2989, %v3514, 0
    %v3545 = vsel %vm2989, %v3516, 0
    %v3547 = vsel %vm2989, %v3518, 0
    %v3549 = vsel %vm2989, %v3520, 0
    %v3551 = vsel %vm2989, %v3522, 0
    %v3553 = vsel %vm2989, %v3524, 0
    %v3555 = vsel %vm2989, %v3526, 0
    %v3557 = vsel %vm2989, %v3528, 0
    %v3559 = vsel %vm2989, %v3530, 0
    %v3561 = vsel %vm2989, %v3532, 0
    %v3563 = vsel %vm2989, %v3534, 0
    %v3565 = vsel %vm2989, %v3536, 0
    %v3567 = vsel %vm2989, %v3538, 0
    %v3569 = vsel %vm2989, %v3537, 0
    %3571 = vmatpush.msra.mxu0 0.0
    %3572 = vmatpush.msra.mxu0 0.0
    %3573 = vmatpush.msra.mxu0 0.0
    %3574 = vmatpush.msra.mxu0 0.0
    %3575 = vmatpush.msra.mxu0 0.0
    %3576 = vmatpush.msra.mxu0 0.0
    %3577 = vmatpush.msra.mxu0 0.0
    %3578 = vmatpush.msra.mxu0 0.0
    %3579 = vmatpush.msra.mxu0 0.0
    %3580 = vmatpush.msra.mxu0 0.0
    %3581 = vmatpush.msra.mxu0 0.0
    %3582 = vmatpush.msra.mxu0 0.0
    %3583 = vmatpush.msra.mxu0 %v3507
    %3584 = vmatpush.msra.mxu0 %v3506
    %3585 = vmatpush.msra.mxu0 %v3505
    %3586 = vmatpush.msra.mxu0 %v3504
    %3587 = vmatmul.f32.gmra.mxu0 %v3539
    %v3588 = vpop.f32.mrf.mxu0
    %v3589 = vadd.f32 0.0, %v3588
    %3590 = vmatmul.f32.gmra.mxu0 %v3541
    %v3591 = vpop.f32.mrf.mxu0
    %v3592 = vadd.f32 0.0, %v3591
    %3593 = vmatmul.f32.gmra.mxu0 %v3543
    %v3594 = vpop.f32.mrf.mxu0
    %v3595 = vadd.f32 0.0, %v3594
    %3596 = vmatmul.f32.gmra.mxu0 %v3545
    %v3597 = vpop.f32.mrf.mxu0
    %v3598 = vadd.f32 0.0, %v3597
    %3599 = vmatmul.f32.gmra.mxu0 %v3547
    %v3600 = vpop.f32.mrf.mxu0
    %v3601 = vadd.f32 0.0, %v3600
    %3602 = vmatmul.f32.gmra.mxu0 %v3549
    %v3603 = vpop.f32.mrf.mxu0
    %v3604 = vadd.f32 0.0, %v3603
    %3605 = vmatmul.f32.gmra.mxu0 %v3551
    %v3606 = vpop.f32.mrf.mxu0
    %v3607 = vadd.f32 0.0, %v3606
    %3608 = vmatmul.f32.gmra.mxu0 %v3553
    %v3609 = vpop.f32.mrf.mxu0
    %v3610 = vadd.f32 0.0, %v3609
    %3611 = vmatmul.f32.gmra.mxu0 %v3555
    %v3612 = vpop.f32.mrf.mxu0
    %v3613 = vadd.f32 0.0, %v3612
    %3614 = vmatmul.f32.gmra.mxu0 %v3557
    %v3615 = vpop.f32.mrf.mxu0
    %v3616 = vadd.f32 0.0, %v3615
    %3617 = vmatmul.f32.gmra.mxu0 %v3559
    %v3618 = vpop.f32.mrf.mxu0
    %v3619 = vadd.f32 0.0, %v3618
    %3620 = vmatmul.f32.gmra.mxu0 %v3561
    %v3621 = vpop.f32.mrf.mxu0
    %v3622 = vadd.f32 0.0, %v3621
    %3623 = vmatmul.f32.gmra.mxu0 %v3563
    %v3624 = vpop.f32.mrf.mxu0
    %v3625 = vadd.f32 0.0, %v3624
    %3626 = vmatmul.f32.gmra.mxu0 %v3565
    %v3627 = vpop.f32.mrf.mxu0
    %v3628 = vadd.f32 0.0, %v3627
    %3629 = vmatmul.f32.gmra.mxu0 %v3567
    %v3630 = vpop.f32.mrf.mxu0
    %v3631 = vadd.f32 0.0, %v3630
    %3632 = vmatmul.f32.gmra.mxu0 %v3569
    %v3633 = vpop.f32.mrf.mxu0
    %v3634 = vadd.f32 0.0, %v3633
    %3635 = vdwg.mxu0
    %v3636 = vadd.f32 %v3487, %v3589
    %v3637 = vadd.f32 %v3488, %v3592
    %v3638 = vadd.f32 %v3489, %v3595
    %v3639 = vadd.f32 %v3490, %v3598
    %v3640 = vadd.f32 %v3491, %v3601
    %v3641 = vadd.f32 %v3492, %v3604
    %v3642 = vadd.f32 %v3493, %v3607
    %v3643 = vadd.f32 %v3494, %v3610
    %v3644 = vadd.f32 %v3495, %v3613
    %v3645 = vadd.f32 %v3496, %v3616
    %v3646 = vadd.f32 %v3497, %v3619
    %v3647 = vadd.f32 %v3498, %v3622
    %v3648 = vadd.f32 %v3499, %v3625
    %v3649 = vadd.f32 %v3500, %v3628
    %v3650 = vadd.f32 %v3501, %v3631
    %v3651 = vadd.f32 %v3502, %v3634
    %s3652 = scalar_lea.vmem %s3, 160
    %v3653 = vld [vmem:[%s3652] sm:$0xff]
    %v3654 = vld [vmem:[%s3652 + $0x8] sm:$0xff]
    %v3655 = vld [vmem:[%s3652 + $0x10] sm:$0xff]
    %v3656 = vld [vmem:[%s3652 + $0x18] sm:$0xff]
    %v3674 = vrot.slane %v2894, 4
    %v3675 = vrot.slane %v2895, 4
    %v3676 = vsel %vm1800, %v3674, %v3675
    %v3677 = vrot.slane %v2896, 4
    %v3678 = vsel %vm1800, %v3675, %v3677
    %v3679 = vrot.slane %v2897, 4
    %v3680 = vsel %vm1800, %v3677, %v3679
    %v3681 = vrot.slane %v2898, 4
    %v3682 = vsel %vm1800, %v3679, %v3681
    %v3683 = vrot.slane %v2899, 4
    %v3684 = vsel %vm1800, %v3681, %v3683
    %v3685 = vrot.slane %v2900, 4
    %v3686 = vsel %vm1800, %v3683, %v3685
    %v3687 = vrot.slane %v2901, 4
    %v3688 = vsel %vm1800, %v3685, %v3687
    %v3689 = vrot.slane %v2902, 4
    %v3690 = vsel %vm1800, %v3687, %v3689
    %v3691 = vrot.slane %v2903, 4
    %v3692 = vsel %vm1800, %v3689, %v3691
    %v3693 = vrot.slane %v2904, 4
    %v3694 = vsel %vm1800, %v3691, %v3693
    %v3695 = vrot.slane %v2905, 4
    %v3696 = vsel %vm1800, %v3693, %v3695
    %v3697 = vrot.slane %v2906, 4
    %v3698 = vsel %vm1800, %v3695, %v3697
    %v3699 = vrot.slane %v2907, 4
    %v3700 = vsel %vm1800, %v3697, %v3699
    %v3701 = vrot.slane %v2908, 4
    %v3702 = vsel %vm1800, %v3699, %v3701
    %v3703 = vrot.slane %v2909, 4
    %v3704 = vsel %vm1800, %v3701, %v3703
    %v3705 = vrot.slane %v2910, 4
    %v3706 = vsel %vm1800, %v3703, %v3705
    %v3707 = vsel %vm2989, %v3676, 0
    %v3709 = vsel %vm2989, %v3678, 0
    %v3711 = vsel %vm2989, %v3680, 0
    %v3713 = vsel %vm2989, %v3682, 0
    %v3715 = vsel %vm2989, %v3684, 0
    %v3717 = vsel %vm2989, %v3686, 0
    %v3719 = vsel %vm2989, %v3688, 0
    %v3721 = vsel %vm2989, %v3690, 0
    %v3723 = vsel %vm2989, %v3692, 0
    %v3725 = vsel %vm2989, %v3694, 0
    %v3727 = vsel %vm2989, %v3696, 0
    %v3729 = vsel %vm2989, %v3698, 0
    %v3731 = vsel %vm2989, %v3700, 0
    %v3733 = vsel %vm2989, %v3702, 0
    %v3735 = vsel %vm2989, %v3704, 0
    %v3737 = vsel %vm2989, %v3706, 0
    %3739 = vmatpush.msra.mxu0 0.0
    %3740 = vmatpush.msra.mxu0 0.0
    %3741 = vmatpush.msra.mxu0 0.0
    %3742 = vmatpush.msra.mxu0 0.0
    %3743 = vmatpush.msra.mxu0 0.0
    %3744 = vmatpush.msra.mxu0 0.0
    %3745 = vmatpush.msra.mxu0 0.0
    %3746 = vmatpush.msra.mxu0 0.0
    %3747 = vmatpush.msra.mxu0 0.0
    %3748 = vmatpush.msra.mxu0 0.0
    %3749 = vmatpush.msra.mxu0 0.0
    %3750 = vmatpush.msra.mxu0 0.0
    %3751 = vmatpush.msra.mxu0 %v3656
    %3752 = vmatpush.msra.mxu0 %v3655
    %3753 = vmatpush.msra.mxu0 %v3654
    %3754 = vmatpush.msra.mxu0 %v3653
    %3755 = vmatmul.f32.gmra.mxu0 %v3707
    %v3756 = vpop.f32.mrf.mxu0
    %v3757 = vadd.f32 0.0, %v3756
    %3758 = vmatmul.f32.gmra.mxu0 %v3709
    %v3759 = vpop.f32.mrf.mxu0
    %v3760 = vadd.f32 0.0, %v3759
    %3761 = vmatmul.f32.gmra.mxu0 %v3711
    %v3762 = vpop.f32.mrf.mxu0
    %v3763 = vadd.f32 0.0, %v3762
    %3764 = vmatmul.f32.gmra.mxu0 %v3713
    %v3765 = vpop.f32.mrf.mxu0
    %v3766 = vadd.f32 0.0, %v3765
    %3767 = vmatmul.f32.gmra.mxu0 %v3715
    %v3768 = vpop.f32.mrf.mxu0
    %v3769 = vadd.f32 0.0, %v3768
    %3770 = vmatmul.f32.gmra.mxu0 %v3717
    %v3771 = vpop.f32.mrf.mxu0
    %v3772 = vadd.f32 0.0, %v3771
    %3773 = vmatmul.f32.gmra.mxu0 %v3719
    %v3774 = vpop.f32.mrf.mxu0
    %v3775 = vadd.f32 0.0, %v3774
    %3776 = vmatmul.f32.gmra.mxu0 %v3721
    %v3777 = vpop.f32.mrf.mxu0
    %v3778 = vadd.f32 0.0, %v3777
    %3779 = vmatmul.f32.gmra.mxu0 %v3723
    %v3780 = vpop.f32.mrf.mxu0
    %v3781 = vadd.f32 0.0, %v3780
    %3782 = vmatmul.f32.gmra.mxu0 %v3725
    %v3783 = vpop.f32.mrf.mxu0
    %v3784 = vadd.f32 0.0, %v3783
    %3785 = vmatmul.f32.gmra.mxu0 %v3727
    %v3786 = vpop.f32.mrf.mxu0
    %v3787 = vadd.f32 0.0, %v3786
    %3788 = vmatmul.f32.gmra.mxu0 %v3729
    %v3789 = vpop.f32.mrf.mxu0
    %v3790 = vadd.f32 0.0, %v3789
    %3791 = vmatmul.f32.gmra.mxu0 %v3731
    %v3792 = vpop.f32.mrf.mxu0
    %v3793 = vadd.f32 0.0, %v3792
    %3794 = vmatmul.f32.gmra.mxu0 %v3733
    %v3795 = vpop.f32.mrf.mxu0
    %v3796 = vadd.f32 0.0, %v3795
    %3797 = vmatmul.f32.gmra.mxu0 %v3735
    %v3798 = vpop.f32.mrf.mxu0
    %v3799 = vadd.f32 0.0, %v3798
    %3800 = vmatmul.f32.gmra.mxu0 %v3737
    %v3801 = vpop.f32.mrf.mxu0
    %v3802 = vadd.f32 0.0, %v3801
    %3803 = vdwg.mxu0
    %v3804 = vadd.f32 %v3636, %v3757
    %v3805 = vadd.f32 %v3637, %v3760
    %v3806 = vadd.f32 %v3638, %v3763
    %v3807 = vadd.f32 %v3639, %v3766
    %v3808 = vadd.f32 %v3640, %v3769
    %v3809 = vadd.f32 %v3641, %v3772
    %v3810 = vadd.f32 %v3642, %v3775
    %v3811 = vadd.f32 %v3643, %v3778
    %v3812 = vadd.f32 %v3644, %v3781
    %v3813 = vadd.f32 %v3645, %v3784
    %v3814 = vadd.f32 %v3646, %v3787
    %v3815 = vadd.f32 %v3647, %v3790
    %v3816 = vadd.f32 %v3648, %v3793
    %v3817 = vadd.f32 %v3649, %v3796
    %v3818 = vadd.f32 %v3650, %v3799
    %v3819 = vadd.f32 %v3651, %v3802
    %s3820 = scalar_lea.vmem %s3, 192
    %v3821 = vld [vmem:[%s3820] sm:$0xff]
    %v3822 = vld [vmem:[%s3820 + $0x8] sm:$0xff]
    %v3823 = vld [vmem:[%s3820 + $0x10] sm:$0xff]
    %v3824 = vld [vmem:[%s3820 + $0x18] sm:$0xff]
    %vm3842 = vcmask 1041408
    %v3843 = vrot.slane %v2913, 6
    %v3844 = vrot.slane %v2914, 6
    %v3845 = vsel %vm3842, %v3843, %v3844
    %v3846 = vrot.slane %v2915, 6
    %v3847 = vsel %vm3842, %v3844, %v3846
    %v3848 = vrot.slane %v2916, 6
    %v3849 = vsel %vm3842, %v3846, %v3848
    %v3850 = vrot.slane %v2917, 6
    %v3851 = vsel %vm3842, %v3848, %v3850
    %v3852 = vrot.slane %v2918, 6
    %v3853 = vsel %vm3842, %v3850, %v3852
    %v3854 = vrot.slane %v2919, 6
    %v3855 = vsel %vm3842, %v3852, %v3854
    %v3856 = vrot.slane %v2920, 6
    %v3857 = vsel %vm3842, %v3854, %v3856
    %v3858 = vrot.slane %v2921, 6
    %v3859 = vsel %vm3842, %v3856, %v3858
    %v3860 = vrot.slane %v2922, 6
    %v3861 = vsel %vm3842, %v3858, %v3860
    %v3862 = vrot.slane %v2923, 6
    %v3863 = vsel %vm3842, %v3860, %v3862
    %v3864 = vrot.slane %v2924, 6
    %v3865 = vsel %vm3842, %v3862, %v3864
    %v3866 = vrot.slane %v2925, 6
    %v3867 = vsel %vm3842, %v3864, %v3866
    %v3868 = vrot.slane %v2926, 6
    %v3869 = vsel %vm3842, %v3866, %v3868
    %v3870 = vrot.slane %v2927, 6
    %v3871 = vsel %vm3842, %v3868, %v3870
    %v3872 = vrot.slane %v2928, 6
    %v3873 = vsel %vm3842, %v3870, %v3872
    %v3874 = vrot.slane %v2929, 6
    %v3875 = vsel %vm3842, %v3872, %v3874
    %v3876 = vsel %vm2989, %v3845, 0
    %v3878 = vsel %vm2989, %v3847, 0
    %v3880 = vsel %vm2989, %v3849, 0
    %v3882 = vsel %vm2989, %v3851, 0
    %v3884 = vsel %vm2989, %v3853, 0
    %v3886 = vsel %vm2989, %v3855, 0
    %v3888 = vsel %vm2989, %v3857, 0
    %v3890 = vsel %vm2989, %v3859, 0
    %v3892 = vsel %vm2989, %v3861, 0
    %v3894 = vsel %vm2989, %v3863, 0
    %v3896 = vsel %vm2989, %v3865, 0
    %v3898 = vsel %vm2989, %v3867, 0
    %v3900 = vsel %vm2989, %v3869, 0
    %v3902 = vsel %vm2989, %v3871, 0
    %v3904 = vsel %vm2989, %v3873, 0
    %v3906 = vsel %vm2989, %v3875, 0
    %3908 = vmatpush.msra.mxu0 0.0
    %3909 = vmatpush.msra.mxu0 0.0
    %3910 = vmatpush.msra.mxu0 0.0
    %3911 = vmatpush.msra.mxu0 0.0
    %3912 = vmatpush.msra.mxu0 0.0
    %3913 = vmatpush.msra.mxu0 0.0
    %3914 = vmatpush.msra.mxu0 0.0
    %3915 = vmatpush.msra.mxu0 0.0
    %3916 = vmatpush.msra.mxu0 0.0
    %3917 = vmatpush.msra.mxu0 0.0
    %3918 = vmatpush.msra.mxu0 0.0
    %3919 = vmatpush.msra.mxu0 0.0
    %3920 = vmatpush.msra.mxu0 %v3824
    %3921 = vmatpush.msra.mxu0 %v3823
    %3922 = vmatpush.msra.mxu0 %v3822
    %3923 = vmatpush.msra.mxu0 %v3821
    %3924 = vmatmul.f32.gmra.mxu0 %v3876
    %v3925 = vpop.f32.mrf.mxu0
    %v3926 = vadd.f32 0.0, %v3925
    %3927 = vmatmul.f32.gmra.mxu0 %v3878
    %v3928 = vpop.f32.mrf.mxu0
    %v3929 = vadd.f32 0.0, %v3928
    %3930 = vmatmul.f32.gmra.mxu0 %v3880
    %v3931 = vpop.f32.mrf.mxu0
    %v3932 = vadd.f32 0.0, %v3931
    %3933 = vmatmul.f32.gmra.mxu0 %v3882
    %v3934 = vpop.f32.mrf.mxu0
    %v3935 = vadd.f32 0.0, %v3934
    %3936 = vmatmul.f32.gmra.mxu0 %v3884
    %v3937 = vpop.f32.mrf.mxu0
    %v3938 = vadd.f32 0.0, %v3937
    %3939 = vmatmul.f32.gmra.mxu0 %v3886
    %v3940 = vpop.f32.mrf.mxu0
    %v3941 = vadd.f32 0.0, %v3940
    %3942 = vmatmul.f32.gmra.mxu0 %v3888
    %v3943 = vpop.f32.mrf.mxu0
    %v3944 = vadd.f32 0.0, %v3943
    %3945 = vmatmul.f32.gmra.mxu0 %v3890
    %v3946 = vpop.f32.mrf.mxu0
    %v3947 = vadd.f32 0.0, %v3946
    %3948 = vmatmul.f32.gmra.mxu0 %v3892
    %v3949 = vpop.f32.mrf.mxu0
    %v3950 = vadd.f32 0.0, %v3949
    %3951 = vmatmul.f32.gmra.mxu0 %v3894
    %v3952 = vpop.f32.mrf.mxu0
    %v3953 = vadd.f32 0.0, %v3952
    %3954 = vmatmul.f32.gmra.mxu0 %v3896
    %v3955 = vpop.f32.mrf.mxu0
    %v3956 = vadd.f32 0.0, %v3955
    %3957 = vmatmul.f32.gmra.mxu0 %v3898
    %v3958 = vpop.f32.mrf.mxu0
    %v3959 = vadd.f32 0.0, %v3958
    %3960 = vmatmul.f32.gmra.mxu0 %v3900
    %v3961 = vpop.f32.mrf.mxu0
    %v3962 = vadd.f32 0.0, %v3961
    %3963 = vmatmul.f32.gmra.mxu0 %v3902
    %v3964 = vpop.f32.mrf.mxu0
    %v3965 = vadd.f32 0.0, %v3964
    %3966 = vmatmul.f32.gmra.mxu0 %v3904
    %v3967 = vpop.f32.mrf.mxu0
    %v3968 = vadd.f32 0.0, %v3967
    %3969 = vmatmul.f32.gmra.mxu0 %v3906
    %v3970 = vpop.f32.mrf.mxu0
    %v3971 = vadd.f32 0.0, %v3970
    %3972 = vdwg.mxu0
    %v3973 = vadd.f32 %v3804, %v3926
    %v3974 = vadd.f32 %v3805, %v3929
    %v3975 = vadd.f32 %v3806, %v3932
    %v3976 = vadd.f32 %v3807, %v3935
    %v3977 = vadd.f32 %v3808, %v3938
    %v3978 = vadd.f32 %v3809, %v3941
    %v3979 = vadd.f32 %v3810, %v3944
    %v3980 = vadd.f32 %v3811, %v3947
    %v3981 = vadd.f32 %v3812, %v3950
    %v3982 = vadd.f32 %v3813, %v3953
    %v3983 = vadd.f32 %v3814, %v3956
    %v3984 = vadd.f32 %v3815, %v3959
    %v3985 = vadd.f32 %v3816, %v3962
    %v3986 = vadd.f32 %v3817, %v3965
    %v3987 = vadd.f32 %v3818, %v3968
    %v3988 = vadd.f32 %v3819, %v3971
    %s3989 = scalar_lea.vmem %s3, 224
    %v3990 = vld [vmem:[%s3989] sm:$0xff]
    %v3991 = vld [vmem:[%s3989 + $0x8] sm:$0xff]
    %v3992 = vld [vmem:[%s3989 + $0x10] sm:$0xff]
    %v3993 = vld [vmem:[%s3989 + $0x18] sm:$0xff]
    %vm3994 = vcmask 1042432
    %v3995 = vrot.slane %v2894, 5
    %v3996 = vrot.slane %v2895, 5
    %v3997 = vsel %vm3994, %v3995, %v3996
    %v3998 = vrot.slane %v2896, 5
    %v3999 = vsel %vm3994, %v3996, %v3998
    %v4000 = vrot.slane %v2897, 5
    %v4001 = vsel %vm3994, %v3998, %v4000
    %v4002 = vrot.slane %v2898, 5
    %v4003 = vsel %vm3994, %v4000, %v4002
    %v4004 = vrot.slane %v2899, 5
    %v4005 = vsel %vm3994, %v4002, %v4004
    %v4006 = vrot.slane %v2900, 5
    %v4007 = vsel %vm3994, %v4004, %v4006
    %v4008 = vrot.slane %v2901, 5
    %v4009 = vsel %vm3994, %v4006, %v4008
    %v4010 = vrot.slane %v2902, 5
    %v4011 = vsel %vm3994, %v4008, %v4010
    %v4012 = vrot.slane %v2903, 5
    %v4013 = vsel %vm3994, %v4010, %v4012
    %v4014 = vrot.slane %v2904, 5
    %v4015 = vsel %vm3994, %v4012, %v4014
    %v4016 = vrot.slane %v2905, 5
    %v4017 = vsel %vm3994, %v4014, %v4016
    %v4018 = vrot.slane %v2906, 5
    %v4019 = vsel %vm3994, %v4016, %v4018
    %v4020 = vrot.slane %v2907, 5
    %v4021 = vsel %vm3994, %v4018, %v4020
    %v4022 = vrot.slane %v2908, 5
    %v4023 = vsel %vm3994, %v4020, %v4022
    %v4024 = vrot.slane %v2909, 5
    %v4025 = vsel %vm3994, %v4022, %v4024
    %v4026 = vrot.slane %v2910, 5
    %v4027 = vsel %vm3994, %v4024, %v4026
    %v4028 = vsel %vm2989, %v3997, 0
    %v4030 = vsel %vm2989, %v3999, 0
    %v4032 = vsel %vm2989, %v4001, 0
    %v4034 = vsel %vm2989, %v4003, 0
    %v4036 = vsel %vm2989, %v4005, 0
    %v4038 = vsel %vm2989, %v4007, 0
    %v4040 = vsel %vm2989, %v4009, 0
    %v4042 = vsel %vm2989, %v4011, 0
    %v4044 = vsel %vm2989, %v4013, 0
    %v4046 = vsel %vm2989, %v4015, 0
    %v4048 = vsel %vm2989, %v4017, 0
    %v4050 = vsel %vm2989, %v4019, 0
    %v4052 = vsel %vm2989, %v4021, 0
    %v4054 = vsel %vm2989, %v4023, 0
    %v4056 = vsel %vm2989, %v4025, 0
    %v4058 = vsel %vm2989, %v4027, 0
    %4060 = vmatpush.msra.mxu0 0.0
    %4061 = vmatpush.msra.mxu0 0.0
    %4062 = vmatpush.msra.mxu0 0.0
    %4063 = vmatpush.msra.mxu0 0.0
    %4064 = vmatpush.msra.mxu0 0.0
    %4065 = vmatpush.msra.mxu0 0.0
    %4066 = vmatpush.msra.mxu0 0.0
    %4067 = vmatpush.msra.mxu0 0.0
    %4068 = vmatpush.msra.mxu0 0.0
    %4069 = vmatpush.msra.mxu0 0.0
    %4070 = vmatpush.msra.mxu0 0.0
    %4071 = vmatpush.msra.mxu0 0.0
    %4072 = vmatpush.msra.mxu0 %v3993
    %4073 = vmatpush.msra.mxu0 %v3992
    %4074 = vmatpush.msra.mxu0 %v3991
    %4075 = vmatpush.msra.mxu0 %v3990
    %4076 = vmatmul.f32.gmra.mxu0 %v4028
    %v4077 = vpop.f32.mrf.mxu0
    %v4078 = vadd.f32 0.0, %v4077
    %4079 = vmatmul.f32.gmra.mxu0 %v4030
    %v4080 = vpop.f32.mrf.mxu0
    %v4081 = vadd.f32 0.0, %v4080
    %4082 = vmatmul.f32.gmra.mxu0 %v4032
    %v4083 = vpop.f32.mrf.mxu0
    %v4084 = vadd.f32 0.0, %v4083
    %4085 = vmatmul.f32.gmra.mxu0 %v4034
    %v4086 = vpop.f32.mrf.mxu0
    %v4087 = vadd.f32 0.0, %v4086
    %4088 = vmatmul.f32.gmra.mxu0 %v4036
    %v4089 = vpop.f32.mrf.mxu0
    %v4090 = vadd.f32 0.0, %v4089
    %4091 = vmatmul.f32.gmra.mxu0 %v4038
    %v4092 = vpop.f32.mrf.mxu0
    %v4093 = vadd.f32 0.0, %v4092
    %4094 = vmatmul.f32.gmra.mxu0 %v4040
    %v4095 = vpop.f32.mrf.mxu0
    %v4096 = vadd.f32 0.0, %v4095
    %4097 = vmatmul.f32.gmra.mxu0 %v4042
    %v4098 = vpop.f32.mrf.mxu0
    %v4099 = vadd.f32 0.0, %v4098
    %4100 = vmatmul.f32.gmra.mxu0 %v4044
    %v4101 = vpop.f32.mrf.mxu0
    %v4102 = vadd.f32 0.0, %v4101
    %4103 = vmatmul.f32.gmra.mxu0 %v4046
    %v4104 = vpop.f32.mrf.mxu0
    %v4105 = vadd.f32 0.0, %v4104
    %4106 = vmatmul.f32.gmra.mxu0 %v4048
    %v4107 = vpop.f32.mrf.mxu0
    %v4108 = vadd.f32 0.0, %v4107
    %4109 = vmatmul.f32.gmra.mxu0 %v4050
    %v4110 = vpop.f32.mrf.mxu0
    %v4111 = vadd.f32 0.0, %v4110
    %4112 = vmatmul.f32.gmra.mxu0 %v4052
    %v4113 = vpop.f32.mrf.mxu0
    %v4114 = vadd.f32 0.0, %v4113
    %4115 = vmatmul.f32.gmra.mxu0 %v4054
    %v4116 = vpop.f32.mrf.mxu0
    %v4117 = vadd.f32 0.0, %v4116
    %4118 = vmatmul.f32.gmra.mxu0 %v4056
    %v4119 = vpop.f32.mrf.mxu0
    %v4120 = vadd.f32 0.0, %v4119
    %4121 = vmatmul.f32.gmra.mxu0 %v4058
    %v4122 = vpop.f32.mrf.mxu0
    %v4123 = vadd.f32 0.0, %v4122
    %4124 = vdwg.mxu0
    %v4125 = vadd.f32 %v3973, %v4078
    %v4126 = vadd.f32 %v3974, %v4081
    %v4127 = vadd.f32 %v3975, %v4084
    %v4128 = vadd.f32 %v3976, %v4087
    %v4129 = vadd.f32 %v3977, %v4090
    %v4130 = vadd.f32 %v3978, %v4093
    %v4131 = vadd.f32 %v3979, %v4096
    %v4132 = vadd.f32 %v3980, %v4099
    %v4133 = vadd.f32 %v3981, %v4102
    %v4134 = vadd.f32 %v3982, %v4105
    %v4135 = vadd.f32 %v3983, %v4108
    %v4136 = vadd.f32 %v3984, %v4111
    %v4137 = vadd.f32 %v3985, %v4114
    %v4138 = vadd.f32 %v3986, %v4117
    %v4139 = vadd.f32 %v3987, %v4120
    %v4140 = vadd.f32 %v3988, %v4123
    %s4141 = scalar_lea.vmem %s3, 256
    %v4142 = vld [vmem:[%s4141] sm:$0xff]
    %v4143 = vld [vmem:[%s4141 + $0x8] sm:$0xff]
    %v4144 = vld [vmem:[%s4141 + $0x10] sm:$0xff]
    %v4145 = vld [vmem:[%s4141 + $0x18] sm:$0xff]
    %vm4146 = vcmask 1040384
    %v4147 = vrot.slane %v2913, 7
    %v4148 = vrot.slane %v2914, 7
    %v4149 = vsel %vm4146, %v4147, %v4148
    %v4150 = vrot.slane %v2915, 7
    %v4151 = vsel %vm4146, %v4148, %v4150
    %v4152 = vrot.slane %v2916, 7
    %v4153 = vsel %vm4146, %v4150, %v4152
    %v4154 = vrot.slane %v2917, 7
    %v4155 = vsel %vm4146, %v4152, %v4154
    %v4156 = vrot.slane %v2918, 7
    %v4157 = vsel %vm4146, %v4154, %v4156
    %v4158 = vrot.slane %v2919, 7
    %v4159 = vsel %vm4146, %v4156, %v4158
    %v4160 = vrot.slane %v2920, 7
    %v4161 = vsel %vm4146, %v4158, %v4160
    %v4162 = vrot.slane %v2921, 7
    %v4163 = vsel %vm4146, %v4160, %v4162
    %v4164 = vrot.slane %v2922, 7
    %v4165 = vsel %vm4146, %v4162, %v4164
    %v4166 = vrot.slane %v2923, 7
    %v4167 = vsel %vm4146, %v4164, %v4166
    %v4168 = vrot.slane %v2924, 7
    %v4169 = vsel %vm4146, %v4166, %v4168
    %v4170 = vrot.slane %v2925, 7
    %v4171 = vsel %vm4146, %v4168, %v4170
    %v4172 = vrot.slane %v2926, 7
    %v4173 = vsel %vm4146, %v4170, %v4172
    %v4174 = vrot.slane %v2927, 7
    %v4175 = vsel %vm4146, %v4172, %v4174
    %v4176 = vrot.slane %v2928, 7
    %v4177 = vsel %vm4146, %v4174, %v4176
    %v4178 = vrot.slane %v2929, 7
    %v4179 = vsel %vm4146, %v4176, %v4178
    %v4180 = vsel %vm2989, %v4149, 0
    %v4182 = vsel %vm2989, %v4151, 0
    %v4184 = vsel %vm2989, %v4153, 0
    %v4186 = vsel %vm2989, %v4155, 0
    %v4188 = vsel %vm2989, %v4157, 0
    %v4190 = vsel %vm2989, %v4159, 0
    %v4192 = vsel %vm2989, %v4161, 0
    %v4194 = vsel %vm2989, %v4163, 0
    %v4196 = vsel %vm2989, %v4165, 0
    %v4198 = vsel %vm2989, %v4167, 0
    %v4200 = vsel %vm2989, %v4169, 0
    %v4202 = vsel %vm2989, %v4171, 0
    %v4204 = vsel %vm2989, %v4173, 0
    %v4206 = vsel %vm2989, %v4175, 0
    %v4208 = vsel %vm2989, %v4177, 0
    %v4210 = vsel %vm2989, %v4179, 0
    %4212 = vmatpush.msra.mxu0 0.0
    %4213 = vmatpush.msra.mxu0 0.0
    %4214 = vmatpush.msra.mxu0 0.0
    %4215 = vmatpush.msra.mxu0 0.0
    %4216 = vmatpush.msra.mxu0 0.0
    %4217 = vmatpush.msra.mxu0 0.0
    %4218 = vmatpush.msra.mxu0 0.0
    %4219 = vmatpush.msra.mxu0 0.0
    %4220 = vmatpush.msra.mxu0 0.0
    %4221 = vmatpush.msra.mxu0 0.0
    %4222 = vmatpush.msra.mxu0 0.0
    %4223 = vmatpush.msra.mxu0 0.0
    %4224 = vmatpush.msra.mxu0 %v4145
    %4225 = vmatpush.msra.mxu0 %v4144
    %4226 = vmatpush.msra.mxu0 %v4143
    %4227 = vmatpush.msra.mxu0 %v4142
    %4228 = vmatmul.f32.gmra.mxu0 %v4180
    %v4229 = vpop.f32.mrf.mxu0
    %v4230 = vadd.f32 0.0, %v4229
    %4231 = vmatmul.f32.gmra.mxu0 %v4182
    %v4232 = vpop.f32.mrf.mxu0
    %v4233 = vadd.f32 0.0, %v4232
    %4234 = vmatmul.f32.gmra.mxu0 %v4184
    %v4235 = vpop.f32.mrf.mxu0
    %v4236 = vadd.f32 0.0, %v4235
    %4237 = vmatmul.f32.gmra.mxu0 %v4186
    %v4238 = vpop.f32.mrf.mxu0
    %v4239 = vadd.f32 0.0, %v4238
    %4240 = vmatmul.f32.gmra.mxu0 %v4188
    %v4241 = vpop.f32.mrf.mxu0
    %v4242 = vadd.f32 0.0, %v4241
    %4243 = vmatmul.f32.gmra.mxu0 %v4190
    %v4244 = vpop.f32.mrf.mxu0
    %v4245 = vadd.f32 0.0, %v4244
    %4246 = vmatmul.f32.gmra.mxu0 %v4192
    %v4247 = vpop.f32.mrf.mxu0
    %v4248 = vadd.f32 0.0, %v4247
    %4249 = vmatmul.f32.gmra.mxu0 %v4194
    %v4250 = vpop.f32.mrf.mxu0
    %v4251 = vadd.f32 0.0, %v4250
    %4252 = vmatmul.f32.gmra.mxu0 %v4196
    %v4253 = vpop.f32.mrf.mxu0
    %v4254 = vadd.f32 0.0, %v4253
    %4255 = vmatmul.f32.gmra.mxu0 %v4198
    %v4256 = vpop.f32.mrf.mxu0
    %v4257 = vadd.f32 0.0, %v4256
    %4258 = vmatmul.f32.gmra.mxu0 %v4200
    %v4259 = vpop.f32.mrf.mxu0
    %v4260 = vadd.f32 0.0, %v4259
    %4261 = vmatmul.f32.gmra.mxu0 %v4202
    %v4262 = vpop.f32.mrf.mxu0
    %v4263 = vadd.f32 0.0, %v4262
    %4264 = vmatmul.f32.gmra.mxu0 %v4204
    %v4265 = vpop.f32.mrf.mxu0
    %v4266 = vadd.f32 0.0, %v4265
    %4267 = vmatmul.f32.gmra.mxu0 %v4206
    %v4268 = vpop.f32.mrf.mxu0
    %v4269 = vadd.f32 0.0, %v4268
    %4270 = vmatmul.f32.gmra.mxu0 %v4208
    %v4271 = vpop.f32.mrf.mxu0
    %v4272 = vadd.f32 0.0, %v4271
    %4273 = vmatmul.f32.gmra.mxu0 %v4210
    %v4274 = vpop.f32.mrf.mxu0
    %v4275 = vadd.f32 0.0, %v4274
    %4276 = vdwg.mxu0
    %v4277 = vadd.f32 %v4125, %v4230
    %v4278 = vadd.f32 %v4126, %v4233
    %v4279 = vadd.f32 %v4127, %v4236
    %v4280 = vadd.f32 %v4128, %v4239
    %v4281 = vadd.f32 %v4129, %v4242
    %v4282 = vadd.f32 %v4130, %v4245
    %v4283 = vadd.f32 %v4131, %v4248
    %v4284 = vadd.f32 %v4132, %v4251
    %v4285 = vadd.f32 %v4133, %v4254
    %v4286 = vadd.f32 %v4134, %v4257
    %v4287 = vadd.f32 %v4135, %v4260
    %v4288 = vadd.f32 %v4136, %v4263
    %v4289 = vadd.f32 %v4137, %v4266
    %v4290 = vadd.f32 %v4138, %v4269
    %v4291 = vadd.f32 %v4139, %v4272
    %v4292 = vadd.f32 %v4140, %v4275
    %s4293 = scalar_lea.vmem %s3, 288
    %v4294 = vld [vmem:[%s4293] sm:$0xff]
    %v4295 = vld [vmem:[%s4293 + $0x8] sm:$0xff]
    %v4296 = vld [vmem:[%s4293 + $0x10] sm:$0xff]
    %v4297 = vld [vmem:[%s4293 + $0x18] sm:$0xff]
    %v4298 = vrot.slane %v2894, 6
    %v4299 = vrot.slane %v2895, 6
    %v4300 = vsel %vm3842, %v4298, %v4299
    %v4301 = vrot.slane %v2896, 6
    %v4302 = vsel %vm3842, %v4299, %v4301
    %v4303 = vrot.slane %v2897, 6
    %v4304 = vsel %vm3842, %v4301, %v4303
    %v4305 = vrot.slane %v2898, 6
    %v4306 = vsel %vm3842, %v4303, %v4305
    %v4307 = vrot.slane %v2899, 6
    %v4308 = vsel %vm3842, %v4305, %v4307
    %v4309 = vrot.slane %v2900, 6
    %v4310 = vsel %vm3842, %v4307, %v4309
    %v4311 = vrot.slane %v2901, 6
    %v4312 = vsel %vm3842, %v4309, %v4311
    %v4313 = vrot.slane %v2902, 6
    %v4314 = vsel %vm3842, %v4311, %v4313
    %v4315 = vrot.slane %v2903, 6
    %v4316 = vsel %vm3842, %v4313, %v4315
    %v4317 = vrot.slane %v2904, 6
    %v4318 = vsel %vm3842, %v4315, %v4317
    %v4319 = vrot.slane %v2905, 6
    %v4320 = vsel %vm3842, %v4317, %v4319
    %v4321 = vrot.slane %v2906, 6
    %v4322 = vsel %vm3842, %v4319, %v4321
    %v4323 = vrot.slane %v2907, 6
    %v4324 = vsel %vm3842, %v4321, %v4323
    %v4325 = vrot.slane %v2908, 6
    %v4326 = vsel %vm3842, %v4323, %v4325
    %v4327 = vrot.slane %v2909, 6
    %v4328 = vsel %vm3842, %v4325, %v4327
    %v4329 = vrot.slane %v2910, 6
    %v4330 = vsel %vm3842, %v4327, %v4329
    %v4331 = vsel %vm2989, %v4300, 0
    %v4333 = vsel %vm2989, %v4302, 0
    %v4335 = vsel %vm2989, %v4304, 0
    %v4337 = vsel %vm2989, %v4306, 0
    %v4339 = vsel %vm2989, %v4308, 0
    %v4341 = vsel %vm2989, %v4310, 0
    %v4343 = vsel %vm2989, %v4312, 0
    %v4345 = vsel %vm2989, %v4314, 0
    %v4347 = vsel %vm2989, %v4316, 0
    %v4349 = vsel %vm2989, %v4318, 0
    %v4351 = vsel %vm2989, %v4320, 0
    %v4353 = vsel %vm2989, %v4322, 0
    %v4355 = vsel %vm2989, %v4324, 0
    %v4357 = vsel %vm2989, %v4326, 0
    %v4359 = vsel %vm2989, %v4328, 0
    %v4361 = vsel %vm2989, %v4330, 0
    %4363 = vmatpush.msra.mxu0 0.0
    %4364 = vmatpush.msra.mxu0 0.0
    %4365 = vmatpush.msra.mxu0 0.0
    %4366 = vmatpush.msra.mxu0 0.0
    %4367 = vmatpush.msra.mxu0 0.0
    %4368 = vmatpush.msra.mxu0 0.0
    %4369 = vmatpush.msra.mxu0 0.0
    %4370 = vmatpush.msra.mxu0 0.0
    %4371 = vmatpush.msra.mxu0 0.0
    %4372 = vmatpush.msra.mxu0 0.0
    %4373 = vmatpush.msra.mxu0 0.0
    %4374 = vmatpush.msra.mxu0 0.0
    %4375 = vmatpush.msra.mxu0 %v4297
    %4376 = vmatpush.msra.mxu0 %v4296
    %4377 = vmatpush.msra.mxu0 %v4295
    %4378 = vmatpush.msra.mxu0 %v4294
    %4379 = vmatmul.f32.gmra.mxu0 %v4331
    %v4380 = vpop.f32.mrf.mxu0
    %v4381 = vadd.f32 0.0, %v4380
    %4382 = vmatmul.f32.gmra.mxu0 %v4333
    %v4383 = vpop.f32.mrf.mxu0
    %v4384 = vadd.f32 0.0, %v4383
    %4385 = vmatmul.f32.gmra.mxu0 %v4335
    %v4386 = vpop.f32.mrf.mxu0
    %v4387 = vadd.f32 0.0, %v4386
    %4388 = vmatmul.f32.gmra.mxu0 %v4337
    %v4389 = vpop.f32.mrf.mxu0
    %v4390 = vadd.f32 0.0, %v4389
    %4391 = vmatmul.f32.gmra.mxu0 %v4339
    %v4392 = vpop.f32.mrf.mxu0
    %v4393 = vadd.f32 0.0, %v4392
    %4394 = vmatmul.f32.gmra.mxu0 %v4341
    %v4395 = vpop.f32.mrf.mxu0
    %v4396 = vadd.f32 0.0, %v4395
    %4397 = vmatmul.f32.gmra.mxu0 %v4343
    %v4398 = vpop.f32.mrf.mxu0
    %v4399 = vadd.f32 0.0, %v4398
    %4400 = vmatmul.f32.gmra.mxu0 %v4345
    %v4401 = vpop.f32.mrf.mxu0
    %v4402 = vadd.f32 0.0, %v4401
    %4403 = vmatmul.f32.gmra.mxu0 %v4347
    %v4404 = vpop.f32.mrf.mxu0
    %v4405 = vadd.f32 0.0, %v4404
    %4406 = vmatmul.f32.gmra.mxu0 %v4349
    %v4407 = vpop.f32.mrf.mxu0
    %v4408 = vadd.f32 0.0, %v4407
    %4409 = vmatmul.f32.gmra.mxu0 %v4351
    %v4410 = vpop.f32.mrf.mxu0
    %v4411 = vadd.f32 0.0, %v4410
    %4412 = vmatmul.f32.gmra.mxu0 %v4353
    %v4413 = vpop.f32.mrf.mxu0
    %v4414 = vadd.f32 0.0, %v4413
    %4415 = vmatmul.f32.gmra.mxu0 %v4355
    %v4416 = vpop.f32.mrf.mxu0
    %v4417 = vadd.f32 0.0, %v4416
    %4418 = vmatmul.f32.gmra.mxu0 %v4357
    %v4419 = vpop.f32.mrf.mxu0
    %v4420 = vadd.f32 0.0, %v4419
    %4421 = vmatmul.f32.gmra.mxu0 %v4359
    %v4422 = vpop.f32.mrf.mxu0
    %v4423 = vadd.f32 0.0, %v4422
    %4424 = vmatmul.f32.gmra.mxu0 %v4361
    %v4425 = vpop.f32.mrf.mxu0
    %v4426 = vadd.f32 0.0, %v4425
    %4427 = vdwg.mxu0
    %v4428 = vadd.f32 %v4277, %v4381
    %v4429 = vadd.f32 %v4278, %v4384
    %v4430 = vadd.f32 %v4279, %v4387
    %v4431 = vadd.f32 %v4280, %v4390
    %v4432 = vadd.f32 %v4281, %v4393
    %v4433 = vadd.f32 %v4282, %v4396
    %v4434 = vadd.f32 %v4283, %v4399
    %v4435 = vadd.f32 %v4284, %v4402
    %v4436 = vadd.f32 %v4285, %v4405
    %v4437 = vadd.f32 %v4286, %v4408
    %v4438 = vadd.f32 %v4287, %v4411
    %v4439 = vadd.f32 %v4288, %v4414
    %v4440 = vadd.f32 %v4289, %v4417
    %v4441 = vadd.f32 %v4290, %v4420
    %v4442 = vadd.f32 %v4291, %v4423
    %v4443 = vadd.f32 %v4292, %v4426
    %s4444 = scalar_lea.vmem %s3, 320
    %v4445 = vld [vmem:[%s4444] sm:$0xff]
    %v4446 = vld [vmem:[%s4444 + $0x8] sm:$0xff]
    %v4447 = vld [vmem:[%s4444 + $0x10] sm:$0xff]
    %v4448 = vld [vmem:[%s4444 + $0x18] sm:$0xff]
    %v4451 = vrot.slane %v2870, 2
    %v4452 = vsel %vm2957, %v3537, %v4451
    %v4453 = vrot.slane %v2871, 2
    %v4454 = vsel %vm2957, %v4451, %v4453
    %v4455 = vsel %vm2989, %v4452, 0
    %v4457 = vsel %vm2989, %v4454, 0
    %v4459 = vsel %vm2989, %v4453, 0
    %4461 = vmatpush.msra.mxu0 0.0
    %4462 = vmatpush.msra.mxu0 0.0
    %4463 = vmatpush.msra.mxu0 0.0
    %4464 = vmatpush.msra.mxu0 0.0
    %4465 = vmatpush.msra.mxu0 0.0
    %4466 = vmatpush.msra.mxu0 0.0
    %4467 = vmatpush.msra.mxu0 0.0
    %4468 = vmatpush.msra.mxu0 0.0
    %4469 = vmatpush.msra.mxu0 0.0
    %4470 = vmatpush.msra.mxu0 0.0
    %4471 = vmatpush.msra.mxu0 0.0
    %4472 = vmatpush.msra.mxu0 0.0
    %4473 = vmatpush.msra.mxu0 %v4448
    %4474 = vmatpush.msra.mxu0 %v4447
    %4475 = vmatpush.msra.mxu0 %v4446
    %4476 = vmatpush.msra.mxu0 %v4445
    %4477 = vmatmul.f32.gmra.mxu0 %v3543
    %v4478 = vpop.f32.mrf.mxu0
    %v4479 = vadd.f32 0.0, %v4478
    %4480 = vmatmul.f32.gmra.mxu0 %v3545
    %v4481 = vpop.f32.mrf.mxu0
    %v4482 = vadd.f32 0.0, %v4481
    %4483 = vmatmul.f32.gmra.mxu0 %v3547
    %v4484 = vpop.f32.mrf.mxu0
    %v4485 = vadd.f32 0.0, %v4484
    %4486 = vmatmul.f32.gmra.mxu0 %v3549
    %v4487 = vpop.f32.mrf.mxu0
    %v4488 = vadd.f32 0.0, %v4487
    %4489 = vmatmul.f32.gmra.mxu0 %v3551
    %v4490 = vpop.f32.mrf.mxu0
    %v4491 = vadd.f32 0.0, %v4490
    %4492 = vmatmul.f32.gmra.mxu0 %v3553
    %v4493 = vpop.f32.mrf.mxu0
    %v4494 = vadd.f32 0.0, %v4493
    %4495 = vmatmul.f32.gmra.mxu0 %v3555
    %v4496 = vpop.f32.mrf.mxu0
    %v4497 = vadd.f32 0.0, %v4496
    %4498 = vmatmul.f32.gmra.mxu0 %v3557
    %v4499 = vpop.f32.mrf.mxu0
    %v4500 = vadd.f32 0.0, %v4499
    %4501 = vmatmul.f32.gmra.mxu0 %v3559
    %v4502 = vpop.f32.mrf.mxu0
    %v4503 = vadd.f32 0.0, %v4502
    %4504 = vmatmul.f32.gmra.mxu0 %v3561
    %v4505 = vpop.f32.mrf.mxu0
    %v4506 = vadd.f32 0.0, %v4505
    %4507 = vmatmul.f32.gmra.mxu0 %v3563
    %v4508 = vpop.f32.mrf.mxu0
    %v4509 = vadd.f32 0.0, %v4508
    %4510 = vmatmul.f32.gmra.mxu0 %v3565
    %v4511 = vpop.f32.mrf.mxu0
    %v4512 = vadd.f32 0.0, %v4511
    %4513 = vmatmul.f32.gmra.mxu0 %v3567
    %v4514 = vpop.f32.mrf.mxu0
    %v4515 = vadd.f32 0.0, %v4514
    %4516 = vmatmul.f32.gmra.mxu0 %v4455
    %v4517 = vpop.f32.mrf.mxu0
    %v4518 = vadd.f32 0.0, %v4517
    %4519 = vmatmul.f32.gmra.mxu0 %v4457
    %v4520 = vpop.f32.mrf.mxu0
    %v4521 = vadd.f32 0.0, %v4520
    %4522 = vmatmul.f32.gmra.mxu0 %v4459
    %v4523 = vpop.f32.mrf.mxu0
    %v4524 = vadd.f32 0.0, %v4523
    %4525 = vdwg.mxu0
    %v4526 = vadd.f32 %v4428, %v4479
    %v4527 = vadd.f32 %v4429, %v4482
    %v4528 = vadd.f32 %v4430, %v4485
    %v4529 = vadd.f32 %v4431, %v4488
    %v4530 = vadd.f32 %v4432, %v4491
    %v4531 = vadd.f32 %v4433, %v4494
    %v4532 = vadd.f32 %v4434, %v4497
    %v4533 = vadd.f32 %v4435, %v4500
    %v4534 = vadd.f32 %v4436, %v4503
    %v4535 = vadd.f32 %v4437, %v4506
    %v4536 = vadd.f32 %v4438, %v4509
    %v4537 = vadd.f32 %v4439, %v4512
    %v4538 = vadd.f32 %v4440, %v4515
    %v4539 = vadd.f32 %v4441, %v4518
    %v4540 = vadd.f32 %v4442, %v4521
    %v4541 = vadd.f32 %v4443, %v4524
    %s4542 = scalar_lea.vmem %s3, 352
    %v4543 = vld [vmem:[%s4542] sm:$0xff]
    %v4544 = vld [vmem:[%s4542 + $0x8] sm:$0xff]
    %v4545 = vld [vmem:[%s4542 + $0x10] sm:$0xff]
    %v4546 = vld [vmem:[%s4542 + $0x18] sm:$0xff]
    %v4549 = vrot.slane %v2876, 4
    %v4550 = vrot.slane %v2877, 4
    %v4551 = vsel %vm1800, %v4549, %v4550
    %v4552 = vrot.slane %v2878, 4
    %v4553 = vsel %vm1800, %v4550, %v4552
    %v4554 = vrot.slane %v2879, 4
    %v4555 = vsel %vm1800, %v4552, %v4554
    %v4556 = vrot.slane %v2880, 4
    %v4557 = vsel %vm1800, %v4554, %v4556
    %v4558 = vrot.slane %v2881, 4
    %v4559 = vsel %vm1800, %v4556, %v4558
    %v4560 = vrot.slane %v2882, 4
    %v4561 = vsel %vm1800, %v4558, %v4560
    %v4562 = vrot.slane %v2883, 4
    %v4563 = vsel %vm1800, %v4560, %v4562
    %v4564 = vrot.slane %v2884, 4
    %v4565 = vsel %vm1800, %v4562, %v4564
    %v4566 = vrot.slane %v2885, 4
    %v4567 = vsel %vm1800, %v4564, %v4566
    %v4568 = vrot.slane %v2886, 4
    %v4569 = vsel %vm1800, %v4566, %v4568
    %v4570 = vrot.slane %v2887, 4
    %v4571 = vsel %vm1800, %v4568, %v4570
    %v4572 = vrot.slane %v2888, 4
    %v4573 = vsel %vm1800, %v4570, %v4572
    %v4574 = vrot.slane %v2889, 4
    %v4575 = vsel %vm1800, %v4572, %v4574
    %v4576 = vrot.slane %v2890, 4
    %v4577 = vsel %vm1800, %v4574, %v4576
    %v4578 = vrot.slane %v2891, 4
    %v4579 = vsel %vm1800, %v4576, %v4578
    %v4580 = vrot.slane %v2892, 4
    %v4581 = vsel %vm1800, %v4578, %v4580
    %v4582 = vsel %vm2989, %v4551, 0
    %v4584 = vsel %vm2989, %v4553, 0
    %v4586 = vsel %vm2989, %v4555, 0
    %v4588 = vsel %vm2989, %v4557, 0
    %v4590 = vsel %vm2989, %v4559, 0
    %v4592 = vsel %vm2989, %v4561, 0
    %v4594 = vsel %vm2989, %v4563, 0
    %v4596 = vsel %vm2989, %v4565, 0
    %v4598 = vsel %vm2989, %v4567, 0
    %v4600 = vsel %vm2989, %v4569, 0
    %v4602 = vsel %vm2989, %v4571, 0
    %v4604 = vsel %vm2989, %v4573, 0
    %v4606 = vsel %vm2989, %v4575, 0
    %v4608 = vsel %vm2989, %v4577, 0
    %v4610 = vsel %vm2989, %v4579, 0
    %v4612 = vsel %vm2989, %v4581, 0
    %4614 = vmatpush.msra.mxu0 0.0
    %4615 = vmatpush.msra.mxu0 0.0
    %4616 = vmatpush.msra.mxu0 0.0
    %4617 = vmatpush.msra.mxu0 0.0
    %4618 = vmatpush.msra.mxu0 0.0
    %4619 = vmatpush.msra.mxu0 0.0
    %4620 = vmatpush.msra.mxu0 0.0
    %4621 = vmatpush.msra.mxu0 0.0
    %4622 = vmatpush.msra.mxu0 0.0
    %4623 = vmatpush.msra.mxu0 0.0
    %4624 = vmatpush.msra.mxu0 0.0
    %4625 = vmatpush.msra.mxu0 0.0
    %4626 = vmatpush.msra.mxu0 %v4546
    %4627 = vmatpush.msra.mxu0 %v4545
    %4628 = vmatpush.msra.mxu0 %v4544
    %4629 = vmatpush.msra.mxu0 %v4543
    %4630 = vmatmul.f32.gmra.mxu0 %v4582
    %v4631 = vpop.f32.mrf.mxu0
    %v4632 = vadd.f32 0.0, %v4631
    %4633 = vmatmul.f32.gmra.mxu0 %v4584
    %v4634 = vpop.f32.mrf.mxu0
    %v4635 = vadd.f32 0.0, %v4634
    %4636 = vmatmul.f32.gmra.mxu0 %v4586
    %v4637 = vpop.f32.mrf.mxu0
    %v4638 = vadd.f32 0.0, %v4637
    %4639 = vmatmul.f32.gmra.mxu0 %v4588
    %v4640 = vpop.f32.mrf.mxu0
    %v4641 = vadd.f32 0.0, %v4640
    %4642 = vmatmul.f32.gmra.mxu0 %v4590
    %v4643 = vpop.f32.mrf.mxu0
    %v4644 = vadd.f32 0.0, %v4643
    %4645 = vmatmul.f32.gmra.mxu0 %v4592
    %v4646 = vpop.f32.mrf.mxu0
    %v4647 = vadd.f32 0.0, %v4646
    %4648 = vmatmul.f32.gmra.mxu0 %v4594
    %v4649 = vpop.f32.mrf.mxu0
    %v4650 = vadd.f32 0.0, %v4649
    %4651 = vmatmul.f32.gmra.mxu0 %v4596
    %v4652 = vpop.f32.mrf.mxu0
    %v4653 = vadd.f32 0.0, %v4652
    %4654 = vmatmul.f32.gmra.mxu0 %v4598
    %v4655 = vpop.f32.mrf.mxu0
    %v4656 = vadd.f32 0.0, %v4655
    %4657 = vmatmul.f32.gmra.mxu0 %v4600
    %v4658 = vpop.f32.mrf.mxu0
    %v4659 = vadd.f32 0.0, %v4658
    %4660 = vmatmul.f32.gmra.mxu0 %v4602
    %v4661 = vpop.f32.mrf.mxu0
    %v4662 = vadd.f32 0.0, %v4661
    %4663 = vmatmul.f32.gmra.mxu0 %v4604
    %v4664 = vpop.f32.mrf.mxu0
    %v4665 = vadd.f32 0.0, %v4664
    %4666 = vmatmul.f32.gmra.mxu0 %v4606
    %v4667 = vpop.f32.mrf.mxu0
    %v4668 = vadd.f32 0.0, %v4667
    %4669 = vmatmul.f32.gmra.mxu0 %v4608
    %v4670 = vpop.f32.mrf.mxu0
    %v4671 = vadd.f32 0.0, %v4670
    %4672 = vmatmul.f32.gmra.mxu0 %v4610
    %v4673 = vpop.f32.mrf.mxu0
    %v4674 = vadd.f32 0.0, %v4673
    %4675 = vmatmul.f32.gmra.mxu0 %v4612
    %v4676 = vpop.f32.mrf.mxu0
    %v4677 = vadd.f32 0.0, %v4676
    %4678 = vdwg.mxu0
    %v4679 = vadd.f32 %v4526, %v4632
    %v4680 = vadd.f32 %v4527, %v4635
    %v4681 = vadd.f32 %v4528, %v4638
    %v4682 = vadd.f32 %v4529, %v4641
    %v4683 = vadd.f32 %v4530, %v4644
    %v4684 = vadd.f32 %v4531, %v4647
    %v4685 = vadd.f32 %v4532, %v4650
    %v4686 = vadd.f32 %v4533, %v4653
    %v4687 = vadd.f32 %v4534, %v4656
    %v4688 = vadd.f32 %v4535, %v4659
    %v4689 = vadd.f32 %v4536, %v4662
    %v4690 = vadd.f32 %v4537, %v4665
    %v4691 = vadd.f32 %v4538, %v4668
    %v4692 = vadd.f32 %v4539, %v4671
    %v4693 = vadd.f32 %v4540, %v4674
    %v4694 = vadd.f32 %v4541, %v4677
    %s4695 = scalar_lea.vmem %s3, 384
    %v4696 = vld [vmem:[%s4695] sm:$0xff]
    %v4697 = vld [vmem:[%s4695 + $0x8] sm:$0xff]
    %v4698 = vld [vmem:[%s4695 + $0x10] sm:$0xff]
    %v4699 = vld [vmem:[%s4695 + $0x18] sm:$0xff]
    %v4701 = vrot.slane %v2856, 3
    %v4702 = vrot.slane %v2857, 3
    %v4703 = vsel %vm3356, %v4701, %v4702
    %v4704 = vrot.slane %v2858, 3
    %v4705 = vsel %vm3356, %v4702, %v4704
    %v4706 = vrot.slane %v2859, 3
    %v4707 = vsel %vm3356, %v4704, %v4706
    %v4708 = vrot.slane %v2860, 3
    %v4709 = vsel %vm3356, %v4706, %v4708
    %v4710 = vrot.slane %v2861, 3
    %v4711 = vsel %vm3356, %v4708, %v4710
    %v4712 = vrot.slane %v2862, 3
    %v4713 = vsel %vm3356, %v4710, %v4712
    %v4714 = vrot.slane %v2863, 3
    %v4715 = vsel %vm3356, %v4712, %v4714
    %v4716 = vrot.slane %v2864, 3
    %v4717 = vsel %vm3356, %v4714, %v4716
    %v4718 = vrot.slane %v2865, 3
    %v4719 = vsel %vm3356, %v4716, %v4718
    %v4720 = vrot.slane %v2866, 3
    %v4721 = vsel %vm3356, %v4718, %v4720
    %v4722 = vrot.slane %v2867, 3
    %v4723 = vsel %vm3356, %v4720, %v4722
    %v4724 = vrot.slane %v2868, 3
    %v4725 = vsel %vm3356, %v4722, %v4724
    %v4726 = vrot.slane %v2869, 3
    %v4727 = vsel %vm3356, %v4724, %v4726
    %v4728 = vrot.slane %v2870, 3
    %v4729 = vsel %vm3356, %v4726, %v4728
    %v4730 = vrot.slane %v2871, 3
    %v4731 = vsel %vm3356, %v4728, %v4730
    %v4732 = vrot.slane %v2872, 3
    %v4733 = vsel %vm3356, %v4730, %v4732
    %v4734 = vsel %vm2989, %v4703, 0
    %v4736 = vsel %vm2989, %v4705, 0
    %v4738 = vsel %vm2989, %v4707, 0
    %v4740 = vsel %vm2989, %v4709, 0
    %v4742 = vsel %vm2989, %v4711, 0
    %v4744 = vsel %vm2989, %v4713, 0
    %v4746 = vsel %vm2989, %v4715, 0
    %v4748 = vsel %vm2989, %v4717, 0
    %v4750 = vsel %vm2989, %v4719, 0
    %v4752 = vsel %vm2989, %v4721, 0
    %v4754 = vsel %vm2989, %v4723, 0
    %v4756 = vsel %vm2989, %v4725, 0
    %v4758 = vsel %vm2989, %v4727, 0
    %v4760 = vsel %vm2989, %v4729, 0
    %v4762 = vsel %vm2989, %v4731, 0
    %v4764 = vsel %vm2989, %v4733, 0
    %4766 = vmatpush.msra.mxu0 0.0
    %4767 = vmatpush.msra.mxu0 0.0
    %4768 = vmatpush.msra.mxu0 0.0
    %4769 = vmatpush.msra.mxu0 0.0
    %4770 = vmatpush.msra.mxu0 0.0
    %4771 = vmatpush.msra.mxu0 0.0
    %4772 = vmatpush.msra.mxu0 0.0
    %4773 = vmatpush.msra.mxu0 0.0
    %4774 = vmatpush.msra.mxu0 0.0
    %4775 = vmatpush.msra.mxu0 0.0
    %4776 = vmatpush.msra.mxu0 0.0
    %4777 = vmatpush.msra.mxu0 0.0
    %4778 = vmatpush.msra.mxu0 %v4699
    %4779 = vmatpush.msra.mxu0 %v4698
    %4780 = vmatpush.msra.mxu0 %v4697
    %4781 = vmatpush.msra.mxu0 %v4696
    %4782 = vmatmul.f32.gmra.mxu0 %v4734
    %v4783 = vpop.f32.mrf.mxu0
    %v4784 = vadd.f32 0.0, %v4783
    %4785 = vmatmul.f32.gmra.mxu0 %v4736
    %v4786 = vpop.f32.mrf.mxu0
    %v4787 = vadd.f32 0.0, %v4786
    %4788 = vmatmul.f32.gmra.mxu0 %v4738
    %v4789 = vpop.f32.mrf.mxu0
    %v4790 = vadd.f32 0.0, %v4789
    %4791 = vmatmul.f32.gmra.mxu0 %v4740
    %v4792 = vpop.f32.mrf.mxu0
    %v4793 = vadd.f32 0.0, %v4792
    %4794 = vmatmul.f32.gmra.mxu0 %v4742
    %v4795 = vpop.f32.mrf.mxu0
    %v4796 = vadd.f32 0.0, %v4795
    %4797 = vmatmul.f32.gmra.mxu0 %v4744
    %v4798 = vpop.f32.mrf.mxu0
    %v4799 = vadd.f32 0.0, %v4798
    %4800 = vmatmul.f32.gmra.mxu0 %v4746
    %v4801 = vpop.f32.mrf.mxu0
    %v4802 = vadd.f32 0.0, %v4801
    %4803 = vmatmul.f32.gmra.mxu0 %v4748
    %v4804 = vpop.f32.mrf.mxu0
    %v4805 = vadd.f32 0.0, %v4804
    %4806 = vmatmul.f32.gmra.mxu0 %v4750
    %v4807 = vpop.f32.mrf.mxu0
    %v4808 = vadd.f32 0.0, %v4807
    %4809 = vmatmul.f32.gmra.mxu0 %v4752
    %v4810 = vpop.f32.mrf.mxu0
    %v4811 = vadd.f32 0.0, %v4810
    %4812 = vmatmul.f32.gmra.mxu0 %v4754
    %v4813 = vpop.f32.mrf.mxu0
    %v4814 = vadd.f32 0.0, %v4813
    %4815 = vmatmul.f32.gmra.mxu0 %v4756
    %v4816 = vpop.f32.mrf.mxu0
    %v4817 = vadd.f32 0.0, %v4816
    %4818 = vmatmul.f32.gmra.mxu0 %v4758
    %v4819 = vpop.f32.mrf.mxu0
    %v4820 = vadd.f32 0.0, %v4819
    %4821 = vmatmul.f32.gmra.mxu0 %v4760
    %v4822 = vpop.f32.mrf.mxu0
    %v4823 = vadd.f32 0.0, %v4822
    %4824 = vmatmul.f32.gmra.mxu0 %v4762
    %v4825 = vpop.f32.mrf.mxu0
    %v4826 = vadd.f32 0.0, %v4825
    %4827 = vmatmul.f32.gmra.mxu0 %v4764
    %v4828 = vpop.f32.mrf.mxu0
    %v4829 = vadd.f32 0.0, %v4828
    %4830 = vdwg.mxu0
    %v4831 = vadd.f32 %v4679, %v4784
    %v4832 = vadd.f32 %v4680, %v4787
    %v4833 = vadd.f32 %v4681, %v4790
    %v4834 = vadd.f32 %v4682, %v4793
    %v4835 = vadd.f32 %v4683, %v4796
    %v4836 = vadd.f32 %v4684, %v4799
    %v4837 = vadd.f32 %v4685, %v4802
    %v4838 = vadd.f32 %v4686, %v4805
    %v4839 = vadd.f32 %v4687, %v4808
    %v4840 = vadd.f32 %v4688, %v4811
    %v4841 = vadd.f32 %v4689, %v4814
    %v4842 = vadd.f32 %v4690, %v4817
    %v4843 = vadd.f32 %v4691, %v4820
    %v4844 = vadd.f32 %v4692, %v4823
    %v4845 = vadd.f32 %v4693, %v4826
    %v4846 = vadd.f32 %v4694, %v4829
    %s4847 = scalar_lea.vmem %s3, 416
    %v4848 = vld [vmem:[%s4847] sm:$0xff]
    %v4849 = vld [vmem:[%s4847 + $0x8] sm:$0xff]
    %v4850 = vld [vmem:[%s4847 + $0x10] sm:$0xff]
    %v4851 = vld [vmem:[%s4847 + $0x18] sm:$0xff]
    %v4852 = vrot.slane %v2876, 5
    %v4853 = vrot.slane %v2877, 5
    %v4854 = vsel %vm3994, %v4852, %v4853
    %v4855 = vrot.slane %v2878, 5
    %v4856 = vsel %vm3994, %v4853, %v4855
    %v4857 = vrot.slane %v2879, 5
    %v4858 = vsel %vm3994, %v4855, %v4857
    %v4859 = vrot.slane %v2880, 5
    %v4860 = vsel %vm3994, %v4857, %v4859
    %v4861 = vrot.slane %v2881, 5
    %v4862 = vsel %vm3994, %v4859, %v4861
    %v4863 = vrot.slane %v2882, 5
    %v4864 = vsel %vm3994, %v4861, %v4863
    %v4865 = vrot.slane %v2883, 5
    %v4866 = vsel %vm3994, %v4863, %v4865
    %v4867 = vrot.slane %v2884, 5
    %v4868 = vsel %vm3994, %v4865, %v4867
    %v4869 = vrot.slane %v2885, 5
    %v4870 = vsel %vm3994, %v4867, %v4869
    %v4871 = vrot.slane %v2886, 5
    %v4872 = vsel %vm3994, %v4869, %v4871
    %v4873 = vrot.slane %v2887, 5
    %v4874 = vsel %vm3994, %v4871, %v4873
    %v4875 = vrot.slane %v2888, 5
    %v4876 = vsel %vm3994, %v4873, %v4875
    %v4877 = vrot.slane %v2889, 5
    %v4878 = vsel %vm3994, %v4875, %v4877
    %v4879 = vrot.slane %v2890, 5
    %v4880 = vsel %vm3994, %v4877, %v4879
    %v4881 = vrot.slane %v2891, 5
    %v4882 = vsel %vm3994, %v4879, %v4881
    %v4883 = vrot.slane %v2892, 5
    %v4884 = vsel %vm3994, %v4881, %v4883
    %v4885 = vsel %vm2989, %v4854, 0
    %v4887 = vsel %vm2989, %v4856, 0
    %v4889 = vsel %vm2989, %v4858, 0
    %v4891 = vsel %vm2989, %v4860, 0
    %v4893 = vsel %vm2989, %v4862, 0
    %v4895 = vsel %vm2989, %v4864, 0
    %v4897 = vsel %vm2989, %v4866, 0
    %v4899 = vsel %vm2989, %v4868, 0
    %v4901 = vsel %vm2989, %v4870, 0
    %v4903 = vsel %vm2989, %v4872, 0
    %v4905 = vsel %vm2989, %v4874, 0
    %v4907 = vsel %vm2989, %v4876, 0
    %v4909 = vsel %vm2989, %v4878, 0
    %v4911 = vsel %vm2989, %v4880, 0
    %v4913 = vsel %vm2989, %v4882, 0
    %v4915 = vsel %vm2989, %v4884, 0
    %4917 = vmatpush.msra.mxu0 0.0
    %4918 = vmatpush.msra.mxu0 0.0
    %4919 = vmatpush.msra.mxu0 0.0
    %4920 = vmatpush.msra.mxu0 0.0
    %4921 = vmatpush.msra.mxu0 0.0
    %4922 = vmatpush.msra.mxu0 0.0
    %4923 = vmatpush.msra.mxu0 0.0
    %4924 = vmatpush.msra.mxu0 0.0
    %4925 = vmatpush.msra.mxu0 0.0
    %4926 = vmatpush.msra.mxu0 0.0
    %4927 = vmatpush.msra.mxu0 0.0
    %4928 = vmatpush.msra.mxu0 0.0
    %4929 = vmatpush.msra.mxu0 %v4851
    %4930 = vmatpush.msra.mxu0 %v4850
    %4931 = vmatpush.msra.mxu0 %v4849
    %4932 = vmatpush.msra.mxu0 %v4848
    %4933 = vmatmul.f32.gmra.mxu0 %v4885
    %v4934 = vpop.f32.mrf.mxu0
    %v4935 = vadd.f32 0.0, %v4934
    %4936 = vmatmul.f32.gmra.mxu0 %v4887
    %v4937 = vpop.f32.mrf.mxu0
    %v4938 = vadd.f32 0.0, %v4937
    %4939 = vmatmul.f32.gmra.mxu0 %v4889
    %v4940 = vpop.f32.mrf.mxu0
    %v4941 = vadd.f32 0.0, %v4940
    %4942 = vmatmul.f32.gmra.mxu0 %v4891
    %v4943 = vpop.f32.mrf.mxu0
    %v4944 = vadd.f32 0.0, %v4943
    %4945 = vmatmul.f32.gmra.mxu0 %v4893
    %v4946 = vpop.f32.mrf.mxu0
    %v4947 = vadd.f32 0.0, %v4946
    %4948 = vmatmul.f32.gmra.mxu0 %v4895
    %v4949 = vpop.f32.mrf.mxu0
    %v4950 = vadd.f32 0.0, %v4949
    %4951 = vmatmul.f32.gmra.mxu0 %v4897
    %v4952 = vpop.f32.mrf.mxu0
    %v4953 = vadd.f32 0.0, %v4952
    %4954 = vmatmul.f32.gmra.mxu0 %v4899
    %v4955 = vpop.f32.mrf.mxu0
    %v4956 = vadd.f32 0.0, %v4955
    %4957 = vmatmul.f32.gmra.mxu0 %v4901
    %v4958 = vpop.f32.mrf.mxu0
    %v4959 = vadd.f32 0.0, %v4958
    %4960 = vmatmul.f32.gmra.mxu0 %v4903
    %v4961 = vpop.f32.mrf.mxu0
    %v4962 = vadd.f32 0.0, %v4961
    %4963 = vmatmul.f32.gmra.mxu0 %v4905
    %v4964 = vpop.f32.mrf.mxu0
    %v4965 = vadd.f32 0.0, %v4964
    %4966 = vmatmul.f32.gmra.mxu0 %v4907
    %v4967 = vpop.f32.mrf.mxu0
    %v4968 = vadd.f32 0.0, %v4967
    %4969 = vmatmul.f32.gmra.mxu0 %v4909
    %v4970 = vpop.f32.mrf.mxu0
    %v4971 = vadd.f32 0.0, %v4970
    %4972 = vmatmul.f32.gmra.mxu0 %v4911
    %v4973 = vpop.f32.mrf.mxu0
    %v4974 = vadd.f32 0.0, %v4973
    %4975 = vmatmul.f32.gmra.mxu0 %v4913
    %v4976 = vpop.f32.mrf.mxu0
    %v4977 = vadd.f32 0.0, %v4976
    %4978 = vmatmul.f32.gmra.mxu0 %v4915
    %v4979 = vpop.f32.mrf.mxu0
    %v4980 = vadd.f32 0.0, %v4979
    %4981 = vdwg.mxu0
    %v4982 = vadd.f32 %v4831, %v4935
    %v4983 = vadd.f32 %v4832, %v4938
    %v4984 = vadd.f32 %v4833, %v4941
    %v4985 = vadd.f32 %v4834, %v4944
    %v4986 = vadd.f32 %v4835, %v4947
    %v4987 = vadd.f32 %v4836, %v4950
    %v4988 = vadd.f32 %v4837, %v4953
    %v4989 = vadd.f32 %v4838, %v4956
    %v4990 = vadd.f32 %v4839, %v4959
    %v4991 = vadd.f32 %v4840, %v4962
    %v4992 = vadd.f32 %v4841, %v4965
    %v4993 = vadd.f32 %v4842, %v4968
    %v4994 = vadd.f32 %v4843, %v4971
    %v4995 = vadd.f32 %v4844, %v4974
    %v4996 = vadd.f32 %v4845, %v4977
    %v4997 = vadd.f32 %v4846, %v4980
    %s4998 = scalar_lea.vmem %s3, 448
    %v4999 = vld [vmem:[%s4998] sm:$0xff]
    %v5000 = vld [vmem:[%s4998 + $0x8] sm:$0xff]
    %v5001 = vld [vmem:[%s4998 + $0x10] sm:$0xff]
    %v5002 = vld [vmem:[%s4998 + $0x18] sm:$0xff]
    %v5003 = vrot.slane %v2856, 4
    %v5004 = vrot.slane %v2857, 4
    %v5005 = vsel %vm1800, %v5003, %v5004
    %v5006 = vrot.slane %v2858, 4
    %v5007 = vsel %vm1800, %v5004, %v5006
    %v5008 = vrot.slane %v2859, 4
    %v5009 = vsel %vm1800, %v5006, %v5008
    %v5010 = vrot.slane %v2860, 4
    %v5011 = vsel %vm1800, %v5008, %v5010
    %v5012 = vrot.slane %v2861, 4
    %v5013 = vsel %vm1800, %v5010, %v5012
    %v5014 = vrot.slane %v2862, 4
    %v5015 = vsel %vm1800, %v5012, %v5014
    %v5016 = vrot.slane %v2863, 4
    %v5017 = vsel %vm1800, %v5014, %v5016
    %v5018 = vrot.slane %v2864, 4
    %v5019 = vsel %vm1800, %v5016, %v5018
    %v5020 = vrot.slane %v2865, 4
    %v5021 = vsel %vm1800, %v5018, %v5020
    %v5022 = vrot.slane %v2866, 4
    %v5023 = vsel %vm1800, %v5020, %v5022
    %v5024 = vrot.slane %v2867, 4
    %v5025 = vsel %vm1800, %v5022, %v5024
    %v5026 = vrot.slane %v2868, 4
    %v5027 = vsel %vm1800, %v5024, %v5026
    %v5028 = vrot.slane %v2869, 4
    %v5029 = vsel %vm1800, %v5026, %v5028
    %v5030 = vrot.slane %v2870, 4
    %v5031 = vsel %vm1800, %v5028, %v5030
    %v5032 = vrot.slane %v2871, 4
    %v5033 = vsel %vm1800, %v5030, %v5032
    %v5034 = vrot.slane %v2872, 4
    %v5035 = vsel %vm1800, %v5032, %v5034
    %v5036 = vsel %vm2989, %v5005, 0
    %v5038 = vsel %vm2989, %v5007, 0
    %v5040 = vsel %vm2989, %v5009, 0
    %v5042 = vsel %vm2989, %v5011, 0
    %v5044 = vsel %vm2989, %v5013, 0
    %v5046 = vsel %vm2989, %v5015, 0
    %v5048 = vsel %vm2989, %v5017, 0
    %v5050 = vsel %vm2989, %v5019, 0
    %v5052 = vsel %vm2989, %v5021, 0
    %v5054 = vsel %vm2989, %v5023, 0
    %v5056 = vsel %vm2989, %v5025, 0
    %v5058 = vsel %vm2989, %v5027, 0
    %v5060 = vsel %vm2989, %v5029, 0
    %v5062 = vsel %vm2989, %v5031, 0
    %v5064 = vsel %vm2989, %v5033, 0
    %v5066 = vsel %vm2989, %v5035, 0
    %5068 = vmatpush.msra.mxu0 0.0
    %5069 = vmatpush.msra.mxu0 0.0
    %5070 = vmatpush.msra.mxu0 0.0
    %5071 = vmatpush.msra.mxu0 0.0
    %5072 = vmatpush.msra.mxu0 0.0
    %5073 = vmatpush.msra.mxu0 0.0
    %5074 = vmatpush.msra.mxu0 0.0
    %5075 = vmatpush.msra.mxu0 0.0
    %5076 = vmatpush.msra.mxu0 0.0
    %5077 = vmatpush.msra.mxu0 0.0
    %5078 = vmatpush.msra.mxu0 0.0
    %5079 = vmatpush.msra.mxu0 0.0
    %5080 = vmatpush.msra.mxu0 %v5002
    %5081 = vmatpush.msra.mxu0 %v5001
    %5082 = vmatpush.msra.mxu0 %v5000
    %5083 = vmatpush.msra.mxu0 %v4999
    %5084 = vmatmul.f32.gmra.mxu0 %v5036
    %v5085 = vpop.f32.mrf.mxu0
    %v5086 = vadd.f32 0.0, %v5085
    %5087 = vmatmul.f32.gmra.mxu0 %v5038
    %v5088 = vpop.f32.mrf.mxu0
    %v5089 = vadd.f32 0.0, %v5088
    %5090 = vmatmul.f32.gmra.mxu0 %v5040
    %v5091 = vpop.f32.mrf.mxu0
    %v5092 = vadd.f32 0.0, %v5091
    %5093 = vmatmul.f32.gmra.mxu0 %v5042
    %v5094 = vpop.f32.mrf.mxu0
    %v5095 = vadd.f32 0.0, %v5094
    %5096 = vmatmul.f32.gmra.mxu0 %v5044
    %v5097 = vpop.f32.mrf.mxu0
    %v5098 = vadd.f32 0.0, %v5097
    %5099 = vmatmul.f32.gmra.mxu0 %v5046
    %v5100 = vpop.f32.mrf.mxu0
    %v5101 = vadd.f32 0.0, %v5100
    %5102 = vmatmul.f32.gmra.mxu0 %v5048
    %v5103 = vpop.f32.mrf.mxu0
    %v5104 = vadd.f32 0.0, %v5103
    %5105 = vmatmul.f32.gmra.mxu0 %v5050
    %v5106 = vpop.f32.mrf.mxu0
    %v5107 = vadd.f32 0.0, %v5106
    %5108 = vmatmul.f32.gmra.mxu0 %v5052
    %v5109 = vpop.f32.mrf.mxu0
    %v5110 = vadd.f32 0.0, %v5109
    %5111 = vmatmul.f32.gmra.mxu0 %v5054
    %v5112 = vpop.f32.mrf.mxu0
    %v5113 = vadd.f32 0.0, %v5112
    %5114 = vmatmul.f32.gmra.mxu0 %v5056
    %v5115 = vpop.f32.mrf.mxu0
    %v5116 = vadd.f32 0.0, %v5115
    %5117 = vmatmul.f32.gmra.mxu0 %v5058
    %v5118 = vpop.f32.mrf.mxu0
    %v5119 = vadd.f32 0.0, %v5118
    %5120 = vmatmul.f32.gmra.mxu0 %v5060
    %v5121 = vpop.f32.mrf.mxu0
    %v5122 = vadd.f32 0.0, %v5121
    %5123 = vmatmul.f32.gmra.mxu0 %v5062
    %v5124 = vpop.f32.mrf.mxu0
    %v5125 = vadd.f32 0.0, %v5124
    %5126 = vmatmul.f32.gmra.mxu0 %v5064
    %v5127 = vpop.f32.mrf.mxu0
    %v5128 = vadd.f32 0.0, %v5127
    %5129 = vmatmul.f32.gmra.mxu0 %v5066
    %v5130 = vpop.f32.mrf.mxu0
    %v5131 = vadd.f32 0.0, %v5130
    %5132 = vdwg.mxu0
    %v5133 = vadd.f32 %v4982, %v5086
    %v5134 = vadd.f32 %v4983, %v5089
    %v5135 = vadd.f32 %v4984, %v5092
    %v5136 = vadd.f32 %v4985, %v5095
    %v5137 = vadd.f32 %v4986, %v5098
    %v5138 = vadd.f32 %v4987, %v5101
    %v5139 = vadd.f32 %v4988, %v5104
    %v5140 = vadd.f32 %v4989, %v5107
    %v5141 = vadd.f32 %v4990, %v5110
    %v5142 = vadd.f32 %v4991, %v5113
    %v5143 = vadd.f32 %v4992, %v5116
    %v5144 = vadd.f32 %v4993, %v5119
    %v5145 = vadd.f32 %v4994, %v5122
    %v5146 = vadd.f32 %v4995, %v5125
    %v5147 = vadd.f32 %v4996, %v5128
    %v5148 = vadd.f32 %v4997, %v5131
    %s5149 = scalar_lea.vmem %s3, 480
    %v5150 = vld [vmem:[%s5149] sm:$0xff]
    %v5151 = vld [vmem:[%s5149 + $0x8] sm:$0xff]
    %v5152 = vld [vmem:[%s5149 + $0x10] sm:$0xff]
    %v5153 = vld [vmem:[%s5149 + $0x18] sm:$0xff]
    %v5156 = vrot.slane %v2911, 6
    %v5157 = vsel %vm3842, %v4329, %v5156
    %v5158 = vrot.slane %v2912, 6
    %v5159 = vsel %vm3842, %v5156, %v5158
    %v5160 = vsel %vm2989, %v5157, 0
    %v5162 = vsel %vm2989, %v5159, 0
    %5164 = vmatpush.msra.mxu0 0.0
    %5165 = vmatpush.msra.mxu0 0.0
    %5166 = vmatpush.msra.mxu0 0.0
    %5167 = vmatpush.msra.mxu0 0.0
    %5168 = vmatpush.msra.mxu0 0.0
    %5169 = vmatpush.msra.mxu0 0.0
    %5170 = vmatpush.msra.mxu0 0.0
    %5171 = vmatpush.msra.mxu0 0.0
    %5172 = vmatpush.msra.mxu0 0.0
    %5173 = vmatpush.msra.mxu0 0.0
    %5174 = vmatpush.msra.mxu0 0.0
    %5175 = vmatpush.msra.mxu0 0.0
    %5176 = vmatpush.msra.mxu0 %v5153
    %5177 = vmatpush.msra.mxu0 %v5152
    %5178 = vmatpush.msra.mxu0 %v5151
    %5179 = vmatpush.msra.mxu0 %v5150
    %5180 = vmatmul.f32.gmra.mxu0 %v4335
    %v5181 = vpop.f32.mrf.mxu0
    %v5182 = vadd.f32 0.0, %v5181
    %5183 = vmatmul.f32.gmra.mxu0 %v4337
    %v5184 = vpop.f32.mrf.mxu0
    %v5185 = vadd.f32 0.0, %v5184
    %5186 = vmatmul.f32.gmra.mxu0 %v4339
    %v5187 = vpop.f32.mrf.mxu0
    %v5188 = vadd.f32 0.0, %v5187
    %5189 = vmatmul.f32.gmra.mxu0 %v4341
    %v5190 = vpop.f32.mrf.mxu0
    %v5191 = vadd.f32 0.0, %v5190
    %5192 = vmatmul.f32.gmra.mxu0 %v4343
    %v5193 = vpop.f32.mrf.mxu0
    %v5194 = vadd.f32 0.0, %v5193
    %5195 = vmatmul.f32.gmra.mxu0 %v4345
    %v5196 = vpop.f32.mrf.mxu0
    %v5197 = vadd.f32 0.0, %v5196
    %5198 = vmatmul.f32.gmra.mxu0 %v4347
    %v5199 = vpop.f32.mrf.mxu0
    %v5200 = vadd.f32 0.0, %v5199
    %5201 = vmatmul.f32.gmra.mxu0 %v4349
    %v5202 = vpop.f32.mrf.mxu0
    %v5203 = vadd.f32 0.0, %v5202
    %5204 = vmatmul.f32.gmra.mxu0 %v4351
    %v5205 = vpop.f32.mrf.mxu0
    %v5206 = vadd.f32 0.0, %v5205
    %5207 = vmatmul.f32.gmra.mxu0 %v4353
    %v5208 = vpop.f32.mrf.mxu0
    %v5209 = vadd.f32 0.0, %v5208
    %5210 = vmatmul.f32.gmra.mxu0 %v4355
    %v5211 = vpop.f32.mrf.mxu0
    %v5212 = vadd.f32 0.0, %v5211
    %5213 = vmatmul.f32.gmra.mxu0 %v4357
    %v5214 = vpop.f32.mrf.mxu0
    %v5215 = vadd.f32 0.0, %v5214
    %5216 = vmatmul.f32.gmra.mxu0 %v4359
    %v5217 = vpop.f32.mrf.mxu0
    %v5218 = vadd.f32 0.0, %v5217
    %5219 = vmatmul.f32.gmra.mxu0 %v4361
    %v5220 = vpop.f32.mrf.mxu0
    %v5221 = vadd.f32 0.0, %v5220
    %5222 = vmatmul.f32.gmra.mxu0 %v5160
    %v5223 = vpop.f32.mrf.mxu0
    %v5224 = vadd.f32 0.0, %v5223
    %5225 = vmatmul.f32.gmra.mxu0 %v5162
    %v5226 = vpop.f32.mrf.mxu0
    %v5227 = vadd.f32 0.0, %v5226
    %5228 = vdwg.mxu0
    %v5229 = vadd.f32 %v5133, %v5182
    %v5230 = vadd.f32 %v5134, %v5185
    %v5231 = vadd.f32 %v5135, %v5188
    %v5232 = vadd.f32 %v5136, %v5191
    %v5233 = vadd.f32 %v5137, %v5194
    %v5234 = vadd.f32 %v5138, %v5197
    %v5235 = vadd.f32 %v5139, %v5200
    %v5236 = vadd.f32 %v5140, %v5203
    %v5237 = vadd.f32 %v5141, %v5206
    %v5238 = vadd.f32 %v5142, %v5209
    %v5239 = vadd.f32 %v5143, %v5212
    %v5240 = vadd.f32 %v5144, %v5215
    %v5241 = vadd.f32 %v5145, %v5218
    %v5242 = vadd.f32 %v5146, %v5221
    %v5243 = vadd.f32 %v5147, %v5224
    %v5244 = vadd.f32 %v5148, %v5227
    %s5245 = scalar_lea.vmem %s3, 512
    %v5246 = vld [vmem:[%s5245] sm:$0xff]
    %v5247 = vld [vmem:[%s5245 + $0x8] sm:$0xff]
    %v5248 = vld [vmem:[%s5245 + $0x10] sm:$0xff]
    %v5249 = vld [vmem:[%s5245 + $0x18] sm:$0xff]
    %v5250 = vsel %vm2989, %v2916, 0
    %v5252 = vsel %vm2989, %v2917, 0
    %v5254 = vsel %vm2989, %v2918, 0
    %v5256 = vsel %vm2989, %v2919, 0
    %v5258 = vsel %vm2989, %v2920, 0
    %v5260 = vsel %vm2989, %v2921, 0
    %v5262 = vsel %vm2989, %v2922, 0
    %v5264 = vsel %vm2989, %v2923, 0
    %v5266 = vsel %vm2989, %v2924, 0
    %v5268 = vsel %vm2989, %v2925, 0
    %v5270 = vsel %vm2989, %v2926, 0
    %v5272 = vsel %vm2989, %v2927, 0
    %v5274 = vsel %vm2989, %v2928, 0
    %v5276 = vsel %vm2989, %v2929, 0
    %v5279 = vsel %vm2989, %v2930, 0
    %v5282 = vsel %vm2989, %v2931, 0
    %5284 = vmatpush.msra.mxu0 0.0
    %5285 = vmatpush.msra.mxu0 0.0
    %5286 = vmatpush.msra.mxu0 0.0
    %5287 = vmatpush.msra.mxu0 0.0
    %5288 = vmatpush.msra.mxu0 0.0
    %5289 = vmatpush.msra.mxu0 0.0
    %5290 = vmatpush.msra.mxu0 0.0
    %5291 = vmatpush.msra.mxu0 0.0
    %5292 = vmatpush.msra.mxu0 0.0
    %5293 = vmatpush.msra.mxu0 0.0
    %5294 = vmatpush.msra.mxu0 0.0
    %5295 = vmatpush.msra.mxu0 0.0
    %5296 = vmatpush.msra.mxu0 %v5249
    %5297 = vmatpush.msra.mxu0 %v5248
    %5298 = vmatpush.msra.mxu0 %v5247
    %5299 = vmatpush.msra.mxu0 %v5246
    %5300 = vmatmul.f32.gmra.mxu0 %v5250
    %v5301 = vpop.f32.mrf.mxu0
    %v5302 = vadd.f32 0.0, %v5301
    %5303 = vmatmul.f32.gmra.mxu0 %v5252
    %v5304 = vpop.f32.mrf.mxu0
    %v5305 = vadd.f32 0.0, %v5304
    %5306 = vmatmul.f32.gmra.mxu0 %v5254
    %v5307 = vpop.f32.mrf.mxu0
    %v5308 = vadd.f32 0.0, %v5307
    %5309 = vmatmul.f32.gmra.mxu0 %v5256
    %v5310 = vpop.f32.mrf.mxu0
    %v5311 = vadd.f32 0.0, %v5310
    %5312 = vmatmul.f32.gmra.mxu0 %v5258
    %v5313 = vpop.f32.mrf.mxu0
    %v5314 = vadd.f32 0.0, %v5313
    %5315 = vmatmul.f32.gmra.mxu0 %v5260
    %v5316 = vpop.f32.mrf.mxu0
    %v5317 = vadd.f32 0.0, %v5316
    %5318 = vmatmul.f32.gmra.mxu0 %v5262
    %v5319 = vpop.f32.mrf.mxu0
    %v5320 = vadd.f32 0.0, %v5319
    %5321 = vmatmul.f32.gmra.mxu0 %v5264
    %v5322 = vpop.f32.mrf.mxu0
    %v5323 = vadd.f32 0.0, %v5322
    %5324 = vmatmul.f32.gmra.mxu0 %v5266
    %v5325 = vpop.f32.mrf.mxu0
    %v5326 = vadd.f32 0.0, %v5325
    %5327 = vmatmul.f32.gmra.mxu0 %v5268
    %v5328 = vpop.f32.mrf.mxu0
    %v5329 = vadd.f32 0.0, %v5328
    %5330 = vmatmul.f32.gmra.mxu0 %v5270
    %v5331 = vpop.f32.mrf.mxu0
    %v5332 = vadd.f32 0.0, %v5331
    %5333 = vmatmul.f32.gmra.mxu0 %v5272
    %v5334 = vpop.f32.mrf.mxu0
    %v5335 = vadd.f32 0.0, %v5334
    %5336 = vmatmul.f32.gmra.mxu0 %v5274
    %v5337 = vpop.f32.mrf.mxu0
    %v5338 = vadd.f32 0.0, %v5337
    %5339 = vmatmul.f32.gmra.mxu0 %v5276
    %v5340 = vpop.f32.mrf.mxu0
    %v5341 = vadd.f32 0.0, %v5340
    %5342 = vmatmul.f32.gmra.mxu0 %v5279
    %v5343 = vpop.f32.mrf.mxu0
    %v5344 = vadd.f32 0.0, %v5343
    %5345 = vmatmul.f32.gmra.mxu0 %v5282
    %v5346 = vpop.f32.mrf.mxu0
    %v5347 = vadd.f32 0.0, %v5346
    %5348 = vdwg.mxu0
    %v5349 = vadd.f32 %v5229, %v5302
    %v5350 = vadd.f32 %v5230, %v5305
    %v5351 = vadd.f32 %v5231, %v5308
    %v5352 = vadd.f32 %v5232, %v5311
    %v5353 = vadd.f32 %v5233, %v5314
    %v5354 = vadd.f32 %v5234, %v5317
    %v5355 = vadd.f32 %v5235, %v5320
    %v5356 = vadd.f32 %v5236, %v5323
    %v5357 = vadd.f32 %v5237, %v5326
    %v5358 = vadd.f32 %v5238, %v5329
    %v5359 = vadd.f32 %v5239, %v5332
    %v5360 = vadd.f32 %v5240, %v5335
    %v5361 = vadd.f32 %v5241, %v5338
    %v5362 = vadd.f32 %v5242, %v5341
    %v5363 = vadd.f32 %v5243, %v5344
    %v5364 = vadd.f32 %v5244, %v5347
    %s5365 = scalar_lea.vmem %s3, 544
    %v5366 = vld [vmem:[%s5365] sm:$0xff]
    %v5367 = vld [vmem:[%s5365 + $0x8] sm:$0xff]
    %v5368 = vld [vmem:[%s5365 + $0x10] sm:$0xff]
    %v5369 = vld [vmem:[%s5365 + $0x18] sm:$0xff]
    %v5370 = vrot.slane %v2896, 7
    %v5371 = vrot.slane %v2897, 7
    %v5372 = vsel %vm4146, %v5370, %v5371
    %v5373 = vrot.slane %v2898, 7
    %v5374 = vsel %vm4146, %v5371, %v5373
    %v5375 = vrot.slane %v2899, 7
    %v5376 = vsel %vm4146, %v5373, %v5375
    %v5377 = vrot.slane %v2900, 7
    %v5378 = vsel %vm4146, %v5375, %v5377
    %v5379 = vrot.slane %v2901, 7
    %v5380 = vsel %vm4146, %v5377, %v5379
    %v5381 = vrot.slane %v2902, 7
    %v5382 = vsel %vm4146, %v5379, %v5381
    %v5383 = vrot.slane %v2903, 7
    %v5384 = vsel %vm4146, %v5381, %v5383
    %v5385 = vrot.slane %v2904, 7
    %v5386 = vsel %vm4146, %v5383, %v5385
    %v5387 = vrot.slane %v2905, 7
    %v5388 = vsel %vm4146, %v5385, %v5387
    %v5389 = vrot.slane %v2906, 7
    %v5390 = vsel %vm4146, %v5387, %v5389
    %v5391 = vrot.slane %v2907, 7
    %v5392 = vsel %vm4146, %v5389, %v5391
    %v5393 = vrot.slane %v2908, 7
    %v5394 = vsel %vm4146, %v5391, %v5393
    %v5395 = vrot.slane %v2909, 7
    %v5396 = vsel %vm4146, %v5393, %v5395
    %v5397 = vrot.slane %v2910, 7
    %v5398 = vsel %vm4146, %v5395, %v5397
    %v5399 = vrot.slane %v2911, 7
    %v5400 = vsel %vm4146, %v5397, %v5399
    %v5401 = vrot.slane %v2912, 7
    %v5402 = vsel %vm4146, %v5399, %v5401
    %v5403 = vsel %vm2989, %v5372, 0
    %v5405 = vsel %vm2989, %v5374, 0
    %v5407 = vsel %vm2989, %v5376, 0
    %v5409 = vsel %vm2989, %v5378, 0
    %v5411 = vsel %vm2989, %v5380, 0
    %v5413 = vsel %vm2989, %v5382, 0
    %v5415 = vsel %vm2989, %v5384, 0
    %v5417 = vsel %vm2989, %v5386, 0
    %v5419 = vsel %vm2989, %v5388, 0
    %v5421 = vsel %vm2989, %v5390, 0
    %v5423 = vsel %vm2989, %v5392, 0
    %v5425 = vsel %vm2989, %v5394, 0
    %v5427 = vsel %vm2989, %v5396, 0
    %v5429 = vsel %vm2989, %v5398, 0
    %v5431 = vsel %vm2989, %v5400, 0
    %v5433 = vsel %vm2989, %v5402, 0
    %5435 = vmatpush.msra.mxu0 0.0
    %5436 = vmatpush.msra.mxu0 0.0
    %5437 = vmatpush.msra.mxu0 0.0
    %5438 = vmatpush.msra.mxu0 0.0
    %5439 = vmatpush.msra.mxu0 0.0
    %5440 = vmatpush.msra.mxu0 0.0
    %5441 = vmatpush.msra.mxu0 0.0
    %5442 = vmatpush.msra.mxu0 0.0
    %5443 = vmatpush.msra.mxu0 0.0
    %5444 = vmatpush.msra.mxu0 0.0
    %5445 = vmatpush.msra.mxu0 0.0
    %5446 = vmatpush.msra.mxu0 0.0
    %5447 = vmatpush.msra.mxu0 %v5369
    %5448 = vmatpush.msra.mxu0 %v5368
    %5449 = vmatpush.msra.mxu0 %v5367
    %5450 = vmatpush.msra.mxu0 %v5366
    %5451 = vmatmul.f32.gmra.mxu0 %v5403
    %v5452 = vpop.f32.mrf.mxu0
    %v5453 = vadd.f32 0.0, %v5452
    %5454 = vmatmul.f32.gmra.mxu0 %v5405
    %v5455 = vpop.f32.mrf.mxu0
    %v5456 = vadd.f32 0.0, %v5455
    %5457 = vmatmul.f32.gmra.mxu0 %v5407
    %v5458 = vpop.f32.mrf.mxu0
    %v5459 = vadd.f32 0.0, %v5458
    %5460 = vmatmul.f32.gmra.mxu0 %v5409
    %v5461 = vpop.f32.mrf.mxu0
    %v5462 = vadd.f32 0.0, %v5461
    %5463 = vmatmul.f32.gmra.mxu0 %v5411
    %v5464 = vpop.f32.mrf.mxu0
    %v5465 = vadd.f32 0.0, %v5464
    %5466 = vmatmul.f32.gmra.mxu0 %v5413
    %v5467 = vpop.f32.mrf.mxu0
    %v5468 = vadd.f32 0.0, %v5467
    %5469 = vmatmul.f32.gmra.mxu0 %v5415
    %v5470 = vpop.f32.mrf.mxu0
    %v5471 = vadd.f32 0.0, %v5470
    %5472 = vmatmul.f32.gmra.mxu0 %v5417
    %v5473 = vpop.f32.mrf.mxu0
    %v5474 = vadd.f32 0.0, %v5473
    %5475 = vmatmul.f32.gmra.mxu0 %v5419
    %v5476 = vpop.f32.mrf.mxu0
    %v5477 = vadd.f32 0.0, %v5476
    %5478 = vmatmul.f32.gmra.mxu0 %v5421
    %v5479 = vpop.f32.mrf.mxu0
    %v5480 = vadd.f32 0.0, %v5479
    %5481 = vmatmul.f32.gmra.mxu0 %v5423
    %v5482 = vpop.f32.mrf.mxu0
    %v5483 = vadd.f32 0.0, %v5482
    %5484 = vmatmul.f32.gmra.mxu0 %v5425
    %v5485 = vpop.f32.mrf.mxu0
    %v5486 = vadd.f32 0.0, %v5485
    %5487 = vmatmul.f32.gmra.mxu0 %v5427
    %v5488 = vpop.f32.mrf.mxu0
    %v5489 = vadd.f32 0.0, %v5488
    %5490 = vmatmul.f32.gmra.mxu0 %v5429
    %v5491 = vpop.f32.mrf.mxu0
    %v5492 = vadd.f32 0.0, %v5491
    %5493 = vmatmul.f32.gmra.mxu0 %v5431
    %v5494 = vpop.f32.mrf.mxu0
    %v5495 = vadd.f32 0.0, %v5494
    %5496 = vmatmul.f32.gmra.mxu0 %v5433
    %v5497 = vpop.f32.mrf.mxu0
    %v5498 = vadd.f32 0.0, %v5497
    %5499 = vdwg.mxu0
    %v5500 = vadd.f32 %v5349, %v5453
    %v5501 = vadd.f32 %v5350, %v5456
    %v5502 = vadd.f32 %v5351, %v5459
    %v5503 = vadd.f32 %v5352, %v5462
    %v5504 = vadd.f32 %v5353, %v5465
    %v5505 = vadd.f32 %v5354, %v5468
    %v5506 = vadd.f32 %v5355, %v5471
    %v5507 = vadd.f32 %v5356, %v5474
    %v5508 = vadd.f32 %v5357, %v5477
    %v5509 = vadd.f32 %v5358, %v5480
    %v5510 = vadd.f32 %v5359, %v5483
    %v5511 = vadd.f32 %v5360, %v5486
    %v5512 = vadd.f32 %v5361, %v5489
    %v5513 = vadd.f32 %v5362, %v5492
    %v5514 = vadd.f32 %v5363, %v5495
    %v5515 = vadd.f32 %v5364, %v5498
    %s5516 = scalar_lea.vmem %s3, 576
    %v5517 = vld [vmem:[%s5516] sm:$0xff]
    %v5518 = vld [vmem:[%s5516 + $0x8] sm:$0xff]
    %v5519 = vld [vmem:[%s5516 + $0x10] sm:$0xff]
    %v5520 = vld [vmem:[%s5516 + $0x18] sm:$0xff]
    %v5521 = vrot.slane %v2916, 1
    %v5522 = vrot.slane %v2917, 1
    %v5523 = vsel %vm3205, %v5521, %v5522
    %v5524 = vrot.slane %v2918, 1
    %v5525 = vsel %vm3205, %v5522, %v5524
    %v5526 = vrot.slane %v2919, 1
    %v5527 = vsel %vm3205, %v5524, %v5526
    %v5528 = vrot.slane %v2920, 1
    %v5529 = vsel %vm3205, %v5526, %v5528
    %v5530 = vrot.slane %v2921, 1
    %v5531 = vsel %vm3205, %v5528, %v5530
    %v5532 = vrot.slane %v2922, 1
    %v5533 = vsel %vm3205, %v5530, %v5532
    %v5534 = vrot.slane %v2923, 1
    %v5535 = vsel %vm3205, %v5532, %v5534
    %v5536 = vrot.slane %v2924, 1
    %v5537 = vsel %vm3205, %v5534, %v5536
    %v5538 = vrot.slane %v2925, 1
    %v5539 = vsel %vm3205, %v5536, %v5538
    %v5540 = vrot.slane %v2926, 1
    %v5541 = vsel %vm3205, %v5538, %v5540
    %v5542 = vrot.slane %v2927, 1
    %v5543 = vsel %vm3205, %v5540, %v5542
    %v5544 = vrot.slane %v2928, 1
    %v5545 = vsel %vm3205, %v5542, %v5544
    %v5546 = vrot.slane %v2929, 1
    %v5547 = vsel %vm3205, %v5544, %v5546
    %v5548 = vrot.slane %v2930, 1
    %v5549 = vsel %vm3205, %v5546, %v5548
    %v5550 = vrot.slane %v2931, 1
    %v5551 = vsel %vm3205, %v5548, %v5550
    %v5552 = vsel %vm2989, %v5523, 0
    %v5554 = vsel %vm2989, %v5525, 0
    %v5556 = vsel %vm2989, %v5527, 0
    %v5558 = vsel %vm2989, %v5529, 0
    %v5560 = vsel %vm2989, %v5531, 0
    %v5562 = vsel %vm2989, %v5533, 0
    %v5564 = vsel %vm2989, %v5535, 0
    %v5566 = vsel %vm2989, %v5537, 0
    %v5568 = vsel %vm2989, %v5539, 0
    %v5570 = vsel %vm2989, %v5541, 0
    %v5572 = vsel %vm2989, %v5543, 0
    %v5574 = vsel %vm2989, %v5545, 0
    %v5576 = vsel %vm2989, %v5547, 0
    %v5578 = vsel %vm2989, %v5549, 0
    %v5580 = vsel %vm2989, %v5551, 0
    %v5582 = vsel %vm2989, %v5550, 0
    %5584 = vmatpush.msra.mxu0 0.0
    %5585 = vmatpush.msra.mxu0 0.0
    %5586 = vmatpush.msra.mxu0 0.0
    %5587 = vmatpush.msra.mxu0 0.0
    %5588 = vmatpush.msra.mxu0 0.0
    %5589 = vmatpush.msra.mxu0 0.0
    %5590 = vmatpush.msra.mxu0 0.0
    %5591 = vmatpush.msra.mxu0 0.0
    %5592 = vmatpush.msra.mxu0 0.0
    %5593 = vmatpush.msra.mxu0 0.0
    %5594 = vmatpush.msra.mxu0 0.0
    %5595 = vmatpush.msra.mxu0 0.0
    %5596 = vmatpush.msra.mxu0 %v5520
    %5597 = vmatpush.msra.mxu0 %v5519
    %5598 = vmatpush.msra.mxu0 %v5518
    %5599 = vmatpush.msra.mxu0 %v5517
    %5600 = vmatmul.f32.gmra.mxu0 %v5552
    %v5601 = vpop.f32.mrf.mxu0
    %v5602 = vadd.f32 0.0, %v5601
    %5603 = vmatmul.f32.gmra.mxu0 %v5554
    %v5604 = vpop.f32.mrf.mxu0
    %v5605 = vadd.f32 0.0, %v5604
    %5606 = vmatmul.f32.gmra.mxu0 %v5556
    %v5607 = vpop.f32.mrf.mxu0
    %v5608 = vadd.f32 0.0, %v5607
    %5609 = vmatmul.f32.gmra.mxu0 %v5558
    %v5610 = vpop.f32.mrf.mxu0
    %v5611 = vadd.f32 0.0, %v5610
    %5612 = vmatmul.f32.gmra.mxu0 %v5560
    %v5613 = vpop.f32.mrf.mxu0
    %v5614 = vadd.f32 0.0, %v5613
    %5615 = vmatmul.f32.gmra.mxu0 %v5562
    %v5616 = vpop.f32.mrf.mxu0
    %v5617 = vadd.f32 0.0, %v5616
    %5618 = vmatmul.f32.gmra.mxu0 %v5564
    %v5619 = vpop.f32.mrf.mxu0
    %v5620 = vadd.f32 0.0, %v5619
    %5621 = vmatmul.f32.gmra.mxu0 %v5566
    %v5622 = vpop.f32.mrf.mxu0
    %v5623 = vadd.f32 0.0, %v5622
    %5624 = vmatmul.f32.gmra.mxu0 %v5568
    %v5625 = vpop.f32.mrf.mxu0
    %v5626 = vadd.f32 0.0, %v5625
    %5627 = vmatmul.f32.gmra.mxu0 %v5570
    %v5628 = vpop.f32.mrf.mxu0
    %v5629 = vadd.f32 0.0, %v5628
    %5630 = vmatmul.f32.gmra.mxu0 %v5572
    %v5631 = vpop.f32.mrf.mxu0
    %v5632 = vadd.f32 0.0, %v5631
    %5633 = vmatmul.f32.gmra.mxu0 %v5574
    %v5634 = vpop.f32.mrf.mxu0
    %v5635 = vadd.f32 0.0, %v5634
    %5636 = vmatmul.f32.gmra.mxu0 %v5576
    %v5637 = vpop.f32.mrf.mxu0
    %v5638 = vadd.f32 0.0, %v5637
    %5639 = vmatmul.f32.gmra.mxu0 %v5578
    %v5640 = vpop.f32.mrf.mxu0
    %v5641 = vadd.f32 0.0, %v5640
    %5642 = vmatmul.f32.gmra.mxu0 %v5580
    %v5643 = vpop.f32.mrf.mxu0
    %v5644 = vadd.f32 0.0, %v5643
    %5645 = vmatmul.f32.gmra.mxu0 %v5582
    %v5646 = vpop.f32.mrf.mxu0
    %v5647 = vadd.f32 0.0, %v5646
    %5648 = vdwg.mxu0
    %v5649 = vadd.f32 %v5500, %v5602
    %v5650 = vadd.f32 %v5501, %v5605
    %v5651 = vadd.f32 %v5502, %v5608
    %v5652 = vadd.f32 %v5503, %v5611
    %v5653 = vadd.f32 %v5504, %v5614
    %v5654 = vadd.f32 %v5505, %v5617
    %v5655 = vadd.f32 %v5506, %v5620
    %v5656 = vadd.f32 %v5507, %v5623
    %v5657 = vadd.f32 %v5508, %v5626
    %v5658 = vadd.f32 %v5509, %v5629
    %v5659 = vadd.f32 %v5510, %v5632
    %v5660 = vadd.f32 %v5511, %v5635
    %v5661 = vadd.f32 %v5512, %v5638
    %v5662 = vadd.f32 %v5513, %v5641
    %v5663 = vadd.f32 %v5514, %v5644
    %v5664 = vadd.f32 %v5515, %v5647
    %s5665 = scalar_lea.vmem %s3, 608
    %v5666 = vld [vmem:[%s5665] sm:$0xff]
    %v5667 = vld [vmem:[%s5665 + $0x8] sm:$0xff]
    %v5668 = vld [vmem:[%s5665 + $0x10] sm:$0xff]
    %v5669 = vld [vmem:[%s5665 + $0x18] sm:$0xff]
    %v5670 = vsel %vm2989, %v2897, 0
    %v5672 = vsel %vm2989, %v2898, 0
    %v5674 = vsel %vm2989, %v2899, 0
    %v5676 = vsel %vm2989, %v2900, 0
    %v5678 = vsel %vm2989, %v2901, 0
    %v5680 = vsel %vm2989, %v2902, 0
    %v5682 = vsel %vm2989, %v2903, 0
    %v5684 = vsel %vm2989, %v2904, 0
    %v5686 = vsel %vm2989, %v2905, 0
    %v5688 = vsel %vm2989, %v2906, 0
    %v5690 = vsel %vm2989, %v2907, 0
    %v5692 = vsel %vm2989, %v2908, 0
    %v5694 = vsel %vm2989, %v2909, 0
    %v5696 = vsel %vm2989, %v2910, 0
    %v5698 = vsel %vm2989, %v2911, 0
    %v5700 = vsel %vm2989, %v2912, 0
    %5702 = vmatpush.msra.mxu0 0.0
    %5703 = vmatpush.msra.mxu0 0.0
    %5704 = vmatpush.msra.mxu0 0.0
    %5705 = vmatpush.msra.mxu0 0.0
    %5706 = vmatpush.msra.mxu0 0.0
    %5707 = vmatpush.msra.mxu0 0.0
    %5708 = vmatpush.msra.mxu0 0.0
    %5709 = vmatpush.msra.mxu0 0.0
    %5710 = vmatpush.msra.mxu0 0.0
    %5711 = vmatpush.msra.mxu0 0.0
    %5712 = vmatpush.msra.mxu0 0.0
    %5713 = vmatpush.msra.mxu0 0.0
    %5714 = vmatpush.msra.mxu0 %v5669
    %5715 = vmatpush.msra.mxu0 %v5668
    %5716 = vmatpush.msra.mxu0 %v5667
    %5717 = vmatpush.msra.mxu0 %v5666
    %5718 = vmatmul.f32.gmra.mxu0 %v5670
    %v5719 = vpop.f32.mrf.mxu0
    %v5720 = vadd.f32 0.0, %v5719
    %5721 = vmatmul.f32.gmra.mxu0 %v5672
    %v5722 = vpop.f32.mrf.mxu0
    %v5723 = vadd.f32 0.0, %v5722
    %5724 = vmatmul.f32.gmra.mxu0 %v5674
    %v5725 = vpop.f32.mrf.mxu0
    %v5726 = vadd.f32 0.0, %v5725
    %5727 = vmatmul.f32.gmra.mxu0 %v5676
    %v5728 = vpop.f32.mrf.mxu0
    %v5729 = vadd.f32 0.0, %v5728
    %5730 = vmatmul.f32.gmra.mxu0 %v5678
    %v5731 = vpop.f32.mrf.mxu0
    %v5732 = vadd.f32 0.0, %v5731
    %5733 = vmatmul.f32.gmra.mxu0 %v5680
    %v5734 = vpop.f32.mrf.mxu0
    %v5735 = vadd.f32 0.0, %v5734
    %5736 = vmatmul.f32.gmra.mxu0 %v5682
    %v5737 = vpop.f32.mrf.mxu0
    %v5738 = vadd.f32 0.0, %v5737
    %5739 = vmatmul.f32.gmra.mxu0 %v5684
    %v5740 = vpop.f32.mrf.mxu0
    %v5741 = vadd.f32 0.0, %v5740
    %5742 = vmatmul.f32.gmra.mxu0 %v5686
    %v5743 = vpop.f32.mrf.mxu0
    %v5744 = vadd.f32 0.0, %v5743
    %5745 = vmatmul.f32.gmra.mxu0 %v5688
    %v5746 = vpop.f32.mrf.mxu0
    %v5747 = vadd.f32 0.0, %v5746
    %5748 = vmatmul.f32.gmra.mxu0 %v5690
    %v5749 = vpop.f32.mrf.mxu0
    %v5750 = vadd.f32 0.0, %v5749
    %5751 = vmatmul.f32.gmra.mxu0 %v5692
    %v5752 = vpop.f32.mrf.mxu0
    %v5753 = vadd.f32 0.0, %v5752
    %5754 = vmatmul.f32.gmra.mxu0 %v5694
    %v5755 = vpop.f32.mrf.mxu0
    %v5756 = vadd.f32 0.0, %v5755
    %5757 = vmatmul.f32.gmra.mxu0 %v5696
    %v5758 = vpop.f32.mrf.mxu0
    %v5759 = vadd.f32 0.0, %v5758
    %5760 = vmatmul.f32.gmra.mxu0 %v5698
    %v5761 = vpop.f32.mrf.mxu0
    %v5762 = vadd.f32 0.0, %v5761
    %5763 = vmatmul.f32.gmra.mxu0 %v5700
    %v5764 = vpop.f32.mrf.mxu0
    %v5765 = vadd.f32 0.0, %v5764
    %5766 = vdwg.mxu0
    %v5767 = vadd.f32 %v5649, %v5720
    %v5768 = vadd.f32 %v5650, %v5723
    %v5769 = vadd.f32 %v5651, %v5726
    %v5770 = vadd.f32 %v5652, %v5729
    %v5771 = vadd.f32 %v5653, %v5732
    %v5772 = vadd.f32 %v5654, %v5735
    %v5773 = vadd.f32 %v5655, %v5738
    %v5774 = vadd.f32 %v5656, %v5741
    %v5775 = vadd.f32 %v5657, %v5744
    %v5776 = vadd.f32 %v5658, %v5747
    %v5777 = vadd.f32 %v5659, %v5750
    %v5778 = vadd.f32 %v5660, %v5753
    %v5779 = vadd.f32 %v5661, %v5756
    %v5780 = vadd.f32 %v5662, %v5759
    %v5781 = vadd.f32 %v5663, %v5762
    %v5782 = vadd.f32 %v5664, %v5765
    %s5783 = scalar_lea.vmem %s3, 640
    %v5784 = vld [vmem:[%s5783] sm:$0xff]
    %v5785 = vld [vmem:[%s5783 + $0x8] sm:$0xff]
    %v5786 = vld [vmem:[%s5783 + $0x10] sm:$0xff]
    %v5787 = vld [vmem:[%s5783 + $0x18] sm:$0xff]
    %v5789 = vrot.slane %v2873, 4
    %v5790 = vsel %vm1800, %v5034, %v5789
    %v5791 = vrot.slane %v2874, 4
    %v5792 = vsel %vm1800, %v5789, %v5791
    %v5793 = vsel %vm2989, %v5790, 0
    %v5795 = vsel %vm2989, %v5792, 0
    %5797 = vmatpush.msra.mxu0 0.0
    %5798 = vmatpush.msra.mxu0 0.0
    %5799 = vmatpush.msra.mxu0 0.0
    %5800 = vmatpush.msra.mxu0 0.0
    %5801 = vmatpush.msra.mxu0 0.0
    %5802 = vmatpush.msra.mxu0 0.0
    %5803 = vmatpush.msra.mxu0 0.0
    %5804 = vmatpush.msra.mxu0 0.0
    %5805 = vmatpush.msra.mxu0 0.0
    %5806 = vmatpush.msra.mxu0 0.0
    %5807 = vmatpush.msra.mxu0 0.0
    %5808 = vmatpush.msra.mxu0 0.0
    %5809 = vmatpush.msra.mxu0 %v5787
    %5810 = vmatpush.msra.mxu0 %v5786
    %5811 = vmatpush.msra.mxu0 %v5785
    %5812 = vmatpush.msra.mxu0 %v5784
    %5813 = vmatmul.f32.gmra.mxu0 %v5040
    %v5814 = vpop.f32.mrf.mxu0
    %v5815 = vadd.f32 0.0, %v5814
    %5816 = vmatmul.f32.gmra.mxu0 %v5042
    %v5817 = vpop.f32.mrf.mxu0
    %v5818 = vadd.f32 0.0, %v5817
    %5819 = vmatmul.f32.gmra.mxu0 %v5044
    %v5820 = vpop.f32.mrf.mxu0
    %v5821 = vadd.f32 0.0, %v5820
    %5822 = vmatmul.f32.gmra.mxu0 %v5046
    %v5823 = vpop.f32.mrf.mxu0
    %v5824 = vadd.f32 0.0, %v5823
    %5825 = vmatmul.f32.gmra.mxu0 %v5048
    %v5826 = vpop.f32.mrf.mxu0
    %v5827 = vadd.f32 0.0, %v5826
    %5828 = vmatmul.f32.gmra.mxu0 %v5050
    %v5829 = vpop.f32.mrf.mxu0
    %v5830 = vadd.f32 0.0, %v5829
    %5831 = vmatmul.f32.gmra.mxu0 %v5052
    %v5832 = vpop.f32.mrf.mxu0
    %v5833 = vadd.f32 0.0, %v5832
    %5834 = vmatmul.f32.gmra.mxu0 %v5054
    %v5835 = vpop.f32.mrf.mxu0
    %v5836 = vadd.f32 0.0, %v5835
    %5837 = vmatmul.f32.gmra.mxu0 %v5056
    %v5838 = vpop.f32.mrf.mxu0
    %v5839 = vadd.f32 0.0, %v5838
    %5840 = vmatmul.f32.gmra.mxu0 %v5058
    %v5841 = vpop.f32.mrf.mxu0
    %v5842 = vadd.f32 0.0, %v5841
    %5843 = vmatmul.f32.gmra.mxu0 %v5060
    %v5844 = vpop.f32.mrf.mxu0
    %v5845 = vadd.f32 0.0, %v5844
    %5846 = vmatmul.f32.gmra.mxu0 %v5062
    %v5847 = vpop.f32.mrf.mxu0
    %v5848 = vadd.f32 0.0, %v5847
    %5849 = vmatmul.f32.gmra.mxu0 %v5064
    %v5850 = vpop.f32.mrf.mxu0
    %v5851 = vadd.f32 0.0, %v5850
    %5852 = vmatmul.f32.gmra.mxu0 %v5066
    %v5853 = vpop.f32.mrf.mxu0
    %v5854 = vadd.f32 0.0, %v5853
    %5855 = vmatmul.f32.gmra.mxu0 %v5793
    %v5856 = vpop.f32.mrf.mxu0
    %v5857 = vadd.f32 0.0, %v5856
    %5858 = vmatmul.f32.gmra.mxu0 %v5795
    %v5859 = vpop.f32.mrf.mxu0
    %v5860 = vadd.f32 0.0, %v5859
    %5861 = vdwg.mxu0
    %v5862 = vadd.f32 %v5767, %v5815
    %v5863 = vadd.f32 %v5768, %v5818
    %v5864 = vadd.f32 %v5769, %v5821
    %v5865 = vadd.f32 %v5770, %v5824
    %v5866 = vadd.f32 %v5771, %v5827
    %v5867 = vadd.f32 %v5772, %v5830
    %v5868 = vadd.f32 %v5773, %v5833
    %v5869 = vadd.f32 %v5774, %v5836
    %v5870 = vadd.f32 %v5775, %v5839
    %v5871 = vadd.f32 %v5776, %v5842
    %v5872 = vadd.f32 %v5777, %v5845
    %v5873 = vadd.f32 %v5778, %v5848
    %v5874 = vadd.f32 %v5779, %v5851
    %v5875 = vadd.f32 %v5780, %v5854
    %v5876 = vadd.f32 %v5781, %v5857
    %v5877 = vadd.f32 %v5782, %v5860
    %s5878 = scalar_lea.vmem %s3, 672
    %v5879 = vld [vmem:[%s5878] sm:$0xff]
    %v5880 = vld [vmem:[%s5878 + $0x8] sm:$0xff]
    %v5881 = vld [vmem:[%s5878 + $0x10] sm:$0xff]
    %v5882 = vld [vmem:[%s5878 + $0x18] sm:$0xff]
    %v5884 = vrot.slane %v2878, 6
    %v5885 = vrot.slane %v2879, 6
    %v5886 = vsel %vm3842, %v5884, %v5885
    %v5887 = vrot.slane %v2880, 6
    %v5888 = vsel %vm3842, %v5885, %v5887
    %v5889 = vrot.slane %v2881, 6
    %v5890 = vsel %vm3842, %v5887, %v5889
    %v5891 = vrot.slane %v2882, 6
    %v5892 = vsel %vm3842, %v5889, %v5891
    %v5893 = vrot.slane %v2883, 6
    %v5894 = vsel %vm3842, %v5891, %v5893
    %v5895 = vrot.slane %v2884, 6
    %v5896 = vsel %vm3842, %v5893, %v5895
    %v5897 = vrot.slane %v2885, 6
    %v5898 = vsel %vm3842, %v5895, %v5897
    %v5899 = vrot.slane %v2886, 6
    %v5900 = vsel %vm3842, %v5897, %v5899
    %v5901 = vrot.slane %v2887, 6
    %v5902 = vsel %vm3842, %v5899, %v5901
    %v5903 = vrot.slane %v2888, 6
    %v5904 = vsel %vm3842, %v5901, %v5903
    %v5905 = vrot.slane %v2889, 6
    %v5906 = vsel %vm3842, %v5903, %v5905
    %v5907 = vrot.slane %v2890, 6
    %v5908 = vsel %vm3842, %v5905, %v5907
    %v5909 = vrot.slane %v2891, 6
    %v5910 = vsel %vm3842, %v5907, %v5909
    %v5911 = vrot.slane %v2892, 6
    %v5912 = vsel %vm3842, %v5909, %v5911
    %v5913 = vrot.slane %v2893, 6
    %v5914 = vsel %vm3842, %v5911, %v5913
    %v5915 = vsel %vm3842, %v5913, %v4298
    %v5916 = vsel %vm2989, %v5886, 0
    %v5918 = vsel %vm2989, %v5888, 0
    %v5920 = vsel %vm2989, %v5890, 0
    %v5922 = vsel %vm2989, %v5892, 0
    %v5924 = vsel %vm2989, %v5894, 0
    %v5926 = vsel %vm2989, %v5896, 0
    %v5928 = vsel %vm2989, %v5898, 0
    %v5930 = vsel %vm2989, %v5900, 0
    %v5932 = vsel %vm2989, %v5902, 0
    %v5934 = vsel %vm2989, %v5904, 0
    %v5936 = vsel %vm2989, %v5906, 0
    %v5938 = vsel %vm2989, %v5908, 0
    %v5940 = vsel %vm2989, %v5910, 0
    %v5942 = vsel %vm2989, %v5912, 0
    %v5944 = vsel %vm2989, %v5914, 0
    %v5946 = vsel %vm2989, %v5915, 0
    %5948 = vmatpush.msra.mxu0 0.0
    %5949 = vmatpush.msra.mxu0 0.0
    %5950 = vmatpush.msra.mxu0 0.0
    %5951 = vmatpush.msra.mxu0 0.0
    %5952 = vmatpush.msra.mxu0 0.0
    %5953 = vmatpush.msra.mxu0 0.0
    %5954 = vmatpush.msra.mxu0 0.0
    %5955 = vmatpush.msra.mxu0 0.0
    %5956 = vmatpush.msra.mxu0 0.0
    %5957 = vmatpush.msra.mxu0 0.0
    %5958 = vmatpush.msra.mxu0 0.0
    %5959 = vmatpush.msra.mxu0 0.0
    %5960 = vmatpush.msra.mxu0 %v5882
    %5961 = vmatpush.msra.mxu0 %v5881
    %5962 = vmatpush.msra.mxu0 %v5880
    %5963 = vmatpush.msra.mxu0 %v5879
    %5964 = vmatmul.f32.gmra.mxu0 %v5916
    %v5965 = vpop.f32.mrf.mxu0
    %v5966 = vadd.f32 0.0, %v5965
    %5967 = vmatmul.f32.gmra.mxu0 %v5918
    %v5968 = vpop.f32.mrf.mxu0
    %v5969 = vadd.f32 0.0, %v5968
    %5970 = vmatmul.f32.gmra.mxu0 %v5920
    %v5971 = vpop.f32.mrf.mxu0
    %v5972 = vadd.f32 0.0, %v5971
    %5973 = vmatmul.f32.gmra.mxu0 %v5922
    %v5974 = vpop.f32.mrf.mxu0
    %v5975 = vadd.f32 0.0, %v5974
    %5976 = vmatmul.f32.gmra.mxu0 %v5924
    %v5977 = vpop.f32.mrf.mxu0
    %v5978 = vadd.f32 0.0, %v5977
    %5979 = vmatmul.f32.gmra.mxu0 %v5926
    %v5980 = vpop.f32.mrf.mxu0
    %v5981 = vadd.f32 0.0, %v5980
    %5982 = vmatmul.f32.gmra.mxu0 %v5928
    %v5983 = vpop.f32.mrf.mxu0
    %v5984 = vadd.f32 0.0, %v5983
    %5985 = vmatmul.f32.gmra.mxu0 %v5930
    %v5986 = vpop.f32.mrf.mxu0
    %v5987 = vadd.f32 0.0, %v5986
    %5988 = vmatmul.f32.gmra.mxu0 %v5932
    %v5989 = vpop.f32.mrf.mxu0
    %v5990 = vadd.f32 0.0, %v5989
    %5991 = vmatmul.f32.gmra.mxu0 %v5934
    %v5992 = vpop.f32.mrf.mxu0
    %v5993 = vadd.f32 0.0, %v5992
    %5994 = vmatmul.f32.gmra.mxu0 %v5936
    %v5995 = vpop.f32.mrf.mxu0
    %v5996 = vadd.f32 0.0, %v5995
    %5997 = vmatmul.f32.gmra.mxu0 %v5938
    %v5998 = vpop.f32.mrf.mxu0
    %v5999 = vadd.f32 0.0, %v5998
    %6000 = vmatmul.f32.gmra.mxu0 %v5940
    %v6001 = vpop.f32.mrf.mxu0
    %v6002 = vadd.f32 0.0, %v6001
    %6003 = vmatmul.f32.gmra.mxu0 %v5942
    %v6004 = vpop.f32.mrf.mxu0
    %v6005 = vadd.f32 0.0, %v6004
    %6006 = vmatmul.f32.gmra.mxu0 %v5944
    %v6007 = vpop.f32.mrf.mxu0
    %v6008 = vadd.f32 0.0, %v6007
    %6009 = vmatmul.f32.gmra.mxu0 %v5946
    %v6010 = vpop.f32.mrf.mxu0
    %v6011 = vadd.f32 0.0, %v6010
    %6012 = vdwg.mxu0
    %v6013 = vadd.f32 %v5862, %v5966
    %v6014 = vadd.f32 %v5863, %v5969
    %v6015 = vadd.f32 %v5864, %v5972
    %v6016 = vadd.f32 %v5865, %v5975
    %v6017 = vadd.f32 %v5866, %v5978
    %v6018 = vadd.f32 %v5867, %v5981
    %v6019 = vadd.f32 %v5868, %v5984
    %v6020 = vadd.f32 %v5869, %v5987
    %v6021 = vadd.f32 %v5870, %v5990
    %v6022 = vadd.f32 %v5871, %v5993
    %v6023 = vadd.f32 %v5872, %v5996
    %v6024 = vadd.f32 %v5873, %v5999
    %v6025 = vadd.f32 %v5874, %v6002
    %v6026 = vadd.f32 %v5875, %v6005
    %v6027 = vadd.f32 %v5876, %v6008
    %v6028 = vadd.f32 %v5877, %v6011
    %s6029 = scalar_lea.vmem %s3, 704
    %v6030 = vld [vmem:[%s6029] sm:$0xff]
    %v6031 = vld [vmem:[%s6029 + $0x8] sm:$0xff]
    %v6032 = vld [vmem:[%s6029 + $0x10] sm:$0xff]
    %v6033 = vld [vmem:[%s6029 + $0x18] sm:$0xff]
    %v6034 = vrot.slane %v2858, 5
    %v6035 = vrot.slane %v2859, 5
    %v6036 = vsel %vm3994, %v6034, %v6035
    %v6037 = vrot.slane %v2860, 5
    %v6038 = vsel %vm3994, %v6035, %v6037
    %v6039 = vrot.slane %v2861, 5
    %v6040 = vsel %vm3994, %v6037, %v6039
    %v6041 = vrot.slane %v2862, 5
    %v6042 = vsel %vm3994, %v6039, %v6041
    %v6043 = vrot.slane %v2863, 5
    %v6044 = vsel %vm3994, %v6041, %v6043
    %v6045 = vrot.slane %v2864, 5
    %v6046 = vsel %vm3994, %v6043, %v6045
    %v6047 = vrot.slane %v2865, 5
    %v6048 = vsel %vm3994, %v6045, %v6047
    %v6049 = vrot.slane %v2866, 5
    %v6050 = vsel %vm3994, %v6047, %v6049
    %v6051 = vrot.slane %v2867, 5
    %v6052 = vsel %vm3994, %v6049, %v6051
    %v6053 = vrot.slane %v2868, 5
    %v6054 = vsel %vm3994, %v6051, %v6053
    %v6055 = vrot.slane %v2869, 5
    %v6056 = vsel %vm3994, %v6053, %v6055
    %v6057 = vrot.slane %v2870, 5
    %v6058 = vsel %vm3994, %v6055, %v6057
    %v6059 = vrot.slane %v2871, 5
    %v6060 = vsel %vm3994, %v6057, %v6059
    %v6061 = vrot.slane %v2872, 5
    %v6062 = vsel %vm3994, %v6059, %v6061
    %v6063 = vrot.slane %v2873, 5
    %v6064 = vsel %vm3994, %v6061, %v6063
    %v6065 = vrot.slane %v2874, 5
    %v6066 = vsel %vm3994, %v6063, %v6065
    %v6067 = vsel %vm2989, %v6036, 0
    %v6069 = vsel %vm2989, %v6038, 0
    %v6071 = vsel %vm2989, %v6040, 0
    %v6073 = vsel %vm2989, %v6042, 0
    %v6075 = vsel %vm2989, %v6044, 0
    %v6077 = vsel %vm2989, %v6046, 0
    %v6079 = vsel %vm2989, %v6048, 0
    %v6081 = vsel %vm2989, %v6050, 0
    %v6083 = vsel %vm2989, %v6052, 0
    %v6085 = vsel %vm2989, %v6054, 0
    %v6087 = vsel %vm2989, %v6056, 0
    %v6089 = vsel %vm2989, %v6058, 0
    %v6091 = vsel %vm2989, %v6060, 0
    %v6093 = vsel %vm2989, %v6062, 0
    %v6095 = vsel %vm2989, %v6064, 0
    %v6097 = vsel %vm2989, %v6066, 0
    %6099 = vmatpush.msra.mxu0 0.0
    %6100 = vmatpush.msra.mxu0 0.0
    %6101 = vmatpush.msra.mxu0 0.0
    %6102 = vmatpush.msra.mxu0 0.0
    %6103 = vmatpush.msra.mxu0 0.0
    %6104 = vmatpush.msra.mxu0 0.0
    %6105 = vmatpush.msra.mxu0 0.0
    %6106 = vmatpush.msra.mxu0 0.0
    %6107 = vmatpush.msra.mxu0 0.0
    %6108 = vmatpush.msra.mxu0 0.0
    %6109 = vmatpush.msra.mxu0 0.0
    %6110 = vmatpush.msra.mxu0 0.0
    %6111 = vmatpush.msra.mxu0 %v6033
    %6112 = vmatpush.msra.mxu0 %v6032
    %6113 = vmatpush.msra.mxu0 %v6031
    %6114 = vmatpush.msra.mxu0 %v6030
    %6115 = vmatmul.f32.gmra.mxu0 %v6067
    %v6116 = vpop.f32.mrf.mxu0
    %v6117 = vadd.f32 0.0, %v6116
    %6118 = vmatmul.f32.gmra.mxu0 %v6069
    %v6119 = vpop.f32.mrf.mxu0
    %v6120 = vadd.f32 0.0, %v6119
    %6121 = vmatmul.f32.gmra.mxu0 %v6071
    %v6122 = vpop.f32.mrf.mxu0
    %v6123 = vadd.f32 0.0, %v6122
    %6124 = vmatmul.f32.gmra.mxu0 %v6073
    %v6125 = vpop.f32.mrf.mxu0
    %v6126 = vadd.f32 0.0, %v6125
    %6127 = vmatmul.f32.gmra.mxu0 %v6075
    %v6128 = vpop.f32.mrf.mxu0
    %v6129 = vadd.f32 0.0, %v6128
    %6130 = vmatmul.f32.gmra.mxu0 %v6077
    %v6131 = vpop.f32.mrf.mxu0
    %v6132 = vadd.f32 0.0, %v6131
    %6133 = vmatmul.f32.gmra.mxu0 %v6079
    %v6134 = vpop.f32.mrf.mxu0
    %v6135 = vadd.f32 0.0, %v6134
    %6136 = vmatmul.f32.gmra.mxu0 %v6081
    %v6137 = vpop.f32.mrf.mxu0
    %v6138 = vadd.f32 0.0, %v6137
    %6139 = vmatmul.f32.gmra.mxu0 %v6083
    %v6140 = vpop.f32.mrf.mxu0
    %v6141 = vadd.f32 0.0, %v6140
    %6142 = vmatmul.f32.gmra.mxu0 %v6085
    %v6143 = vpop.f32.mrf.mxu0
    %v6144 = vadd.f32 0.0, %v6143
    %6145 = vmatmul.f32.gmra.mxu0 %v6087
    %v6146 = vpop.f32.mrf.mxu0
    %v6147 = vadd.f32 0.0, %v6146
    %6148 = vmatmul.f32.gmra.mxu0 %v6089
    %v6149 = vpop.f32.mrf.mxu0
    %v6150 = vadd.f32 0.0, %v6149
    %6151 = vmatmul.f32.gmra.mxu0 %v6091
    %v6152 = vpop.f32.mrf.mxu0
    %v6153 = vadd.f32 0.0, %v6152
    %6154 = vmatmul.f32.gmra.mxu0 %v6093
    %v6155 = vpop.f32.mrf.mxu0
    %v6156 = vadd.f32 0.0, %v6155
    %6157 = vmatmul.f32.gmra.mxu0 %v6095
    %v6158 = vpop.f32.mrf.mxu0
    %v6159 = vadd.f32 0.0, %v6158
    %6160 = vmatmul.f32.gmra.mxu0 %v6097
    %v6161 = vpop.f32.mrf.mxu0
    %v6162 = vadd.f32 0.0, %v6161
    %6163 = vdwg.mxu0
    %v6164 = vadd.f32 %v6013, %v6117
    %v6165 = vadd.f32 %v6014, %v6120
    %v6166 = vadd.f32 %v6015, %v6123
    %v6167 = vadd.f32 %v6016, %v6126
    %v6168 = vadd.f32 %v6017, %v6129
    %v6169 = vadd.f32 %v6018, %v6132
    %v6170 = vadd.f32 %v6019, %v6135
    %v6171 = vadd.f32 %v6020, %v6138
    %v6172 = vadd.f32 %v6021, %v6141
    %v6173 = vadd.f32 %v6022, %v6144
    %v6174 = vadd.f32 %v6023, %v6147
    %v6175 = vadd.f32 %v6024, %v6150
    %v6176 = vadd.f32 %v6025, %v6153
    %v6177 = vadd.f32 %v6026, %v6156
    %v6178 = vadd.f32 %v6027, %v6159
    %v6179 = vadd.f32 %v6028, %v6162
    %s6180 = scalar_lea.vmem %s3, 736
    %v6181 = vld [vmem:[%s6180] sm:$0xff]
    %v6182 = vld [vmem:[%s6180 + $0x8] sm:$0xff]
    %v6183 = vld [vmem:[%s6180 + $0x10] sm:$0xff]
    %v6184 = vld [vmem:[%s6180 + $0x18] sm:$0xff]
    %v6185 = vrot.slane %v2878, 7
    %v6186 = vrot.slane %v2879, 7
    %v6187 = vsel %vm4146, %v6185, %v6186
    %v6188 = vrot.slane %v2880, 7
    %v6189 = vsel %vm4146, %v6186, %v6188
    %v6190 = vrot.slane %v2881, 7
    %v6191 = vsel %vm4146, %v6188, %v6190
    %v6192 = vrot.slane %v2882, 7
    %v6193 = vsel %vm4146, %v6190, %v6192
    %v6194 = vrot.slane %v2883, 7
    %v6195 = vsel %vm4146, %v6192, %v6194
    %v6196 = vrot.slane %v2884, 7
    %v6197 = vsel %vm4146, %v6194, %v6196
    %v6198 = vrot.slane %v2885, 7
    %v6199 = vsel %vm4146, %v6196, %v6198
    %v6200 = vrot.slane %v2886, 7
    %v6201 = vsel %vm4146, %v6198, %v6200
    %v6202 = vrot.slane %v2887, 7
    %v6203 = vsel %vm4146, %v6200, %v6202
    %v6204 = vrot.slane %v2888, 7
    %v6205 = vsel %vm4146, %v6202, %v6204
    %v6206 = vrot.slane %v2889, 7
    %v6207 = vsel %vm4146, %v6204, %v6206
    %v6208 = vrot.slane %v2890, 7
    %v6209 = vsel %vm4146, %v6206, %v6208
    %v6210 = vrot.slane %v2891, 7
    %v6211 = vsel %vm4146, %v6208, %v6210
    %v6212 = vrot.slane %v2892, 7
    %v6213 = vsel %vm4146, %v6210, %v6212
    %v6214 = vrot.slane %v2893, 7
    %v6215 = vsel %vm4146, %v6212, %v6214
    %v6216 = vrot.slane %v2894, 7
    %v6217 = vsel %vm4146, %v6214, %v6216
    %v6218 = vsel %vm2989, %v6187, 0
    %v6220 = vsel %vm2989, %v6189, 0
    %v6222 = vsel %vm2989, %v6191, 0
    %v6224 = vsel %vm2989, %v6193, 0
    %v6226 = vsel %vm2989, %v6195, 0
    %v6228 = vsel %vm2989, %v6197, 0
    %v6230 = vsel %vm2989, %v6199, 0
    %v6232 = vsel %vm2989, %v6201, 0
    %v6234 = vsel %vm2989, %v6203, 0
    %v6236 = vsel %vm2989, %v6205, 0
    %v6238 = vsel %vm2989, %v6207, 0
    %v6240 = vsel %vm2989, %v6209, 0
    %v6242 = vsel %vm2989, %v6211, 0
    %v6244 = vsel %vm2989, %v6213, 0
    %v6246 = vsel %vm2989, %v6215, 0
    %v6248 = vsel %vm2989, %v6217, 0
    %6250 = vmatpush.msra.mxu0 0.0
    %6251 = vmatpush.msra.mxu0 0.0
    %6252 = vmatpush.msra.mxu0 0.0
    %6253 = vmatpush.msra.mxu0 0.0
    %6254 = vmatpush.msra.mxu0 0.0
    %6255 = vmatpush.msra.mxu0 0.0
    %6256 = vmatpush.msra.mxu0 0.0
    %6257 = vmatpush.msra.mxu0 0.0
    %6258 = vmatpush.msra.mxu0 0.0
    %6259 = vmatpush.msra.mxu0 0.0
    %6260 = vmatpush.msra.mxu0 0.0
    %6261 = vmatpush.msra.mxu0 0.0
    %6262 = vmatpush.msra.mxu0 %v6184
    %6263 = vmatpush.msra.mxu0 %v6183
    %6264 = vmatpush.msra.mxu0 %v6182
    %6265 = vmatpush.msra.mxu0 %v6181
    %6266 = vmatmul.f32.gmra.mxu0 %v6218
    %v6267 = vpop.f32.mrf.mxu0
    %v6268 = vadd.f32 0.0, %v6267
    %6269 = vmatmul.f32.gmra.mxu0 %v6220
    %v6270 = vpop.f32.mrf.mxu0
    %v6271 = vadd.f32 0.0, %v6270
    %6272 = vmatmul.f32.gmra.mxu0 %v6222
    %v6273 = vpop.f32.mrf.mxu0
    %v6274 = vadd.f32 0.0, %v6273
    %6275 = vmatmul.f32.gmra.mxu0 %v6224
    %v6276 = vpop.f32.mrf.mxu0
    %v6277 = vadd.f32 0.0, %v6276
    %6278 = vmatmul.f32.gmra.mxu0 %v6226
    %v6279 = vpop.f32.mrf.mxu0
    %v6280 = vadd.f32 0.0, %v6279
    %6281 = vmatmul.f32.gmra.mxu0 %v6228
    %v6282 = vpop.f32.mrf.mxu0
    %v6283 = vadd.f32 0.0, %v6282
    %6284 = vmatmul.f32.gmra.mxu0 %v6230
    %v6285 = vpop.f32.mrf.mxu0
    %v6286 = vadd.f32 0.0, %v6285
    %6287 = vmatmul.f32.gmra.mxu0 %v6232
    %v6288 = vpop.f32.mrf.mxu0
    %v6289 = vadd.f32 0.0, %v6288
    %6290 = vmatmul.f32.gmra.mxu0 %v6234
    %v6291 = vpop.f32.mrf.mxu0
    %v6292 = vadd.f32 0.0, %v6291
    %6293 = vmatmul.f32.gmra.mxu0 %v6236
    %v6294 = vpop.f32.mrf.mxu0
    %v6295 = vadd.f32 0.0, %v6294
    %6296 = vmatmul.f32.gmra.mxu0 %v6238
    %v6297 = vpop.f32.mrf.mxu0
    %v6298 = vadd.f32 0.0, %v6297
    %6299 = vmatmul.f32.gmra.mxu0 %v6240
    %v6300 = vpop.f32.mrf.mxu0
    %v6301 = vadd.f32 0.0, %v6300
    %6302 = vmatmul.f32.gmra.mxu0 %v6242
    %v6303 = vpop.f32.mrf.mxu0
    %v6304 = vadd.f32 0.0, %v6303
    %6305 = vmatmul.f32.gmra.mxu0 %v6244
    %v6306 = vpop.f32.mrf.mxu0
    %v6307 = vadd.f32 0.0, %v6306
    %6308 = vmatmul.f32.gmra.mxu0 %v6246
    %v6309 = vpop.f32.mrf.mxu0
    %v6310 = vadd.f32 0.0, %v6309
    %6311 = vmatmul.f32.gmra.mxu0 %v6248
    %v6312 = vpop.f32.mrf.mxu0
    %v6313 = vadd.f32 0.0, %v6312
    %6314 = vdwg.mxu0
    %v6315 = vadd.f32 %v6164, %v6268
    %v6316 = vadd.f32 %v6165, %v6271
    %v6317 = vadd.f32 %v6166, %v6274
    %v6318 = vadd.f32 %v6167, %v6277
    %v6319 = vadd.f32 %v6168, %v6280
    %v6320 = vadd.f32 %v6169, %v6283
    %v6321 = vadd.f32 %v6170, %v6286
    %v6322 = vadd.f32 %v6171, %v6289
    %v6323 = vadd.f32 %v6172, %v6292
    %v6324 = vadd.f32 %v6173, %v6295
    %v6325 = vadd.f32 %v6174, %v6298
    %v6326 = vadd.f32 %v6175, %v6301
    %v6327 = vadd.f32 %v6176, %v6304
    %v6328 = vadd.f32 %v6177, %v6307
    %v6329 = vadd.f32 %v6178, %v6310
    %v6330 = vadd.f32 %v6179, %v6313
    %s6331 = scalar_lea.vmem %s3, 768
    %v6332 = vld [vmem:[%s6331] sm:$0xff]
    %v6333 = vld [vmem:[%s6331 + $0x8] sm:$0xff]
    %v6334 = vld [vmem:[%s6331 + $0x10] sm:$0xff]
    %v6335 = vld [vmem:[%s6331 + $0x18] sm:$0xff]
    %v6336 = vrot.slane %v2858, 6
    %v6337 = vrot.slane %v2859, 6
    %v6338 = vsel %vm3842, %v6336, %v6337
    %v6339 = vrot.slane %v2860, 6
    %v6340 = vsel %vm3842, %v6337, %v6339
    %v6341 = vrot.slane %v2861, 6
    %v6342 = vsel %vm3842, %v6339, %v6341
    %v6343 = vrot.slane %v2862, 6
    %v6344 = vsel %vm3842, %v6341, %v6343
    %v6345 = vrot.slane %v2863, 6
    %v6346 = vsel %vm3842, %v6343, %v6345
    %v6347 = vrot.slane %v2864, 6
    %v6348 = vsel %vm3842, %v6345, %v6347
    %v6349 = vrot.slane %v2865, 6
    %v6350 = vsel %vm3842, %v6347, %v6349
    %v6351 = vrot.slane %v2866, 6
    %v6352 = vsel %vm3842, %v6349, %v6351
    %v6353 = vrot.slane %v2867, 6
    %v6354 = vsel %vm3842, %v6351, %v6353
    %v6355 = vrot.slane %v2868, 6
    %v6356 = vsel %vm3842, %v6353, %v6355
    %v6357 = vrot.slane %v2869, 6
    %v6358 = vsel %vm3842, %v6355, %v6357
    %v6359 = vrot.slane %v2870, 6
    %v6360 = vsel %vm3842, %v6357, %v6359
    %v6361 = vrot.slane %v2871, 6
    %v6362 = vsel %vm3842, %v6359, %v6361
    %v6363 = vrot.slane %v2872, 6
    %v6364 = vsel %vm3842, %v6361, %v6363
    %v6365 = vrot.slane %v2873, 6
    %v6366 = vsel %vm3842, %v6363, %v6365
    %v6367 = vrot.slane %v2874, 6
    %v6368 = vsel %vm3842, %v6365, %v6367
    %v6369 = vsel %vm2989, %v6338, 0
    %v6371 = vsel %vm2989, %v6340, 0
    %v6373 = vsel %vm2989, %v6342, 0
    %v6375 = vsel %vm2989, %v6344, 0
    %v6377 = vsel %vm2989, %v6346, 0
    %v6379 = vsel %vm2989, %v6348, 0
    %v6381 = vsel %vm2989, %v6350, 0
    %v6383 = vsel %vm2989, %v6352, 0
    %v6385 = vsel %vm2989, %v6354, 0
    %v6387 = vsel %vm2989, %v6356, 0
    %v6389 = vsel %vm2989, %v6358, 0
    %v6391 = vsel %vm2989, %v6360, 0
    %v6393 = vsel %vm2989, %v6362, 0
    %v6395 = vsel %vm2989, %v6364, 0
    %v6397 = vsel %vm2989, %v6366, 0
    %v6399 = vsel %vm2989, %v6368, 0
    %6401 = vmatpush.msra.mxu0 0.0
    %6402 = vmatpush.msra.mxu0 0.0
    %6403 = vmatpush.msra.mxu0 0.0
    %6404 = vmatpush.msra.mxu0 0.0
    %6405 = vmatpush.msra.mxu0 0.0
    %6406 = vmatpush.msra.mxu0 0.0
    %6407 = vmatpush.msra.mxu0 0.0
    %6408 = vmatpush.msra.mxu0 0.0
    %6409 = vmatpush.msra.mxu0 0.0
    %6410 = vmatpush.msra.mxu0 0.0
    %6411 = vmatpush.msra.mxu0 0.0
    %6412 = vmatpush.msra.mxu0 0.0
    %6413 = vmatpush.msra.mxu0 %v6335
    %6414 = vmatpush.msra.mxu0 %v6334
    %6415 = vmatpush.msra.mxu0 %v6333
    %6416 = vmatpush.msra.mxu0 %v6332
    %6417 = vmatmul.f32.gmra.mxu0 %v6369
    %v6418 = vpop.f32.mrf.mxu0
    %v6419 = vadd.f32 0.0, %v6418
    %6420 = vmatmul.f32.gmra.mxu0 %v6371
    %v6421 = vpop.f32.mrf.mxu0
    %v6422 = vadd.f32 0.0, %v6421
    %6423 = vmatmul.f32.gmra.mxu0 %v6373
    %v6424 = vpop.f32.mrf.mxu0
    %v6425 = vadd.f32 0.0, %v6424
    %6426 = vmatmul.f32.gmra.mxu0 %v6375
    %v6427 = vpop.f32.mrf.mxu0
    %v6428 = vadd.f32 0.0, %v6427
    %6429 = vmatmul.f32.gmra.mxu0 %v6377
    %v6430 = vpop.f32.mrf.mxu0
    %v6431 = vadd.f32 0.0, %v6430
    %6432 = vmatmul.f32.gmra.mxu0 %v6379
    %v6433 = vpop.f32.mrf.mxu0
    %v6434 = vadd.f32 0.0, %v6433
    %6435 = vmatmul.f32.gmra.mxu0 %v6381
    %v6436 = vpop.f32.mrf.mxu0
    %v6437 = vadd.f32 0.0, %v6436
    %6438 = vmatmul.f32.gmra.mxu0 %v6383
    %v6439 = vpop.f32.mrf.mxu0
    %v6440 = vadd.f32 0.0, %v6439
    %6441 = vmatmul.f32.gmra.mxu0 %v6385
    %v6442 = vpop.f32.mrf.mxu0
    %v6443 = vadd.f32 0.0, %v6442
    %6444 = vmatmul.f32.gmra.mxu0 %v6387
    %v6445 = vpop.f32.mrf.mxu0
    %v6446 = vadd.f32 0.0, %v6445
    %6447 = vmatmul.f32.gmra.mxu0 %v6389
    %v6448 = vpop.f32.mrf.mxu0
    %v6449 = vadd.f32 0.0, %v6448
    %6450 = vmatmul.f32.gmra.mxu0 %v6391
    %v6451 = vpop.f32.mrf.mxu0
    %v6452 = vadd.f32 0.0, %v6451
    %6453 = vmatmul.f32.gmra.mxu0 %v6393
    %v6454 = vpop.f32.mrf.mxu0
    %v6455 = vadd.f32 0.0, %v6454
    %6456 = vmatmul.f32.gmra.mxu0 %v6395
    %v6457 = vpop.f32.mrf.mxu0
    %v6458 = vadd.f32 0.0, %v6457
    %6459 = vmatmul.f32.gmra.mxu0 %v6397
    %v6460 = vpop.f32.mrf.mxu0
    %v6461 = vadd.f32 0.0, %v6460
    %6462 = vmatmul.f32.gmra.mxu0 %v6399
    %v6463 = vpop.f32.mrf.mxu0
    %v6464 = vadd.f32 0.0, %v6463
    %6465 = vdwg.mxu0
    %v6466 = vadd.f32 %v6315, %v6419
    %v6467 = vadd.f32 %v6316, %v6422
    %v6468 = vadd.f32 %v6317, %v6425
    %v6469 = vadd.f32 %v6318, %v6428
    %v6470 = vadd.f32 %v6319, %v6431
    %v6471 = vadd.f32 %v6320, %v6434
    %v6472 = vadd.f32 %v6321, %v6437
    %v6473 = vadd.f32 %v6322, %v6440
    %v6474 = vadd.f32 %v6323, %v6443
    %v6475 = vadd.f32 %v6324, %v6446
    %v6476 = vadd.f32 %v6325, %v6449
    %v6477 = vadd.f32 %v6326, %v6452
    %v6478 = vadd.f32 %v6327, %v6455
    %v6479 = vadd.f32 %v6328, %v6458
    %v6480 = vadd.f32 %v6329, %v6461
    %v6481 = vadd.f32 %v6330, %v6464
    %v6482 = vld [vmem:[%s4] sm:$0x1]
    %v6484 = vperm.slane %v6482, 0
    %v6486 = vadd.f32 %v6466, %v6484
    %v6487 = vadd.f32 %v6467, %v6484
    %v6488 = vadd.f32 %v6468, %v6484
    %v6489 = vadd.f32 %v6469, %v6484
    %v6490 = vadd.f32 %v6470, %v6484
    %v6491 = vadd.f32 %v6471, %v6484
    %v6492 = vadd.f32 %v6472, %v6484
    %v6493 = vadd.f32 %v6473, %v6484
    %v6494 = vadd.f32 %v6474, %v6484
    %v6495 = vadd.f32 %v6475, %v6484
    %v6496 = vadd.f32 %v6476, %v6484
    %v6497 = vadd.f32 %v6477, %v6484
    %v6498 = vadd.f32 %v6478, %v6484
    %v6499 = vadd.f32 %v6479, %v6484
    %v6500 = vadd.f32 %v6480, %v6484
    %v6501 = vadd.f32 %v6481, %v6484
    %v6502 = vmax.f32 %v6486, 0.0
    %v6503 = vmax.f32 %v6487, 0.0
    %v6504 = vmax.f32 %v6488, 0.0
    %v6505 = vmax.f32 %v6489, 0.0
    %v6506 = vmax.f32 %v6490, 0.0
    %v6507 = vmax.f32 %v6491, 0.0
    %v6508 = vmax.f32 %v6492, 0.0
    %v6509 = vmax.f32 %v6493, 0.0
    %v6510 = vmax.f32 %v6494, 0.0
    %v6511 = vmax.f32 %v6495, 0.0
    %v6512 = vmax.f32 %v6496, 0.0
    %v6513 = vmax.f32 %v6497, 0.0
    %v6514 = vmax.f32 %v6498, 0.0
    %v6515 = vmax.f32 %v6499, 0.0
    %v6516 = vmax.f32 %v6500, 0.0
    %v6517 = vmax.f32 %v6501, 0.0
    %v6518 = vld [vmem:[%s5] sm:$0xff]
    %v6519 = vld [vmem:[%s5 + $0x8] sm:$0xff]
    %v6520 = vld [vmem:[%s5 + $0x10] sm:$0xff]
    %v6521 = vld [vmem:[%s5 + $0x18] sm:$0xff]
    %v6522 = vld [vmem:[%s5 + $0x20] sm:$0xff]
    %v6523 = vld [vmem:[%s5 + $0x28] sm:$0xff]
    %v6524 = vld [vmem:[%s5 + $0x30] sm:$0xff]
    %v6525 = vld [vmem:[%s5 + $0x38] sm:$0xff]
    %v6526 = vld [vmem:[%s5 + $0x40] sm:$0xff]
    %v6527 = vld [vmem:[%s5 + $0x48] sm:$0xff]
    %v6528 = vld [vmem:[%s5 + $0x50] sm:$0xff]
    %v6529 = vld [vmem:[%s5 + $0x58] sm:$0xff]
    %v6530 = vld [vmem:[%s5 + $0x60] sm:$0xff]
    %v6531 = vld [vmem:[%s5 + $0x68] sm:$0xff]
    %v6532 = vld [vmem:[%s5 + $0x70] sm:$0xff]
    %v6533 = vld [vmem:[%s5 + $0x78] sm:$0xff]
    %v6534 = vld [vmem:[%s5 + $0x80] sm:$0xff]
    %v6535 = vld [vmem:[%s5 + $0x88] sm:$0xff]
    %v6536 = vld [vmem:[%s5 + $0x90] sm:$0xff]
    %v6537 = vld [vmem:[%s5 + $0x98] sm:$0xff]
    %v6538 = vld [vmem:[%s5 + $0xa0] sm:$0x3]
    %vm6539 = vcmask 1031168
    %v6541 = vsel %vm6539, %v6518, 0
    %v6544 = vsel %vm6539, %v6519, 0
    %v6547 = vsel %vm6539, %v6520, 0
    %v6550 = vsel %vm6539, %v6521, 0
    %v6553 = vsel %vm6539, %v6522, 0
    %v6556 = vsel %vm6539, %v6523, 0
    %v6559 = vsel %vm6539, %v6524, 0
    %v6562 = vsel %vm6539, %v6525, 0
    %v6565 = vsel %vm6539, %v6526, 0
    %v6568 = vsel %vm6539, %v6527, 0
    %v6571 = vsel %vm6539, %v6528, 0
    %v6574 = vsel %vm6539, %v6529, 0
    %v6577 = vsel %vm6539, %v6530, 0
    %v6580 = vsel %vm6539, %v6531, 0
    %v6583 = vsel %vm6539, %v6532, 0
    %v6586 = vsel %vm6539, %v6533, 0
    %v6589 = vsel %vm6539, %v6534, 0
    %v6592 = vsel %vm6539, %v6535, 0
    %v6595 = vsel %vm6539, %v6536, 0
    %v6598 = vsel %vm6539, %v6537, 0
    %v6601 = vsel %vm6539, %v6538, 0
    %v6604 = vsel %vm2957, %v6517, 0
    %6606 = vmatpush.msra.mxu0 %v6604
    %6607 = vmatpush.msra.mxu0 %v6516
    %6608 = vmatpush.msra.mxu0 %v6515
    %6609 = vmatpush.msra.mxu0 %v6514
    %6610 = vmatpush.msra.mxu0 %v6513
    %6611 = vmatpush.msra.mxu0 %v6512
    %6612 = vmatpush.msra.mxu0 %v6511
    %6613 = vmatpush.msra.mxu0 %v6510
    %6614 = vmatpush.msra.mxu0 %v6509
    %6615 = vmatpush.msra.mxu0 %v6508
    %6616 = vmatpush.msra.mxu0 %v6507
    %6617 = vmatpush.msra.mxu0 %v6506
    %6618 = vmatpush.msra.mxu0 %v6505
    %6619 = vmatpush.msra.mxu0 %v6504
    %6620 = vmatpush.msra.mxu0 %v6503
    %6621 = vmatpush.msra.mxu0 %v6502
    %6622 = vmatmul.f32.gmra.mxu0 %v6541
    %v6623 = vpop.f32.mrf.mxu0
    %v6624 = vadd.f32 0.0, %v6623
    %6625 = vmatmul.f32.gmra.mxu0 %v6544
    %v6626 = vpop.f32.mrf.mxu0
    %v6627 = vadd.f32 0.0, %v6626
    %6628 = vmatmul.f32.gmra.mxu0 %v6547
    %v6629 = vpop.f32.mrf.mxu0
    %v6630 = vadd.f32 0.0, %v6629
    %6631 = vmatmul.f32.gmra.mxu0 %v6550
    %v6632 = vpop.f32.mrf.mxu0
    %v6633 = vadd.f32 0.0, %v6632
    %6634 = vmatmul.f32.gmra.mxu0 %v6553
    %v6635 = vpop.f32.mrf.mxu0
    %v6636 = vadd.f32 0.0, %v6635
    %6637 = vmatmul.f32.gmra.mxu0 %v6556
    %v6638 = vpop.f32.mrf.mxu0
    %v6639 = vadd.f32 0.0, %v6638
    %6640 = vmatmul.f32.gmra.mxu0 %v6559
    %v6641 = vpop.f32.mrf.mxu0
    %v6642 = vadd.f32 0.0, %v6641
    %6643 = vmatmul.f32.gmra.mxu0 %v6562
    %v6644 = vpop.f32.mrf.mxu0
    %v6645 = vadd.f32 0.0, %v6644
    %6646 = vmatmul.f32.gmra.mxu0 %v6565
    %v6647 = vpop.f32.mrf.mxu0
    %v6648 = vadd.f32 0.0, %v6647
    %6649 = vmatmul.f32.gmra.mxu0 %v6568
    %v6650 = vpop.f32.mrf.mxu0
    %v6651 = vadd.f32 0.0, %v6650
    %6652 = vmatmul.f32.gmra.mxu0 %v6571
    %v6653 = vpop.f32.mrf.mxu0
    %v6654 = vadd.f32 0.0, %v6653
    %6655 = vmatmul.f32.gmra.mxu0 %v6574
    %v6656 = vpop.f32.mrf.mxu0
    %v6657 = vadd.f32 0.0, %v6656
    %6658 = vmatmul.f32.gmra.mxu0 %v6577
    %v6659 = vpop.f32.mrf.mxu0
    %v6660 = vadd.f32 0.0, %v6659
    %6661 = vmatmul.f32.gmra.mxu0 %v6580
    %v6662 = vpop.f32.mrf.mxu0
    %v6663 = vadd.f32 0.0, %v6662
    %6664 = vmatmul.f32.gmra.mxu0 %v6583
    %v6665 = vpop.f32.mrf.mxu0
    %v6666 = vadd.f32 0.0, %v6665
    %6667 = vmatmul.f32.gmra.mxu0 %v6586
    %v6668 = vpop.f32.mrf.mxu0
    %v6669 = vadd.f32 0.0, %v6668
    %6670 = vmatmul.f32.gmra.mxu0 %v6589
    %v6671 = vpop.f32.mrf.mxu0
    %v6672 = vadd.f32 0.0, %v6671
    %6673 = vmatmul.f32.gmra.mxu0 %v6592
    %v6674 = vpop.f32.mrf.mxu0
    %v6675 = vadd.f32 0.0, %v6674
    %6676 = vmatmul.f32.gmra.mxu0 %v6595
    %v6677 = vpop.f32.mrf.mxu0
    %v6678 = vadd.f32 0.0, %v6677
    %6679 = vmatmul.f32.gmra.mxu0 %v6598
    %v6680 = vpop.f32.mrf.mxu0
    %v6681 = vadd.f32 0.0, %v6680
    %6682 = vmatmul.f32.gmra.mxu0 %v6601
    %v6683 = vpop.f32.mrf.mxu0
    %v6684 = vadd.f32 0.0, %v6683
    %6685 = vdwg.mxu0
    %v6686 = vld [vmem:[%s6] sm:$0xff]
    %v6687 = vld [vmem:[%s6 + $0x8] sm:$0xff]
    %v6688 = vld [vmem:[%s6 + $0x10] sm:$0xff]
    %v6689 = vld [vmem:[%s6 + $0x18] sm:$0xff]
    %v6690 = vld [vmem:[%s6 + $0x20] sm:$0xff]
    %v6691 = vld [vmem:[%s6 + $0x28] sm:$0xff]
    %v6692 = vld [vmem:[%s6 + $0x30] sm:$0xff]
    %v6693 = vld [vmem:[%s6 + $0x38] sm:$0xff]
    %s6694 = scalar_lea.vmem %s6, 64
    %v6695 = vld [vmem:[%s6694] sm:$0xff]
    %v6696 = vld [vmem:[%s6694 + $0x8] sm:$0xff]
    %v6697 = vld [vmem:[%s6694 + $0x10] sm:$0xff]
    %v6698 = vld [vmem:[%s6694 + $0x18] sm:$0xff]
    %v6699 = vld [vmem:[%s6694 + $0x20] sm:$0xff]
    %v6700 = vld [vmem:[%s6694 + $0x28] sm:$0xff]
    %v6701 = vld [vmem:[%s6694 + $0x30] sm:$0xff]
    %v6702 = vld [vmem:[%s6694 + $0x38] sm:$0xff]
    %v6706 = vrot.slane %v6630, 2
    %v6707 = vrot.slane %v6633, 2
    %v6708 = vsel %vm2957, %v6706, %v6707
    %v6709 = vrot.slane %v6636, 2
    %v6710 = vsel %vm2957, %v6707, %v6709
    %v6711 = vsel %vm81, %v6708, 0
    %v6713 = vsel %vm81, %v6710, 0
    %v6715 = vsel %vm81, %v6709, 0
    %6717 = vmatpush.msra.mxu0 0.0
    %6718 = vmatpush.msra.mxu0 0.0
    %6719 = vmatpush.msra.mxu0 0.0
    %6720 = vmatpush.msra.mxu0 0.0
    %6721 = vmatpush.msra.mxu0 0.0
    %6722 = vmatpush.msra.mxu0 0.0
    %6723 = vmatpush.msra.mxu0 0.0
    %6724 = vmatpush.msra.mxu0 0.0
    %6725 = vmatpush.msra.mxu0 %v6702
    %6726 = vmatpush.msra.mxu0 %v6701
    %6727 = vmatpush.msra.mxu0 %v6700
    %6728 = vmatpush.msra.mxu0 %v6699
    %6729 = vmatpush.msra.mxu0 %v6698
    %6730 = vmatpush.msra.mxu0 %v6697
    %6731 = vmatpush.msra.mxu0 %v6696
    %6732 = vmatpush.msra.mxu0 %v6695
    %6733 = vmatmul.f32.gmra.mxu0 %v6711
    %v6734 = vpop.f32.mrf.mxu0
    %v6735 = vadd.f32 0.0, %v6734
    %6736 = vmatmul.f32.gmra.mxu0 %v6713
    %v6737 = vpop.f32.mrf.mxu0
    %v6738 = vadd.f32 0.0, %v6737
    %6739 = vmatmul.f32.gmra.mxu0 %v6715
    %v6740 = vpop.f32.mrf.mxu0
    %v6741 = vadd.f32 0.0, %v6740
    %6742 = vdwg.mxu0
    %v6744 = vsel %vm81, %v6624, 0
    %v6747 = vsel %vm81, %v6627, 0
    %v6749 = vsel %vm81, %v6630, 0
    %6751 = vmatpush.msra.mxu0 0.0
    %6752 = vmatpush.msra.mxu0 0.0
    %6753 = vmatpush.msra.mxu0 0.0
    %6754 = vmatpush.msra.mxu0 0.0
    %6755 = vmatpush.msra.mxu0 0.0
    %6756 = vmatpush.msra.mxu0 0.0
    %6757 = vmatpush.msra.mxu0 0.0
    %6758 = vmatpush.msra.mxu0 0.0
    %6759 = vmatpush.msra.mxu0 %v6693
    %6760 = vmatpush.msra.mxu0 %v6692
    %6761 = vmatpush.msra.mxu0 %v6691
    %6762 = vmatpush.msra.mxu0 %v6690
    %6763 = vmatpush.msra.mxu0 %v6689
    %6764 = vmatpush.msra.mxu0 %v6688
    %6765 = vmatpush.msra.mxu0 %v6687
    %6766 = vmatpush.msra.mxu0 %v6686
    %6767 = vmatmul.f32.gmra.mxu0 %v6744
    %v6768 = vpop.f32.mrf.mxu0
    %v6769 = vadd.f32 %v6735, %v6768
    %6770 = vmatmul.f32.gmra.mxu0 %v6747
    %v6771 = vpop.f32.mrf.mxu0
    %v6772 = vadd.f32 %v6738, %v6771
    %6773 = vmatmul.f32.gmra.mxu0 %v6749
    %v6774 = vpop.f32.mrf.mxu0
    %v6775 = vadd.f32 %v6741, %v6774
    %6776 = vdwg.mxu0
    %s6777 = scalar_lea.vmem %s6, 128
    %v6778 = vld [vmem:[%s6777] sm:$0xff]
    %v6779 = vld [vmem:[%s6777 + $0x8] sm:$0xff]
    %v6780 = vld [vmem:[%s6777 + $0x10] sm:$0xff]
    %v6781 = vld [vmem:[%s6777 + $0x18] sm:$0xff]
    %v6782 = vld [vmem:[%s6777 + $0x20] sm:$0xff]
    %v6783 = vld [vmem:[%s6777 + $0x28] sm:$0xff]
    %v6784 = vld [vmem:[%s6777 + $0x30] sm:$0xff]
    %v6785 = vld [vmem:[%s6777 + $0x38] sm:$0xff]
    %v6788 = vrot.slane %v6636, 4
    %v6789 = vrot.slane %v6639, 4
    %v6790 = vsel %vm1800, %v6788, %v6789
    %v6791 = vrot.slane %v6642, 4
    %v6792 = vsel %vm1800, %v6789, %v6791
    %v6793 = vsel %vm81, %v6790, 0
    %v6795 = vsel %vm81, %v6792, 0
    %v6797 = vsel %vm81, %v6791, 0
    %6799 = vmatpush.msra.mxu0 0.0
    %6800 = vmatpush.msra.mxu0 0.0
    %6801 = vmatpush.msra.mxu0 0.0
    %6802 = vmatpush.msra.mxu0 0.0
    %6803 = vmatpush.msra.mxu0 0.0
    %6804 = vmatpush.msra.mxu0 0.0
    %6805 = vmatpush.msra.mxu0 0.0
    %6806 = vmatpush.msra.mxu0 0.0
    %6807 = vmatpush.msra.mxu0 %v6785
    %6808 = vmatpush.msra.mxu0 %v6784
    %6809 = vmatpush.msra.mxu0 %v6783
    %6810 = vmatpush.msra.mxu0 %v6782
    %6811 = vmatpush.msra.mxu0 %v6781
    %6812 = vmatpush.msra.mxu0 %v6780
    %6813 = vmatpush.msra.mxu0 %v6779
    %6814 = vmatpush.msra.mxu0 %v6778
    %6815 = vmatmul.f32.gmra.mxu0 %v6793
    %v6816 = vpop.f32.mrf.mxu0
    %v6817 = vadd.f32 0.0, %v6816
    %6818 = vmatmul.f32.gmra.mxu0 %v6795
    %v6819 = vpop.f32.mrf.mxu0
    %v6820 = vadd.f32 0.0, %v6819
    %6821 = vmatmul.f32.gmra.mxu0 %v6797
    %v6822 = vpop.f32.mrf.mxu0
    %v6823 = vadd.f32 0.0, %v6822
    %6824 = vdwg.mxu0
    %v6825 = vadd.f32 %v6769, %v6817
    %v6826 = vadd.f32 %v6772, %v6820
    %v6827 = vadd.f32 %v6775, %v6823
    %s6828 = scalar_lea.vmem %s6, 192
    %v6829 = vld [vmem:[%s6828] sm:$0xff]
    %v6830 = vld [vmem:[%s6828 + $0x8] sm:$0xff]
    %v6831 = vld [vmem:[%s6828 + $0x10] sm:$0xff]
    %v6832 = vld [vmem:[%s6828 + $0x18] sm:$0xff]
    %v6833 = vld [vmem:[%s6828 + $0x20] sm:$0xff]
    %v6834 = vld [vmem:[%s6828 + $0x28] sm:$0xff]
    %v6835 = vld [vmem:[%s6828 + $0x30] sm:$0xff]
    %v6836 = vld [vmem:[%s6828 + $0x38] sm:$0xff]
    %v6839 = vrot.slane %v6642, 6
    %v6840 = vrot.slane %v6645, 6
    %v6841 = vsel %vm3842, %v6839, %v6840
    %v6842 = vrot.slane %v6648, 6
    %v6843 = vsel %vm3842, %v6840, %v6842
    %v6844 = vsel %vm81, %v6841, 0
    %v6846 = vsel %vm81, %v6843, 0
    %v6848 = vsel %vm81, %v6842, 0
    %6850 = vmatpush.msra.mxu0 0.0
    %6851 = vmatpush.msra.mxu0 0.0
    %6852 = vmatpush.msra.mxu0 0.0
    %6853 = vmatpush.msra.mxu0 0.0
    %6854 = vmatpush.msra.mxu0 0.0
    %6855 = vmatpush.msra.mxu0 0.0
    %6856 = vmatpush.msra.mxu0 0.0
    %6857 = vmatpush.msra.mxu0 0.0
    %6858 = vmatpush.msra.mxu0 %v6836
    %6859 = vmatpush.msra.mxu0 %v6835
    %6860 = vmatpush.msra.mxu0 %v6834
    %6861 = vmatpush.msra.mxu0 %v6833
    %6862 = vmatpush.msra.mxu0 %v6832
    %6863 = vmatpush.msra.mxu0 %v6831
    %6864 = vmatpush.msra.mxu0 %v6830
    %6865 = vmatpush.msra.mxu0 %v6829
    %6866 = vmatmul.f32.gmra.mxu0 %v6844
    %v6867 = vpop.f32.mrf.mxu0
    %v6868 = vadd.f32 0.0, %v6867
    %6869 = vmatmul.f32.gmra.mxu0 %v6846
    %v6870 = vpop.f32.mrf.mxu0
    %v6871 = vadd.f32 0.0, %v6870
    %6872 = vmatmul.f32.gmra.mxu0 %v6848
    %v6873 = vpop.f32.mrf.mxu0
    %v6874 = vadd.f32 0.0, %v6873
    %6875 = vdwg.mxu0
    %v6876 = vadd.f32 %v6825, %v6868
    %v6877 = vadd.f32 %v6826, %v6871
    %v6878 = vadd.f32 %v6827, %v6874
    %s6879 = scalar_lea.vmem %s6, 256
    %v6880 = vld [vmem:[%s6879] sm:$0xff]
    %v6881 = vld [vmem:[%s6879 + $0x8] sm:$0xff]
    %v6882 = vld [vmem:[%s6879 + $0x10] sm:$0xff]
    %v6883 = vld [vmem:[%s6879 + $0x18] sm:$0xff]
    %v6884 = vld [vmem:[%s6879 + $0x20] sm:$0xff]
    %v6885 = vld [vmem:[%s6879 + $0x28] sm:$0xff]
    %v6886 = vld [vmem:[%s6879 + $0x30] sm:$0xff]
    %v6887 = vld [vmem:[%s6879 + $0x38] sm:$0xff]
    %v6889 = vsel %vm81, %v6651, 0
    %v6892 = vsel %vm81, %v6654, 0
    %v6895 = vsel %vm81, %v6657, 0
    %6897 = vmatpush.msra.mxu0 0.0
    %6898 = vmatpush.msra.mxu0 0.0
    %6899 = vmatpush.msra.mxu0 0.0
    %6900 = vmatpush.msra.mxu0 0.0
    %6901 = vmatpush.msra.mxu0 0.0
    %6902 = vmatpush.msra.mxu0 0.0
    %6903 = vmatpush.msra.mxu0 0.0
    %6904 = vmatpush.msra.mxu0 0.0
    %6905 = vmatpush.msra.mxu0 %v6887
    %6906 = vmatpush.msra.mxu0 %v6886
    %6907 = vmatpush.msra.mxu0 %v6885
    %6908 = vmatpush.msra.mxu0 %v6884
    %6909 = vmatpush.msra.mxu0 %v6883
    %6910 = vmatpush.msra.mxu0 %v6882
    %6911 = vmatpush.msra.mxu0 %v6881
    %6912 = vmatpush.msra.mxu0 %v6880
    %6913 = vmatmul.f32.gmra.mxu0 %v6889
    %v6914 = vpop.f32.mrf.mxu0
    %v6915 = vadd.f32 0.0, %v6914
    %6916 = vmatmul.f32.gmra.mxu0 %v6892
    %v6917 = vpop.f32.mrf.mxu0
    %v6918 = vadd.f32 0.0, %v6917
    %6919 = vmatmul.f32.gmra.mxu0 %v6895
    %v6920 = vpop.f32.mrf.mxu0
    %v6921 = vadd.f32 0.0, %v6920
    %6922 = vdwg.mxu0
    %v6923 = vadd.f32 %v6876, %v6915
    %v6924 = vadd.f32 %v6877, %v6918
    %v6925 = vadd.f32 %v6878, %v6921
    %s6926 = scalar_lea.vmem %s6, 320
    %v6927 = vld [vmem:[%s6926] sm:$0xff]
    %v6928 = vld [vmem:[%s6926 + $0x8] sm:$0xff]
    %v6929 = vld [vmem:[%s6926 + $0x10] sm:$0xff]
    %v6930 = vld [vmem:[%s6926 + $0x18] sm:$0xff]
    %v6931 = vld [vmem:[%s6926 + $0x20] sm:$0xff]
    %v6932 = vld [vmem:[%s6926 + $0x28] sm:$0xff]
    %v6933 = vld [vmem:[%s6926 + $0x30] sm:$0xff]
    %v6934 = vld [vmem:[%s6926 + $0x38] sm:$0xff]
    %v6937 = vrot.slane %v6657, 2
    %v6938 = vrot.slane %v6660, 2
    %v6939 = vsel %vm2957, %v6937, %v6938
    %v6940 = vrot.slane %v6663, 2
    %v6941 = vsel %vm2957, %v6938, %v6940
    %v6942 = vsel %vm81, %v6939, 0
    %v6944 = vsel %vm81, %v6941, 0
    %v6946 = vsel %vm81, %v6940, 0
    %6948 = vmatpush.msra.mxu0 0.0
    %6949 = vmatpush.msra.mxu0 0.0
    %6950 = vmatpush.msra.mxu0 0.0
    %6951 = vmatpush.msra.mxu0 0.0
    %6952 = vmatpush.msra.mxu0 0.0
    %6953 = vmatpush.msra.mxu0 0.0
    %6954 = vmatpush.msra.mxu0 0.0
    %6955 = vmatpush.msra.mxu0 0.0
    %6956 = vmatpush.msra.mxu0 %v6934
    %6957 = vmatpush.msra.mxu0 %v6933
    %6958 = vmatpush.msra.mxu0 %v6932
    %6959 = vmatpush.msra.mxu0 %v6931
    %6960 = vmatpush.msra.mxu0 %v6930
    %6961 = vmatpush.msra.mxu0 %v6929
    %6962 = vmatpush.msra.mxu0 %v6928
    %6963 = vmatpush.msra.mxu0 %v6927
    %6964 = vmatmul.f32.gmra.mxu0 %v6942
    %v6965 = vpop.f32.mrf.mxu0
    %v6966 = vadd.f32 0.0, %v6965
    %6967 = vmatmul.f32.gmra.mxu0 %v6944
    %v6968 = vpop.f32.mrf.mxu0
    %v6969 = vadd.f32 0.0, %v6968
    %6970 = vmatmul.f32.gmra.mxu0 %v6946
    %v6971 = vpop.f32.mrf.mxu0
    %v6972 = vadd.f32 0.0, %v6971
    %6973 = vdwg.mxu0
    %v6974 = vadd.f32 %v6923, %v6966
    %v6975 = vadd.f32 %v6924, %v6969
    %v6976 = vadd.f32 %v6925, %v6972
    %s6977 = scalar_lea.vmem %s6, 384
    %v6978 = vld [vmem:[%s6977] sm:$0xff]
    %v6979 = vld [vmem:[%s6977 + $0x8] sm:$0xff]
    %v6980 = vld [vmem:[%s6977 + $0x10] sm:$0xff]
    %v6981 = vld [vmem:[%s6977 + $0x18] sm:$0xff]
    %v6982 = vld [vmem:[%s6977 + $0x20] sm:$0xff]
    %v6983 = vld [vmem:[%s6977 + $0x28] sm:$0xff]
    %v6984 = vld [vmem:[%s6977 + $0x30] sm:$0xff]
    %v6985 = vld [vmem:[%s6977 + $0x38] sm:$0xff]
    %v6988 = vrot.slane %v6663, 4
    %v6989 = vrot.slane %v6666, 4
    %v6990 = vsel %vm1800, %v6988, %v6989
    %v6991 = vrot.slane %v6669, 4
    %v6992 = vsel %vm1800, %v6989, %v6991
    %v6993 = vsel %vm81, %v6990, 0
    %v6995 = vsel %vm81, %v6992, 0
    %v6997 = vsel %vm81, %v6991, 0
    %6999 = vmatpush.msra.mxu0 0.0
    %7000 = vmatpush.msra.mxu0 0.0
    %7001 = vmatpush.msra.mxu0 0.0
    %7002 = vmatpush.msra.mxu0 0.0
    %7003 = vmatpush.msra.mxu0 0.0
    %7004 = vmatpush.msra.mxu0 0.0
    %7005 = vmatpush.msra.mxu0 0.0
    %7006 = vmatpush.msra.mxu0 0.0
    %7007 = vmatpush.msra.mxu0 %v6985
    %7008 = vmatpush.msra.mxu0 %v6984
    %7009 = vmatpush.msra.mxu0 %v6983
    %7010 = vmatpush.msra.mxu0 %v6982
    %7011 = vmatpush.msra.mxu0 %v6981
    %7012 = vmatpush.msra.mxu0 %v6980
    %7013 = vmatpush.msra.mxu0 %v6979
    %7014 = vmatpush.msra.mxu0 %v6978
    %7015 = vmatmul.f32.gmra.mxu0 %v6993
    %v7016 = vpop.f32.mrf.mxu0
    %v7017 = vadd.f32 0.0, %v7016
    %7018 = vmatmul.f32.gmra.mxu0 %v6995
    %v7019 = vpop.f32.mrf.mxu0
    %v7020 = vadd.f32 0.0, %v7019
    %7021 = vmatmul.f32.gmra.mxu0 %v6997
    %v7022 = vpop.f32.mrf.mxu0
    %v7023 = vadd.f32 0.0, %v7022
    %7024 = vdwg.mxu0
    %v7025 = vadd.f32 %v6974, %v7017
    %v7026 = vadd.f32 %v6975, %v7020
    %v7027 = vadd.f32 %v6976, %v7023
    %s7028 = scalar_lea.vmem %s6, 448
    %v7029 = vld [vmem:[%s7028] sm:$0xff]
    %v7030 = vld [vmem:[%s7028 + $0x8] sm:$0xff]
    %v7031 = vld [vmem:[%s7028 + $0x10] sm:$0xff]
    %v7032 = vld [vmem:[%s7028 + $0x18] sm:$0xff]
    %v7033 = vld [vmem:[%s7028 + $0x20] sm:$0xff]
    %v7034 = vld [vmem:[%s7028 + $0x28] sm:$0xff]
    %v7035 = vld [vmem:[%s7028 + $0x30] sm:$0xff]
    %v7036 = vld [vmem:[%s7028 + $0x38] sm:$0xff]
    %v7039 = vrot.slane %v6669, 6
    %v7040 = vrot.slane %v6672, 6
    %v7041 = vsel %vm3842, %v7039, %v7040
    %v7042 = vrot.slane %v6675, 6
    %v7043 = vsel %vm3842, %v7040, %v7042
    %v7044 = vsel %vm81, %v7041, 0
    %v7046 = vsel %vm81, %v7043, 0
    %v7048 = vsel %vm81, %v7042, 0
    %7050 = vmatpush.msra.mxu0 0.0
    %7051 = vmatpush.msra.mxu0 0.0
    %7052 = vmatpush.msra.mxu0 0.0
    %7053 = vmatpush.msra.mxu0 0.0
    %7054 = vmatpush.msra.mxu0 0.0
    %7055 = vmatpush.msra.mxu0 0.0
    %7056 = vmatpush.msra.mxu0 0.0
    %7057 = vmatpush.msra.mxu0 0.0
    %7058 = vmatpush.msra.mxu0 %v7036
    %7059 = vmatpush.msra.mxu0 %v7035
    %7060 = vmatpush.msra.mxu0 %v7034
    %7061 = vmatpush.msra.mxu0 %v7033
    %7062 = vmatpush.msra.mxu0 %v7032
    %7063 = vmatpush.msra.mxu0 %v7031
    %7064 = vmatpush.msra.mxu0 %v7030
    %7065 = vmatpush.msra.mxu0 %v7029
    %7066 = vmatmul.f32.gmra.mxu0 %v7044
    %v7067 = vpop.f32.mrf.mxu0
    %v7068 = vadd.f32 0.0, %v7067
    %7069 = vmatmul.f32.gmra.mxu0 %v7046
    %v7070 = vpop.f32.mrf.mxu0
    %v7071 = vadd.f32 0.0, %v7070
    %7072 = vmatmul.f32.gmra.mxu0 %v7048
    %v7073 = vpop.f32.mrf.mxu0
    %v7074 = vadd.f32 0.0, %v7073
    %7075 = vdwg.mxu0
    %v7076 = vadd.f32 %v7025, %v7068
    %v7077 = vadd.f32 %v7026, %v7071
    %v7078 = vadd.f32 %v7027, %v7074
    %s7079 = scalar_lea.vmem %s6, 512
    %v7080 = vld [vmem:[%s7079] sm:$0xff]
    %v7081 = vld [vmem:[%s7079 + $0x8] sm:$0xff]
    %v7082 = vld [vmem:[%s7079 + $0x10] sm:$0xff]
    %v7083 = vld [vmem:[%s7079 + $0x18] sm:$0xff]
    %v7084 = vld [vmem:[%s7079 + $0x20] sm:$0xff]
    %v7085 = vld [vmem:[%s7079 + $0x28] sm:$0xff]
    %v7086 = vld [vmem:[%s7079 + $0x30] sm:$0xff]
    %v7087 = vld [vmem:[%s7079 + $0x38] sm:$0xff]
    %v7089 = vsel %vm81, %v6678, 0
    %v7092 = vsel %vm81, %v6681, 0
    %v7095 = vsel %vm81, %v6684, 0
    %7097 = vmatpush.msra.mxu0 0.0
    %7098 = vmatpush.msra.mxu0 0.0
    %7099 = vmatpush.msra.mxu0 0.0
    %7100 = vmatpush.msra.mxu0 0.0
    %7101 = vmatpush.msra.mxu0 0.0
    %7102 = vmatpush.msra.mxu0 0.0
    %7103 = vmatpush.msra.mxu0 0.0
    %7104 = vmatpush.msra.mxu0 0.0
    %7105 = vmatpush.msra.mxu0 %v7087
    %7106 = vmatpush.msra.mxu0 %v7086
    %7107 = vmatpush.msra.mxu0 %v7085
    %7108 = vmatpush.msra.mxu0 %v7084
    %7109 = vmatpush.msra.mxu0 %v7083
    %7110 = vmatpush.msra.mxu0 %v7082
    %7111 = vmatpush.msra.mxu0 %v7081
    %7112 = vmatpush.msra.mxu0 %v7080
    %7113 = vmatmul.f32.gmra.mxu0 %v7089
    %v7114 = vpop.f32.mrf.mxu0
    %v7115 = vadd.f32 0.0, %v7114
    %7116 = vmatmul.f32.gmra.mxu0 %v7092
    %v7117 = vpop.f32.mrf.mxu0
    %v7118 = vadd.f32 0.0, %v7117
    %7119 = vmatmul.f32.gmra.mxu0 %v7095
    %v7120 = vpop.f32.mrf.mxu0
    %v7121 = vadd.f32 0.0, %v7120
    %7122 = vdwg.mxu0
    %v7123 = vadd.f32 %v7076, %v7115
    %v7124 = vadd.f32 %v7077, %v7118
    %v7125 = vadd.f32 %v7078, %v7121
    %v7126 = vld [vmem:[%s7] sm:$0x1]
    %v7128 = vperm.slane %v7126, 0
    %v7130 = vadd.f32 %v7123, %v7128
    %v7131 = vadd.f32 %v7124, %v7128
    %v7132 = vadd.f32 %v7125, %v7128
    %v7133 = vmax.f32 %v7130, 0.0
    %v7134 = vmax.f32 %v7131, 0.0
    %v7135 = vmax.f32 %v7132, 0.0
    %v7136 = vld [vmem:[%s8] sm:$0xff]
    %v7137 = vld [vmem:[%s8 + $0x8] sm:$0xff]
    %v7138 = vld [vmem:[%s8 + $0x10] sm:$0xff]
    %v7139 = vld [vmem:[%s8 + $0x18] sm:$0xff]
    %v7140 = vld [vmem:[%s8 + $0x20] sm:$0xff]
    %v7141 = vld [vmem:[%s8 + $0x28] sm:$0xff]
    %v7142 = vld [vmem:[%s8 + $0x30] sm:$0xff]
    %v7143 = vld [vmem:[%s8 + $0x38] sm:$0xff]
    %s7144 = scalar_lea.vmem %s8, 64
    %v7145 = vld [vmem:[%s7144] sm:$0xff]
    %v7146 = vld [vmem:[%s7144 + $0x8] sm:$0xff]
    %v7147 = vld [vmem:[%s7144 + $0x10] sm:$0xff]
    %v7148 = vld [vmem:[%s7144 + $0x18] sm:$0xff]
    %v7149 = vld [vmem:[%s7144 + $0x20] sm:$0xff]
    %v7150 = vld [vmem:[%s7144 + $0x28] sm:$0xff]
    %v7151 = vld [vmem:[%s7144 + $0x30] sm:$0xff]
    %v7152 = vld [vmem:[%s7144 + $0x38] sm:$0xff]
    %v7154 = vrot.slane %v7133, 2
    %v7155 = vsel %vm81, %v7154, 0
    %7157 = vmatpush.msra.mxu0 0.0
    %7158 = vmatpush.msra.mxu0 0.0
    %7159 = vmatpush.msra.mxu0 0.0
    %7160 = vmatpush.msra.mxu0 0.0
    %7161 = vmatpush.msra.mxu0 0.0
    %7162 = vmatpush.msra.mxu0 0.0
    %7163 = vmatpush.msra.mxu0 0.0
    %7164 = vmatpush.msra.mxu0 0.0
    %7165 = vmatpush.msra.mxu0 %v7152
    %7166 = vmatpush.msra.mxu0 %v7151
    %7167 = vmatpush.msra.mxu0 %v7150
    %7168 = vmatpush.msra.mxu0 %v7149
    %7169 = vmatpush.msra.mxu0 %v7148
    %7170 = vmatpush.msra.mxu0 %v7147
    %7171 = vmatpush.msra.mxu0 %v7146
    %7172 = vmatpush.msra.mxu0 %v7145
    %7173 = vmatmul.f32.gmra.mxu0 %v7155
    %v7174 = vpop.f32.mrf.mxu0
    %v7175 = vadd.f32 0.0, %v7174
    %7176 = vdwg.mxu0
    %v7177 = vsel %vm81, %v7133, 0
    %7179 = vmatpush.msra.mxu0 0.0
    %7180 = vmatpush.msra.mxu0 0.0
    %7181 = vmatpush.msra.mxu0 0.0
    %7182 = vmatpush.msra.mxu0 0.0
    %7183 = vmatpush.msra.mxu0 0.0
    %7184 = vmatpush.msra.mxu0 0.0
    %7185 = vmatpush.msra.mxu0 0.0
    %7186 = vmatpush.msra.mxu0 0.0
    %7187 = vmatpush.msra.mxu0 %v7143
    %7188 = vmatpush.msra.mxu0 %v7142
    %7189 = vmatpush.msra.mxu0 %v7141
    %7190 = vmatpush.msra.mxu0 %v7140
    %7191 = vmatpush.msra.mxu0 %v7139
    %7192 = vmatpush.msra.mxu0 %v7138
    %7193 = vmatpush.msra.mxu0 %v7137
    %7194 = vmatpush.msra.mxu0 %v7136
    %7195 = vmatmul.f32.gmra.mxu0 %v7177
    %v7196 = vpop.f32.mrf.mxu0
    %v7197 = vadd.f32 %v7175, %v7196
    %7198 = vdwg.mxu0
    %s7199 = scalar_lea.vmem %s8, 128
    %v7200 = vld [vmem:[%s7199] sm:$0xff]
    %v7201 = vld [vmem:[%s7199 + $0x8] sm:$0xff]
    %v7202 = vld [vmem:[%s7199 + $0x10] sm:$0xff]
    %v7203 = vld [vmem:[%s7199 + $0x18] sm:$0xff]
    %v7204 = vld [vmem:[%s7199 + $0x20] sm:$0xff]
    %v7205 = vld [vmem:[%s7199 + $0x28] sm:$0xff]
    %v7206 = vld [vmem:[%s7199 + $0x30] sm:$0xff]
    %v7207 = vld [vmem:[%s7199 + $0x38] sm:$0xff]
    %v7208 = vrot.slane %v7133, 4
    %v7209 = vsel %vm81, %v7208, 0
    %7211 = vmatpush.msra.mxu0 0.0
    %7212 = vmatpush.msra.mxu0 0.0
    %7213 = vmatpush.msra.mxu0 0.0
    %7214 = vmatpush.msra.mxu0 0.0
    %7215 = vmatpush.msra.mxu0 0.0
    %7216 = vmatpush.msra.mxu0 0.0
    %7217 = vmatpush.msra.mxu0 0.0
    %7218 = vmatpush.msra.mxu0 0.0
    %7219 = vmatpush.msra.mxu0 %v7207
    %7220 = vmatpush.msra.mxu0 %v7206
    %7221 = vmatpush.msra.mxu0 %v7205
    %7222 = vmatpush.msra.mxu0 %v7204
    %7223 = vmatpush.msra.mxu0 %v7203
    %7224 = vmatpush.msra.mxu0 %v7202
    %7225 = vmatpush.msra.mxu0 %v7201
    %7226 = vmatpush.msra.mxu0 %v7200
    %7227 = vmatmul.f32.gmra.mxu0 %v7209
    %v7228 = vpop.f32.mrf.mxu0
    %v7229 = vadd.f32 0.0, %v7228
    %7230 = vdwg.mxu0
    %v7231 = vadd.f32 %v7197, %v7229
    %s7232 = scalar_lea.vmem %s8, 192
    %v7233 = vld [vmem:[%s7232] sm:$0xff]
    %v7234 = vld [vmem:[%s7232 + $0x8] sm:$0xff]
    %v7235 = vld [vmem:[%s7232 + $0x10] sm:$0xff]
    %v7236 = vld [vmem:[%s7232 + $0x18] sm:$0xff]
    %v7237 = vld [vmem:[%s7232 + $0x20] sm:$0xff]
    %v7238 = vld [vmem:[%s7232 + $0x28] sm:$0xff]
    %v7239 = vld [vmem:[%s7232 + $0x30] sm:$0xff]
    %v7240 = vld [vmem:[%s7232 + $0x38] sm:$0xff]
    %v7241 = vrot.slane %v7133, 6
    %v7242 = vsel %vm81, %v7241, 0
    %7244 = vmatpush.msra.mxu0 0.0
    %7245 = vmatpush.msra.mxu0 0.0
    %7246 = vmatpush.msra.mxu0 0.0
    %7247 = vmatpush.msra.mxu0 0.0
    %7248 = vmatpush.msra.mxu0 0.0
    %7249 = vmatpush.msra.mxu0 0.0
    %7250 = vmatpush.msra.mxu0 0.0
    %7251 = vmatpush.msra.mxu0 0.0
    %7252 = vmatpush.msra.mxu0 %v7240
    %7253 = vmatpush.msra.mxu0 %v7239
    %7254 = vmatpush.msra.mxu0 %v7238
    %7255 = vmatpush.msra.mxu0 %v7237
    %7256 = vmatpush.msra.mxu0 %v7236
    %7257 = vmatpush.msra.mxu0 %v7235
    %7258 = vmatpush.msra.mxu0 %v7234
    %7259 = vmatpush.msra.mxu0 %v7233
    %7260 = vmatmul.f32.gmra.mxu0 %v7242
    %v7261 = vpop.f32.mrf.mxu0
    %v7262 = vadd.f32 0.0, %v7261
    %7263 = vdwg.mxu0
    %v7264 = vadd.f32 %v7231, %v7262
    %s7265 = scalar_lea.vmem %s8, 256
    %v7266 = vld [vmem:[%s7265] sm:$0xff]
    %v7267 = vld [vmem:[%s7265 + $0x8] sm:$0xff]
    %v7268 = vld [vmem:[%s7265 + $0x10] sm:$0xff]
    %v7269 = vld [vmem:[%s7265 + $0x18] sm:$0xff]
    %v7270 = vld [vmem:[%s7265 + $0x20] sm:$0xff]
    %v7271 = vld [vmem:[%s7265 + $0x28] sm:$0xff]
    %v7272 = vld [vmem:[%s7265 + $0x30] sm:$0xff]
    %v7273 = vld [vmem:[%s7265 + $0x38] sm:$0xff]
    %v7275 = vsel %vm81, %v7134, 0
    %7277 = vmatpush.msra.mxu0 0.0
    %7278 = vmatpush.msra.mxu0 0.0
    %7279 = vmatpush.msra.mxu0 0.0
    %7280 = vmatpush.msra.mxu0 0.0
    %7281 = vmatpush.msra.mxu0 0.0
    %7282 = vmatpush.msra.mxu0 0.0
    %7283 = vmatpush.msra.mxu0 0.0
    %7284 = vmatpush.msra.mxu0 0.0
    %7285 = vmatpush.msra.mxu0 %v7273
    %7286 = vmatpush.msra.mxu0 %v7272
    %7287 = vmatpush.msra.mxu0 %v7271
    %7288 = vmatpush.msra.mxu0 %v7270
    %7289 = vmatpush.msra.mxu0 %v7269
    %7290 = vmatpush.msra.mxu0 %v7268
    %7291 = vmatpush.msra.mxu0 %v7267
    %7292 = vmatpush.msra.mxu0 %v7266
    %7293 = vmatmul.f32.gmra.mxu0 %v7275
    %v7294 = vpop.f32.mrf.mxu0
    %v7295 = vadd.f32 0.0, %v7294
    %7296 = vdwg.mxu0
    %v7297 = vadd.f32 %v7264, %v7295
    %s7298 = scalar_lea.vmem %s8, 320
    %v7299 = vld [vmem:[%s7298] sm:$0xff]
    %v7300 = vld [vmem:[%s7298 + $0x8] sm:$0xff]
    %v7301 = vld [vmem:[%s7298 + $0x10] sm:$0xff]
    %v7302 = vld [vmem:[%s7298 + $0x18] sm:$0xff]
    %v7303 = vld [vmem:[%s7298 + $0x20] sm:$0xff]
    %v7304 = vld [vmem:[%s7298 + $0x28] sm:$0xff]
    %v7305 = vld [vmem:[%s7298 + $0x30] sm:$0xff]
    %v7306 = vld [vmem:[%s7298 + $0x38] sm:$0xff]
    %v7307 = vrot.slane %v7134, 2
    %v7308 = vsel %vm81, %v7307, 0
    %7310 = vmatpush.msra.mxu0 0.0
    %7311 = vmatpush.msra.mxu0 0.0
    %7312 = vmatpush.msra.mxu0 0.0
    %7313 = vmatpush.msra.mxu0 0.0
    %7314 = vmatpush.msra.mxu0 0.0
    %7315 = vmatpush.msra.mxu0 0.0
    %7316 = vmatpush.msra.mxu0 0.0
    %7317 = vmatpush.msra.mxu0 0.0
    %7318 = vmatpush.msra.mxu0 %v7306
    %7319 = vmatpush.msra.mxu0 %v7305
    %7320 = vmatpush.msra.mxu0 %v7304
    %7321 = vmatpush.msra.mxu0 %v7303
    %7322 = vmatpush.msra.mxu0 %v7302
    %7323 = vmatpush.msra.mxu0 %v7301
    %7324 = vmatpush.msra.mxu0 %v7300
    %7325 = vmatpush.msra.mxu0 %v7299
    %7326 = vmatmul.f32.gmra.mxu0 %v7308
    %v7327 = vpop.f32.mrf.mxu0
    %v7328 = vadd.f32 0.0, %v7327
    %7329 = vdwg.mxu0
    %v7330 = vadd.f32 %v7297, %v7328
    %s7331 = scalar_lea.vmem %s8, 384
    %v7332 = vld [vmem:[%s7331] sm:$0xff]
    %v7333 = vld [vmem:[%s7331 + $0x8] sm:$0xff]
    %v7334 = vld [vmem:[%s7331 + $0x10] sm:$0xff]
    %v7335 = vld [vmem:[%s7331 + $0x18] sm:$0xff]
    %v7336 = vld [vmem:[%s7331 + $0x20] sm:$0xff]
    %v7337 = vld [vmem:[%s7331 + $0x28] sm:$0xff]
    %v7338 = vld [vmem:[%s7331 + $0x30] sm:$0xff]
    %v7339 = vld [vmem:[%s7331 + $0x38] sm:$0xff]
    %v7340 = vrot.slane %v7134, 4
    %v7341 = vsel %vm81, %v7340, 0
    %7343 = vmatpush.msra.mxu0 0.0
    %7344 = vmatpush.msra.mxu0 0.0
    %7345 = vmatpush.msra.mxu0 0.0
    %7346 = vmatpush.msra.mxu0 0.0
    %7347 = vmatpush.msra.mxu0 0.0
    %7348 = vmatpush.msra.mxu0 0.0
    %7349 = vmatpush.msra.mxu0 0.0
    %7350 = vmatpush.msra.mxu0 0.0
    %7351 = vmatpush.msra.mxu0 %v7339
    %7352 = vmatpush.msra.mxu0 %v7338
    %7353 = vmatpush.msra.mxu0 %v7337
    %7354 = vmatpush.msra.mxu0 %v7336
    %7355 = vmatpush.msra.mxu0 %v7335
    %7356 = vmatpush.msra.mxu0 %v7334
    %7357 = vmatpush.msra.mxu0 %v7333
    %7358 = vmatpush.msra.mxu0 %v7332
    %7359 = vmatmul.f32.gmra.mxu0 %v7341
    %v7360 = vpop.f32.mrf.mxu0
    %v7361 = vadd.f32 0.0, %v7360
    %7362 = vdwg.mxu0
    %v7363 = vadd.f32 %v7330, %v7361
    %s7364 = scalar_lea.vmem %s8, 448
    %v7365 = vld [vmem:[%s7364] sm:$0xff]
    %v7366 = vld [vmem:[%s7364 + $0x8] sm:$0xff]
    %v7367 = vld [vmem:[%s7364 + $0x10] sm:$0xff]
    %v7368 = vld [vmem:[%s7364 + $0x18] sm:$0xff]
    %v7369 = vld [vmem:[%s7364 + $0x20] sm:$0xff]
    %v7370 = vld [vmem:[%s7364 + $0x28] sm:$0xff]
    %v7371 = vld [vmem:[%s7364 + $0x30] sm:$0xff]
    %v7372 = vld [vmem:[%s7364 + $0x38] sm:$0xff]
    %v7373 = vrot.slane %v7134, 6
    %v7374 = vsel %vm81, %v7373, 0
    %7376 = vmatpush.msra.mxu0 0.0
    %7377 = vmatpush.msra.mxu0 0.0
    %7378 = vmatpush.msra.mxu0 0.0
    %7379 = vmatpush.msra.mxu0 0.0
    %7380 = vmatpush.msra.mxu0 0.0
    %7381 = vmatpush.msra.mxu0 0.0
    %7382 = vmatpush.msra.mxu0 0.0
    %7383 = vmatpush.msra.mxu0 0.0
    %7384 = vmatpush.msra.mxu0 %v7372
    %7385 = vmatpush.msra.mxu0 %v7371
    %7386 = vmatpush.msra.mxu0 %v7370
    %7387 = vmatpush.msra.mxu0 %v7369
    %7388 = vmatpush.msra.mxu0 %v7368
    %7389 = vmatpush.msra.mxu0 %v7367
    %7390 = vmatpush.msra.mxu0 %v7366
    %7391 = vmatpush.msra.mxu0 %v7365
    %7392 = vmatmul.f32.gmra.mxu0 %v7374
    %v7393 = vpop.f32.mrf.mxu0
    %v7394 = vadd.f32 0.0, %v7393
    %7395 = vdwg.mxu0
    %v7396 = vadd.f32 %v7363, %v7394
    %s7397 = scalar_lea.vmem %s8, 512
    %v7398 = vld [vmem:[%s7397] sm:$0xff]
    %v7399 = vld [vmem:[%s7397 + $0x8] sm:$0xff]
    %v7400 = vld [vmem:[%s7397 + $0x10] sm:$0xff]
    %v7401 = vld [vmem:[%s7397 + $0x18] sm:$0xff]
    %v7402 = vld [vmem:[%s7397 + $0x20] sm:$0xff]
    %v7403 = vld [vmem:[%s7397 + $0x28] sm:$0xff]
    %v7404 = vld [vmem:[%s7397 + $0x30] sm:$0xff]
    %v7405 = vld [vmem:[%s7397 + $0x38] sm:$0xff]
    %v7407 = vsel %vm81, %v7135, 0
    %7409 = vmatpush.msra.mxu0 0.0
    %7410 = vmatpush.msra.mxu0 0.0
    %7411 = vmatpush.msra.mxu0 0.0
    %7412 = vmatpush.msra.mxu0 0.0
    %7413 = vmatpush.msra.mxu0 0.0
    %7414 = vmatpush.msra.mxu0 0.0
    %7415 = vmatpush.msra.mxu0 0.0
    %7416 = vmatpush.msra.mxu0 0.0
    %7417 = vmatpush.msra.mxu0 %v7405
    %7418 = vmatpush.msra.mxu0 %v7404
    %7419 = vmatpush.msra.mxu0 %v7403
    %7420 = vmatpush.msra.mxu0 %v7402
    %7421 = vmatpush.msra.mxu0 %v7401
    %7422 = vmatpush.msra.mxu0 %v7400
    %7423 = vmatpush.msra.mxu0 %v7399
    %7424 = vmatpush.msra.mxu0 %v7398
    %7425 = vmatmul.f32.gmra.mxu0 %v7407
    %v7426 = vpop.f32.mrf.mxu0
    %v7427 = vadd.f32 0.0, %v7426
    %7428 = vdwg.mxu0
    %v7429 = vadd.f32 %v7396, %v7427
    %v7430 = vld [vmem:[%s9] sm:$0x1]
    %v7432 = vperm.slane %v7430, 0
    %v7434 = vadd.f32 %v7429, %v7432
    %v7435 = vmax.f32 %v7434, 0.0
    %vm7436 = vcmask 517120
    %7437 = vst.msk [vmem:[#allocation2] sm:$0x3] %vm7436, %v7435
    // Predicated region
    $region62: #{perception_forward.3} parent=1 // pred_check
      _
    $region63: #{perception_forward.3} parent=1 // pred_check_branch
      %7439 = sbr.rel (0) target = $region65
    $region64: #{perception_forward.3} parent=1 // pred_region
      %7441 = vsyncadd [#allocation3], 0
      %s7443 = sshll.u32 [#allocation2], 4
      %s7444 = int_to_ptr.vmem [resolvable:$true] %s7443
      %s7445 = sshll.u32 %s15, 4
      %s7446 = int_to_ptr.hbm [resolvable:$true] %s7445
      %7448 = dma.vmem_to_hbm [thread:$0]  %s7444, 32, %s7446, [#allocation3]
    $region65: #{perception_forward.3} parent=1 // pred_fallthru
      _
    // Predicated region
    $region66: #{perception_forward.3} parent=1 // pred_check
      _
    $region67: #{perception_forward.3} parent=1 // pred_check_branch
      %7450 = sbr.rel (0) target = $region69
    $region68: #{perception_forward.3} parent=1 // pred_region
      %7452 = dma.done [#allocation3], 32
    $region69: #{perception_forward.3} parent=1 // pred_fallthru
      _
    %7453 = vsyncpa [#allocation3], 1

</llo_original>
